<compile_context>
chip_gen: v7x
topology: tpu7x:2x2x1
jax: 0.10.0
libtpu: 0.0.40
codegen_flags: <defaults>
</compile_context>

<pallas_src>
import jax
import jax.numpy as jnp
from jax.experimental import pallas as pl
from jax.experimental.pallas import tpu as pltpu

C = 488            # channels (fixed by the module)
H = W = 7          # spatial size (from x343)
HW = H * W         # 49 valid pixels
CP = 512           # C padded to a multiple of 128 (sublane axis here)
LP = 128           # HW padded to one full lane width (lane axis)
EPS = 1e-5


def fused_kernel(x_ref, w1_ref, par_ref, w3_hbm_ref, o_ref, w3_vmem, w3_sem):
    f32 = jnp.float32
    inv_hw = 1.0 / HW

    # ---- start the w3 weight DMA (HBM -> VMEM) immediately; it is only needed
    # by the very last matmul, so it hides behind BN1 / depthwise / BN2.
    w3_copy = pltpu.make_async_copy(w3_hbm_ref, w3_vmem, w3_sem)
    w3_copy.start()

    # ---- pixel-lane masks built in-kernel (lane iota + compares, no DMA).
    lane_i = jax.lax.broadcasted_iota(jnp.int32, (1, LP), 1)
    lane_f = lane_i.astype(f32)
    # column index w = lane % 7, computed exactly in f32 for lane < 128.
    col = lane_f - jnp.floor(lane_f * (1.0 / W)) * W
    valid = lane_i < HW
    vmask = jnp.where(valid, 1.0, 0.0).astype(f32)                      # valid pixels
    mask_wp = jnp.where(valid & (col > 0.5), 1.0, 0.0).astype(f32)      # valid & w != 0
    mask_wm = jnp.where(valid & (col < W - 1.5), 1.0, 0.0).astype(f32)  # valid & w != W-1

    # packed per-channel parameters: cols 0..8 = depthwise taps, 9..12 = BN.
    g1 = par_ref[:, 9:10]
    b1 = par_ref[:, 10:11]
    g2 = par_ref[:, 11:12]
    b2 = par_ref[:, 12:13]

    # ---- conv2d52: 1x1 conv == channel matmul on the MXU (bf16 in, f32 acc) ----
    y1 = jnp.dot(w1_ref[...], x_ref[...], preferred_element_type=f32)   # (CP, LP)

    # ---- batchnorm2d52 (training-mode batch stats over 49 pixels) + relu ----
    # Padded pixel lanes of y1 are exactly zero (zero input lanes), so the plain
    # sum / 49 is the correct per-channel mean.  Variance is two-pass (masked).
    mean1 = jnp.sum(y1, axis=1, keepdims=True) * inv_hw                 # (CP, 1)
    c1m = (y1 - mean1) * vmask
    var1 = jnp.sum(c1m * c1m, axis=1, keepdims=True) * inv_hw
    s1 = jax.lax.rsqrt(var1 + EPS) * g1            # folded BN scale (CP,1)
    z1 = jnp.maximum(c1m * s1 + b1, 0.0) * vmask   # zero padded lanes -> safe rolls
    z1_wp = z1 * mask_wp            # source for dw=+1 taps (kills wrap at w==0)
    z1_wm = z1 * mask_wm            # source for dw=-1 taps (kills wrap at w==W-1)

    # ---- conv2d53: depthwise 3x3, pad=1, as 9 lane rolls + per-channel FMA ----
    # shifted[c, p] = src[c, p + dh*W + dw]; out-of-image taps land on zeroed
    # padding lanes or pre-masked source columns, so they contribute 0.
    # Two running accumulators keep the live set small (vs. a 9-term tree).
    acc_a = None
    acc_b = None
    taps = [(dh, dw) for dh in (-1, 0, 1) for dw in (-1, 0, 1)]
    for tap, (dh, dw) in enumerate(taps):
        src = z1_wp if dw == 1 else (z1_wm if dw == -1 else z1)
        d = dh * W + dw
        shifted = src if d == 0 else pltpu.roll(src, shift=(-d) % LP, axis=1)
        term = shifted * par_ref[:, tap:tap + 1]
        if tap % 2 == 0:
            acc_a = term if acc_a is None else acc_a + term
        else:
            acc_b = term if acc_b is None else acc_b + term
    acc = (acc_a + acc_b) * vmask   # keep padded pixel lanes at 0 for BN2 stats

    # ---- batchnorm2d53 (training-mode batch stats) ----
    mean2 = jnp.sum(acc, axis=1, keepdims=True) * inv_hw
    c2m = (acc - mean2) * vmask
    var2 = jnp.sum(c2m * c2m, axis=1, keepdims=True) * inv_hw
    s2 = jax.lax.rsqrt(var2 + EPS) * g2
    z2 = (c2m * s2 + b2).astype(jnp.bfloat16)

    # ---- conv2d54: 1x1 conv; w3 arrives via the async copy started above ----
    w3_copy.wait()
    o_ref[...] = jnp.dot(w3_vmem[...], z2,
                         preferred_element_type=f32).astype(o_ref.dtype)


def _pad2(a, rows, cols):
    out = jnp.zeros((rows, cols), a.dtype)
    return out.at[: a.shape[0], : a.shape[1]].set(a)


def prepare_params(w1, g1, b1, wd, g2, b2, w3):
    """One-time weight padding / casting, hoisted out of the per-call path."""
    w1_p = _pad2(w1, CP, CP).astype(jnp.bfloat16)        # (Cout, Cin) bf16
    w3_p = _pad2(w3, CP, CP).astype(jnp.bfloat16)        # (Cout, Cin) bf16
    par = jnp.zeros((CP, 16), jnp.float32)               # taps + BN params packed
    par = par.at[:C, 0:9].set(wd.reshape(C, 9))
    par = par.at[:C, 9].set(g1)
    par = par.at[:C, 10].set(b1)
    par = par.at[:C, 11].set(g2)
    par = par.at[:C, 12].set(b2)
    return w1_p, par, w3_p


_COST = pl.CostEstimate(
    flops=2 * 2 * CP * CP * LP + 2 * 9 * CP * LP,        # two 1x1 convs + depthwise
    transcendentals=2 * CP,                              # two rsqrt of (CP,1)
    bytes_accessed=(CP * LP * 2                          # x (bf16)
                    + 2 * CP * CP * 2                    # w1 + w3 (bf16)
                    + CP * 16 * 4                        # packed params (f32)
                    + CP * LP * 2))                      # output (bf16)


@jax.jit
def forward(x_nchw, w1_p, par_p, w3_p):
    # NCHW -> (C, HW) channels-on-sublanes layout, pad to (CP, LP), bf16 MXU input.
    x_cp = jnp.zeros((CP, LP), jnp.bfloat16).at[:C, :HW].set(
        x_nchw[0].reshape(C, HW).astype(jnp.bfloat16))

    out_p = pl.pallas_call(
        fused_kernel,
        out_shape=jax.ShapeDtypeStruct((CP, LP), jnp.bfloat16),
        in_specs=[
            pl.BlockSpec(memory_space=pltpu.MemorySpace.VMEM),   # x
            pl.BlockSpec(memory_space=pltpu.MemorySpace.VMEM),   # w1
            pl.BlockSpec(memory_space=pltpu.MemorySpace.VMEM),   # packed taps + BN
            pl.BlockSpec(memory_space=pl.ANY),                   # w3 (stays in HBM)
        ],
        out_specs=pl.BlockSpec(memory_space=pltpu.MemorySpace.VMEM),
        scratch_shapes=[
            pltpu.VMEM((CP, CP), jnp.bfloat16),   # w3 landing buffer
            pltpu.SemaphoreType.DMA,              # its completion semaphore
        ],
        cost_estimate=_COST,
    )(x_cp, w1_p, par_p, w3_p)

    # Back to NCHW: (CP, LP) -> (C, HW) -> (1, C, H, W).  No transpose needed.
    return out_p[:C, :HW].astype(jnp.float32).reshape(1, C, H, W)


def reference(x, w1, g1, b1, wd, g2, b2, w3):
    # Pure-JAX f32 reference reproducing PyTorch forward semantics (training BN).
    def bn(y, g, b):
        mean = y.mean(axis=(0, 2, 3), keepdims=True)
        var = y.var(axis=(0, 2, 3), keepdims=True)   # biased, like PyTorch training BN
        return ((y - mean) * jax.lax.rsqrt(var + EPS)
                * g[None, :, None, None] + b[None, :, None, None])

    y1 = jnp.einsum('nchw,oc->nohw', x, w1)
    z1 = jnp.maximum(bn(y1, g1, b1), 0.0)
    z1p = jnp.pad(z1, ((0, 0), (0, 0), (1, 1), (1, 1)))
    y2 = jnp.zeros_like(z1)
    for dh in range(3):
        for dw in range(3):
            y2 = y2 + (z1p[:, :, dh:dh + H, dw:dw + W]
                       * wd[:, 0, dh, dw][None, :, None, None])
    z2 = bn(y2, g2, b2)
    return jnp.einsum('nchw,oc->nohw', z2, w3)


if __name__ == "__main__":
    key = jax.random.PRNGKey(0)
    kx, k1, k2, k3, k4, k5, k6, k7 = jax.random.split(key, 8)

    # Input matches the module's x343: [1, 488, 7, 7]
    x = jax.random.normal(kx, (1, C, H, W), jnp.float32)

    # Deterministic synthetic parameters (shapes from the module __init__).
    w1 = jax.random.normal(k1, (C, C), jnp.float32) * 0.05          # conv2d52 (Cout, Cin)
    g1 = 1.0 + 0.1 * jax.random.normal(k2, (C,), jnp.float32)       # bn52 gamma
    b1 = 0.1 * jax.random.normal(k3, (C,), jnp.float32)             # bn52 beta
    wd = jax.random.normal(k4, (C, 1, 3, 3), jnp.float32) * 0.2     # conv2d53 depthwise
    g2 = 1.0 + 0.1 * jax.random.normal(k5, (C,), jnp.float32)       # bn53 gamma
    b2 = 0.1 * jax.random.normal(k6, (C,), jnp.float32)             # bn53 beta
    w3 = jax.random.normal(k7, (C, C), jnp.float32) * 0.05          # conv2d54 (Cout, Cin)

    # Weight padding / casting done once, outside the per-call path.
    w1_p, par_p, w3_p = prepare_params(w1, g1, b1, wd, g2, b2, w3)

    out = forward(x, w1_p, par_p, w3_p)
    jax.block_until_ready(out)

    ref = reference(x, w1, g1, b1, wd, g2, b2, w3)
    assert out.shape == (1, C, H, W)
    assert jnp.allclose(out, ref, atol=3e-2, rtol=3e-2), \
        float(jnp.max(jnp.abs(out - ref)))
    print("KERNEL_OK")
</pallas_src>

<mosaic_0001>
module attributes {stable_mosaic.version = 11 : i64} {
  func.func @fused_kernel(%arg0: memref<512x128xbf16, #tpu.memory_space<vmem>>, %arg1: memref<512x512xbf16, #tpu.memory_space<vmem>>, %arg2: memref<512x16xf32, #tpu.memory_space<vmem>>, %arg3: memref<512x512xbf16, #tpu.memory_space<any>>, %arg4: memref<512x128xbf16, #tpu.memory_space<vmem>>, %arg5: memref<512x512xbf16, #tpu.memory_space<vmem>>, %arg6: memref<!tpu.dma_semaphore, #tpu.memory_space<semaphore_mem>>) attributes {dimension_semantics = [], scalar_prefetch = 0 : i64, scratch_operands = 2 : i64, tpu.core_type = #tpu.core_type<tc>} {
    tpu.enqueue_dma source(%arg3 : memref<512x512xbf16, #tpu.memory_space<any>>) target(%arg5 : memref<512x512xbf16, #tpu.memory_space<vmem>>) target_semaphore(%arg6 : memref<!tpu.dma_semaphore, #tpu.memory_space<semaphore_mem>>)
    %0 = tpu.iota {dimensions = array<i32: 1>} : vector<1x128xi32>
    %1 = arith.sitofp %0 : vector<1x128xi32> to vector<1x128xf32>
    %cst = arith.constant 0.142857149 : f32
    %2 = vector.broadcast %cst : f32 to vector<1x128xf32>
    %3 = arith.mulf %1, %2 : vector<1x128xf32>
    %4 = math.floor %3 : vector<1x128xf32>
    %cst_0 = arith.constant 7.000000e+00 : f32
    %5 = vector.broadcast %cst_0 : f32 to vector<1x128xf32>
    %6 = arith.mulf %4, %5 : vector<1x128xf32>
    %7 = arith.subf %1, %6 : vector<1x128xf32>
    %c49_i32 = arith.constant 49 : i32
    %8 = vector.broadcast %c49_i32 : i32 to vector<1x128xi32>
    %9 = arith.cmpi slt, %0, %8 : vector<1x128xi32>
    %cst_1 = arith.constant 1.000000e+00 : f32
    %cst_2 = arith.constant 0.000000e+00 : f32
    %10 = vector.broadcast %cst_1 : f32 to vector<1x128xf32>
    %11 = vector.broadcast %cst_2 : f32 to vector<1x128xf32>
    %12 = arith.select %9, %10, %11 : vector<1x128xi1>, vector<1x128xf32>
    %cst_3 = arith.constant 5.000000e-01 : f32
    %13 = vector.broadcast %cst_3 : f32 to vector<1x128xf32>
    %14 = arith.cmpf ogt, %7, %13 : vector<1x128xf32>
    %15 = arith.andi %9, %14 : vector<1x128xi1>
    %cst_4 = arith.constant 1.000000e+00 : f32
    %cst_5 = arith.constant 0.000000e+00 : f32
    %16 = vector.broadcast %cst_4 : f32 to vector<1x128xf32>
    %17 = vector.broadcast %cst_5 : f32 to vector<1x128xf32>
    %18 = arith.select %15, %16, %17 : vector<1x128xi1>, vector<1x128xf32>
    %cst_6 = arith.constant 5.500000e+00 : f32
    %19 = vector.broadcast %cst_6 : f32 to vector<1x128xf32>
    %20 = arith.cmpf olt, %7, %19 : vector<1x128xf32>
    %21 = arith.andi %9, %20 : vector<1x128xi1>
    %cst_7 = arith.constant 1.000000e+00 : f32
    %cst_8 = arith.constant 0.000000e+00 : f32
    %22 = vector.broadcast %cst_7 : f32 to vector<1x128xf32>
    %23 = vector.broadcast %cst_8 : f32 to vector<1x128xf32>
    %24 = arith.select %21, %22, %23 : vector<1x128xi1>, vector<1x128xf32>
    %c0 = arith.constant 0 : index
    %c9 = arith.constant 9 : index
    %25 = vector.load %arg2[%c0, %c9] : memref<512x16xf32, #tpu.memory_space<vmem>>, vector<512x1xf32>
    %c0_9 = arith.constant 0 : index
    %c10 = arith.constant 10 : index
    %26 = vector.load %arg2[%c0_9, %c10] : memref<512x16xf32, #tpu.memory_space<vmem>>, vector<512x1xf32>
    %c0_10 = arith.constant 0 : index
    %c11 = arith.constant 11 : index
    %27 = vector.load %arg2[%c0_10, %c11] : memref<512x16xf32, #tpu.memory_space<vmem>>, vector<512x1xf32>
    %c0_11 = arith.constant 0 : index
    %c12 = arith.constant 12 : index
    %28 = vector.load %arg2[%c0_11, %c12] : memref<512x16xf32, #tpu.memory_space<vmem>>, vector<512x1xf32>
    %c0_12 = arith.constant 0 : index
    %c0_13 = arith.constant 0 : index
    %29 = vector.load %arg1[%c0_12, %c0_13] : memref<512x512xbf16, #tpu.memory_space<vmem>>, vector<512x512xbf16>
    %c0_14 = arith.constant 0 : index
    %c0_15 = arith.constant 0 : index
    %30 = vector.load %arg0[%c0_14, %c0_15] : memref<512x128xbf16, #tpu.memory_space<vmem>>, vector<512x128xbf16>
    %cst_16 = arith.constant dense<0.000000e+00> : vector<512x128xf32>
    %31 = tpu.matmul %29, %30, %cst_16 {dimension_numbers = #tpu.dot_dimension_numbers<[1], [0], [0], [1], [0, 0, 1, 1], [], []>} : vector<512x512xbf16>, vector<512x128xbf16>, vector<512x128xf32> -> vector<512x128xf32>
    %cst_17 = arith.constant dense<0.000000e+00> : vector<512xf32>
    %32 = vector.multi_reduction <add>, %31, %cst_17 [1] : vector<512x128xf32> to vector<512xf32>
    %33 = vector.shape_cast %32 : vector<512xf32> to vector<512x1xf32>
    %cst_18 = arith.constant 0.0204081628 : f32
    %34 = vector.broadcast %cst_18 : f32 to vector<512x1xf32>
    %35 = arith.mulf %33, %34 : vector<512x1xf32>
    %36 = vector.broadcast %35 : vector<512x1xf32> to vector<512x128xf32>
    %37 = arith.subf %31, %36 : vector<512x128xf32>
    %38 = vector.broadcast %12 : vector<1x128xf32> to vector<512x128xf32>
    %39 = arith.mulf %37, %38 : vector<512x128xf32>
    %40 = arith.mulf %39, %39 : vector<512x128xf32>
    %cst_19 = arith.constant dense<0.000000e+00> : vector<512xf32>
    %41 = vector.multi_reduction <add>, %40, %cst_19 [1] : vector<512x128xf32> to vector<512xf32>
    %42 = vector.shape_cast %41 : vector<512xf32> to vector<512x1xf32>
    %cst_20 = arith.constant 0.0204081628 : f32
    %43 = vector.broadcast %cst_20 : f32 to vector<512x1xf32>
    %44 = arith.mulf %42, %43 : vector<512x1xf32>
    %cst_21 = arith.constant 9.99999974E-6 : f32
    %45 = vector.broadcast %cst_21 : f32 to vector<512x1xf32>
    %46 = arith.addf %44, %45 : vector<512x1xf32>
    %47 = math.rsqrt %46 : vector<512x1xf32>
    %48 = arith.mulf %47, %25 : vector<512x1xf32>
    %49 = vector.broadcast %48 : vector<512x1xf32> to vector<512x128xf32>
    %50 = arith.mulf %39, %49 : vector<512x128xf32>
    %51 = vector.broadcast %26 : vector<512x1xf32> to vector<512x128xf32>
    %52 = arith.addf %50, %51 : vector<512x128xf32>
    %cst_22 = arith.constant 0.000000e+00 : f32
    %53 = vector.broadcast %cst_22 : f32 to vector<512x128xf32>
    %54 = arith.maximumf %52, %53 : vector<512x128xf32>
    %55 = vector.broadcast %12 : vector<1x128xf32> to vector<512x128xf32>
    %56 = arith.mulf %54, %55 : vector<512x128xf32>
    %57 = vector.broadcast %18 : vector<1x128xf32> to vector<512x128xf32>
    %58 = arith.mulf %56, %57 : vector<512x128xf32>
    %59 = vector.broadcast %24 : vector<1x128xf32> to vector<512x128xf32>
    %60 = arith.mulf %56, %59 : vector<512x128xf32>
    %c8_i32 = arith.constant 8 : i32
    %61 = tpu.dynamic_rotate %60 by %c8_i32 dim 1 : vector<512x128xf32>, i32 -> vector<512x128xf32>
    %c0_23 = arith.constant 0 : index
    %c0_24 = arith.constant 0 : index
    %62 = vector.load %arg2[%c0_23, %c0_24] : memref<512x16xf32, #tpu.memory_space<vmem>>, vector<512x1xf32>
    %63 = vector.broadcast %62 : vector<512x1xf32> to vector<512x128xf32>
    %64 = arith.mulf %61, %63 : vector<512x128xf32>
    %c7_i32 = arith.constant 7 : i32
    %65 = tpu.dynamic_rotate %56 by %c7_i32 dim 1 : vector<512x128xf32>, i32 -> vector<512x128xf32>
    %c0_25 = arith.constant 0 : index
    %c1 = arith.constant 1 : index
    %66 = vector.load %arg2[%c0_25, %c1] : memref<512x16xf32, #tpu.memory_space<vmem>>, vector<512x1xf32>
    %67 = vector.broadcast %66 : vector<512x1xf32> to vector<512x128xf32>
    %68 = arith.mulf %65, %67 : vector<512x128xf32>
    %c6_i32 = arith.constant 6 : i32
    %69 = tpu.dynamic_rotate %58 by %c6_i32 dim 1 : vector<512x128xf32>, i32 -> vector<512x128xf32>
    %c0_26 = arith.constant 0 : index
    %c2 = arith.constant 2 : index
    %70 = vector.load %arg2[%c0_26, %c2] : memref<512x16xf32, #tpu.memory_space<vmem>>, vector<512x1xf32>
    %71 = vector.broadcast %70 : vector<512x1xf32> to vector<512x128xf32>
    %72 = arith.mulf %69, %71 : vector<512x128xf32>
    %73 = arith.addf %64, %72 : vector<512x128xf32>
    %c1_i32 = arith.constant 1 : i32
    %74 = tpu.dynamic_rotate %60 by %c1_i32 dim 1 : vector<512x128xf32>, i32 -> vector<512x128xf32>
    %c0_27 = arith.constant 0 : index
    %c3 = arith.constant 3 : index
    %75 = vector.load %arg2[%c0_27, %c3] : memref<512x16xf32, #tpu.memory_space<vmem>>, vector<512x1xf32>
    %76 = vector.broadcast %75 : vector<512x1xf32> to vector<512x128xf32>
    %77 = arith.mulf %74, %76 : vector<512x128xf32>
    %78 = arith.addf %68, %77 : vector<512x128xf32>
    %c0_28 = arith.constant 0 : index
    %c4 = arith.constant 4 : index
    %79 = vector.load %arg2[%c0_28, %c4] : memref<512x16xf32, #tpu.memory_space<vmem>>, vector<512x1xf32>
    %80 = vector.broadcast %79 : vector<512x1xf32> to vector<512x128xf32>
    %81 = arith.mulf %56, %80 : vector<512x128xf32>
    %82 = arith.addf %73, %81 : vector<512x128xf32>
    %c127_i32 = arith.constant 127 : i32
    %83 = tpu.dynamic_rotate %58 by %c127_i32 dim 1 : vector<512x128xf32>, i32 -> vector<512x128xf32>
    %c0_29 = arith.constant 0 : index
    %c5 = arith.constant 5 : index
    %84 = vector.load %arg2[%c0_29, %c5] : memref<512x16xf32, #tpu.memory_space<vmem>>, vector<512x1xf32>
    %85 = vector.broadcast %84 : vector<512x1xf32> to vector<512x128xf32>
    %86 = arith.mulf %83, %85 : vector<512x128xf32>
    %87 = arith.addf %78, %86 : vector<512x128xf32>
    %c122_i32 = arith.constant 122 : i32
    %88 = tpu.dynamic_rotate %60 by %c122_i32 dim 1 : vector<512x128xf32>, i32 -> vector<512x128xf32>
    %c0_30 = arith.constant 0 : index
    %c6 = arith.constant 6 : index
    %89 = vector.load %arg2[%c0_30, %c6] : memref<512x16xf32, #tpu.memory_space<vmem>>, vector<512x1xf32>
    %90 = vector.broadcast %89 : vector<512x1xf32> to vector<512x128xf32>
    %91 = arith.mulf %88, %90 : vector<512x128xf32>
    %92 = arith.addf %82, %91 : vector<512x128xf32>
    %c121_i32 = arith.constant 121 : i32
    %93 = tpu.dynamic_rotate %56 by %c121_i32 dim 1 : vector<512x128xf32>, i32 -> vector<512x128xf32>
    %c0_31 = arith.constant 0 : index
    %c7 = arith.constant 7 : index
    %94 = vector.load %arg2[%c0_31, %c7] : memref<512x16xf32, #tpu.memory_space<vmem>>, vector<512x1xf32>
    %95 = vector.broadcast %94 : vector<512x1xf32> to vector<512x128xf32>
    %96 = arith.mulf %93, %95 : vector<512x128xf32>
    %97 = arith.addf %87, %96 : vector<512x128xf32>
    %c120_i32 = arith.constant 120 : i32
    %98 = tpu.dynamic_rotate %58 by %c120_i32 dim 1 : vector<512x128xf32>, i32 -> vector<512x128xf32>
    %c0_32 = arith.constant 0 : index
    %c8 = arith.constant 8 : index
    %99 = vector.load %arg2[%c0_32, %c8] : memref<512x16xf32, #tpu.memory_space<vmem>>, vector<512x1xf32>
    %100 = vector.broadcast %99 : vector<512x1xf32> to vector<512x128xf32>
    %101 = arith.mulf %98, %100 : vector<512x128xf32>
    %102 = arith.addf %92, %101 : vector<512x128xf32>
    %103 = arith.addf %102, %97 : vector<512x128xf32>
    %104 = vector.broadcast %12 : vector<1x128xf32> to vector<512x128xf32>
    %105 = arith.mulf %103, %104 : vector<512x128xf32>
    %cst_33 = arith.constant dense<0.000000e+00> : vector<512xf32>
    %106 = vector.multi_reduction <add>, %105, %cst_33 [1] : vector<512x128xf32> to vector<512xf32>
    %107 = vector.shape_cast %106 : vector<512xf32> to vector<512x1xf32>
    %cst_34 = arith.constant 0.0204081628 : f32
    %108 = vector.broadcast %cst_34 : f32 to vector<512x1xf32>
    %109 = arith.mulf %107, %108 : vector<512x1xf32>
    %110 = vector.broadcast %109 : vector<512x1xf32> to vector<512x128xf32>
    %111 = arith.subf %105, %110 : vector<512x128xf32>
    %112 = vector.broadcast %12 : vector<1x128xf32> to vector<512x128xf32>
    %113 = arith.mulf %111, %112 : vector<512x128xf32>
    %114 = arith.mulf %113, %113 : vector<512x128xf32>
    %cst_35 = arith.constant dense<0.000000e+00> : vector<512xf32>
    %115 = vector.multi_reduction <add>, %114, %cst_35 [1] : vector<512x128xf32> to vector<512xf32>
    %116 = vector.shape_cast %115 : vector<512xf32> to vector<512x1xf32>
    %cst_36 = arith.constant 0.0204081628 : f32
    %117 = vector.broadcast %cst_36 : f32 to vector<512x1xf32>
    %118 = arith.mulf %116, %117 : vector<512x1xf32>
    %cst_37 = arith.constant 9.99999974E-6 : f32
    %119 = vector.broadcast %cst_37 : f32 to vector<512x1xf32>
    %120 = arith.addf %118, %119 : vector<512x1xf32>
    %121 = math.rsqrt %120 : vector<512x1xf32>
    %122 = arith.mulf %121, %27 : vector<512x1xf32>
    %123 = vector.broadcast %122 : vector<512x1xf32> to vector<512x128xf32>
    %124 = arith.mulf %113, %123 : vector<512x128xf32>
    %125 = vector.broadcast %28 : vector<512x1xf32> to vector<512x128xf32>
    %126 = arith.addf %124, %125 : vector<512x128xf32>
    %127 = arith.truncf %126 : vector<512x128xf32> to vector<512x128xbf16>
    tpu.wait_dma2 semaphore(%arg6 : memref<!tpu.dma_semaphore, #tpu.memory_space<semaphore_mem>>) src(%arg3 : memref<512x512xbf16, #tpu.memory_space<any>>) dst(%arg5 : memref<512x512xbf16, #tpu.memory_space<vmem>>)
    %c0_38 = arith.constant 0 : index
    %c0_39 = arith.constant 0 : index
    %128 = vector.load %arg5[%c0_38, %c0_39] : memref<512x512xbf16, #tpu.memory_space<vmem>>, vector<512x512xbf16>
    %cst_40 = arith.constant dense<0.000000e+00> : vector<512x128xf32>
    %129 = tpu.matmul %128, %127, %cst_40 {dimension_numbers = #tpu.dot_dimension_numbers<[1], [0], [0], [1], [0, 0, 1, 1], [], []>} : vector<512x512xbf16>, vector<512x128xbf16>, vector<512x128xf32> -> vector<512x128xf32>
    %130 = arith.truncf %129 : vector<512x128xf32> to vector<512x128xbf16>
    %c0_41 = arith.constant 0 : index
    %c0_42 = arith.constant 0 : index
    %131 = vector.load %arg4[%c0_41, %c0_42] : memref<512x128xbf16, #tpu.memory_space<vmem>>, vector<512x128xbf16>
    tpu.vector_store %arg4[%c0_41, %c0_42], %130 {strides = array<i32>} : memref<512x128xbf16, #tpu.memory_space<vmem>>, vector<512x128xbf16>,
    return
  }
}

</mosaic_0001>

<llo_original>
// kernel: forward.1
$region0: #{forward.1}
  #allocation0 [shape = 'u32[]', space=smem, size = 0x4, offset = 0x4, fixed_abs, tag = 'smem constant byte address 0x4 - core index']
  #allocation1 [shape = 'u32[144,128]{1,0:T(1,128)}', space=vmem, size = 0x12000, scoped, tag = 'internal scratch']
  #allocation2 [shape = 'bf16[512,512]{1,0:T(16,128)(2,1)}', space=vmem, size = 0x80000, scoped, tag = 'scratch operand']
  #allocation3 [shape = 's32[1]{0}', space=sflag, size = 0x4, scoped, tag = 'scratch operand']
  #allocation4 [shape = 's32[]', space=sflag, size = 0x4, offset = 0, fixed_abs, tag = 'sflag constant byte address 0x0 - dummy sync flag']
  %s0 = inlined_call_operand.vmem [shape: bf16[512,128], index: 0, kind: input, shape index: {}]
  %s1 = inlined_call_operand.vmem [shape: bf16[512,512], index: 1, kind: input, shape index: {}]
  %s2 = inlined_call_operand.vmem [shape: f32[512,16], index: 2, kind: input, shape index: {}]
  %s3 = inlined_call_operand.hbm [shape: bf16[512,512], index: 3, kind: input, shape index: {}]
  %s4 = inlined_call_operand.vmem [shape: bf16[512,128], index: 4, kind: output, shape index: {}]
  %s5 = sld [smem:[#allocation0]]
  $region22: #{forward.1} parent=0
    _
  %s7 = ssub.s32 1, %s5
  %s8 = scalar_select 0, %s7, %s5
  $region1: #{forward.1} parent=0
    #allocation5 [shape = 'u32[9]{0}', space=smem, size = 0x24, scoped, tag = 'DMA stride descriptor']
    // Predicated region
    $region2: #{forward.1} parent=1 // pred_check
      _
    $region3: #{forward.1} parent=1 // pred_check_branch
      %10 = sbr.rel (0) target = $region5
    $region4: #{forward.1} parent=1 // pred_region
      _
    $region5: #{forward.1} parent=1 // pred_fallthru
      _
    // Predicated region
    $region6: #{forward.1} parent=1 // pred_check
      _
    $region7: #{forward.1} parent=1 // pred_check_branch
      %12 = sbr.rel (0) target = $region9
    $region8: #{forward.1} parent=1 // pred_region
      _
    $region9: #{forward.1} parent=1 // pred_fallthru
      _
    // Predicated region
    $region10: #{forward.1} parent=1 // pred_check
      _
    $region11: #{forward.1} parent=1 // pred_check_branch
      %14 = sbr.rel (0) target = $region13
    $region12: #{forward.1} parent=1 // pred_region
      _
    $region13: #{forward.1} parent=1 // pred_fallthru
      _
    %s17 = sshll.u32 1, 14
    %s18 = sxor.u32 4294967295, %s17
    %s20 = sld [smem:[#allocation0]]
    %s21 = sadd.s32 2, %s20
    %s23 = sshll.u32 7, 26
    %s24 = sxor.u32 4294967295, %s23
    %s25 = sand.u32 0, %s24
    %s26 = sshll.u32 %s21, 26
    %s27 = sor.u32 %s25, %s26
    %s28 = sshll.u32 [#allocation2], 4
    %s29 = int_to_ptr.vmem [resolvable:$true] %s28
    %32 = sst [smem:[#allocation5]] 512
    %s33 = scalar_lea.smem [#allocation5], 1
    %34 = sst [smem:[%s33]] 512
    %s35 = scalar_lea.smem [#allocation5], 2
    %36 = sst [smem:[%s35]] 4
    %s37 = scalar_lea.smem [#allocation5], 3
    %38 = sst [smem:[%s37]] 64
    %s39 = scalar_lea.smem [#allocation5], 4
    %40 = sst [smem:[%s39]] 128
    %s41 = scalar_lea.smem [#allocation5], 5
    %42 = sst [smem:[%s41]] 2
    %s43 = scalar_lea.smem [#allocation5], 6
    %44 = sst [smem:[%s43]] 256
    %s45 = scalar_lea.smem [#allocation5], 7
    %46 = sst [smem:[%s45]] 64
    %s47 = scalar_lea.smem [#allocation5], 8
    %48 = sst [smem:[%s47]] 4
    %50 = dma.general %s3, 16384, %s29, [#allocation3], [#allocation4], [#allocation5], %s27, 0
    %v51 = vlaneseq
    %v52 = vand.u32 %v51, 127
    %v53 = vcvt.s32.f32 %v52
    %v54 = vmul.f32 %v53, 0.14285715
    %v55 = vfloor.f32 %v54
    %v56 = vmul.f32 %v55, 7.0
    %v57 = vsub.f32 %v53, %v56
    %vm58 = vcmp.lt.s32.totalorder %v52, 49
    %v59 = vsel %vm58, 1.0, 0.0
    %vm60 = vcmp.gt.f32.partialorder %v57, 0.5
    %vm61 = vmand %vm58, %vm60
    %v62 = vsel %vm61, 1.0, 0.0
    %vm63 = vcmp.lt.f32.partialorder %v57, 5.5
    %vm64 = vmand %vm58, %vm63
    %v65 = vsel %vm64, 1.0, 0.0
    %v66 = vld [vmem:[%s2] sm:$0xff]
    %v67 = vld [vmem:[%s2 + $0x8] sm:$0xff]
    %v68 = vld [vmem:[%s2 + $0x10] sm:$0xff]
    %v69 = vld [vmem:[%s2 + $0x18] sm:$0xff]
    %v70 = vld [vmem:[%s2 + $0x20] sm:$0xff]
    %v71 = vld [vmem:[%s2 + $0x28] sm:$0xff]
    %v72 = vld [vmem:[%s2 + $0x30] sm:$0xff]
    %v73 = vld [vmem:[%s2 + $0x38] sm:$0xff]
    %v74 = vld [vmem:[%s2 + $0x40] sm:$0xff]
    %v75 = vld [vmem:[%s2 + $0x48] sm:$0xff]
    %v76 = vld [vmem:[%s2 + $0x50] sm:$0xff]
    %v77 = vld [vmem:[%s2 + $0x58] sm:$0xff]
    %v78 = vld [vmem:[%s2 + $0x60] sm:$0xff]
    %v79 = vld [vmem:[%s2 + $0x68] sm:$0xff]
    %v80 = vld [vmem:[%s2 + $0x70] sm:$0xff]
    %v81 = vld [vmem:[%s2 + $0x78] sm:$0xff]
    %v82 = vld [vmem:[%s2 + $0x80] sm:$0xff]
    %v83 = vld [vmem:[%s2 + $0x88] sm:$0xff]
    %v84 = vld [vmem:[%s2 + $0x90] sm:$0xff]
    %v85 = vld [vmem:[%s2 + $0x98] sm:$0xff]
    %v86 = vld [vmem:[%s2 + $0xa0] sm:$0xff]
    %v87 = vld [vmem:[%s2 + $0xa8] sm:$0xff]
    %v88 = vld [vmem:[%s2 + $0xb0] sm:$0xff]
    %v89 = vld [vmem:[%s2 + $0xb8] sm:$0xff]
    %v90 = vld [vmem:[%s2 + $0xc0] sm:$0xff]
    %v91 = vld [vmem:[%s2 + $0xc8] sm:$0xff]
    %v92 = vld [vmem:[%s2 + $0xd0] sm:$0xff]
    %v93 = vld [vmem:[%s2 + $0xd8] sm:$0xff]
    %v94 = vld [vmem:[%s2 + $0xe0] sm:$0xff]
    %v95 = vld [vmem:[%s2 + $0xe8] sm:$0xff]
    %v96 = vld [vmem:[%s2 + $0xf0] sm:$0xff]
    %v97 = vld [vmem:[%s2 + $0xf8] sm:$0xff]
    %v98 = vld [vmem:[%s2 + $0x100] sm:$0xff]
    %v99 = vld [vmem:[%s2 + $0x108] sm:$0xff]
    %v100 = vld [vmem:[%s2 + $0x110] sm:$0xff]
    %v101 = vld [vmem:[%s2 + $0x118] sm:$0xff]
    %v102 = vld [vmem:[%s2 + $0x120] sm:$0xff]
    %v103 = vld [vmem:[%s2 + $0x128] sm:$0xff]
    %v104 = vld [vmem:[%s2 + $0x130] sm:$0xff]
    %v105 = vld [vmem:[%s2 + $0x138] sm:$0xff]
    %v106 = vld [vmem:[%s2 + $0x140] sm:$0xff]
    %v107 = vld [vmem:[%s2 + $0x148] sm:$0xff]
    %v108 = vld [vmem:[%s2 + $0x150] sm:$0xff]
    %v109 = vld [vmem:[%s2 + $0x158] sm:$0xff]
    %v110 = vld [vmem:[%s2 + $0x160] sm:$0xff]
    %v111 = vld [vmem:[%s2 + $0x168] sm:$0xff]
    %v112 = vld [vmem:[%s2 + $0x170] sm:$0xff]
    %v113 = vld [vmem:[%s2 + $0x178] sm:$0xff]
    %v114 = vld [vmem:[%s2 + $0x180] sm:$0xff]
    %v115 = vld [vmem:[%s2 + $0x188] sm:$0xff]
    %v116 = vld [vmem:[%s2 + $0x190] sm:$0xff]
    %v117 = vld [vmem:[%s2 + $0x198] sm:$0xff]
    %v118 = vld [vmem:[%s2 + $0x1a0] sm:$0xff]
    %v119 = vld [vmem:[%s2 + $0x1a8] sm:$0xff]
    %v120 = vld [vmem:[%s2 + $0x1b0] sm:$0xff]
    %v121 = vld [vmem:[%s2 + $0x1b8] sm:$0xff]
    %v122 = vld [vmem:[%s2 + $0x1c0] sm:$0xff]
    %v123 = vld [vmem:[%s2 + $0x1c8] sm:$0xff]
    %v124 = vld [vmem:[%s2 + $0x1d0] sm:$0xff]
    %v125 = vld [vmem:[%s2 + $0x1d8] sm:$0xff]
    %v126 = vld [vmem:[%s2 + $0x1e0] sm:$0xff]
    %v127 = vld [vmem:[%s2 + $0x1e8] sm:$0xff]
    %v128 = vld [vmem:[%s2 + $0x1f0] sm:$0xff]
    %v129 = vld [vmem:[%s2 + $0x1f8] sm:$0xff]
    %v130 = vld [vmem:[%s1] sm:$0xff]
    %v131 = vld [vmem:[%s1 + $0x8] sm:$0xff]
    %v132 = vld [vmem:[%s1 + $0x10] sm:$0xff]
    %v133 = vld [vmem:[%s1 + $0x18] sm:$0xff]
    %v134 = vld [vmem:[%s1 + $0x20] sm:$0xff]
    %v135 = vld [vmem:[%s1 + $0x28] sm:$0xff]
    %v136 = vld [vmem:[%s1 + $0x30] sm:$0xff]
    %v137 = vld [vmem:[%s1 + $0x38] sm:$0xff]
    %v138 = vld [vmem:[%s1 + $0x40] sm:$0xff]
    %v139 = vld [vmem:[%s1 + $0x48] sm:$0xff]
    %v140 = vld [vmem:[%s1 + $0x50] sm:$0xff]
    %v141 = vld [vmem:[%s1 + $0x58] sm:$0xff]
    %v142 = vld [vmem:[%s1 + $0x60] sm:$0xff]
    %v143 = vld [vmem:[%s1 + $0x68] sm:$0xff]
    %v144 = vld [vmem:[%s1 + $0x70] sm:$0xff]
    %v145 = vld [vmem:[%s1 + $0x78] sm:$0xff]
    %v146 = vld [vmem:[%s1 + $0x80] sm:$0xff]
    %v147 = vld [vmem:[%s1 + $0x88] sm:$0xff]
    %v148 = vld [vmem:[%s1 + $0x90] sm:$0xff]
    %v149 = vld [vmem:[%s1 + $0x98] sm:$0xff]
    %v150 = vld [vmem:[%s1 + $0xa0] sm:$0xff]
    %v151 = vld [vmem:[%s1 + $0xa8] sm:$0xff]
    %v152 = vld [vmem:[%s1 + $0xb0] sm:$0xff]
    %v153 = vld [vmem:[%s1 + $0xb8] sm:$0xff]
    %v154 = vld [vmem:[%s1 + $0xc0] sm:$0xff]
    %v155 = vld [vmem:[%s1 + $0xc8] sm:$0xff]
    %v156 = vld [vmem:[%s1 + $0xd0] sm:$0xff]
    %v157 = vld [vmem:[%s1 + $0xd8] sm:$0xff]
    %v158 = vld [vmem:[%s1 + $0xe0] sm:$0xff]
    %v159 = vld [vmem:[%s1 + $0xe8] sm:$0xff]
    %v160 = vld [vmem:[%s1 + $0xf0] sm:$0xff]
    %v161 = vld [vmem:[%s1 + $0xf8] sm:$0xff]
    %v162 = vld [vmem:[%s1 + $0x100] sm:$0xff]
    %v163 = vld [vmem:[%s1 + $0x108] sm:$0xff]
    %v164 = vld [vmem:[%s1 + $0x110] sm:$0xff]
    %v165 = vld [vmem:[%s1 + $0x118] sm:$0xff]
    %v166 = vld [vmem:[%s1 + $0x120] sm:$0xff]
    %v167 = vld [vmem:[%s1 + $0x128] sm:$0xff]
    %v168 = vld [vmem:[%s1 + $0x130] sm:$0xff]
    %v169 = vld [vmem:[%s1 + $0x138] sm:$0xff]
    %v170 = vld [vmem:[%s1 + $0x140] sm:$0xff]
    %v171 = vld [vmem:[%s1 + $0x148] sm:$0xff]
    %v172 = vld [vmem:[%s1 + $0x150] sm:$0xff]
    %v173 = vld [vmem:[%s1 + $0x158] sm:$0xff]
    %v174 = vld [vmem:[%s1 + $0x160] sm:$0xff]
    %v175 = vld [vmem:[%s1 + $0x168] sm:$0xff]
    %v176 = vld [vmem:[%s1 + $0x170] sm:$0xff]
    %v177 = vld [vmem:[%s1 + $0x178] sm:$0xff]
    %v178 = vld [vmem:[%s1 + $0x180] sm:$0xff]
    %v179 = vld [vmem:[%s1 + $0x188] sm:$0xff]
    %v180 = vld [vmem:[%s1 + $0x190] sm:$0xff]
    %v181 = vld [vmem:[%s1 + $0x198] sm:$0xff]
    %v182 = vld [vmem:[%s1 + $0x1a0] sm:$0xff]
    %v183 = vld [vmem:[%s1 + $0x1a8] sm:$0xff]
    %v184 = vld [vmem:[%s1 + $0x1b0] sm:$0xff]
    %v185 = vld [vmem:[%s1 + $0x1b8] sm:$0xff]
    %v186 = vld [vmem:[%s1 + $0x1c0] sm:$0xff]
    %v187 = vld [vmem:[%s1 + $0x1c8] sm:$0xff]
    %v188 = vld [vmem:[%s1 + $0x1d0] sm:$0xff]
    %v189 = vld [vmem:[%s1 + $0x1d8] sm:$0xff]
    %v190 = vld [vmem:[%s1 + $0x1e0] sm:$0xff]
    %v191 = vld [vmem:[%s1 + $0x1e8] sm:$0xff]
    %v192 = vld [vmem:[%s1 + $0x1f0] sm:$0xff]
    %v193 = vld [vmem:[%s1 + $0x1f8] sm:$0xff]
    %v194 = vld [vmem:[%s1 + $0x200] sm:$0xff]
    %v195 = vld [vmem:[%s1 + $0x208] sm:$0xff]
    %v196 = vld [vmem:[%s1 + $0x210] sm:$0xff]
    %v197 = vld [vmem:[%s1 + $0x218] sm:$0xff]
    %v198 = vld [vmem:[%s1 + $0x220] sm:$0xff]
    %v199 = vld [vmem:[%s1 + $0x228] sm:$0xff]
    %v200 = vld [vmem:[%s1 + $0x230] sm:$0xff]
    %v201 = vld [vmem:[%s1 + $0x238] sm:$0xff]
    %v202 = vld [vmem:[%s1 + $0x240] sm:$0xff]
    %v203 = vld [vmem:[%s1 + $0x248] sm:$0xff]
    %v204 = vld [vmem:[%s1 + $0x250] sm:$0xff]
    %v205 = vld [vmem:[%s1 + $0x258] sm:$0xff]
    %v206 = vld [vmem:[%s1 + $0x260] sm:$0xff]
    %v207 = vld [vmem:[%s1 + $0x268] sm:$0xff]
    %v208 = vld [vmem:[%s1 + $0x270] sm:$0xff]
    %v209 = vld [vmem:[%s1 + $0x278] sm:$0xff]
    %v210 = vld [vmem:[%s1 + $0x280] sm:$0xff]
    %v211 = vld [vmem:[%s1 + $0x288] sm:$0xff]
    %v212 = vld [vmem:[%s1 + $0x290] sm:$0xff]
    %v213 = vld [vmem:[%s1 + $0x298] sm:$0xff]
    %v214 = vld [vmem:[%s1 + $0x2a0] sm:$0xff]
    %v215 = vld [vmem:[%s1 + $0x2a8] sm:$0xff]
    %v216 = vld [vmem:[%s1 + $0x2b0] sm:$0xff]
    %v217 = vld [vmem:[%s1 + $0x2b8] sm:$0xff]
    %v218 = vld [vmem:[%s1 + $0x2c0] sm:$0xff]
    %v219 = vld [vmem:[%s1 + $0x2c8] sm:$0xff]
    %v220 = vld [vmem:[%s1 + $0x2d0] sm:$0xff]
    %v221 = vld [vmem:[%s1 + $0x2d8] sm:$0xff]
    %v222 = vld [vmem:[%s1 + $0x2e0] sm:$0xff]
    %v223 = vld [vmem:[%s1 + $0x2e8] sm:$0xff]
    %v224 = vld [vmem:[%s1 + $0x2f0] sm:$0xff]
    %v225 = vld [vmem:[%s1 + $0x2f8] sm:$0xff]
    %v226 = vld [vmem:[%s1 + $0x300] sm:$0xff]
    %v227 = vld [vmem:[%s1 + $0x308] sm:$0xff]
    %v228 = vld [vmem:[%s1 + $0x310] sm:$0xff]
    %v229 = vld [vmem:[%s1 + $0x318] sm:$0xff]
    %v230 = vld [vmem:[%s1 + $0x320] sm:$0xff]
    %v231 = vld [vmem:[%s1 + $0x328] sm:$0xff]
    %v232 = vld [vmem:[%s1 + $0x330] sm:$0xff]
    %v233 = vld [vmem:[%s1 + $0x338] sm:$0xff]
    %v234 = vld [vmem:[%s1 + $0x340] sm:$0xff]
    %v235 = vld [vmem:[%s1 + $0x348] sm:$0xff]
    %v236 = vld [vmem:[%s1 + $0x350] sm:$0xff]
    %v237 = vld [vmem:[%s1 + $0x358] sm:$0xff]
    %v238 = vld [vmem:[%s1 + $0x360] sm:$0xff]
    %v239 = vld [vmem:[%s1 + $0x368] sm:$0xff]
    %v240 = vld [vmem:[%s1 + $0x370] sm:$0xff]
    %v241 = vld [vmem:[%s1 + $0x378] sm:$0xff]
    %v242 = vld [vmem:[%s1 + $0x380] sm:$0xff]
    %v243 = vld [vmem:[%s1 + $0x388] sm:$0xff]
    %v244 = vld [vmem:[%s1 + $0x390] sm:$0xff]
    %v245 = vld [vmem:[%s1 + $0x398] sm:$0xff]
    %v246 = vld [vmem:[%s1 + $0x3a0] sm:$0xff]
    %v247 = vld [vmem:[%s1 + $0x3a8] sm:$0xff]
    %v248 = vld [vmem:[%s1 + $0x3b0] sm:$0xff]
    %v249 = vld [vmem:[%s1 + $0x3b8] sm:$0xff]
    %v250 = vld [vmem:[%s1 + $0x3c0] sm:$0xff]
    %v251 = vld [vmem:[%s1 + $0x3c8] sm:$0xff]
    %v252 = vld [vmem:[%s1 + $0x3d0] sm:$0xff]
    %v253 = vld [vmem:[%s1 + $0x3d8] sm:$0xff]
    %v254 = vld [vmem:[%s1 + $0x3e0] sm:$0xff]
    %v255 = vld [vmem:[%s1 + $0x3e8] sm:$0xff]
    %v256 = vld [vmem:[%s1 + $0x3f0] sm:$0xff]
    %v257 = vld [vmem:[%s1 + $0x3f8] sm:$0xff]
    %v258 = vld [vmem:[%s0] sm:$0xf]
    %v259 = vld [vmem:[%s0 + $0x4] sm:$0xf]
    %v260 = vld [vmem:[%s0 + $0x8] sm:$0xf]
    %v261 = vld [vmem:[%s0 + $0xc] sm:$0xf]
    %v262 = vld [vmem:[%s0 + $0x10] sm:$0xf]
    %v263 = vld [vmem:[%s0 + $0x14] sm:$0xf]
    %v264 = vld [vmem:[%s0 + $0x18] sm:$0xf]
    %v265 = vld [vmem:[%s0 + $0x1c] sm:$0xf]
    %v266 = vld [vmem:[%s0 + $0x20] sm:$0xf]
    %v267 = vld [vmem:[%s0 + $0x24] sm:$0xf]
    %v268 = vld [vmem:[%s0 + $0x28] sm:$0xf]
    %v269 = vld [vmem:[%s0 + $0x2c] sm:$0xf]
    %v270 = vld [vmem:[%s0 + $0x30] sm:$0xf]
    %v271 = vld [vmem:[%s0 + $0x34] sm:$0xf]
    %v272 = vld [vmem:[%s0 + $0x38] sm:$0xf]
    %v273 = vld [vmem:[%s0 + $0x3c] sm:$0xf]
    %v274 = vld [vmem:[%s0 + $0x40] sm:$0xf]
    %v275 = vld [vmem:[%s0 + $0x44] sm:$0xf]
    %v276 = vld [vmem:[%s0 + $0x48] sm:$0xf]
    %v277 = vld [vmem:[%s0 + $0x4c] sm:$0xf]
    %v278 = vld [vmem:[%s0 + $0x50] sm:$0xf]
    %v279 = vld [vmem:[%s0 + $0x54] sm:$0xf]
    %v280 = vld [vmem:[%s0 + $0x58] sm:$0xf]
    %v281 = vld [vmem:[%s0 + $0x5c] sm:$0xf]
    %v282 = vld [vmem:[%s0 + $0x60] sm:$0xf]
    %v283 = vld [vmem:[%s0 + $0x64] sm:$0xf]
    %v284 = vld [vmem:[%s0 + $0x68] sm:$0xf]
    %v285 = vld [vmem:[%s0 + $0x6c] sm:$0xf]
    %v286 = vld [vmem:[%s0 + $0x70] sm:$0xf]
    %v287 = vld [vmem:[%s0 + $0x74] sm:$0xf]
    %v288 = vld [vmem:[%s0 + $0x78] sm:$0xf]
    %v289 = vld [vmem:[%s0 + $0x7c] sm:$0xf]
    %v290 = vld [vmem:[%s0 + $0x80] sm:$0xf]
    %v291 = vld [vmem:[%s0 + $0x84] sm:$0xf]
    %v292 = vld [vmem:[%s0 + $0x88] sm:$0xf]
    %v293 = vld [vmem:[%s0 + $0x8c] sm:$0xf]
    %v294 = vld [vmem:[%s0 + $0x90] sm:$0xf]
    %v295 = vld [vmem:[%s0 + $0x94] sm:$0xf]
    %v296 = vld [vmem:[%s0 + $0x98] sm:$0xf]
    %v297 = vld [vmem:[%s0 + $0x9c] sm:$0xf]
    %v298 = vld [vmem:[%s0 + $0xa0] sm:$0xf]
    %v299 = vld [vmem:[%s0 + $0xa4] sm:$0xf]
    %v300 = vld [vmem:[%s0 + $0xa8] sm:$0xf]
    %v301 = vld [vmem:[%s0 + $0xac] sm:$0xf]
    %v302 = vld [vmem:[%s0 + $0xb0] sm:$0xf]
    %v303 = vld [vmem:[%s0 + $0xb4] sm:$0xf]
    %v304 = vld [vmem:[%s0 + $0xb8] sm:$0xf]
    %v305 = vld [vmem:[%s0 + $0xbc] sm:$0xf]
    %v306 = vld [vmem:[%s0 + $0xc0] sm:$0xf]
    %v307 = vld [vmem:[%s0 + $0xc4] sm:$0xf]
    %v308 = vld [vmem:[%s0 + $0xc8] sm:$0xf]
    %v309 = vld [vmem:[%s0 + $0xcc] sm:$0xf]
    %v310 = vld [vmem:[%s0 + $0xd0] sm:$0xf]
    %v311 = vld [vmem:[%s0 + $0xd4] sm:$0xf]
    %v312 = vld [vmem:[%s0 + $0xd8] sm:$0xf]
    %v313 = vld [vmem:[%s0 + $0xdc] sm:$0xf]
    %v314 = vld [vmem:[%s0 + $0xe0] sm:$0xf]
    %v315 = vld [vmem:[%s0 + $0xe4] sm:$0xf]
    %v316 = vld [vmem:[%s0 + $0xe8] sm:$0xf]
    %v317 = vld [vmem:[%s0 + $0xec] sm:$0xf]
    %v318 = vld [vmem:[%s0 + $0xf0] sm:$0xf]
    %v319 = vld [vmem:[%s0 + $0xf4] sm:$0xf]
    %v320 = vld [vmem:[%s0 + $0xf8] sm:$0xf]
    %v321 = vld [vmem:[%s0 + $0xfc] sm:$0xf]
    %v450 = vunpack.c.l.b16 %v130
    %v451 = vunpack.c.h.b16 %v130
    %v452 = vunpack.c.l.b16 %v131
    %v453 = vunpack.c.h.b16 %v131
    %v454 = vunpack.c.l.b16 %v132
    %v455 = vunpack.c.h.b16 %v132
    %v456 = vunpack.c.l.b16 %v133
    %v457 = vunpack.c.h.b16 %v133
    %v458 = vunpack.c.l.b16 %v134
    %v459 = vunpack.c.h.b16 %v134
    %v460 = vunpack.c.l.b16 %v135
    %v461 = vunpack.c.h.b16 %v135
    %v462 = vunpack.c.l.b16 %v136
    %v463 = vunpack.c.h.b16 %v136
    %v464 = vunpack.c.l.b16 %v137
    %v465 = vunpack.c.h.b16 %v137
    %v466 = vunpack.c.l.b16 %v138
    %v467 = vunpack.c.h.b16 %v138
    %v468 = vunpack.c.l.b16 %v139
    %v469 = vunpack.c.h.b16 %v139
    %v470 = vunpack.c.l.b16 %v140
    %v471 = vunpack.c.h.b16 %v140
    %v472 = vunpack.c.l.b16 %v141
    %v473 = vunpack.c.h.b16 %v141
    %v474 = vunpack.c.l.b16 %v142
    %v475 = vunpack.c.h.b16 %v142
    %v476 = vunpack.c.l.b16 %v143
    %v477 = vunpack.c.h.b16 %v143
    %v478 = vunpack.c.l.b16 %v144
    %v479 = vunpack.c.h.b16 %v144
    %v480 = vunpack.c.l.b16 %v145
    %v481 = vunpack.c.h.b16 %v145
    %v482 = vunpack.c.l.b16 %v146
    %v483 = vunpack.c.h.b16 %v146
    %v484 = vunpack.c.l.b16 %v147
    %v485 = vunpack.c.h.b16 %v147
    %v486 = vunpack.c.l.b16 %v148
    %v487 = vunpack.c.h.b16 %v148
    %v488 = vunpack.c.l.b16 %v149
    %v489 = vunpack.c.h.b16 %v149
    %v490 = vunpack.c.l.b16 %v150
    %v491 = vunpack.c.h.b16 %v150
    %v492 = vunpack.c.l.b16 %v151
    %v493 = vunpack.c.h.b16 %v151
    %v494 = vunpack.c.l.b16 %v152
    %v495 = vunpack.c.h.b16 %v152
    %v496 = vunpack.c.l.b16 %v153
    %v497 = vunpack.c.h.b16 %v153
    %v498 = vunpack.c.l.b16 %v154
    %v499 = vunpack.c.h.b16 %v154
    %v500 = vunpack.c.l.b16 %v155
    %v501 = vunpack.c.h.b16 %v155
    %v502 = vunpack.c.l.b16 %v156
    %v503 = vunpack.c.h.b16 %v156
    %v504 = vunpack.c.l.b16 %v157
    %v505 = vunpack.c.h.b16 %v157
    %v506 = vunpack.c.l.b16 %v158
    %v507 = vunpack.c.h.b16 %v158
    %v508 = vunpack.c.l.b16 %v159
    %v509 = vunpack.c.h.b16 %v159
    %v510 = vunpack.c.l.b16 %v160
    %v511 = vunpack.c.h.b16 %v160
    %v512 = vunpack.c.l.b16 %v161
    %v513 = vunpack.c.h.b16 %v161
    %v514 = vunpack.c.l.b16 %v162
    %v515 = vunpack.c.h.b16 %v162
    %v516 = vunpack.c.l.b16 %v163
    %v517 = vunpack.c.h.b16 %v163
    %v518 = vunpack.c.l.b16 %v164
    %v519 = vunpack.c.h.b16 %v164
    %v520 = vunpack.c.l.b16 %v165
    %v521 = vunpack.c.h.b16 %v165
    %v522 = vunpack.c.l.b16 %v166
    %v523 = vunpack.c.h.b16 %v166
    %v524 = vunpack.c.l.b16 %v167
    %v525 = vunpack.c.h.b16 %v167
    %v526 = vunpack.c.l.b16 %v168
    %v527 = vunpack.c.h.b16 %v168
    %v528 = vunpack.c.l.b16 %v169
    %v529 = vunpack.c.h.b16 %v169
    %v530 = vunpack.c.l.b16 %v170
    %v531 = vunpack.c.h.b16 %v170
    %v532 = vunpack.c.l.b16 %v171
    %v533 = vunpack.c.h.b16 %v171
    %v534 = vunpack.c.l.b16 %v172
    %v535 = vunpack.c.h.b16 %v172
    %v536 = vunpack.c.l.b16 %v173
    %v537 = vunpack.c.h.b16 %v173
    %v538 = vunpack.c.l.b16 %v174
    %v539 = vunpack.c.h.b16 %v174
    %v540 = vunpack.c.l.b16 %v175
    %v541 = vunpack.c.h.b16 %v175
    %v542 = vunpack.c.l.b16 %v176
    %v543 = vunpack.c.h.b16 %v176
    %v544 = vunpack.c.l.b16 %v177
    %v545 = vunpack.c.h.b16 %v177
    %v546 = vunpack.c.l.b16 %v178
    %v547 = vunpack.c.h.b16 %v178
    %v548 = vunpack.c.l.b16 %v179
    %v549 = vunpack.c.h.b16 %v179
    %v550 = vunpack.c.l.b16 %v180
    %v551 = vunpack.c.h.b16 %v180
    %v552 = vunpack.c.l.b16 %v181
    %v553 = vunpack.c.h.b16 %v181
    %v554 = vunpack.c.l.b16 %v182
    %v555 = vunpack.c.h.b16 %v182
    %v556 = vunpack.c.l.b16 %v183
    %v557 = vunpack.c.h.b16 %v183
    %v558 = vunpack.c.l.b16 %v184
    %v559 = vunpack.c.h.b16 %v184
    %v560 = vunpack.c.l.b16 %v185
    %v561 = vunpack.c.h.b16 %v185
    %v562 = vunpack.c.l.b16 %v186
    %v563 = vunpack.c.h.b16 %v186
    %v564 = vunpack.c.l.b16 %v187
    %v565 = vunpack.c.h.b16 %v187
    %v566 = vunpack.c.l.b16 %v188
    %v567 = vunpack.c.h.b16 %v188
    %v568 = vunpack.c.l.b16 %v189
    %v569 = vunpack.c.h.b16 %v189
    %v570 = vunpack.c.l.b16 %v190
    %v571 = vunpack.c.h.b16 %v190
    %v572 = vunpack.c.l.b16 %v191
    %v573 = vunpack.c.h.b16 %v191
    %v574 = vunpack.c.l.b16 %v192
    %v575 = vunpack.c.h.b16 %v192
    %v576 = vunpack.c.l.b16 %v193
    %v577 = vunpack.c.h.b16 %v193
    %v578 = vunpack.c.l.b16 %v194
    %v579 = vunpack.c.h.b16 %v194
    %v580 = vunpack.c.l.b16 %v195
    %v581 = vunpack.c.h.b16 %v195
    %v582 = vunpack.c.l.b16 %v196
    %v583 = vunpack.c.h.b16 %v196
    %v584 = vunpack.c.l.b16 %v197
    %v585 = vunpack.c.h.b16 %v197
    %v586 = vunpack.c.l.b16 %v198
    %v587 = vunpack.c.h.b16 %v198
    %v588 = vunpack.c.l.b16 %v199
    %v589 = vunpack.c.h.b16 %v199
    %v590 = vunpack.c.l.b16 %v200
    %v591 = vunpack.c.h.b16 %v200
    %v592 = vunpack.c.l.b16 %v201
    %v593 = vunpack.c.h.b16 %v201
    %v594 = vunpack.c.l.b16 %v202
    %v595 = vunpack.c.h.b16 %v202
    %v596 = vunpack.c.l.b16 %v203
    %v597 = vunpack.c.h.b16 %v203
    %v598 = vunpack.c.l.b16 %v204
    %v599 = vunpack.c.h.b16 %v204
    %v600 = vunpack.c.l.b16 %v205
    %v601 = vunpack.c.h.b16 %v205
    %v602 = vunpack.c.l.b16 %v206
    %v603 = vunpack.c.h.b16 %v206
    %v604 = vunpack.c.l.b16 %v207
    %v605 = vunpack.c.h.b16 %v207
    %v606 = vunpack.c.l.b16 %v208
    %v607 = vunpack.c.h.b16 %v208
    %v608 = vunpack.c.l.b16 %v209
    %v609 = vunpack.c.h.b16 %v209
    %v610 = vunpack.c.l.b16 %v210
    %v611 = vunpack.c.h.b16 %v210
    %v612 = vunpack.c.l.b16 %v211
    %v613 = vunpack.c.h.b16 %v211
    %v614 = vunpack.c.l.b16 %v212
    %v615 = vunpack.c.h.b16 %v212
    %v616 = vunpack.c.l.b16 %v213
    %v617 = vunpack.c.h.b16 %v213
    %v618 = vunpack.c.l.b16 %v214
    %v619 = vunpack.c.h.b16 %v214
    %v620 = vunpack.c.l.b16 %v215
    %v621 = vunpack.c.h.b16 %v215
    %v622 = vunpack.c.l.b16 %v216
    %v623 = vunpack.c.h.b16 %v216
    %v624 = vunpack.c.l.b16 %v217
    %v625 = vunpack.c.h.b16 %v217
    %v626 = vunpack.c.l.b16 %v218
    %v627 = vunpack.c.h.b16 %v218
    %v628 = vunpack.c.l.b16 %v219
    %v629 = vunpack.c.h.b16 %v219
    %v630 = vunpack.c.l.b16 %v220
    %v631 = vunpack.c.h.b16 %v220
    %v632 = vunpack.c.l.b16 %v221
    %v633 = vunpack.c.h.b16 %v221
    %v634 = vunpack.c.l.b16 %v222
    %v635 = vunpack.c.h.b16 %v222
    %v636 = vunpack.c.l.b16 %v223
    %v637 = vunpack.c.h.b16 %v223
    %v638 = vunpack.c.l.b16 %v224
    %v639 = vunpack.c.h.b16 %v224
    %v640 = vunpack.c.l.b16 %v225
    %v641 = vunpack.c.h.b16 %v225
    %v642 = vunpack.c.l.b16 %v226
    %v643 = vunpack.c.h.b16 %v226
    %v644 = vunpack.c.l.b16 %v227
    %v645 = vunpack.c.h.b16 %v227
    %v646 = vunpack.c.l.b16 %v228
    %v647 = vunpack.c.h.b16 %v228
    %v648 = vunpack.c.l.b16 %v229
    %v649 = vunpack.c.h.b16 %v229
    %v650 = vunpack.c.l.b16 %v230
    %v651 = vunpack.c.h.b16 %v230
    %v652 = vunpack.c.l.b16 %v231
    %v653 = vunpack.c.h.b16 %v231
    %v654 = vunpack.c.l.b16 %v232
    %v655 = vunpack.c.h.b16 %v232
    %v656 = vunpack.c.l.b16 %v233
    %v657 = vunpack.c.h.b16 %v233
    %v658 = vunpack.c.l.b16 %v234
    %v659 = vunpack.c.h.b16 %v234
    %v660 = vunpack.c.l.b16 %v235
    %v661 = vunpack.c.h.b16 %v235
    %v662 = vunpack.c.l.b16 %v236
    %v663 = vunpack.c.h.b16 %v236
    %v664 = vunpack.c.l.b16 %v237
    %v665 = vunpack.c.h.b16 %v237
    %v666 = vunpack.c.l.b16 %v238
    %v667 = vunpack.c.h.b16 %v238
    %v668 = vunpack.c.l.b16 %v239
    %v669 = vunpack.c.h.b16 %v239
    %v670 = vunpack.c.l.b16 %v240
    %v671 = vunpack.c.h.b16 %v240
    %v672 = vunpack.c.l.b16 %v241
    %v673 = vunpack.c.h.b16 %v241
    %v674 = vunpack.c.l.b16 %v242
    %v675 = vunpack.c.h.b16 %v242
    %v676 = vunpack.c.l.b16 %v243
    %v677 = vunpack.c.h.b16 %v243
    %v678 = vunpack.c.l.b16 %v244
    %v679 = vunpack.c.h.b16 %v244
    %v680 = vunpack.c.l.b16 %v245
    %v681 = vunpack.c.h.b16 %v245
    %v682 = vunpack.c.l.b16 %v246
    %v683 = vunpack.c.h.b16 %v246
    %v684 = vunpack.c.l.b16 %v247
    %v685 = vunpack.c.h.b16 %v247
    %v686 = vunpack.c.l.b16 %v248
    %v687 = vunpack.c.h.b16 %v248
    %v688 = vunpack.c.l.b16 %v249
    %v689 = vunpack.c.h.b16 %v249
    %v690 = vunpack.c.l.b16 %v250
    %v691 = vunpack.c.h.b16 %v250
    %v692 = vunpack.c.l.b16 %v251
    %v693 = vunpack.c.h.b16 %v251
    %v694 = vunpack.c.l.b16 %v252
    %v695 = vunpack.c.h.b16 %v252
    %v696 = vunpack.c.l.b16 %v253
    %v697 = vunpack.c.h.b16 %v253
    %v698 = vunpack.c.l.b16 %v254
    %v699 = vunpack.c.h.b16 %v254
    %v700 = vunpack.c.l.b16 %v255
    %v701 = vunpack.c.h.b16 %v255
    %v702 = vunpack.c.l.b16 %v256
    %v703 = vunpack.c.h.b16 %v256
    %v704 = vunpack.c.l.b16 %v257
    %v705 = vunpack.c.h.b16 %v257
    %v706 = vpack.c.b16 %v454, %v450
    %v707 = vpack.c.b16 %v455, %v451
    %v708 = vpack.c.b16 %v456, %v452
    %v709 = vpack.c.b16 %v457, %v453
    %v710 = vpack.c.b16 %v462, %v458
    %v711 = vpack.c.b16 %v463, %v459
    %v712 = vpack.c.b16 %v464, %v460
    %v713 = vpack.c.b16 %v465, %v461
    %v714 = vpack.c.b16 %v470, %v466
    %v715 = vpack.c.b16 %v471, %v467
    %v716 = vpack.c.b16 %v472, %v468
    %v717 = vpack.c.b16 %v473, %v469
    %v718 = vpack.c.b16 %v478, %v474
    %v719 = vpack.c.b16 %v479, %v475
    %v720 = vpack.c.b16 %v480, %v476
    %v721 = vpack.c.b16 %v481, %v477
    %v722 = vpack.c.b16 %v486, %v482
    %v723 = vpack.c.b16 %v487, %v483
    %v724 = vpack.c.b16 %v488, %v484
    %v725 = vpack.c.b16 %v489, %v485
    %v726 = vpack.c.b16 %v494, %v490
    %v727 = vpack.c.b16 %v495, %v491
    %v728 = vpack.c.b16 %v496, %v492
    %v729 = vpack.c.b16 %v497, %v493
    %v730 = vpack.c.b16 %v502, %v498
    %v731 = vpack.c.b16 %v503, %v499
    %v732 = vpack.c.b16 %v504, %v500
    %v733 = vpack.c.b16 %v505, %v501
    %v734 = vpack.c.b16 %v510, %v506
    %v735 = vpack.c.b16 %v511, %v507
    %v736 = vpack.c.b16 %v512, %v508
    %v737 = vpack.c.b16 %v513, %v509
    %v738 = vpack.c.b16 %v518, %v514
    %v739 = vpack.c.b16 %v519, %v515
    %v740 = vpack.c.b16 %v520, %v516
    %v741 = vpack.c.b16 %v521, %v517
    %v742 = vpack.c.b16 %v526, %v522
    %v743 = vpack.c.b16 %v527, %v523
    %v744 = vpack.c.b16 %v528, %v524
    %v745 = vpack.c.b16 %v529, %v525
    %v746 = vpack.c.b16 %v534, %v530
    %v747 = vpack.c.b16 %v535, %v531
    %v748 = vpack.c.b16 %v536, %v532
    %v749 = vpack.c.b16 %v537, %v533
    %v750 = vpack.c.b16 %v542, %v538
    %v751 = vpack.c.b16 %v543, %v539
    %v752 = vpack.c.b16 %v544, %v540
    %v753 = vpack.c.b16 %v545, %v541
    %v754 = vpack.c.b16 %v550, %v546
    %v755 = vpack.c.b16 %v551, %v547
    %v756 = vpack.c.b16 %v552, %v548
    %v757 = vpack.c.b16 %v553, %v549
    %v758 = vpack.c.b16 %v558, %v554
    %v759 = vpack.c.b16 %v559, %v555
    %v760 = vpack.c.b16 %v560, %v556
    %v761 = vpack.c.b16 %v561, %v557
    %v762 = vpack.c.b16 %v566, %v562
    %v763 = vpack.c.b16 %v567, %v563
    %v764 = vpack.c.b16 %v568, %v564
    %v765 = vpack.c.b16 %v569, %v565
    %v766 = vpack.c.b16 %v574, %v570
    %v767 = vpack.c.b16 %v575, %v571
    %v768 = vpack.c.b16 %v576, %v572
    %v769 = vpack.c.b16 %v577, %v573
    %v770 = vpack.c.b16 %v582, %v578
    %v771 = vpack.c.b16 %v583, %v579
    %v772 = vpack.c.b16 %v584, %v580
    %v773 = vpack.c.b16 %v585, %v581
    %v774 = vpack.c.b16 %v590, %v586
    %v775 = vpack.c.b16 %v591, %v587
    %v776 = vpack.c.b16 %v592, %v588
    %v777 = vpack.c.b16 %v593, %v589
    %v778 = vpack.c.b16 %v598, %v594
    %v779 = vpack.c.b16 %v599, %v595
    %v780 = vpack.c.b16 %v600, %v596
    %v781 = vpack.c.b16 %v601, %v597
    %v782 = vpack.c.b16 %v606, %v602
    %v783 = vpack.c.b16 %v607, %v603
    %v784 = vpack.c.b16 %v608, %v604
    %v785 = vpack.c.b16 %v609, %v605
    %v786 = vpack.c.b16 %v614, %v610
    %v787 = vpack.c.b16 %v615, %v611
    %v788 = vpack.c.b16 %v616, %v612
    %v789 = vpack.c.b16 %v617, %v613
    %v790 = vpack.c.b16 %v622, %v618
    %v791 = vpack.c.b16 %v623, %v619
    %v792 = vpack.c.b16 %v624, %v620
    %v793 = vpack.c.b16 %v625, %v621
    %v794 = vpack.c.b16 %v630, %v626
    %v795 = vpack.c.b16 %v631, %v627
    %v796 = vpack.c.b16 %v632, %v628
    %v797 = vpack.c.b16 %v633, %v629
    %v798 = vpack.c.b16 %v638, %v634
    %v799 = vpack.c.b16 %v639, %v635
    %v800 = vpack.c.b16 %v640, %v636
    %v801 = vpack.c.b16 %v641, %v637
    %v802 = vpack.c.b16 %v646, %v642
    %v803 = vpack.c.b16 %v647, %v643
    %v804 = vpack.c.b16 %v648, %v644
    %v805 = vpack.c.b16 %v649, %v645
    %v806 = vpack.c.b16 %v654, %v650
    %v807 = vpack.c.b16 %v655, %v651
    %v808 = vpack.c.b16 %v656, %v652
    %v809 = vpack.c.b16 %v657, %v653
    %v810 = vpack.c.b16 %v662, %v658
    %v811 = vpack.c.b16 %v663, %v659
    %v812 = vpack.c.b16 %v664, %v660
    %v813 = vpack.c.b16 %v665, %v661
    %v814 = vpack.c.b16 %v670, %v666
    %v815 = vpack.c.b16 %v671, %v667
    %v816 = vpack.c.b16 %v672, %v668
    %v817 = vpack.c.b16 %v673, %v669
    %v818 = vpack.c.b16 %v678, %v674
    %v819 = vpack.c.b16 %v679, %v675
    %v820 = vpack.c.b16 %v680, %v676
    %v821 = vpack.c.b16 %v681, %v677
    %v822 = vpack.c.b16 %v686, %v682
    %v823 = vpack.c.b16 %v687, %v683
    %v824 = vpack.c.b16 %v688, %v684
    %v825 = vpack.c.b16 %v689, %v685
    %v826 = vpack.c.b16 %v694, %v690
    %v827 = vpack.c.b16 %v695, %v691
    %v828 = vpack.c.b16 %v696, %v692
    %v829 = vpack.c.b16 %v697, %v693
    %v830 = vpack.c.b16 %v702, %v698
    %v831 = vpack.c.b16 %v703, %v699
    %v832 = vpack.c.b16 %v704, %v700
    %v833 = vpack.c.b16 %v705, %v701
    %v1026 = vunpack.c.l.b16 %v258
    %v1027 = vunpack.c.l.b16 %v259
    %v1028 = vunpack.c.l.b16 %v260
    %v1029 = vunpack.c.l.b16 %v261
    %v1030 = vunpack.c.l.b16 %v262
    %v1031 = vunpack.c.l.b16 %v263
    %v1032 = vunpack.c.l.b16 %v264
    %v1033 = vunpack.c.l.b16 %v265
    %v1034 = vunpack.c.l.b16 %v266
    %v1035 = vunpack.c.l.b16 %v267
    %v1036 = vunpack.c.l.b16 %v268
    %v1037 = vunpack.c.l.b16 %v269
    %v1038 = vunpack.c.l.b16 %v270
    %v1039 = vunpack.c.l.b16 %v271
    %v1040 = vunpack.c.l.b16 %v272
    %v1041 = vunpack.c.l.b16 %v273
    %v1042 = vunpack.c.l.b16 %v274
    %v1043 = vunpack.c.l.b16 %v275
    %v1044 = vunpack.c.l.b16 %v276
    %v1045 = vunpack.c.l.b16 %v277
    %v1046 = vunpack.c.l.b16 %v278
    %v1047 = vunpack.c.l.b16 %v279
    %v1048 = vunpack.c.l.b16 %v280
    %v1049 = vunpack.c.l.b16 %v281
    %v1050 = vunpack.c.l.b16 %v282
    %v1051 = vunpack.c.l.b16 %v283
    %v1052 = vunpack.c.l.b16 %v284
    %v1053 = vunpack.c.l.b16 %v285
    %v1054 = vunpack.c.l.b16 %v286
    %v1055 = vunpack.c.l.b16 %v287
    %v1056 = vunpack.c.l.b16 %v288
    %v1057 = vunpack.c.l.b16 %v289
    %v1058 = vunpack.c.l.b16 %v290
    %v1059 = vunpack.c.l.b16 %v291
    %v1060 = vunpack.c.l.b16 %v292
    %v1061 = vunpack.c.l.b16 %v293
    %v1062 = vunpack.c.l.b16 %v294
    %v1063 = vunpack.c.l.b16 %v295
    %v1064 = vunpack.c.l.b16 %v296
    %v1065 = vunpack.c.l.b16 %v297
    %v1066 = vunpack.c.l.b16 %v298
    %v1067 = vunpack.c.l.b16 %v299
    %v1068 = vunpack.c.l.b16 %v300
    %v1069 = vunpack.c.l.b16 %v301
    %v1070 = vunpack.c.l.b16 %v302
    %v1071 = vunpack.c.l.b16 %v303
    %v1072 = vunpack.c.l.b16 %v304
    %v1073 = vunpack.c.l.b16 %v305
    %v1074 = vunpack.c.l.b16 %v306
    %v1075 = vunpack.c.l.b16 %v307
    %v1076 = vunpack.c.l.b16 %v308
    %v1077 = vunpack.c.l.b16 %v309
    %v1078 = vunpack.c.l.b16 %v310
    %v1079 = vunpack.c.l.b16 %v311
    %v1080 = vunpack.c.l.b16 %v312
    %v1081 = vunpack.c.l.b16 %v313
    %v1082 = vunpack.c.l.b16 %v314
    %v1083 = vunpack.c.l.b16 %v315
    %v1084 = vunpack.c.l.b16 %v316
    %v1085 = vunpack.c.l.b16 %v317
    %v1086 = vunpack.c.l.b16 %v318
    %v1087 = vunpack.c.l.b16 %v319
    %v1088 = vunpack.c.l.b16 %v320
    %v1089 = vunpack.c.l.b16 %v321
    %v1090 = vpack.c.b16 %v1027, %v1026
    %v1091 = vpack.c.b16 %v1029, %v1028
    %v1092 = vpack.c.b16 %v1031, %v1030
    %v1093 = vpack.c.b16 %v1033, %v1032
    %v1094 = vpack.c.b16 %v1035, %v1034
    %v1095 = vpack.c.b16 %v1037, %v1036
    %v1096 = vpack.c.b16 %v1039, %v1038
    %v1097 = vpack.c.b16 %v1041, %v1040
    %v1098 = vpack.c.b16 %v1043, %v1042
    %v1099 = vpack.c.b16 %v1045, %v1044
    %v1100 = vpack.c.b16 %v1047, %v1046
    %v1101 = vpack.c.b16 %v1049, %v1048
    %v1102 = vpack.c.b16 %v1051, %v1050
    %v1103 = vpack.c.b16 %v1053, %v1052
    %v1104 = vpack.c.b16 %v1055, %v1054
    %v1105 = vpack.c.b16 %v1057, %v1056
    %v1106 = vpack.c.b16 %v1059, %v1058
    %v1107 = vpack.c.b16 %v1061, %v1060
    %v1108 = vpack.c.b16 %v1063, %v1062
    %v1109 = vpack.c.b16 %v1065, %v1064
    %v1110 = vpack.c.b16 %v1067, %v1066
    %v1111 = vpack.c.b16 %v1069, %v1068
    %v1112 = vpack.c.b16 %v1071, %v1070
    %v1113 = vpack.c.b16 %v1073, %v1072
    %v1114 = vpack.c.b16 %v1075, %v1074
    %v1115 = vpack.c.b16 %v1077, %v1076
    %v1116 = vpack.c.b16 %v1079, %v1078
    %v1117 = vpack.c.b16 %v1081, %v1080
    %v1118 = vpack.c.b16 %v1083, %v1082
    %v1119 = vpack.c.b16 %v1085, %v1084
    %v1120 = vpack.c.b16 %v1087, %v1086
    %v1121 = vpack.c.b16 %v1089, %v1088
    %1154 = vmatprep.subr.bf16.mxu0 0
    %1155 = vmatpush1.bf16.msra.mxu0 %v1090
    %1156 = vmatprep.subr.bf16.mxu0 0
    %1157 = vmatpush1.bf16.msra.mxu0 %v1091
    %1158 = vmatprep.subr.bf16.mxu0 0
    %1159 = vmatpush1.bf16.msra.mxu0 %v1092
    %1160 = vmatprep.subr.bf16.mxu0 0
    %1161 = vmatpush1.bf16.msra.mxu0 %v1093
    %1162 = vmatprep.subr.bf16.mxu0 0
    %1163 = vmatpush1.bf16.msra.mxu0 %v1094
    %1164 = vmatprep.subr.bf16.mxu0 0
    %1165 = vmatpush1.bf16.msra.mxu0 %v1095
    %1166 = vmatprep.subr.bf16.mxu0 0
    %1167 = vmatpush1.bf16.msra.mxu0 %v1096
    %1168 = vmatprep.subr.bf16.mxu0 0
    %1169 = vmatpush1.bf16.msra.mxu0 %v1097
    %1170 = vmatprep.subr.bf16.mxu0 0
    %1171 = vmatpush1.bf16.msra.mxu0 %v1098
    %1172 = vmatprep.subr.bf16.mxu0 0
    %1173 = vmatpush1.bf16.msra.mxu0 %v1099
    %1174 = vmatprep.subr.bf16.mxu0 0
    %1175 = vmatpush1.bf16.msra.mxu0 %v1100
    %1176 = vmatprep.subr.bf16.mxu0 0
    %1177 = vmatpush1.bf16.msra.mxu0 %v1101
    %1178 = vmatprep.subr.bf16.mxu0 0
    %1179 = vmatpush1.bf16.msra.mxu0 %v1102
    %1180 = vmatprep.subr.bf16.mxu0 0
    %1181 = vmatpush1.bf16.msra.mxu0 %v1103
    %1182 = vmatprep.subr.bf16.mxu0 0
    %1183 = vmatpush1.bf16.msra.mxu0 %v1104
    %1184 = vmatprep.subr.bf16.mxu0 0
    %1185 = vmatpush1.bf16.msra.mxu0 %v1105
    %1186 = vmatprep.mubr.bf16.mxu0 %v707
    %1187 = vmatmul.mubr.bf16.gmra.mrb[0].mxu0 %v706
    %v1188 = vpop.f32.mrb[0].mxu0
    %v1189 = vadd.f32 0.0, %v1188
    %v1190 = vpop.f32.mrb[0].mxu0
    %v1191 = vpop.f32.mrb[0].mxu0
    %v1192 = vadd.f32 0.0, %v1191
    %v1193 = vpop.f32.mrb[0].mxu0
    %1194 = vmatprep.mubr.bf16.mxu0 %v711
    %1195 = vmatmul.mubr.bf16.gmra.mrb[0].mxu0 %v710
    %v1196 = vpop.f32.mrb[0].mxu0
    %v1197 = vadd.f32 0.0, %v1196
    %v1198 = vpop.f32.mrb[0].mxu0
    %v1199 = vpop.f32.mrb[0].mxu0
    %v1200 = vadd.f32 0.0, %v1199
    %v1201 = vpop.f32.mrb[0].mxu0
    %1202 = vmatprep.mubr.bf16.mxu0 %v715
    %1203 = vmatmul.mubr.bf16.gmra.mrb[0].mxu0 %v714
    %v1204 = vpop.f32.mrb[0].mxu0
    %v1205 = vadd.f32 0.0, %v1204
    %v1206 = vpop.f32.mrb[0].mxu0
    %v1207 = vpop.f32.mrb[0].mxu0
    %v1208 = vadd.f32 0.0, %v1207
    %v1209 = vpop.f32.mrb[0].mxu0
    %1210 = vmatprep.mubr.bf16.mxu0 %v719
    %1211 = vmatmul.mubr.bf16.gmra.mrb[0].mxu0 %v718
    %v1212 = vpop.f32.mrb[0].mxu0
    %v1213 = vadd.f32 0.0, %v1212
    %v1214 = vpop.f32.mrb[0].mxu0
    %v1215 = vpop.f32.mrb[0].mxu0
    %v1216 = vadd.f32 0.0, %v1215
    %v1217 = vpop.f32.mrb[0].mxu0
    %1218 = vmatprep.mubr.bf16.mxu0 %v723
    %1219 = vmatmul.mubr.bf16.gmra.mrb[0].mxu0 %v722
    %v1220 = vpop.f32.mrb[0].mxu0
    %v1221 = vadd.f32 0.0, %v1220
    %v1222 = vpop.f32.mrb[0].mxu0
    %v1223 = vpop.f32.mrb[0].mxu0
    %v1224 = vadd.f32 0.0, %v1223
    %v1225 = vpop.f32.mrb[0].mxu0
    %1226 = vmatprep.mubr.bf16.mxu0 %v727
    %1227 = vmatmul.mubr.bf16.gmra.mrb[0].mxu0 %v726
    %v1228 = vpop.f32.mrb[0].mxu0
    %v1229 = vadd.f32 0.0, %v1228
    %v1230 = vpop.f32.mrb[0].mxu0
    %v1231 = vpop.f32.mrb[0].mxu0
    %v1232 = vadd.f32 0.0, %v1231
    %v1233 = vpop.f32.mrb[0].mxu0
    %1234 = vmatprep.mubr.bf16.mxu0 %v731
    %1235 = vmatmul.mubr.bf16.gmra.mrb[0].mxu0 %v730
    %v1236 = vpop.f32.mrb[0].mxu0
    %v1237 = vadd.f32 0.0, %v1236
    %v1238 = vpop.f32.mrb[0].mxu0
    %v1239 = vpop.f32.mrb[0].mxu0
    %v1240 = vadd.f32 0.0, %v1239
    %v1241 = vpop.f32.mrb[0].mxu0
    %1242 = vmatprep.mubr.bf16.mxu0 %v735
    %1243 = vmatmul.mubr.bf16.gmra.mrb[0].mxu0 %v734
    %v1244 = vpop.f32.mrb[0].mxu0
    %v1245 = vadd.f32 0.0, %v1244
    %v1246 = vpop.f32.mrb[0].mxu0
    %v1247 = vpop.f32.mrb[0].mxu0
    %v1248 = vadd.f32 0.0, %v1247
    %v1249 = vpop.f32.mrb[0].mxu0
    %1250 = vmatprep.mubr.bf16.mxu0 %v739
    %1251 = vmatmul.mubr.bf16.gmra.mrb[0].mxu0 %v738
    %v1252 = vpop.f32.mrb[0].mxu0
    %v1253 = vadd.f32 0.0, %v1252
    %v1254 = vpop.f32.mrb[0].mxu0
    %v1255 = vpop.f32.mrb[0].mxu0
    %v1256 = vadd.f32 0.0, %v1255
    %v1257 = vpop.f32.mrb[0].mxu0
    %1258 = vmatprep.mubr.bf16.mxu0 %v743
    %1259 = vmatmul.mubr.bf16.gmra.mrb[0].mxu0 %v742
    %v1260 = vpop.f32.mrb[0].mxu0
    %v1261 = vadd.f32 0.0, %v1260
    %v1262 = vpop.f32.mrb[0].mxu0
    %v1263 = vpop.f32.mrb[0].mxu0
    %v1264 = vadd.f32 0.0, %v1263
    %v1265 = vpop.f32.mrb[0].mxu0
    %1266 = vmatprep.mubr.bf16.mxu0 %v747
    %1267 = vmatmul.mubr.bf16.gmra.mrb[0].mxu0 %v746
    %v1268 = vpop.f32.mrb[0].mxu0
    %v1269 = vadd.f32 0.0, %v1268
    %v1270 = vpop.f32.mrb[0].mxu0
    %v1271 = vpop.f32.mrb[0].mxu0
    %v1272 = vadd.f32 0.0, %v1271
    %v1273 = vpop.f32.mrb[0].mxu0
    %1274 = vmatprep.mubr.bf16.mxu0 %v751
    %1275 = vmatmul.mubr.bf16.gmra.mrb[0].mxu0 %v750
    %v1276 = vpop.f32.mrb[0].mxu0
    %v1277 = vadd.f32 0.0, %v1276
    %v1278 = vpop.f32.mrb[0].mxu0
    %v1279 = vpop.f32.mrb[0].mxu0
    %v1280 = vadd.f32 0.0, %v1279
    %v1281 = vpop.f32.mrb[0].mxu0
    %1282 = vmatprep.mubr.bf16.mxu0 %v755
    %1283 = vmatmul.mubr.bf16.gmra.mrb[0].mxu0 %v754
    %v1284 = vpop.f32.mrb[0].mxu0
    %v1285 = vadd.f32 0.0, %v1284
    %v1286 = vpop.f32.mrb[0].mxu0
    %v1287 = vpop.f32.mrb[0].mxu0
    %v1288 = vadd.f32 0.0, %v1287
    %v1289 = vpop.f32.mrb[0].mxu0
    %1290 = vmatprep.mubr.bf16.mxu0 %v759
    %1291 = vmatmul.mubr.bf16.gmra.mrb[0].mxu0 %v758
    %v1292 = vpop.f32.mrb[0].mxu0
    %v1293 = vadd.f32 0.0, %v1292
    %v1294 = vpop.f32.mrb[0].mxu0
    %v1295 = vpop.f32.mrb[0].mxu0
    %v1296 = vadd.f32 0.0, %v1295
    %v1297 = vpop.f32.mrb[0].mxu0
    %1298 = vmatprep.mubr.bf16.mxu0 %v763
    %1299 = vmatmul.mubr.bf16.gmra.mrb[0].mxu0 %v762
    %v1300 = vpop.f32.mrb[0].mxu0
    %v1301 = vadd.f32 0.0, %v1300
    %v1302 = vpop.f32.mrb[0].mxu0
    %v1303 = vpop.f32.mrb[0].mxu0
    %v1304 = vadd.f32 0.0, %v1303
    %v1305 = vpop.f32.mrb[0].mxu0
    %1306 = vmatprep.mubr.bf16.mxu0 %v767
    %1307 = vmatmul.mubr.bf16.gmra.mrb[0].mxu0 %v766
    %v1308 = vpop.f32.mrb[0].mxu0
    %v1309 = vadd.f32 0.0, %v1308
    %v1310 = vpop.f32.mrb[0].mxu0
    %v1311 = vpop.f32.mrb[0].mxu0
    %v1312 = vadd.f32 0.0, %v1311
    %v1313 = vpop.f32.mrb[0].mxu0
    %1314 = vmatprep.mubr.bf16.mxu0 %v771
    %1315 = vmatmul.mubr.bf16.gmra.mrb[0].mxu0 %v770
    %v1316 = vpop.f32.mrb[0].mxu0
    %v1317 = vadd.f32 0.0, %v1316
    %v1318 = vpop.f32.mrb[0].mxu0
    %v1319 = vpop.f32.mrb[0].mxu0
    %v1320 = vadd.f32 0.0, %v1319
    %v1321 = vpop.f32.mrb[0].mxu0
    %1322 = vmatprep.mubr.bf16.mxu0 %v775
    %1323 = vmatmul.mubr.bf16.gmra.mrb[0].mxu0 %v774
    %v1324 = vpop.f32.mrb[0].mxu0
    %v1325 = vadd.f32 0.0, %v1324
    %v1326 = vpop.f32.mrb[0].mxu0
    %v1327 = vpop.f32.mrb[0].mxu0
    %v1328 = vadd.f32 0.0, %v1327
    %v1329 = vpop.f32.mrb[0].mxu0
    %1330 = vmatprep.mubr.bf16.mxu0 %v779
    %1331 = vmatmul.mubr.bf16.gmra.mrb[0].mxu0 %v778
    %v1332 = vpop.f32.mrb[0].mxu0
    %v1333 = vadd.f32 0.0, %v1332
    %v1334 = vpop.f32.mrb[0].mxu0
    %v1335 = vpop.f32.mrb[0].mxu0
    %v1336 = vadd.f32 0.0, %v1335
    %v1337 = vpop.f32.mrb[0].mxu0
    %1338 = vmatprep.mubr.bf16.mxu0 %v783
    %1339 = vmatmul.mubr.bf16.gmra.mrb[0].mxu0 %v782
    %v1340 = vpop.f32.mrb[0].mxu0
    %v1341 = vadd.f32 0.0, %v1340
    %v1342 = vpop.f32.mrb[0].mxu0
    %v1343 = vpop.f32.mrb[0].mxu0
    %v1344 = vadd.f32 0.0, %v1343
    %v1345 = vpop.f32.mrb[0].mxu0
    %1346 = vmatprep.mubr.bf16.mxu0 %v787
    %1347 = vmatmul.mubr.bf16.gmra.mrb[0].mxu0 %v786
    %v1348 = vpop.f32.mrb[0].mxu0
    %v1349 = vadd.f32 0.0, %v1348
    %v1350 = vpop.f32.mrb[0].mxu0
    %v1351 = vpop.f32.mrb[0].mxu0
    %v1352 = vadd.f32 0.0, %v1351
    %v1353 = vpop.f32.mrb[0].mxu0
    %1354 = vmatprep.mubr.bf16.mxu0 %v791
    %1355 = vmatmul.mubr.bf16.gmra.mrb[0].mxu0 %v790
    %v1356 = vpop.f32.mrb[0].mxu0
    %v1357 = vadd.f32 0.0, %v1356
    %v1358 = vpop.f32.mrb[0].mxu0
    %v1359 = vpop.f32.mrb[0].mxu0
    %v1360 = vadd.f32 0.0, %v1359
    %v1361 = vpop.f32.mrb[0].mxu0
    %1362 = vmatprep.mubr.bf16.mxu0 %v795
    %1363 = vmatmul.mubr.bf16.gmra.mrb[0].mxu0 %v794
    %v1364 = vpop.f32.mrb[0].mxu0
    %v1365 = vadd.f32 0.0, %v1364
    %v1366 = vpop.f32.mrb[0].mxu0
    %v1367 = vpop.f32.mrb[0].mxu0
    %v1368 = vadd.f32 0.0, %v1367
    %v1369 = vpop.f32.mrb[0].mxu0
    %1370 = vmatprep.mubr.bf16.mxu0 %v799
    %1371 = vmatmul.mubr.bf16.gmra.mrb[0].mxu0 %v798
    %v1372 = vpop.f32.mrb[0].mxu0
    %v1373 = vadd.f32 0.0, %v1372
    %v1374 = vpop.f32.mrb[0].mxu0
    %v1375 = vpop.f32.mrb[0].mxu0
    %v1376 = vadd.f32 0.0, %v1375
    %v1377 = vpop.f32.mrb[0].mxu0
    %1378 = vmatprep.mubr.bf16.mxu0 %v803
    %1379 = vmatmul.mubr.bf16.gmra.mrb[0].mxu0 %v802
    %v1380 = vpop.f32.mrb[0].mxu0
    %v1381 = vadd.f32 0.0, %v1380
    %v1382 = vpop.f32.mrb[0].mxu0
    %v1383 = vpop.f32.mrb[0].mxu0
    %v1384 = vadd.f32 0.0, %v1383
    %v1385 = vpop.f32.mrb[0].mxu0
    %1386 = vmatprep.mubr.bf16.mxu0 %v807
    %1387 = vmatmul.mubr.bf16.gmra.mrb[0].mxu0 %v806
    %v1388 = vpop.f32.mrb[0].mxu0
    %v1389 = vadd.f32 0.0, %v1388
    %v1390 = vpop.f32.mrb[0].mxu0
    %v1391 = vpop.f32.mrb[0].mxu0
    %v1392 = vadd.f32 0.0, %v1391
    %v1393 = vpop.f32.mrb[0].mxu0
    %1394 = vmatprep.mubr.bf16.mxu0 %v811
    %1395 = vmatmul.mubr.bf16.gmra.mrb[0].mxu0 %v810
    %v1396 = vpop.f32.mrb[0].mxu0
    %v1397 = vadd.f32 0.0, %v1396
    %v1398 = vpop.f32.mrb[0].mxu0
    %v1399 = vpop.f32.mrb[0].mxu0
    %v1400 = vadd.f32 0.0, %v1399
    %v1401 = vpop.f32.mrb[0].mxu0
    %1402 = vmatprep.mubr.bf16.mxu0 %v815
    %1403 = vmatmul.mubr.bf16.gmra.mrb[0].mxu0 %v814
    %v1404 = vpop.f32.mrb[0].mxu0
    %v1405 = vadd.f32 0.0, %v1404
    %v1406 = vpop.f32.mrb[0].mxu0
    %v1407 = vpop.f32.mrb[0].mxu0
    %v1408 = vadd.f32 0.0, %v1407
    %v1409 = vpop.f32.mrb[0].mxu0
    %1410 = vmatprep.mubr.bf16.mxu0 %v819
    %1411 = vmatmul.mubr.bf16.gmra.mrb[0].mxu0 %v818
    %v1412 = vpop.f32.mrb[0].mxu0
    %v1413 = vadd.f32 0.0, %v1412
    %v1414 = vpop.f32.mrb[0].mxu0
    %v1415 = vpop.f32.mrb[0].mxu0
    %v1416 = vadd.f32 0.0, %v1415
    %v1417 = vpop.f32.mrb[0].mxu0
    %1418 = vmatprep.mubr.bf16.mxu0 %v823
    %1419 = vmatmul.mubr.bf16.gmra.mrb[0].mxu0 %v822
    %v1420 = vpop.f32.mrb[0].mxu0
    %v1421 = vadd.f32 0.0, %v1420
    %v1422 = vpop.f32.mrb[0].mxu0
    %v1423 = vpop.f32.mrb[0].mxu0
    %v1424 = vadd.f32 0.0, %v1423
    %v1425 = vpop.f32.mrb[0].mxu0
    %1426 = vmatprep.mubr.bf16.mxu0 %v827
    %1427 = vmatmul.mubr.bf16.gmra.mrb[0].mxu0 %v826
    %v1428 = vpop.f32.mrb[0].mxu0
    %v1429 = vadd.f32 0.0, %v1428
    %v1430 = vpop.f32.mrb[0].mxu0
    %v1431 = vpop.f32.mrb[0].mxu0
    %v1432 = vadd.f32 0.0, %v1431
    %v1433 = vpop.f32.mrb[0].mxu0
    %1434 = vmatprep.mubr.bf16.mxu0 %v831
    %1435 = vmatmul.mubr.bf16.gmra.mrb[0].mxu0 %v830
    %v1436 = vpop.f32.mrb[0].mxu0
    %v1437 = vadd.f32 0.0, %v1436
    %v1438 = vpop.f32.mrb[0].mxu0
    %v1439 = vpop.f32.mrb[0].mxu0
    %v1440 = vadd.f32 0.0, %v1439
    %v1441 = vpop.f32.mrb[0].mxu0
    %1442 = vdwg.mxu0
    %1443 = vmatprep.subr.bf16.mxu0 0
    %1444 = vmatpush1.bf16.msra.mxu0 %v1106
    %1445 = vmatprep.subr.bf16.mxu0 0
    %1446 = vmatpush1.bf16.msra.mxu0 %v1107
    %1447 = vmatprep.subr.bf16.mxu0 0
    %1448 = vmatpush1.bf16.msra.mxu0 %v1108
    %1449 = vmatprep.subr.bf16.mxu0 0
    %1450 = vmatpush1.bf16.msra.mxu0 %v1109
    %1451 = vmatprep.subr.bf16.mxu0 0
    %1452 = vmatpush1.bf16.msra.mxu0 %v1110
    %1453 = vmatprep.subr.bf16.mxu0 0
    %1454 = vmatpush1.bf16.msra.mxu0 %v1111
    %1455 = vmatprep.subr.bf16.mxu0 0
    %1456 = vmatpush1.bf16.msra.mxu0 %v1112
    %1457 = vmatprep.subr.bf16.mxu0 0
    %1458 = vmatpush1.bf16.msra.mxu0 %v1113
    %1459 = vmatprep.subr.bf16.mxu0 0
    %1460 = vmatpush1.bf16.msra.mxu0 %v1114
    %1461 = vmatprep.subr.bf16.mxu0 0
    %1462 = vmatpush1.bf16.msra.mxu0 %v1115
    %1463 = vmatprep.subr.bf16.mxu0 0
    %1464 = vmatpush1.bf16.msra.mxu0 %v1116
    %1465 = vmatprep.subr.bf16.mxu0 0
    %1466 = vmatpush1.bf16.msra.mxu0 %v1117
    %1467 = vmatprep.subr.bf16.mxu0 0
    %1468 = vmatpush1.bf16.msra.mxu0 %v1118
    %1469 = vmatprep.subr.bf16.mxu0 0
    %1470 = vmatpush1.bf16.msra.mxu0 %v1119
    %1471 = vmatprep.subr.bf16.mxu0 0
    %1472 = vmatpush1.bf16.msra.mxu0 %v1120
    %1473 = vmatprep.subr.bf16.mxu0 0
    %1474 = vmatpush1.bf16.msra.mxu0 %v1121
    %1475 = vmatprep.mubr.bf16.mxu0 %v709
    %1476 = vmatmul.mubr.bf16.gmra.mrb[0].mxu0 %v708
    %v1477 = vpop.f32.mrb[0].mxu0
    %v1478 = vadd.f32 %v1189, %v1477
    %v1479 = vpop.f32.mrb[0].mxu0
    %v1480 = vpop.f32.mrb[0].mxu0
    %v1481 = vadd.f32 %v1192, %v1480
    %v1482 = vpop.f32.mrb[0].mxu0
    %1483 = vmatprep.mubr.bf16.mxu0 %v713
    %1484 = vmatmul.mubr.bf16.gmra.mrb[0].mxu0 %v712
    %v1485 = vpop.f32.mrb[0].mxu0
    %v1486 = vadd.f32 %v1197, %v1485
    %v1487 = vpop.f32.mrb[0].mxu0
    %v1488 = vpop.f32.mrb[0].mxu0
    %v1489 = vadd.f32 %v1200, %v1488
    %v1490 = vpop.f32.mrb[0].mxu0
    %1491 = vmatprep.mubr.bf16.mxu0 %v717
    %1492 = vmatmul.mubr.bf16.gmra.mrb[0].mxu0 %v716
    %v1493 = vpop.f32.mrb[0].mxu0
    %v1494 = vadd.f32 %v1205, %v1493
    %v1495 = vpop.f32.mrb[0].mxu0
    %v1496 = vpop.f32.mrb[0].mxu0
    %v1497 = vadd.f32 %v1208, %v1496
    %v1498 = vpop.f32.mrb[0].mxu0
    %1499 = vmatprep.mubr.bf16.mxu0 %v721
    %1500 = vmatmul.mubr.bf16.gmra.mrb[0].mxu0 %v720
    %v1501 = vpop.f32.mrb[0].mxu0
    %v1502 = vadd.f32 %v1213, %v1501
    %v1503 = vpop.f32.mrb[0].mxu0
    %v1504 = vpop.f32.mrb[0].mxu0
    %v1505 = vadd.f32 %v1216, %v1504
    %v1506 = vpop.f32.mrb[0].mxu0
    %1507 = vmatprep.mubr.bf16.mxu0 %v725
    %1508 = vmatmul.mubr.bf16.gmra.mrb[0].mxu0 %v724
    %v1509 = vpop.f32.mrb[0].mxu0
    %v1510 = vadd.f32 %v1221, %v1509
    %v1511 = vpop.f32.mrb[0].mxu0
    %v1512 = vpop.f32.mrb[0].mxu0
    %v1513 = vadd.f32 %v1224, %v1512
    %v1514 = vpop.f32.mrb[0].mxu0
    %1515 = vmatprep.mubr.bf16.mxu0 %v729
    %1516 = vmatmul.mubr.bf16.gmra.mrb[0].mxu0 %v728
    %v1517 = vpop.f32.mrb[0].mxu0
    %v1518 = vadd.f32 %v1229, %v1517
    %v1519 = vpop.f32.mrb[0].mxu0
    %v1520 = vpop.f32.mrb[0].mxu0
    %v1521 = vadd.f32 %v1232, %v1520
    %v1522 = vpop.f32.mrb[0].mxu0
    %1523 = vmatprep.mubr.bf16.mxu0 %v733
    %1524 = vmatmul.mubr.bf16.gmra.mrb[0].mxu0 %v732
    %v1525 = vpop.f32.mrb[0].mxu0
    %v1526 = vadd.f32 %v1237, %v1525
    %v1527 = vpop.f32.mrb[0].mxu0
    %v1528 = vpop.f32.mrb[0].mxu0
    %v1529 = vadd.f32 %v1240, %v1528
    %v1530 = vpop.f32.mrb[0].mxu0
    %1531 = vmatprep.mubr.bf16.mxu0 %v737
    %1532 = vmatmul.mubr.bf16.gmra.mrb[0].mxu0 %v736
    %v1533 = vpop.f32.mrb[0].mxu0
    %v1534 = vadd.f32 %v1245, %v1533
    %v1535 = vpop.f32.mrb[0].mxu0
    %v1536 = vpop.f32.mrb[0].mxu0
    %v1537 = vadd.f32 %v1248, %v1536
    %v1538 = vpop.f32.mrb[0].mxu0
    %1539 = vmatprep.mubr.bf16.mxu0 %v741
    %1540 = vmatmul.mubr.bf16.gmra.mrb[0].mxu0 %v740
    %v1541 = vpop.f32.mrb[0].mxu0
    %v1542 = vadd.f32 %v1253, %v1541
    %v1543 = vpop.f32.mrb[0].mxu0
    %v1544 = vpop.f32.mrb[0].mxu0
    %v1545 = vadd.f32 %v1256, %v1544
    %v1546 = vpop.f32.mrb[0].mxu0
    %1547 = vmatprep.mubr.bf16.mxu0 %v745
    %1548 = vmatmul.mubr.bf16.gmra.mrb[0].mxu0 %v744
    %v1549 = vpop.f32.mrb[0].mxu0
    %v1550 = vadd.f32 %v1261, %v1549
    %v1551 = vpop.f32.mrb[0].mxu0
    %v1552 = vpop.f32.mrb[0].mxu0
    %v1553 = vadd.f32 %v1264, %v1552
    %v1554 = vpop.f32.mrb[0].mxu0
    %1555 = vmatprep.mubr.bf16.mxu0 %v749
    %1556 = vmatmul.mubr.bf16.gmra.mrb[0].mxu0 %v748
    %v1557 = vpop.f32.mrb[0].mxu0
    %v1558 = vadd.f32 %v1269, %v1557
    %v1559 = vpop.f32.mrb[0].mxu0
    %v1560 = vpop.f32.mrb[0].mxu0
    %v1561 = vadd.f32 %v1272, %v1560
    %v1562 = vpop.f32.mrb[0].mxu0
    %1563 = vmatprep.mubr.bf16.mxu0 %v753
    %1564 = vmatmul.mubr.bf16.gmra.mrb[0].mxu0 %v752
    %v1565 = vpop.f32.mrb[0].mxu0
    %v1566 = vadd.f32 %v1277, %v1565
    %v1567 = vpop.f32.mrb[0].mxu0
    %v1568 = vpop.f32.mrb[0].mxu0
    %v1569 = vadd.f32 %v1280, %v1568
    %v1570 = vpop.f32.mrb[0].mxu0
    %1571 = vmatprep.mubr.bf16.mxu0 %v757
    %1572 = vmatmul.mubr.bf16.gmra.mrb[0].mxu0 %v756
    %v1573 = vpop.f32.mrb[0].mxu0
    %v1574 = vadd.f32 %v1285, %v1573
    %v1575 = vpop.f32.mrb[0].mxu0
    %v1576 = vpop.f32.mrb[0].mxu0
    %v1577 = vadd.f32 %v1288, %v1576
    %v1578 = vpop.f32.mrb[0].mxu0
    %1579 = vmatprep.mubr.bf16.mxu0 %v761
    %1580 = vmatmul.mubr.bf16.gmra.mrb[0].mxu0 %v760
    %v1581 = vpop.f32.mrb[0].mxu0
    %v1582 = vadd.f32 %v1293, %v1581
    %v1583 = vpop.f32.mrb[0].mxu0
    %v1584 = vpop.f32.mrb[0].mxu0
    %v1585 = vadd.f32 %v1296, %v1584
    %v1586 = vpop.f32.mrb[0].mxu0
    %1587 = vmatprep.mubr.bf16.mxu0 %v765
    %1588 = vmatmul.mubr.bf16.gmra.mrb[0].mxu0 %v764
    %v1589 = vpop.f32.mrb[0].mxu0
    %v1590 = vadd.f32 %v1301, %v1589
    %v1591 = vpop.f32.mrb[0].mxu0
    %v1592 = vpop.f32.mrb[0].mxu0
    %v1593 = vadd.f32 %v1304, %v1592
    %v1594 = vpop.f32.mrb[0].mxu0
    %1595 = vmatprep.mubr.bf16.mxu0 %v769
    %1596 = vmatmul.mubr.bf16.gmra.mrb[0].mxu0 %v768
    %v1597 = vpop.f32.mrb[0].mxu0
    %v1598 = vadd.f32 %v1309, %v1597
    %v1599 = vpop.f32.mrb[0].mxu0
    %v1600 = vpop.f32.mrb[0].mxu0
    %v1601 = vadd.f32 %v1312, %v1600
    %v1602 = vpop.f32.mrb[0].mxu0
    %1603 = vmatprep.mubr.bf16.mxu0 %v773
    %1604 = vmatmul.mubr.bf16.gmra.mrb[0].mxu0 %v772
    %v1605 = vpop.f32.mrb[0].mxu0
    %v1606 = vadd.f32 %v1317, %v1605
    %v1607 = vpop.f32.mrb[0].mxu0
    %v1608 = vpop.f32.mrb[0].mxu0
    %v1609 = vadd.f32 %v1320, %v1608
    %v1610 = vpop.f32.mrb[0].mxu0
    %1611 = vmatprep.mubr.bf16.mxu0 %v777
    %1612 = vmatmul.mubr.bf16.gmra.mrb[0].mxu0 %v776
    %v1613 = vpop.f32.mrb[0].mxu0
    %v1614 = vadd.f32 %v1325, %v1613
    %v1615 = vpop.f32.mrb[0].mxu0
    %v1616 = vpop.f32.mrb[0].mxu0
    %v1617 = vadd.f32 %v1328, %v1616
    %v1618 = vpop.f32.mrb[0].mxu0
    %1619 = vmatprep.mubr.bf16.mxu0 %v781
    %1620 = vmatmul.mubr.bf16.gmra.mrb[0].mxu0 %v780
    %v1621 = vpop.f32.mrb[0].mxu0
    %v1622 = vadd.f32 %v1333, %v1621
    %v1623 = vpop.f32.mrb[0].mxu0
    %v1624 = vpop.f32.mrb[0].mxu0
    %v1625 = vadd.f32 %v1336, %v1624
    %v1626 = vpop.f32.mrb[0].mxu0
    %1627 = vmatprep.mubr.bf16.mxu0 %v785
    %1628 = vmatmul.mubr.bf16.gmra.mrb[0].mxu0 %v784
    %v1629 = vpop.f32.mrb[0].mxu0
    %v1630 = vadd.f32 %v1341, %v1629
    %v1631 = vpop.f32.mrb[0].mxu0
    %v1632 = vpop.f32.mrb[0].mxu0
    %v1633 = vadd.f32 %v1344, %v1632
    %v1634 = vpop.f32.mrb[0].mxu0
    %1635 = vmatprep.mubr.bf16.mxu0 %v789
    %1636 = vmatmul.mubr.bf16.gmra.mrb[0].mxu0 %v788
    %v1637 = vpop.f32.mrb[0].mxu0
    %v1638 = vadd.f32 %v1349, %v1637
    %v1639 = vpop.f32.mrb[0].mxu0
    %v1640 = vpop.f32.mrb[0].mxu0
    %v1641 = vadd.f32 %v1352, %v1640
    %v1642 = vpop.f32.mrb[0].mxu0
    %1643 = vmatprep.mubr.bf16.mxu0 %v793
    %1644 = vmatmul.mubr.bf16.gmra.mrb[0].mxu0 %v792
    %v1645 = vpop.f32.mrb[0].mxu0
    %v1646 = vadd.f32 %v1357, %v1645
    %v1647 = vpop.f32.mrb[0].mxu0
    %v1648 = vpop.f32.mrb[0].mxu0
    %v1649 = vadd.f32 %v1360, %v1648
    %v1650 = vpop.f32.mrb[0].mxu0
    %1651 = vmatprep.mubr.bf16.mxu0 %v797
    %1652 = vmatmul.mubr.bf16.gmra.mrb[0].mxu0 %v796
    %v1653 = vpop.f32.mrb[0].mxu0
    %v1654 = vadd.f32 %v1365, %v1653
    %v1655 = vpop.f32.mrb[0].mxu0
    %v1656 = vpop.f32.mrb[0].mxu0
    %v1657 = vadd.f32 %v1368, %v1656
    %v1658 = vpop.f32.mrb[0].mxu0
    %1659 = vmatprep.mubr.bf16.mxu0 %v801
    %1660 = vmatmul.mubr.bf16.gmra.mrb[0].mxu0 %v800
    %v1661 = vpop.f32.mrb[0].mxu0
    %v1662 = vadd.f32 %v1373, %v1661
    %v1663 = vpop.f32.mrb[0].mxu0
    %v1664 = vpop.f32.mrb[0].mxu0
    %v1665 = vadd.f32 %v1376, %v1664
    %v1666 = vpop.f32.mrb[0].mxu0
    %1667 = vmatprep.mubr.bf16.mxu0 %v805
    %1668 = vmatmul.mubr.bf16.gmra.mrb[0].mxu0 %v804
    %v1669 = vpop.f32.mrb[0].mxu0
    %v1670 = vadd.f32 %v1381, %v1669
    %v1671 = vpop.f32.mrb[0].mxu0
    %v1672 = vpop.f32.mrb[0].mxu0
    %v1673 = vadd.f32 %v1384, %v1672
    %v1674 = vpop.f32.mrb[0].mxu0
    %1675 = vmatprep.mubr.bf16.mxu0 %v809
    %1676 = vmatmul.mubr.bf16.gmra.mrb[0].mxu0 %v808
    %v1677 = vpop.f32.mrb[0].mxu0
    %v1678 = vadd.f32 %v1389, %v1677
    %v1679 = vpop.f32.mrb[0].mxu0
    %v1680 = vpop.f32.mrb[0].mxu0
    %v1681 = vadd.f32 %v1392, %v1680
    %v1682 = vpop.f32.mrb[0].mxu0
    %1683 = vmatprep.mubr.bf16.mxu0 %v813
    %1684 = vmatmul.mubr.bf16.gmra.mrb[0].mxu0 %v812
    %v1685 = vpop.f32.mrb[0].mxu0
    %v1686 = vadd.f32 %v1397, %v1685
    %v1687 = vpop.f32.mrb[0].mxu0
    %v1688 = vpop.f32.mrb[0].mxu0
    %v1689 = vadd.f32 %v1400, %v1688
    %v1690 = vpop.f32.mrb[0].mxu0
    %1691 = vmatprep.mubr.bf16.mxu0 %v817
    %1692 = vmatmul.mubr.bf16.gmra.mrb[0].mxu0 %v816
    %v1693 = vpop.f32.mrb[0].mxu0
    %v1694 = vadd.f32 %v1405, %v1693
    %v1695 = vpop.f32.mrb[0].mxu0
    %v1696 = vpop.f32.mrb[0].mxu0
    %v1697 = vadd.f32 %v1408, %v1696
    %v1698 = vpop.f32.mrb[0].mxu0
    %1699 = vmatprep.mubr.bf16.mxu0 %v821
    %1700 = vmatmul.mubr.bf16.gmra.mrb[0].mxu0 %v820
    %v1701 = vpop.f32.mrb[0].mxu0
    %v1702 = vadd.f32 %v1413, %v1701
    %v1703 = vpop.f32.mrb[0].mxu0
    %v1704 = vpop.f32.mrb[0].mxu0
    %v1705 = vadd.f32 %v1416, %v1704
    %v1706 = vpop.f32.mrb[0].mxu0
    %1707 = vmatprep.mubr.bf16.mxu0 %v825
    %1708 = vmatmul.mubr.bf16.gmra.mrb[0].mxu0 %v824
    %v1709 = vpop.f32.mrb[0].mxu0
    %v1710 = vadd.f32 %v1421, %v1709
    %v1711 = vpop.f32.mrb[0].mxu0
    %v1712 = vpop.f32.mrb[0].mxu0
    %v1713 = vadd.f32 %v1424, %v1712
    %v1714 = vpop.f32.mrb[0].mxu0
    %1715 = vmatprep.mubr.bf16.mxu0 %v829
    %1716 = vmatmul.mubr.bf16.gmra.mrb[0].mxu0 %v828
    %v1717 = vpop.f32.mrb[0].mxu0
    %v1718 = vadd.f32 %v1429, %v1717
    %v1719 = vpop.f32.mrb[0].mxu0
    %v1720 = vpop.f32.mrb[0].mxu0
    %v1721 = vadd.f32 %v1432, %v1720
    %v1722 = vpop.f32.mrb[0].mxu0
    %1723 = vmatprep.mubr.bf16.mxu0 %v833
    %1724 = vmatmul.mubr.bf16.gmra.mrb[0].mxu0 %v832
    %v1725 = vpop.f32.mrb[0].mxu0
    %v1726 = vadd.f32 %v1437, %v1725
    %v1727 = vpop.f32.mrb[0].mxu0
    %v1728 = vpop.f32.mrb[0].mxu0
    %v1729 = vadd.f32 %v1440, %v1728
    %v1730 = vpop.f32.mrb[0].mxu0
    %1731 = vdwg.mxu0
    %1732 = vadd.xlane.f32.xlu0 %v1478
    %v1733 = vpop.xlane.xlu0 %1732
    %1734 = vadd.xlane.f32.xlu0 %v1481
    %v1735 = vpop.xlane.xlu0 %1734
    %1736 = vadd.xlane.f32.xlu0 %v1486
    %v1737 = vpop.xlane.xlu0 %1736
    %1738 = vadd.xlane.f32.xlu0 %v1489
    %v1739 = vpop.xlane.xlu0 %1738
    %1740 = vadd.xlane.f32.xlu0 %v1494
    %v1741 = vpop.xlane.xlu0 %1740
    %1742 = vadd.xlane.f32.xlu0 %v1497
    %v1743 = vpop.xlane.xlu0 %1742
    %1744 = vadd.xlane.f32.xlu0 %v1502
    %v1745 = vpop.xlane.xlu0 %1744
    %1746 = vadd.xlane.f32.xlu0 %v1505
    %v1747 = vpop.xlane.xlu0 %1746
    %1748 = vadd.xlane.f32.xlu0 %v1510
    %v1749 = vpop.xlane.xlu0 %1748
    %1750 = vadd.xlane.f32.xlu0 %v1513
    %v1751 = vpop.xlane.xlu0 %1750
    %1752 = vadd.xlane.f32.xlu0 %v1518
    %v1753 = vpop.xlane.xlu0 %1752
    %1754 = vadd.xlane.f32.xlu0 %v1521
    %v1755 = vpop.xlane.xlu0 %1754
    %1756 = vadd.xlane.f32.xlu0 %v1526
    %v1757 = vpop.xlane.xlu0 %1756
    %1758 = vadd.xlane.f32.xlu0 %v1529
    %v1759 = vpop.xlane.xlu0 %1758
    %1760 = vadd.xlane.f32.xlu0 %v1534
    %v1761 = vpop.xlane.xlu0 %1760
    %1762 = vadd.xlane.f32.xlu0 %v1537
    %v1763 = vpop.xlane.xlu0 %1762
    %1764 = vadd.xlane.f32.xlu0 %v1542
    %v1765 = vpop.xlane.xlu0 %1764
    %1766 = vadd.xlane.f32.xlu0 %v1545
    %v1767 = vpop.xlane.xlu0 %1766
    %1768 = vadd.xlane.f32.xlu0 %v1550
    %v1769 = vpop.xlane.xlu0 %1768
    %1770 = vadd.xlane.f32.xlu0 %v1553
    %v1771 = vpop.xlane.xlu0 %1770
    %1772 = vadd.xlane.f32.xlu0 %v1558
    %v1773 = vpop.xlane.xlu0 %1772
    %1774 = vadd.xlane.f32.xlu0 %v1561
    %v1775 = vpop.xlane.xlu0 %1774
    %1776 = vadd.xlane.f32.xlu0 %v1566
    %v1777 = vpop.xlane.xlu0 %1776
    %1778 = vadd.xlane.f32.xlu0 %v1569
    %v1779 = vpop.xlane.xlu0 %1778
    %1780 = vadd.xlane.f32.xlu0 %v1574
    %v1781 = vpop.xlane.xlu0 %1780
    %1782 = vadd.xlane.f32.xlu0 %v1577
    %v1783 = vpop.xlane.xlu0 %1782
    %1784 = vadd.xlane.f32.xlu0 %v1582
    %v1785 = vpop.xlane.xlu0 %1784
    %1786 = vadd.xlane.f32.xlu0 %v1585
    %v1787 = vpop.xlane.xlu0 %1786
    %1788 = vadd.xlane.f32.xlu0 %v1590
    %v1789 = vpop.xlane.xlu0 %1788
    %1790 = vadd.xlane.f32.xlu0 %v1593
    %v1791 = vpop.xlane.xlu0 %1790
    %1792 = vadd.xlane.f32.xlu0 %v1598
    %v1793 = vpop.xlane.xlu0 %1792
    %1794 = vadd.xlane.f32.xlu0 %v1601
    %v1795 = vpop.xlane.xlu0 %1794
    %1796 = vadd.xlane.f32.xlu0 %v1606
    %v1797 = vpop.xlane.xlu0 %1796
    %1798 = vadd.xlane.f32.xlu0 %v1609
    %v1799 = vpop.xlane.xlu0 %1798
    %1800 = vadd.xlane.f32.xlu0 %v1614
    %v1801 = vpop.xlane.xlu0 %1800
    %1802 = vadd.xlane.f32.xlu0 %v1617
    %v1803 = vpop.xlane.xlu0 %1802
    %1804 = vadd.xlane.f32.xlu0 %v1622
    %v1805 = vpop.xlane.xlu0 %1804
    %1806 = vadd.xlane.f32.xlu0 %v1625
    %v1807 = vpop.xlane.xlu0 %1806
    %1808 = vadd.xlane.f32.xlu0 %v1630
    %v1809 = vpop.xlane.xlu0 %1808
    %1810 = vadd.xlane.f32.xlu0 %v1633
    %v1811 = vpop.xlane.xlu0 %1810
    %1812 = vadd.xlane.f32.xlu0 %v1638
    %v1813 = vpop.xlane.xlu0 %1812
    %1814 = vadd.xlane.f32.xlu0 %v1641
    %v1815 = vpop.xlane.xlu0 %1814
    %1816 = vadd.xlane.f32.xlu0 %v1646
    %v1817 = vpop.xlane.xlu0 %1816
    %1818 = vadd.xlane.f32.xlu0 %v1649
    %v1819 = vpop.xlane.xlu0 %1818
    %1820 = vadd.xlane.f32.xlu0 %v1654
    %v1821 = vpop.xlane.xlu0 %1820
    %1822 = vadd.xlane.f32.xlu0 %v1657
    %v1823 = vpop.xlane.xlu0 %1822
    %1824 = vadd.xlane.f32.xlu0 %v1662
    %v1825 = vpop.xlane.xlu0 %1824
    %1826 = vadd.xlane.f32.xlu0 %v1665
    %v1827 = vpop.xlane.xlu0 %1826
    %1828 = vadd.xlane.f32.xlu0 %v1670
    %v1829 = vpop.xlane.xlu0 %1828
    %1830 = vadd.xlane.f32.xlu0 %v1673
    %v1831 = vpop.xlane.xlu0 %1830
    %1832 = vadd.xlane.f32.xlu0 %v1678
    %v1833 = vpop.xlane.xlu0 %1832
    %1834 = vadd.xlane.f32.xlu0 %v1681
    %v1835 = vpop.xlane.xlu0 %1834
    %1836 = vadd.xlane.f32.xlu0 %v1686
    %v1837 = vpop.xlane.xlu0 %1836
    %1838 = vadd.xlane.f32.xlu0 %v1689
    %v1839 = vpop.xlane.xlu0 %1838
    %1840 = vadd.xlane.f32.xlu0 %v1694
    %v1841 = vpop.xlane.xlu0 %1840
    %1842 = vadd.xlane.f32.xlu0 %v1697
    %v1843 = vpop.xlane.xlu0 %1842
    %1844 = vadd.xlane.f32.xlu0 %v1702
    %v1845 = vpop.xlane.xlu0 %1844
    %1846 = vadd.xlane.f32.xlu0 %v1705
    %v1847 = vpop.xlane.xlu0 %1846
    %1848 = vadd.xlane.f32.xlu0 %v1710
    %v1849 = vpop.xlane.xlu0 %1848
    %1850 = vadd.xlane.f32.xlu0 %v1713
    %v1851 = vpop.xlane.xlu0 %1850
    %1852 = vadd.xlane.f32.xlu0 %v1718
    %v1853 = vpop.xlane.xlu0 %1852
    %1854 = vadd.xlane.f32.xlu0 %v1721
    %v1855 = vpop.xlane.xlu0 %1854
    %1856 = vadd.xlane.f32.xlu0 %v1726
    %v1857 = vpop.xlane.xlu0 %1856
    %1858 = vadd.xlane.f32.xlu0 %v1729
    %v1859 = vpop.xlane.xlu0 %1858
    %v1860 = vmul.f32 %v1733, 0.020408163
    %v1861 = vmul.f32 %v1735, 0.020408163
    %v1862 = vmul.f32 %v1737, 0.020408163
    %v1863 = vmul.f32 %v1739, 0.020408163
    %v1864 = vmul.f32 %v1741, 0.020408163
    %v1865 = vmul.f32 %v1743, 0.020408163
    %v1866 = vmul.f32 %v1745, 0.020408163
    %v1867 = vmul.f32 %v1747, 0.020408163
    %v1868 = vmul.f32 %v1749, 0.020408163
    %v1869 = vmul.f32 %v1751, 0.020408163
    %v1870 = vmul.f32 %v1753, 0.020408163
    %v1871 = vmul.f32 %v1755, 0.020408163
    %v1872 = vmul.f32 %v1757, 0.020408163
    %v1873 = vmul.f32 %v1759, 0.020408163
    %v1874 = vmul.f32 %v1761, 0.020408163
    %v1875 = vmul.f32 %v1763, 0.020408163
    %v1876 = vmul.f32 %v1765, 0.020408163
    %v1877 = vmul.f32 %v1767, 0.020408163
    %v1878 = vmul.f32 %v1769, 0.020408163
    %v1879 = vmul.f32 %v1771, 0.020408163
    %v1880 = vmul.f32 %v1773, 0.020408163
    %v1881 = vmul.f32 %v1775, 0.020408163
    %v1882 = vmul.f32 %v1777, 0.020408163
    %v1883 = vmul.f32 %v1779, 0.020408163
    %v1884 = vmul.f32 %v1781, 0.020408163
    %v1885 = vmul.f32 %v1783, 0.020408163
    %v1886 = vmul.f32 %v1785, 0.020408163
    %v1887 = vmul.f32 %v1787, 0.020408163
    %v1888 = vmul.f32 %v1789, 0.020408163
    %v1889 = vmul.f32 %v1791, 0.020408163
    %v1890 = vmul.f32 %v1793, 0.020408163
    %v1891 = vmul.f32 %v1795, 0.020408163
    %v1892 = vmul.f32 %v1797, 0.020408163
    %v1893 = vmul.f32 %v1799, 0.020408163
    %v1894 = vmul.f32 %v1801, 0.020408163
    %v1895 = vmul.f32 %v1803, 0.020408163
    %v1896 = vmul.f32 %v1805, 0.020408163
    %v1897 = vmul.f32 %v1807, 0.020408163
    %v1898 = vmul.f32 %v1809, 0.020408163
    %v1899 = vmul.f32 %v1811, 0.020408163
    %v1900 = vmul.f32 %v1813, 0.020408163
    %v1901 = vmul.f32 %v1815, 0.020408163
    %v1902 = vmul.f32 %v1817, 0.020408163
    %v1903 = vmul.f32 %v1819, 0.020408163
    %v1904 = vmul.f32 %v1821, 0.020408163
    %v1905 = vmul.f32 %v1823, 0.020408163
    %v1906 = vmul.f32 %v1825, 0.020408163
    %v1907 = vmul.f32 %v1827, 0.020408163
    %v1908 = vmul.f32 %v1829, 0.020408163
    %v1909 = vmul.f32 %v1831, 0.020408163
    %v1910 = vmul.f32 %v1833, 0.020408163
    %v1911 = vmul.f32 %v1835, 0.020408163
    %v1912 = vmul.f32 %v1837, 0.020408163
    %v1913 = vmul.f32 %v1839, 0.020408163
    %v1914 = vmul.f32 %v1841, 0.020408163
    %v1915 = vmul.f32 %v1843, 0.020408163
    %v1916 = vmul.f32 %v1845, 0.020408163
    %v1917 = vmul.f32 %v1847, 0.020408163
    %v1918 = vmul.f32 %v1849, 0.020408163
    %v1919 = vmul.f32 %v1851, 0.020408163
    %v1920 = vmul.f32 %v1853, 0.020408163
    %v1921 = vmul.f32 %v1855, 0.020408163
    %v1922 = vmul.f32 %v1857, 0.020408163
    %v1923 = vmul.f32 %v1859, 0.020408163
    %v1924 = vsub.f32 %v1478, %v1860
    %v1925 = vsub.f32 %v1481, %v1861
    %v1926 = vsub.f32 %v1486, %v1862
    %v1927 = vsub.f32 %v1489, %v1863
    %v1928 = vsub.f32 %v1494, %v1864
    %v1929 = vsub.f32 %v1497, %v1865
    %v1930 = vsub.f32 %v1502, %v1866
    %v1931 = vsub.f32 %v1505, %v1867
    %v1932 = vsub.f32 %v1510, %v1868
    %v1933 = vsub.f32 %v1513, %v1869
    %v1934 = vsub.f32 %v1518, %v1870
    %v1935 = vsub.f32 %v1521, %v1871
    %v1936 = vsub.f32 %v1526, %v1872
    %v1937 = vsub.f32 %v1529, %v1873
    %v1938 = vsub.f32 %v1534, %v1874
    %v1939 = vsub.f32 %v1537, %v1875
    %v1940 = vsub.f32 %v1542, %v1876
    %v1941 = vsub.f32 %v1545, %v1877
    %v1942 = vsub.f32 %v1550, %v1878
    %v1943 = vsub.f32 %v1553, %v1879
    %v1944 = vsub.f32 %v1558, %v1880
    %v1945 = vsub.f32 %v1561, %v1881
    %v1946 = vsub.f32 %v1566, %v1882
    %v1947 = vsub.f32 %v1569, %v1883
    %v1948 = vsub.f32 %v1574, %v1884
    %v1949 = vsub.f32 %v1577, %v1885
    %v1950 = vsub.f32 %v1582, %v1886
    %v1951 = vsub.f32 %v1585, %v1887
    %v1952 = vsub.f32 %v1590, %v1888
    %v1953 = vsub.f32 %v1593, %v1889
    %v1954 = vsub.f32 %v1598, %v1890
    %v1955 = vsub.f32 %v1601, %v1891
    %v1956 = vsub.f32 %v1606, %v1892
    %v1957 = vsub.f32 %v1609, %v1893
    %v1958 = vsub.f32 %v1614, %v1894
    %v1959 = vsub.f32 %v1617, %v1895
    %v1960 = vsub.f32 %v1622, %v1896
    %v1961 = vsub.f32 %v1625, %v1897
    %v1962 = vsub.f32 %v1630, %v1898
    %v1963 = vsub.f32 %v1633, %v1899
    %v1964 = vsub.f32 %v1638, %v1900
    %v1965 = vsub.f32 %v1641, %v1901
    %v1966 = vsub.f32 %v1646, %v1902
    %v1967 = vsub.f32 %v1649, %v1903
    %v1968 = vsub.f32 %v1654, %v1904
    %v1969 = vsub.f32 %v1657, %v1905
    %v1970 = vsub.f32 %v1662, %v1906
    %v1971 = vsub.f32 %v1665, %v1907
    %v1972 = vsub.f32 %v1670, %v1908
    %v1973 = vsub.f32 %v1673, %v1909
    %v1974 = vsub.f32 %v1678, %v1910
    %v1975 = vsub.f32 %v1681, %v1911
    %v1976 = vsub.f32 %v1686, %v1912
    %v1977 = vsub.f32 %v1689, %v1913
    %v1978 = vsub.f32 %v1694, %v1914
    %v1979 = vsub.f32 %v1697, %v1915
    %v1980 = vsub.f32 %v1702, %v1916
    %v1981 = vsub.f32 %v1705, %v1917
    %v1982 = vsub.f32 %v1710, %v1918
    %v1983 = vsub.f32 %v1713, %v1919
    %v1984 = vsub.f32 %v1718, %v1920
    %v1985 = vsub.f32 %v1721, %v1921
    %v1986 = vsub.f32 %v1726, %v1922
    %v1987 = vsub.f32 %v1729, %v1923
    %v1988 = vmul.f32 %v1924, %v59
    %v1989 = vmul.f32 %v1925, %v59
    %v1990 = vmul.f32 %v1926, %v59
    %v1991 = vmul.f32 %v1927, %v59
    %v1992 = vmul.f32 %v1928, %v59
    %v1993 = vmul.f32 %v1929, %v59
    %v1994 = vmul.f32 %v1930, %v59
    %v1995 = vmul.f32 %v1931, %v59
    %v1996 = vmul.f32 %v1932, %v59
    %v1997 = vmul.f32 %v1933, %v59
    %v1998 = vmul.f32 %v1934, %v59
    %v1999 = vmul.f32 %v1935, %v59
    %v2000 = vmul.f32 %v1936, %v59
    %v2001 = vmul.f32 %v1937, %v59
    %v2002 = vmul.f32 %v1938, %v59
    %v2003 = vmul.f32 %v1939, %v59
    %v2004 = vmul.f32 %v1940, %v59
    %v2005 = vmul.f32 %v1941, %v59
    %v2006 = vmul.f32 %v1942, %v59
    %v2007 = vmul.f32 %v1943, %v59
    %v2008 = vmul.f32 %v1944, %v59
    %v2009 = vmul.f32 %v1945, %v59
    %v2010 = vmul.f32 %v1946, %v59
    %v2011 = vmul.f32 %v1947, %v59
    %v2012 = vmul.f32 %v1948, %v59
    %v2013 = vmul.f32 %v1949, %v59
    %v2014 = vmul.f32 %v1950, %v59
    %v2015 = vmul.f32 %v1951, %v59
    %v2016 = vmul.f32 %v1952, %v59
    %v2017 = vmul.f32 %v1953, %v59
    %v2018 = vmul.f32 %v1954, %v59
    %v2019 = vmul.f32 %v1955, %v59
    %v2020 = vmul.f32 %v1956, %v59
    %v2021 = vmul.f32 %v1957, %v59
    %v2022 = vmul.f32 %v1958, %v59
    %v2023 = vmul.f32 %v1959, %v59
    %v2024 = vmul.f32 %v1960, %v59
    %v2025 = vmul.f32 %v1961, %v59
    %v2026 = vmul.f32 %v1962, %v59
    %v2027 = vmul.f32 %v1963, %v59
    %v2028 = vmul.f32 %v1964, %v59
    %v2029 = vmul.f32 %v1965, %v59
    %v2030 = vmul.f32 %v1966, %v59
    %v2031 = vmul.f32 %v1967, %v59
    %v2032 = vmul.f32 %v1968, %v59
    %v2033 = vmul.f32 %v1969, %v59
    %v2034 = vmul.f32 %v1970, %v59
    %v2035 = vmul.f32 %v1971, %v59
    %v2036 = vmul.f32 %v1972, %v59
    %v2037 = vmul.f32 %v1973, %v59
    %v2038 = vmul.f32 %v1974, %v59
    %v2039 = vmul.f32 %v1975, %v59
    %v2040 = vmul.f32 %v1976, %v59
    %v2041 = vmul.f32 %v1977, %v59
    %v2042 = vmul.f32 %v1978, %v59
    %v2043 = vmul.f32 %v1979, %v59
    %v2044 = vmul.f32 %v1980, %v59
    %v2045 = vmul.f32 %v1981, %v59
    %v2046 = vmul.f32 %v1982, %v59
    %v2047 = vmul.f32 %v1983, %v59
    %v2048 = vmul.f32 %v1984, %v59
    %v2049 = vmul.f32 %v1985, %v59
    %v2050 = vmul.f32 %v1986, %v59
    %v2051 = vmul.f32 %v1987, %v59
    %v2052 = vmul.f32 %v1988, %v1988
    %v2053 = vmul.f32 %v1989, %v1989
    %v2054 = vmul.f32 %v1990, %v1990
    %v2055 = vmul.f32 %v1991, %v1991
    %v2056 = vmul.f32 %v1992, %v1992
    %v2057 = vmul.f32 %v1993, %v1993
    %v2058 = vmul.f32 %v1994, %v1994
    %v2059 = vmul.f32 %v1995, %v1995
    %v2060 = vmul.f32 %v1996, %v1996
    %v2061 = vmul.f32 %v1997, %v1997
    %v2062 = vmul.f32 %v1998, %v1998
    %v2063 = vmul.f32 %v1999, %v1999
    %v2064 = vmul.f32 %v2000, %v2000
    %v2065 = vmul.f32 %v2001, %v2001
    %v2066 = vmul.f32 %v2002, %v2002
    %v2067 = vmul.f32 %v2003, %v2003
    %v2068 = vmul.f32 %v2004, %v2004
    %v2069 = vmul.f32 %v2005, %v2005
    %v2070 = vmul.f32 %v2006, %v2006
    %v2071 = vmul.f32 %v2007, %v2007
    %v2072 = vmul.f32 %v2008, %v2008
    %v2073 = vmul.f32 %v2009, %v2009
    %v2074 = vmul.f32 %v2010, %v2010
    %v2075 = vmul.f32 %v2011, %v2011
    %v2076 = vmul.f32 %v2012, %v2012
    %v2077 = vmul.f32 %v2013, %v2013
    %v2078 = vmul.f32 %v2014, %v2014
    %v2079 = vmul.f32 %v2015, %v2015
    %v2080 = vmul.f32 %v2016, %v2016
    %v2081 = vmul.f32 %v2017, %v2017
    %v2082 = vmul.f32 %v2018, %v2018
    %v2083 = vmul.f32 %v2019, %v2019
    %v2084 = vmul.f32 %v2020, %v2020
    %v2085 = vmul.f32 %v2021, %v2021
    %v2086 = vmul.f32 %v2022, %v2022
    %v2087 = vmul.f32 %v2023, %v2023
    %v2088 = vmul.f32 %v2024, %v2024
    %v2089 = vmul.f32 %v2025, %v2025
    %v2090 = vmul.f32 %v2026, %v2026
    %v2091 = vmul.f32 %v2027, %v2027
    %v2092 = vmul.f32 %v2028, %v2028
    %v2093 = vmul.f32 %v2029, %v2029
    %v2094 = vmul.f32 %v2030, %v2030
    %v2095 = vmul.f32 %v2031, %v2031
    %v2096 = vmul.f32 %v2032, %v2032
    %v2097 = vmul.f32 %v2033, %v2033
    %v2098 = vmul.f32 %v2034, %v2034
    %v2099 = vmul.f32 %v2035, %v2035
    %v2100 = vmul.f32 %v2036, %v2036
    %v2101 = vmul.f32 %v2037, %v2037
    %v2102 = vmul.f32 %v2038, %v2038
    %v2103 = vmul.f32 %v2039, %v2039
    %v2104 = vmul.f32 %v2040, %v2040
    %v2105 = vmul.f32 %v2041, %v2041
    %v2106 = vmul.f32 %v2042, %v2042
    %v2107 = vmul.f32 %v2043, %v2043
    %v2108 = vmul.f32 %v2044, %v2044
    %v2109 = vmul.f32 %v2045, %v2045
    %v2110 = vmul.f32 %v2046, %v2046
    %v2111 = vmul.f32 %v2047, %v2047
    %v2112 = vmul.f32 %v2048, %v2048
    %v2113 = vmul.f32 %v2049, %v2049
    %v2114 = vmul.f32 %v2050, %v2050
    %v2115 = vmul.f32 %v2051, %v2051
    %2116 = vadd.xlane.f32.xlu0 %v2052
    %v2117 = vpop.xlane.xlu0 %2116
    %2118 = vadd.xlane.f32.xlu0 %v2053
    %v2119 = vpop.xlane.xlu0 %2118
    %2120 = vadd.xlane.f32.xlu0 %v2054
    %v2121 = vpop.xlane.xlu0 %2120
    %2122 = vadd.xlane.f32.xlu0 %v2055
    %v2123 = vpop.xlane.xlu0 %2122
    %2124 = vadd.xlane.f32.xlu0 %v2056
    %v2125 = vpop.xlane.xlu0 %2124
    %2126 = vadd.xlane.f32.xlu0 %v2057
    %v2127 = vpop.xlane.xlu0 %2126
    %2128 = vadd.xlane.f32.xlu0 %v2058
    %v2129 = vpop.xlane.xlu0 %2128
    %2130 = vadd.xlane.f32.xlu0 %v2059
    %v2131 = vpop.xlane.xlu0 %2130
    %2132 = vadd.xlane.f32.xlu0 %v2060
    %v2133 = vpop.xlane.xlu0 %2132
    %2134 = vadd.xlane.f32.xlu0 %v2061
    %v2135 = vpop.xlane.xlu0 %2134
    %2136 = vadd.xlane.f32.xlu0 %v2062
    %v2137 = vpop.xlane.xlu0 %2136
    %2138 = vadd.xlane.f32.xlu0 %v2063
    %v2139 = vpop.xlane.xlu0 %2138
    %2140 = vadd.xlane.f32.xlu0 %v2064
    %v2141 = vpop.xlane.xlu0 %2140
    %2142 = vadd.xlane.f32.xlu0 %v2065
    %v2143 = vpop.xlane.xlu0 %2142
    %2144 = vadd.xlane.f32.xlu0 %v2066
    %v2145 = vpop.xlane.xlu0 %2144
    %2146 = vadd.xlane.f32.xlu0 %v2067
    %v2147 = vpop.xlane.xlu0 %2146
    %2148 = vadd.xlane.f32.xlu0 %v2068
    %v2149 = vpop.xlane.xlu0 %2148
    %2150 = vadd.xlane.f32.xlu0 %v2069
    %v2151 = vpop.xlane.xlu0 %2150
    %2152 = vadd.xlane.f32.xlu0 %v2070
    %v2153 = vpop.xlane.xlu0 %2152
    %2154 = vadd.xlane.f32.xlu0 %v2071
    %v2155 = vpop.xlane.xlu0 %2154
    %2156 = vadd.xlane.f32.xlu0 %v2072
    %v2157 = vpop.xlane.xlu0 %2156
    %2158 = vadd.xlane.f32.xlu0 %v2073
    %v2159 = vpop.xlane.xlu0 %2158
    %2160 = vadd.xlane.f32.xlu0 %v2074
    %v2161 = vpop.xlane.xlu0 %2160
    %2162 = vadd.xlane.f32.xlu0 %v2075
    %v2163 = vpop.xlane.xlu0 %2162
    %2164 = vadd.xlane.f32.xlu0 %v2076
    %v2165 = vpop.xlane.xlu0 %2164
    %2166 = vadd.xlane.f32.xlu0 %v2077
    %v2167 = vpop.xlane.xlu0 %2166
    %2168 = vadd.xlane.f32.xlu0 %v2078
    %v2169 = vpop.xlane.xlu0 %2168
    %2170 = vadd.xlane.f32.xlu0 %v2079
    %v2171 = vpop.xlane.xlu0 %2170
    %2172 = vadd.xlane.f32.xlu0 %v2080
    %v2173 = vpop.xlane.xlu0 %2172
    %2174 = vadd.xlane.f32.xlu0 %v2081
    %v2175 = vpop.xlane.xlu0 %2174
    %2176 = vadd.xlane.f32.xlu0 %v2082
    %v2177 = vpop.xlane.xlu0 %2176
    %2178 = vadd.xlane.f32.xlu0 %v2083
    %v2179 = vpop.xlane.xlu0 %2178
    %2180 = vadd.xlane.f32.xlu0 %v2084
    %v2181 = vpop.xlane.xlu0 %2180
    %2182 = vadd.xlane.f32.xlu0 %v2085
    %v2183 = vpop.xlane.xlu0 %2182
    %2184 = vadd.xlane.f32.xlu0 %v2086
    %v2185 = vpop.xlane.xlu0 %2184
    %2186 = vadd.xlane.f32.xlu0 %v2087
    %v2187 = vpop.xlane.xlu0 %2186
    %2188 = vadd.xlane.f32.xlu0 %v2088
    %v2189 = vpop.xlane.xlu0 %2188
    %2190 = vadd.xlane.f32.xlu0 %v2089
    %v2191 = vpop.xlane.xlu0 %2190
    %2192 = vadd.xlane.f32.xlu0 %v2090
    %v2193 = vpop.xlane.xlu0 %2192
    %2194 = vadd.xlane.f32.xlu0 %v2091
    %v2195 = vpop.xlane.xlu0 %2194
    %2196 = vadd.xlane.f32.xlu0 %v2092
    %v2197 = vpop.xlane.xlu0 %2196
    %2198 = vadd.xlane.f32.xlu0 %v2093
    %v2199 = vpop.xlane.xlu0 %2198
    %2200 = vadd.xlane.f32.xlu0 %v2094
    %v2201 = vpop.xlane.xlu0 %2200
    %2202 = vadd.xlane.f32.xlu0 %v2095
    %v2203 = vpop.xlane.xlu0 %2202
    %2204 = vadd.xlane.f32.xlu0 %v2096
    %v2205 = vpop.xlane.xlu0 %2204
    %2206 = vadd.xlane.f32.xlu0 %v2097
    %v2207 = vpop.xlane.xlu0 %2206
    %2208 = vadd.xlane.f32.xlu0 %v2098
    %v2209 = vpop.xlane.xlu0 %2208
    %2210 = vadd.xlane.f32.xlu0 %v2099
    %v2211 = vpop.xlane.xlu0 %2210
    %2212 = vadd.xlane.f32.xlu0 %v2100
    %v2213 = vpop.xlane.xlu0 %2212
    %2214 = vadd.xlane.f32.xlu0 %v2101
    %v2215 = vpop.xlane.xlu0 %2214
    %2216 = vadd.xlane.f32.xlu0 %v2102
    %v2217 = vpop.xlane.xlu0 %2216
    %2218 = vadd.xlane.f32.xlu0 %v2103
    %v2219 = vpop.xlane.xlu0 %2218
    %2220 = vadd.xlane.f32.xlu0 %v2104
    %v2221 = vpop.xlane.xlu0 %2220
    %2222 = vadd.xlane.f32.xlu0 %v2105
    %v2223 = vpop.xlane.xlu0 %2222
    %2224 = vadd.xlane.f32.xlu0 %v2106
    %v2225 = vpop.xlane.xlu0 %2224
    %2226 = vadd.xlane.f32.xlu0 %v2107
    %v2227 = vpop.xlane.xlu0 %2226
    %2228 = vadd.xlane.f32.xlu0 %v2108
    %v2229 = vpop.xlane.xlu0 %2228
    %2230 = vadd.xlane.f32.xlu0 %v2109
    %v2231 = vpop.xlane.xlu0 %2230
    %2232 = vadd.xlane.f32.xlu0 %v2110
    %v2233 = vpop.xlane.xlu0 %2232
    %2234 = vadd.xlane.f32.xlu0 %v2111
    %v2235 = vpop.xlane.xlu0 %2234
    %2236 = vadd.xlane.f32.xlu0 %v2112
    %v2237 = vpop.xlane.xlu0 %2236
    %2238 = vadd.xlane.f32.xlu0 %v2113
    %v2239 = vpop.xlane.xlu0 %2238
    %2240 = vadd.xlane.f32.xlu0 %v2114
    %v2241 = vpop.xlane.xlu0 %2240
    %2242 = vadd.xlane.f32.xlu0 %v2115
    %v2243 = vpop.xlane.xlu0 %2242
    %v2244 = vmul.f32 %v2117, 0.020408163
    %v2245 = vmul.f32 %v2119, 0.020408163
    %v2246 = vmul.f32 %v2121, 0.020408163
    %v2247 = vmul.f32 %v2123, 0.020408163
    %v2248 = vmul.f32 %v2125, 0.020408163
    %v2249 = vmul.f32 %v2127, 0.020408163
    %v2250 = vmul.f32 %v2129, 0.020408163
    %v2251 = vmul.f32 %v2131, 0.020408163
    %v2252 = vmul.f32 %v2133, 0.020408163
    %v2253 = vmul.f32 %v2135, 0.020408163
    %v2254 = vmul.f32 %v2137, 0.020408163
    %v2255 = vmul.f32 %v2139, 0.020408163
    %v2256 = vmul.f32 %v2141, 0.020408163
    %v2257 = vmul.f32 %v2143, 0.020408163
    %v2258 = vmul.f32 %v2145, 0.020408163
    %v2259 = vmul.f32 %v2147, 0.020408163
    %v2260 = vmul.f32 %v2149, 0.020408163
    %v2261 = vmul.f32 %v2151, 0.020408163
    %v2262 = vmul.f32 %v2153, 0.020408163
    %v2263 = vmul.f32 %v2155, 0.020408163
    %v2264 = vmul.f32 %v2157, 0.020408163
    %v2265 = vmul.f32 %v2159, 0.020408163
    %v2266 = vmul.f32 %v2161, 0.020408163
    %v2267 = vmul.f32 %v2163, 0.020408163
    %v2268 = vmul.f32 %v2165, 0.020408163
    %v2269 = vmul.f32 %v2167, 0.020408163
    %v2270 = vmul.f32 %v2169, 0.020408163
    %v2271 = vmul.f32 %v2171, 0.020408163
    %v2272 = vmul.f32 %v2173, 0.020408163
    %v2273 = vmul.f32 %v2175, 0.020408163
    %v2274 = vmul.f32 %v2177, 0.020408163
    %v2275 = vmul.f32 %v2179, 0.020408163
    %v2276 = vmul.f32 %v2181, 0.020408163
    %v2277 = vmul.f32 %v2183, 0.020408163
    %v2278 = vmul.f32 %v2185, 0.020408163
    %v2279 = vmul.f32 %v2187, 0.020408163
    %v2280 = vmul.f32 %v2189, 0.020408163
    %v2281 = vmul.f32 %v2191, 0.020408163
    %v2282 = vmul.f32 %v2193, 0.020408163
    %v2283 = vmul.f32 %v2195, 0.020408163
    %v2284 = vmul.f32 %v2197, 0.020408163
    %v2285 = vmul.f32 %v2199, 0.020408163
    %v2286 = vmul.f32 %v2201, 0.020408163
    %v2287 = vmul.f32 %v2203, 0.020408163
    %v2288 = vmul.f32 %v2205, 0.020408163
    %v2289 = vmul.f32 %v2207, 0.020408163
    %v2290 = vmul.f32 %v2209, 0.020408163
    %v2291 = vmul.f32 %v2211, 0.020408163
    %v2292 = vmul.f32 %v2213, 0.020408163
    %v2293 = vmul.f32 %v2215, 0.020408163
    %v2294 = vmul.f32 %v2217, 0.020408163
    %v2295 = vmul.f32 %v2219, 0.020408163
    %v2296 = vmul.f32 %v2221, 0.020408163
    %v2297 = vmul.f32 %v2223, 0.020408163
    %v2298 = vmul.f32 %v2225, 0.020408163
    %v2299 = vmul.f32 %v2227, 0.020408163
    %v2300 = vmul.f32 %v2229, 0.020408163
    %v2301 = vmul.f32 %v2231, 0.020408163
    %v2302 = vmul.f32 %v2233, 0.020408163
    %v2303 = vmul.f32 %v2235, 0.020408163
    %v2304 = vmul.f32 %v2237, 0.020408163
    %v2305 = vmul.f32 %v2239, 0.020408163
    %v2306 = vmul.f32 %v2241, 0.020408163
    %v2307 = vmul.f32 %v2243, 0.020408163
    %v2308 = vadd.f32 %v2244, 1e-05
    %v2309 = vadd.f32 %v2245, 1e-05
    %v2310 = vadd.f32 %v2246, 1e-05
    %v2311 = vadd.f32 %v2247, 1e-05
    %v2312 = vadd.f32 %v2248, 1e-05
    %v2313 = vadd.f32 %v2249, 1e-05
    %v2314 = vadd.f32 %v2250, 1e-05
    %v2315 = vadd.f32 %v2251, 1e-05
    %v2316 = vadd.f32 %v2252, 1e-05
    %v2317 = vadd.f32 %v2253, 1e-05
    %v2318 = vadd.f32 %v2254, 1e-05
    %v2319 = vadd.f32 %v2255, 1e-05
    %v2320 = vadd.f32 %v2256, 1e-05
    %v2321 = vadd.f32 %v2257, 1e-05
    %v2322 = vadd.f32 %v2258, 1e-05
    %v2323 = vadd.f32 %v2259, 1e-05
    %v2324 = vadd.f32 %v2260, 1e-05
    %v2325 = vadd.f32 %v2261, 1e-05
    %v2326 = vadd.f32 %v2262, 1e-05
    %v2327 = vadd.f32 %v2263, 1e-05
    %v2328 = vadd.f32 %v2264, 1e-05
    %v2329 = vadd.f32 %v2265, 1e-05
    %v2330 = vadd.f32 %v2266, 1e-05
    %v2331 = vadd.f32 %v2267, 1e-05
    %v2332 = vadd.f32 %v2268, 1e-05
    %v2333 = vadd.f32 %v2269, 1e-05
    %v2334 = vadd.f32 %v2270, 1e-05
    %v2335 = vadd.f32 %v2271, 1e-05
    %v2336 = vadd.f32 %v2272, 1e-05
    %v2337 = vadd.f32 %v2273, 1e-05
    %v2338 = vadd.f32 %v2274, 1e-05
    %v2339 = vadd.f32 %v2275, 1e-05
    %v2340 = vadd.f32 %v2276, 1e-05
    %v2341 = vadd.f32 %v2277, 1e-05
    %v2342 = vadd.f32 %v2278, 1e-05
    %v2343 = vadd.f32 %v2279, 1e-05
    %v2344 = vadd.f32 %v2280, 1e-05
    %v2345 = vadd.f32 %v2281, 1e-05
    %v2346 = vadd.f32 %v2282, 1e-05
    %v2347 = vadd.f32 %v2283, 1e-05
    %v2348 = vadd.f32 %v2284, 1e-05
    %v2349 = vadd.f32 %v2285, 1e-05
    %v2350 = vadd.f32 %v2286, 1e-05
    %v2351 = vadd.f32 %v2287, 1e-05
    %v2352 = vadd.f32 %v2288, 1e-05
    %v2353 = vadd.f32 %v2289, 1e-05
    %v2354 = vadd.f32 %v2290, 1e-05
    %v2355 = vadd.f32 %v2291, 1e-05
    %v2356 = vadd.f32 %v2292, 1e-05
    %v2357 = vadd.f32 %v2293, 1e-05
    %v2358 = vadd.f32 %v2294, 1e-05
    %v2359 = vadd.f32 %v2295, 1e-05
    %v2360 = vadd.f32 %v2296, 1e-05
    %v2361 = vadd.f32 %v2297, 1e-05
    %v2362 = vadd.f32 %v2298, 1e-05
    %v2363 = vadd.f32 %v2299, 1e-05
    %v2364 = vadd.f32 %v2300, 1e-05
    %v2365 = vadd.f32 %v2301, 1e-05
    %v2366 = vadd.f32 %v2302, 1e-05
    %v2367 = vadd.f32 %v2303, 1e-05
    %v2368 = vadd.f32 %v2304, 1e-05
    %v2369 = vadd.f32 %v2305, 1e-05
    %v2370 = vadd.f32 %v2306, 1e-05
    %v2371 = vadd.f32 %v2307, 1e-05
    %v2372 = vrsqrt.pop %v2308
    %v2373 = vrsqrt.pop %v2309
    %v2374 = vrsqrt.pop %v2310
    %v2375 = vrsqrt.pop %v2311
    %v2376 = vrsqrt.pop %v2312
    %v2377 = vrsqrt.pop %v2313
    %v2378 = vrsqrt.pop %v2314
    %v2379 = vrsqrt.pop %v2315
    %v2380 = vrsqrt.pop %v2316
    %v2381 = vrsqrt.pop %v2317
    %v2382 = vrsqrt.pop %v2318
    %v2383 = vrsqrt.pop %v2319
    %v2384 = vrsqrt.pop %v2320
    %v2385 = vrsqrt.pop %v2321
    %v2386 = vrsqrt.pop %v2322
    %v2387 = vrsqrt.pop %v2323
    %v2388 = vrsqrt.pop %v2324
    %v2389 = vrsqrt.pop %v2325
    %v2390 = vrsqrt.pop %v2326
    %v2391 = vrsqrt.pop %v2327
    %v2392 = vrsqrt.pop %v2328
    %v2393 = vrsqrt.pop %v2329
    %v2394 = vrsqrt.pop %v2330
    %v2395 = vrsqrt.pop %v2331
    %v2396 = vrsqrt.pop %v2332
    %v2397 = vrsqrt.pop %v2333
    %v2398 = vrsqrt.pop %v2334
    %v2399 = vrsqrt.pop %v2335
    %v2400 = vrsqrt.pop %v2336
    %v2401 = vrsqrt.pop %v2337
    %v2402 = vrsqrt.pop %v2338
    %v2403 = vrsqrt.pop %v2339
    %v2404 = vrsqrt.pop %v2340
    %v2405 = vrsqrt.pop %v2341
    %v2406 = vrsqrt.pop %v2342
    %v2407 = vrsqrt.pop %v2343
    %v2408 = vrsqrt.pop %v2344
    %v2409 = vrsqrt.pop %v2345
    %v2410 = vrsqrt.pop %v2346
    %v2411 = vrsqrt.pop %v2347
    %v2412 = vrsqrt.pop %v2348
    %v2413 = vrsqrt.pop %v2349
    %v2414 = vrsqrt.pop %v2350
    %v2415 = vrsqrt.pop %v2351
    %v2416 = vrsqrt.pop %v2352
    %v2417 = vrsqrt.pop %v2353
    %v2418 = vrsqrt.pop %v2354
    %v2419 = vrsqrt.pop %v2355
    %v2420 = vrsqrt.pop %v2356
    %v2421 = vrsqrt.pop %v2357
    %v2422 = vrsqrt.pop %v2358
    %v2423 = vrsqrt.pop %v2359
    %v2424 = vrsqrt.pop %v2360
    %v2425 = vrsqrt.pop %v2361
    %v2426 = vrsqrt.pop %v2362
    %v2427 = vrsqrt.pop %v2363
    %v2428 = vrsqrt.pop %v2364
    %v2429 = vrsqrt.pop %v2365
    %v2430 = vrsqrt.pop %v2366
    %v2431 = vrsqrt.pop %v2367
    %v2432 = vrsqrt.pop %v2368
    %v2433 = vrsqrt.pop %v2369
    %v2434 = vrsqrt.pop %v2370
    %v2435 = vrsqrt.pop %v2371
    %v2436 = vmul.f32 %v2372, %v66
    %v2437 = vmul.f32 %v2373, %v67
    %v2438 = vmul.f32 %v2374, %v68
    %v2439 = vmul.f32 %v2375, %v69
    %v2440 = vmul.f32 %v2376, %v70
    %v2441 = vmul.f32 %v2377, %v71
    %v2442 = vmul.f32 %v2378, %v72
    %v2443 = vmul.f32 %v2379, %v73
    %v2444 = vmul.f32 %v2380, %v74
    %v2445 = vmul.f32 %v2381, %v75
    %v2446 = vmul.f32 %v2382, %v76
    %v2447 = vmul.f32 %v2383, %v77
    %v2448 = vmul.f32 %v2384, %v78
    %v2449 = vmul.f32 %v2385, %v79
    %v2450 = vmul.f32 %v2386, %v80
    %v2451 = vmul.f32 %v2387, %v81
    %v2452 = vmul.f32 %v2388, %v82
    %v2453 = vmul.f32 %v2389, %v83
    %v2454 = vmul.f32 %v2390, %v84
    %v2455 = vmul.f32 %v2391, %v85
    %v2456 = vmul.f32 %v2392, %v86
    %v2457 = vmul.f32 %v2393, %v87
    %v2458 = vmul.f32 %v2394, %v88
    %v2459 = vmul.f32 %v2395, %v89
    %v2460 = vmul.f32 %v2396, %v90
    %v2461 = vmul.f32 %v2397, %v91
    %v2462 = vmul.f32 %v2398, %v92
    %v2463 = vmul.f32 %v2399, %v93
    %v2464 = vmul.f32 %v2400, %v94
    %v2465 = vmul.f32 %v2401, %v95
    %v2466 = vmul.f32 %v2402, %v96
    %v2467 = vmul.f32 %v2403, %v97
    %v2468 = vmul.f32 %v2404, %v98
    %v2469 = vmul.f32 %v2405, %v99
    %v2470 = vmul.f32 %v2406, %v100
    %v2471 = vmul.f32 %v2407, %v101
    %v2472 = vmul.f32 %v2408, %v102
    %v2473 = vmul.f32 %v2409, %v103
    %v2474 = vmul.f32 %v2410, %v104
    %v2475 = vmul.f32 %v2411, %v105
    %v2476 = vmul.f32 %v2412, %v106
    %v2477 = vmul.f32 %v2413, %v107
    %v2478 = vmul.f32 %v2414, %v108
    %v2479 = vmul.f32 %v2415, %v109
    %v2480 = vmul.f32 %v2416, %v110
    %v2481 = vmul.f32 %v2417, %v111
    %v2482 = vmul.f32 %v2418, %v112
    %v2483 = vmul.f32 %v2419, %v113
    %v2484 = vmul.f32 %v2420, %v114
    %v2485 = vmul.f32 %v2421, %v115
    %v2486 = vmul.f32 %v2422, %v116
    %v2487 = vmul.f32 %v2423, %v117
    %v2488 = vmul.f32 %v2424, %v118
    %v2489 = vmul.f32 %v2425, %v119
    %v2490 = vmul.f32 %v2426, %v120
    %v2491 = vmul.f32 %v2427, %v121
    %v2492 = vmul.f32 %v2428, %v122
    %v2493 = vmul.f32 %v2429, %v123
    %v2494 = vmul.f32 %v2430, %v124
    %v2495 = vmul.f32 %v2431, %v125
    %v2496 = vmul.f32 %v2432, %v126
    %v2497 = vmul.f32 %v2433, %v127
    %v2498 = vmul.f32 %v2434, %v128
    %v2499 = vmul.f32 %v2435, %v129
    %2501 = vset.pattern.permute.xlu0 9
    %2502 = vperm.xlu0 %2501, %v2436
    %v2503 = vpop.permute.xlu0 %2502
    %2506 = vset.pattern.permute.xlu0 9
    %2507 = vperm.xlu0 %2506, %v2437
    %v2508 = vpop.permute.xlu0 %2507
    %2511 = vset.pattern.permute.xlu0 9
    %2512 = vperm.xlu0 %2511, %v2438
    %v2513 = vpop.permute.xlu0 %2512
    %2516 = vset.pattern.permute.xlu0 9
    %2517 = vperm.xlu0 %2516, %v2439
    %v2518 = vpop.permute.xlu0 %2517
    %2521 = vset.pattern.permute.xlu0 9
    %2522 = vperm.xlu0 %2521, %v2440
    %v2523 = vpop.permute.xlu0 %2522
    %2526 = vset.pattern.permute.xlu0 9
    %2527 = vperm.xlu0 %2526, %v2441
    %v2528 = vpop.permute.xlu0 %2527
    %2531 = vset.pattern.permute.xlu0 9
    %2532 = vperm.xlu0 %2531, %v2442
    %v2533 = vpop.permute.xlu0 %2532
    %2536 = vset.pattern.permute.xlu0 9
    %2537 = vperm.xlu0 %2536, %v2443
    %v2538 = vpop.permute.xlu0 %2537
    %2541 = vset.pattern.permute.xlu0 9
    %2542 = vperm.xlu0 %2541, %v2444
    %v2543 = vpop.permute.xlu0 %2542
    %2546 = vset.pattern.permute.xlu0 9
    %2547 = vperm.xlu0 %2546, %v2445
    %v2548 = vpop.permute.xlu0 %2547
    %2551 = vset.pattern.permute.xlu0 9
    %2552 = vperm.xlu0 %2551, %v2446
    %v2553 = vpop.permute.xlu0 %2552
    %2556 = vset.pattern.permute.xlu0 9
    %2557 = vperm.xlu0 %2556, %v2447
    %v2558 = vpop.permute.xlu0 %2557
    %2561 = vset.pattern.permute.xlu0 9
    %2562 = vperm.xlu0 %2561, %v2448
    %v2563 = vpop.permute.xlu0 %2562
    %2566 = vset.pattern.permute.xlu0 9
    %2567 = vperm.xlu0 %2566, %v2449
    %v2568 = vpop.permute.xlu0 %2567
    %2571 = vset.pattern.permute.xlu0 9
    %2572 = vperm.xlu0 %2571, %v2450
    %v2573 = vpop.permute.xlu0 %2572
    %2576 = vset.pattern.permute.xlu0 9
    %2577 = vperm.xlu0 %2576, %v2451
    %v2578 = vpop.permute.xlu0 %2577
    %2581 = vset.pattern.permute.xlu0 9
    %2582 = vperm.xlu0 %2581, %v2452
    %v2583 = vpop.permute.xlu0 %2582
    %2586 = vset.pattern.permute.xlu0 9
    %2587 = vperm.xlu0 %2586, %v2453
    %v2588 = vpop.permute.xlu0 %2587
    %2591 = vset.pattern.permute.xlu0 9
    %2592 = vperm.xlu0 %2591, %v2454
    %v2593 = vpop.permute.xlu0 %2592
    %2596 = vset.pattern.permute.xlu0 9
    %2597 = vperm.xlu0 %2596, %v2455
    %v2598 = vpop.permute.xlu0 %2597
    %2601 = vset.pattern.permute.xlu0 9
    %2602 = vperm.xlu0 %2601, %v2456
    %v2603 = vpop.permute.xlu0 %2602
    %2606 = vset.pattern.permute.xlu0 9
    %2607 = vperm.xlu0 %2606, %v2457
    %v2608 = vpop.permute.xlu0 %2607
    %2611 = vset.pattern.permute.xlu0 9
    %2612 = vperm.xlu0 %2611, %v2458
    %v2613 = vpop.permute.xlu0 %2612
    %2616 = vset.pattern.permute.xlu0 9
    %2617 = vperm.xlu0 %2616, %v2459
    %v2618 = vpop.permute.xlu0 %2617
    %2621 = vset.pattern.permute.xlu0 9
    %2622 = vperm.xlu0 %2621, %v2460
    %v2623 = vpop.permute.xlu0 %2622
    %2626 = vset.pattern.permute.xlu0 9
    %2627 = vperm.xlu0 %2626, %v2461
    %v2628 = vpop.permute.xlu0 %2627
    %2631 = vset.pattern.permute.xlu0 9
    %2632 = vperm.xlu0 %2631, %v2462
    %v2633 = vpop.permute.xlu0 %2632
    %2636 = vset.pattern.permute.xlu0 9
    %2637 = vperm.xlu0 %2636, %v2463
    %v2638 = vpop.permute.xlu0 %2637
    %2641 = vset.pattern.permute.xlu0 9
    %2642 = vperm.xlu0 %2641, %v2464
    %v2643 = vpop.permute.xlu0 %2642
    %2646 = vset.pattern.permute.xlu0 9
    %2647 = vperm.xlu0 %2646, %v2465
    %v2648 = vpop.permute.xlu0 %2647
    %2651 = vset.pattern.permute.xlu0 9
    %2652 = vperm.xlu0 %2651, %v2466
    %v2653 = vpop.permute.xlu0 %2652
    %2656 = vset.pattern.permute.xlu0 9
    %2657 = vperm.xlu0 %2656, %v2467
    %v2658 = vpop.permute.xlu0 %2657
    %2661 = vset.pattern.permute.xlu0 9
    %2662 = vperm.xlu0 %2661, %v2468
    %v2663 = vpop.permute.xlu0 %2662
    %2666 = vset.pattern.permute.xlu0 9
    %2667 = vperm.xlu0 %2666, %v2469
    %v2668 = vpop.permute.xlu0 %2667
    %2671 = vset.pattern.permute.xlu0 9
    %2672 = vperm.xlu0 %2671, %v2470
    %v2673 = vpop.permute.xlu0 %2672
    %2676 = vset.pattern.permute.xlu0 9
    %2677 = vperm.xlu0 %2676, %v2471
    %v2678 = vpop.permute.xlu0 %2677
    %2681 = vset.pattern.permute.xlu0 9
    %2682 = vperm.xlu0 %2681, %v2472
    %v2683 = vpop.permute.xlu0 %2682
    %2686 = vset.pattern.permute.xlu0 9
    %2687 = vperm.xlu0 %2686, %v2473
    %v2688 = vpop.permute.xlu0 %2687
    %2691 = vset.pattern.permute.xlu0 9
    %2692 = vperm.xlu0 %2691, %v2474
    %v2693 = vpop.permute.xlu0 %2692
    %2696 = vset.pattern.permute.xlu0 9
    %2697 = vperm.xlu0 %2696, %v2475
    %v2698 = vpop.permute.xlu0 %2697
    %2701 = vset.pattern.permute.xlu0 9
    %2702 = vperm.xlu0 %2701, %v2476
    %v2703 = vpop.permute.xlu0 %2702
    %2706 = vset.pattern.permute.xlu0 9
    %2707 = vperm.xlu0 %2706, %v2477
    %v2708 = vpop.permute.xlu0 %2707
    %2711 = vset.pattern.permute.xlu0 9
    %2712 = vperm.xlu0 %2711, %v2478
    %v2713 = vpop.permute.xlu0 %2712
    %2716 = vset.pattern.permute.xlu0 9
    %2717 = vperm.xlu0 %2716, %v2479
    %v2718 = vpop.permute.xlu0 %2717
    %2721 = vset.pattern.permute.xlu0 9
    %2722 = vperm.xlu0 %2721, %v2480
    %v2723 = vpop.permute.xlu0 %2722
    %2726 = vset.pattern.permute.xlu0 9
    %2727 = vperm.xlu0 %2726, %v2481
    %v2728 = vpop.permute.xlu0 %2727
    %2731 = vset.pattern.permute.xlu0 9
    %2732 = vperm.xlu0 %2731, %v2482
    %v2733 = vpop.permute.xlu0 %2732
    %2736 = vset.pattern.permute.xlu0 9
    %2737 = vperm.xlu0 %2736, %v2483
    %v2738 = vpop.permute.xlu0 %2737
    %2741 = vset.pattern.permute.xlu0 9
    %2742 = vperm.xlu0 %2741, %v2484
    %v2743 = vpop.permute.xlu0 %2742
    %2746 = vset.pattern.permute.xlu0 9
    %2747 = vperm.xlu0 %2746, %v2485
    %v2748 = vpop.permute.xlu0 %2747
    %2751 = vset.pattern.permute.xlu0 9
    %2752 = vperm.xlu0 %2751, %v2486
    %v2753 = vpop.permute.xlu0 %2752
    %2756 = vset.pattern.permute.xlu0 9
    %2757 = vperm.xlu0 %2756, %v2487
    %v2758 = vpop.permute.xlu0 %2757
    %2761 = vset.pattern.permute.xlu0 9
    %2762 = vperm.xlu0 %2761, %v2488
    %v2763 = vpop.permute.xlu0 %2762
    %2766 = vset.pattern.permute.xlu0 9
    %2767 = vperm.xlu0 %2766, %v2489
    %v2768 = vpop.permute.xlu0 %2767
    %2771 = vset.pattern.permute.xlu0 9
    %2772 = vperm.xlu0 %2771, %v2490
    %v2773 = vpop.permute.xlu0 %2772
    %2776 = vset.pattern.permute.xlu0 9
    %2777 = vperm.xlu0 %2776, %v2491
    %v2778 = vpop.permute.xlu0 %2777
    %2781 = vset.pattern.permute.xlu0 9
    %2782 = vperm.xlu0 %2781, %v2492
    %v2783 = vpop.permute.xlu0 %2782
    %2786 = vset.pattern.permute.xlu0 9
    %2787 = vperm.xlu0 %2786, %v2493
    %v2788 = vpop.permute.xlu0 %2787
    %2791 = vset.pattern.permute.xlu0 9
    %2792 = vperm.xlu0 %2791, %v2494
    %v2793 = vpop.permute.xlu0 %2792
    %2796 = vset.pattern.permute.xlu0 9
    %2797 = vperm.xlu0 %2796, %v2495
    %v2798 = vpop.permute.xlu0 %2797
    %2801 = vset.pattern.permute.xlu0 9
    %2802 = vperm.xlu0 %2801, %v2496
    %v2803 = vpop.permute.xlu0 %2802
    %2806 = vset.pattern.permute.xlu0 9
    %2807 = vperm.xlu0 %2806, %v2497
    %v2808 = vpop.permute.xlu0 %2807
    %2811 = vset.pattern.permute.xlu0 9
    %2812 = vperm.xlu0 %2811, %v2498
    %v2813 = vpop.permute.xlu0 %2812
    %2816 = vset.pattern.permute.xlu0 9
    %2817 = vperm.xlu0 %2816, %v2499
    %v2818 = vpop.permute.xlu0 %2817
    %v2820 = vmul.f32 %v1988, %v2503
    %v2821 = vmul.f32 %v1989, %v2508
    %v2822 = vmul.f32 %v1990, %v2513
    %v2823 = vmul.f32 %v1991, %v2518
    %v2824 = vmul.f32 %v1992, %v2523
    %v2825 = vmul.f32 %v1993, %v2528
    %v2826 = vmul.f32 %v1994, %v2533
    %v2827 = vmul.f32 %v1995, %v2538
    %v2828 = vmul.f32 %v1996, %v2543
    %v2829 = vmul.f32 %v1997, %v2548
    %v2830 = vmul.f32 %v1998, %v2553
    %v2831 = vmul.f32 %v1999, %v2558
    %v2832 = vmul.f32 %v2000, %v2563
    %v2833 = vmul.f32 %v2001, %v2568
    %v2834 = vmul.f32 %v2002, %v2573
    %v2835 = vmul.f32 %v2003, %v2578
    %v2836 = vmul.f32 %v2004, %v2583
    %v2837 = vmul.f32 %v2005, %v2588
    %v2838 = vmul.f32 %v2006, %v2593
    %v2839 = vmul.f32 %v2007, %v2598
    %v2840 = vmul.f32 %v2008, %v2603
    %v2841 = vmul.f32 %v2009, %v2608
    %v2842 = vmul.f32 %v2010, %v2613
    %v2843 = vmul.f32 %v2011, %v2618
    %v2844 = vmul.f32 %v2012, %v2623
    %v2845 = vmul.f32 %v2013, %v2628
    %v2846 = vmul.f32 %v2014, %v2633
    %v2847 = vmul.f32 %v2015, %v2638
    %v2848 = vmul.f32 %v2016, %v2643
    %v2849 = vmul.f32 %v2017, %v2648
    %v2850 = vmul.f32 %v2018, %v2653
    %v2851 = vmul.f32 %v2019, %v2658
    %v2852 = vmul.f32 %v2020, %v2663
    %v2853 = vmul.f32 %v2021, %v2668
    %v2854 = vmul.f32 %v2022, %v2673
    %v2855 = vmul.f32 %v2023, %v2678
    %v2856 = vmul.f32 %v2024, %v2683
    %v2857 = vmul.f32 %v2025, %v2688
    %v2858 = vmul.f32 %v2026, %v2693
    %v2859 = vmul.f32 %v2027, %v2698
    %v2860 = vmul.f32 %v2028, %v2703
    %v2861 = vmul.f32 %v2029, %v2708
    %v2862 = vmul.f32 %v2030, %v2713
    %v2863 = vmul.f32 %v2031, %v2718
    %v2864 = vmul.f32 %v2032, %v2723
    %v2865 = vmul.f32 %v2033, %v2728
    %v2866 = vmul.f32 %v2034, %v2733
    %v2867 = vmul.f32 %v2035, %v2738
    %v2868 = vmul.f32 %v2036, %v2743
    %v2869 = vmul.f32 %v2037, %v2748
    %v2870 = vmul.f32 %v2038, %v2753
    %v2871 = vmul.f32 %v2039, %v2758
    %v2872 = vmul.f32 %v2040, %v2763
    %v2873 = vmul.f32 %v2041, %v2768
    %v2874 = vmul.f32 %v2042, %v2773
    %v2875 = vmul.f32 %v2043, %v2778
    %v2876 = vmul.f32 %v2044, %v2783
    %v2877 = vmul.f32 %v2045, %v2788
    %v2878 = vmul.f32 %v2046, %v2793
    %v2879 = vmul.f32 %v2047, %v2798
    %v2880 = vmul.f32 %v2048, %v2803
    %v2881 = vmul.f32 %v2049, %v2808
    %v2882 = vmul.f32 %v2050, %v2813
    %v2883 = vmul.f32 %v2051, %v2818
    %2885 = vset.pattern.permute.xlu0 10
    %2886 = vperm.xlu0 %2885, %v66
    %v2887 = vpop.permute.xlu0 %2886
    %2890 = vset.pattern.permute.xlu0 10
    %2891 = vperm.xlu0 %2890, %v67
    %v2892 = vpop.permute.xlu0 %2891
    %2895 = vset.pattern.permute.xlu0 10
    %2896 = vperm.xlu0 %2895, %v68
    %v2897 = vpop.permute.xlu0 %2896
    %2900 = vset.pattern.permute.xlu0 10
    %2901 = vperm.xlu0 %2900, %v69
    %v2902 = vpop.permute.xlu0 %2901
    %2905 = vset.pattern.permute.xlu0 10
    %2906 = vperm.xlu0 %2905, %v70
    %v2907 = vpop.permute.xlu0 %2906
    %2910 = vset.pattern.permute.xlu0 10
    %2911 = vperm.xlu0 %2910, %v71
    %v2912 = vpop.permute.xlu0 %2911
    %2915 = vset.pattern.permute.xlu0 10
    %2916 = vperm.xlu0 %2915, %v72
    %v2917 = vpop.permute.xlu0 %2916
    %2920 = vset.pattern.permute.xlu0 10
    %2921 = vperm.xlu0 %2920, %v73
    %v2922 = vpop.permute.xlu0 %2921
    %2925 = vset.pattern.permute.xlu0 10
    %2926 = vperm.xlu0 %2925, %v74
    %v2927 = vpop.permute.xlu0 %2926
    %2930 = vset.pattern.permute.xlu0 10
    %2931 = vperm.xlu0 %2930, %v75
    %v2932 = vpop.permute.xlu0 %2931
    %2935 = vset.pattern.permute.xlu0 10
    %2936 = vperm.xlu0 %2935, %v76
    %v2937 = vpop.permute.xlu0 %2936
    %2940 = vset.pattern.permute.xlu0 10
    %2941 = vperm.xlu0 %2940, %v77
    %v2942 = vpop.permute.xlu0 %2941
    %2945 = vset.pattern.permute.xlu0 10
    %2946 = vperm.xlu0 %2945, %v78
    %v2947 = vpop.permute.xlu0 %2946
    %2950 = vset.pattern.permute.xlu0 10
    %2951 = vperm.xlu0 %2950, %v79
    %v2952 = vpop.permute.xlu0 %2951
    %2955 = vset.pattern.permute.xlu0 10
    %2956 = vperm.xlu0 %2955, %v80
    %v2957 = vpop.permute.xlu0 %2956
    %2960 = vset.pattern.permute.xlu0 10
    %2961 = vperm.xlu0 %2960, %v81
    %v2962 = vpop.permute.xlu0 %2961
    %2965 = vset.pattern.permute.xlu0 10
    %2966 = vperm.xlu0 %2965, %v82
    %v2967 = vpop.permute.xlu0 %2966
    %2970 = vset.pattern.permute.xlu0 10
    %2971 = vperm.xlu0 %2970, %v83
    %v2972 = vpop.permute.xlu0 %2971
    %2975 = vset.pattern.permute.xlu0 10
    %2976 = vperm.xlu0 %2975, %v84
    %v2977 = vpop.permute.xlu0 %2976
    %2980 = vset.pattern.permute.xlu0 10
    %2981 = vperm.xlu0 %2980, %v85
    %v2982 = vpop.permute.xlu0 %2981
    %2985 = vset.pattern.permute.xlu0 10
    %2986 = vperm.xlu0 %2985, %v86
    %v2987 = vpop.permute.xlu0 %2986
    %2990 = vset.pattern.permute.xlu0 10
    %2991 = vperm.xlu0 %2990, %v87
    %v2992 = vpop.permute.xlu0 %2991
    %2995 = vset.pattern.permute.xlu0 10
    %2996 = vperm.xlu0 %2995, %v88
    %v2997 = vpop.permute.xlu0 %2996
    %3000 = vset.pattern.permute.xlu0 10
    %3001 = vperm.xlu0 %3000, %v89
    %v3002 = vpop.permute.xlu0 %3001
    %3005 = vset.pattern.permute.xlu0 10
    %3006 = vperm.xlu0 %3005, %v90
    %v3007 = vpop.permute.xlu0 %3006
    %3010 = vset.pattern.permute.xlu0 10
    %3011 = vperm.xlu0 %3010, %v91
    %v3012 = vpop.permute.xlu0 %3011
    %3015 = vset.pattern.permute.xlu0 10
    %3016 = vperm.xlu0 %3015, %v92
    %v3017 = vpop.permute.xlu0 %3016
    %3020 = vset.pattern.permute.xlu0 10
    %3021 = vperm.xlu0 %3020, %v93
    %v3022 = vpop.permute.xlu0 %3021
    %3025 = vset.pattern.permute.xlu0 10
    %3026 = vperm.xlu0 %3025, %v94
    %v3027 = vpop.permute.xlu0 %3026
    %3030 = vset.pattern.permute.xlu0 10
    %3031 = vperm.xlu0 %3030, %v95
    %v3032 = vpop.permute.xlu0 %3031
    %3035 = vset.pattern.permute.xlu0 10
    %3036 = vperm.xlu0 %3035, %v96
    %v3037 = vpop.permute.xlu0 %3036
    %3040 = vset.pattern.permute.xlu0 10
    %3041 = vperm.xlu0 %3040, %v97
    %v3042 = vpop.permute.xlu0 %3041
    %3045 = vset.pattern.permute.xlu0 10
    %3046 = vperm.xlu0 %3045, %v98
    %v3047 = vpop.permute.xlu0 %3046
    %3050 = vset.pattern.permute.xlu0 10
    %3051 = vperm.xlu0 %3050, %v99
    %v3052 = vpop.permute.xlu0 %3051
    %3055 = vset.pattern.permute.xlu0 10
    %3056 = vperm.xlu0 %3055, %v100
    %v3057 = vpop.permute.xlu0 %3056
    %3060 = vset.pattern.permute.xlu0 10
    %3061 = vperm.xlu0 %3060, %v101
    %v3062 = vpop.permute.xlu0 %3061
    %3065 = vset.pattern.permute.xlu0 10
    %3066 = vperm.xlu0 %3065, %v102
    %v3067 = vpop.permute.xlu0 %3066
    %3070 = vset.pattern.permute.xlu0 10
    %3071 = vperm.xlu0 %3070, %v103
    %v3072 = vpop.permute.xlu0 %3071
    %3075 = vset.pattern.permute.xlu0 10
    %3076 = vperm.xlu0 %3075, %v104
    %v3077 = vpop.permute.xlu0 %3076
    %3080 = vset.pattern.permute.xlu0 10
    %3081 = vperm.xlu0 %3080, %v105
    %v3082 = vpop.permute.xlu0 %3081
    %3085 = vset.pattern.permute.xlu0 10
    %3086 = vperm.xlu0 %3085, %v106
    %v3087 = vpop.permute.xlu0 %3086
    %3090 = vset.pattern.permute.xlu0 10
    %3091 = vperm.xlu0 %3090, %v107
    %v3092 = vpop.permute.xlu0 %3091
    %3095 = vset.pattern.permute.xlu0 10
    %3096 = vperm.xlu0 %3095, %v108
    %v3097 = vpop.permute.xlu0 %3096
    %3100 = vset.pattern.permute.xlu0 10
    %3101 = vperm.xlu0 %3100, %v109
    %v3102 = vpop.permute.xlu0 %3101
    %3105 = vset.pattern.permute.xlu0 10
    %3106 = vperm.xlu0 %3105, %v110
    %v3107 = vpop.permute.xlu0 %3106
    %3110 = vset.pattern.permute.xlu0 10
    %3111 = vperm.xlu0 %3110, %v111
    %v3112 = vpop.permute.xlu0 %3111
    %3115 = vset.pattern.permute.xlu0 10
    %3116 = vperm.xlu0 %3115, %v112
    %v3117 = vpop.permute.xlu0 %3116
    %3120 = vset.pattern.permute.xlu0 10
    %3121 = vperm.xlu0 %3120, %v113
    %v3122 = vpop.permute.xlu0 %3121
    %3125 = vset.pattern.permute.xlu0 10
    %3126 = vperm.xlu0 %3125, %v114
    %v3127 = vpop.permute.xlu0 %3126
    %3130 = vset.pattern.permute.xlu0 10
    %3131 = vperm.xlu0 %3130, %v115
    %v3132 = vpop.permute.xlu0 %3131
    %3135 = vset.pattern.permute.xlu0 10
    %3136 = vperm.xlu0 %3135, %v116
    %v3137 = vpop.permute.xlu0 %3136
    %3140 = vset.pattern.permute.xlu0 10
    %3141 = vperm.xlu0 %3140, %v117
    %v3142 = vpop.permute.xlu0 %3141
    %3145 = vset.pattern.permute.xlu0 10
    %3146 = vperm.xlu0 %3145, %v118
    %v3147 = vpop.permute.xlu0 %3146
    %3150 = vset.pattern.permute.xlu0 10
    %3151 = vperm.xlu0 %3150, %v119
    %v3152 = vpop.permute.xlu0 %3151
    %3155 = vset.pattern.permute.xlu0 10
    %3156 = vperm.xlu0 %3155, %v120
    %v3157 = vpop.permute.xlu0 %3156
    %3160 = vset.pattern.permute.xlu0 10
    %3161 = vperm.xlu0 %3160, %v121
    %v3162 = vpop.permute.xlu0 %3161
    %3165 = vset.pattern.permute.xlu0 10
    %3166 = vperm.xlu0 %3165, %v122
    %v3167 = vpop.permute.xlu0 %3166
    %3170 = vset.pattern.permute.xlu0 10
    %3171 = vperm.xlu0 %3170, %v123
    %v3172 = vpop.permute.xlu0 %3171
    %3175 = vset.pattern.permute.xlu0 10
    %3176 = vperm.xlu0 %3175, %v124
    %v3177 = vpop.permute.xlu0 %3176
    %3180 = vset.pattern.permute.xlu0 10
    %3181 = vperm.xlu0 %3180, %v125
    %v3182 = vpop.permute.xlu0 %3181
    %3185 = vset.pattern.permute.xlu0 10
    %3186 = vperm.xlu0 %3185, %v126
    %v3187 = vpop.permute.xlu0 %3186
    %3190 = vset.pattern.permute.xlu0 10
    %3191 = vperm.xlu0 %3190, %v127
    %v3192 = vpop.permute.xlu0 %3191
    %3195 = vset.pattern.permute.xlu0 10
    %3196 = vperm.xlu0 %3195, %v128
    %v3197 = vpop.permute.xlu0 %3196
    %3200 = vset.pattern.permute.xlu0 10
    %3201 = vperm.xlu0 %3200, %v129
    %v3202 = vpop.permute.xlu0 %3201
    %v3204 = vadd.f32 %v2820, %v2887
    %v3205 = vadd.f32 %v2821, %v2892
    %v3206 = vadd.f32 %v2822, %v2897
    %v3207 = vadd.f32 %v2823, %v2902
    %v3208 = vadd.f32 %v2824, %v2907
    %v3209 = vadd.f32 %v2825, %v2912
    %v3210 = vadd.f32 %v2826, %v2917
    %v3211 = vadd.f32 %v2827, %v2922
    %v3212 = vadd.f32 %v2828, %v2927
    %v3213 = vadd.f32 %v2829, %v2932
    %v3214 = vadd.f32 %v2830, %v2937
    %v3215 = vadd.f32 %v2831, %v2942
    %v3216 = vadd.f32 %v2832, %v2947
    %v3217 = vadd.f32 %v2833, %v2952
    %v3218 = vadd.f32 %v2834, %v2957
    %v3219 = vadd.f32 %v2835, %v2962
    %v3220 = vadd.f32 %v2836, %v2967
    %v3221 = vadd.f32 %v2837, %v2972
    %v3222 = vadd.f32 %v2838, %v2977
    %v3223 = vadd.f32 %v2839, %v2982
    %v3224 = vadd.f32 %v2840, %v2987
    %v3225 = vadd.f32 %v2841, %v2992
    %v3226 = vadd.f32 %v2842, %v2997
    %v3227 = vadd.f32 %v2843, %v3002
    %v3228 = vadd.f32 %v2844, %v3007
    %v3229 = vadd.f32 %v2845, %v3012
    %v3230 = vadd.f32 %v2846, %v3017
    %v3231 = vadd.f32 %v2847, %v3022
    %v3232 = vadd.f32 %v2848, %v3027
    %v3233 = vadd.f32 %v2849, %v3032
    %v3234 = vadd.f32 %v2850, %v3037
    %v3235 = vadd.f32 %v2851, %v3042
    %v3236 = vadd.f32 %v2852, %v3047
    %v3237 = vadd.f32 %v2853, %v3052
    %v3238 = vadd.f32 %v2854, %v3057
    %v3239 = vadd.f32 %v2855, %v3062
    %v3240 = vadd.f32 %v2856, %v3067
    %v3241 = vadd.f32 %v2857, %v3072
    %v3242 = vadd.f32 %v2858, %v3077
    %v3243 = vadd.f32 %v2859, %v3082
    %v3244 = vadd.f32 %v2860, %v3087
    %v3245 = vadd.f32 %v2861, %v3092
    %v3246 = vadd.f32 %v2862, %v3097
    %v3247 = vadd.f32 %v2863, %v3102
    %v3248 = vadd.f32 %v2864, %v3107
    %v3249 = vadd.f32 %v2865, %v3112
    %v3250 = vadd.f32 %v2866, %v3117
    %v3251 = vadd.f32 %v2867, %v3122
    %v3252 = vadd.f32 %v2868, %v3127
    %v3253 = vadd.f32 %v2869, %v3132
    %v3254 = vadd.f32 %v2870, %v3137
    %v3255 = vadd.f32 %v2871, %v3142
    %v3256 = vadd.f32 %v2872, %v3147
    %v3257 = vadd.f32 %v2873, %v3152
    %v3258 = vadd.f32 %v2874, %v3157
    %v3259 = vadd.f32 %v2875, %v3162
    %v3260 = vadd.f32 %v2876, %v3167
    %v3261 = vadd.f32 %v2877, %v3172
    %v3262 = vadd.f32 %v2878, %v3177
    %v3263 = vadd.f32 %v2879, %v3182
    %v3264 = vadd.f32 %v2880, %v3187
    %v3265 = vadd.f32 %v2881, %v3192
    %v3266 = vadd.f32 %v2882, %v3197
    %v3267 = vadd.f32 %v2883, %v3202
    %v3268 = vmax.f32 %v3204, 0.0
    %v3269 = vmax.f32 %v3205, 0.0
    %v3270 = vmax.f32 %v3206, 0.0
    %v3271 = vmax.f32 %v3207, 0.0
    %v3272 = vmax.f32 %v3208, 0.0
    %v3273 = vmax.f32 %v3209, 0.0
    %v3274 = vmax.f32 %v3210, 0.0
    %v3275 = vmax.f32 %v3211, 0.0
    %v3276 = vmax.f32 %v3212, 0.0
    %v3277 = vmax.f32 %v3213, 0.0
    %v3278 = vmax.f32 %v3214, 0.0
    %v3279 = vmax.f32 %v3215, 0.0
    %v3280 = vmax.f32 %v3216, 0.0
    %v3281 = vmax.f32 %v3217, 0.0
    %v3282 = vmax.f32 %v3218, 0.0
    %v3283 = vmax.f32 %v3219, 0.0
    %v3284 = vmax.f32 %v3220, 0.0
    %v3285 = vmax.f32 %v3221, 0.0
    %v3286 = vmax.f32 %v3222, 0.0
    %v3287 = vmax.f32 %v3223, 0.0
    %v3288 = vmax.f32 %v3224, 0.0
    %v3289 = vmax.f32 %v3225, 0.0
    %v3290 = vmax.f32 %v3226, 0.0
    %v3291 = vmax.f32 %v3227, 0.0
    %v3292 = vmax.f32 %v3228, 0.0
    %v3293 = vmax.f32 %v3229, 0.0
    %v3294 = vmax.f32 %v3230, 0.0
    %v3295 = vmax.f32 %v3231, 0.0
    %v3296 = vmax.f32 %v3232, 0.0
    %v3297 = vmax.f32 %v3233, 0.0
    %v3298 = vmax.f32 %v3234, 0.0
    %v3299 = vmax.f32 %v3235, 0.0
    %v3300 = vmax.f32 %v3236, 0.0
    %v3301 = vmax.f32 %v3237, 0.0
    %v3302 = vmax.f32 %v3238, 0.0
    %v3303 = vmax.f32 %v3239, 0.0
    %v3304 = vmax.f32 %v3240, 0.0
    %v3305 = vmax.f32 %v3241, 0.0
    %v3306 = vmax.f32 %v3242, 0.0
    %v3307 = vmax.f32 %v3243, 0.0
    %v3308 = vmax.f32 %v3244, 0.0
    %v3309 = vmax.f32 %v3245, 0.0
    %v3310 = vmax.f32 %v3246, 0.0
    %v3311 = vmax.f32 %v3247, 0.0
    %v3312 = vmax.f32 %v3248, 0.0
    %v3313 = vmax.f32 %v3249, 0.0
    %v3314 = vmax.f32 %v3250, 0.0
    %v3315 = vmax.f32 %v3251, 0.0
    %v3316 = vmax.f32 %v3252, 0.0
    %v3317 = vmax.f32 %v3253, 0.0
    %v3318 = vmax.f32 %v3254, 0.0
    %v3319 = vmax.f32 %v3255, 0.0
    %v3320 = vmax.f32 %v3256, 0.0
    %v3321 = vmax.f32 %v3257, 0.0
    %v3322 = vmax.f32 %v3258, 0.0
    %v3323 = vmax.f32 %v3259, 0.0
    %v3324 = vmax.f32 %v3260, 0.0
    %v3325 = vmax.f32 %v3261, 0.0
    %v3326 = vmax.f32 %v3262, 0.0
    %v3327 = vmax.f32 %v3263, 0.0
    %v3328 = vmax.f32 %v3264, 0.0
    %v3329 = vmax.f32 %v3265, 0.0
    %v3330 = vmax.f32 %v3266, 0.0
    %v3331 = vmax.f32 %v3267, 0.0
    %v3332 = vmul.f32 %v3268, %v59
    %v3333 = vmul.f32 %v3269, %v59
    %v3334 = vmul.f32 %v3270, %v59
    %v3335 = vmul.f32 %v3271, %v59
    %v3336 = vmul.f32 %v3272, %v59
    %v3337 = vmul.f32 %v3273, %v59
    %v3338 = vmul.f32 %v3274, %v59
    %v3339 = vmul.f32 %v3275, %v59
    %v3340 = vmul.f32 %v3276, %v59
    %v3341 = vmul.f32 %v3277, %v59
    %v3342 = vmul.f32 %v3278, %v59
    %v3343 = vmul.f32 %v3279, %v59
    %v3344 = vmul.f32 %v3280, %v59
    %v3345 = vmul.f32 %v3281, %v59
    %v3346 = vmul.f32 %v3282, %v59
    %v3347 = vmul.f32 %v3283, %v59
    %v3348 = vmul.f32 %v3284, %v59
    %v3349 = vmul.f32 %v3285, %v59
    %v3350 = vmul.f32 %v3286, %v59
    %v3351 = vmul.f32 %v3287, %v59
    %v3352 = vmul.f32 %v3288, %v59
    %v3353 = vmul.f32 %v3289, %v59
    %v3354 = vmul.f32 %v3290, %v59
    %v3355 = vmul.f32 %v3291, %v59
    %v3356 = vmul.f32 %v3292, %v59
    %v3357 = vmul.f32 %v3293, %v59
    %v3358 = vmul.f32 %v3294, %v59
    %v3359 = vmul.f32 %v3295, %v59
    %v3360 = vmul.f32 %v3296, %v59
    %v3361 = vmul.f32 %v3297, %v59
    %v3362 = vmul.f32 %v3298, %v59
    %v3363 = vmul.f32 %v3299, %v59
    %v3364 = vmul.f32 %v3300, %v59
    %v3365 = vmul.f32 %v3301, %v59
    %v3366 = vmul.f32 %v3302, %v59
    %v3367 = vmul.f32 %v3303, %v59
    %v3368 = vmul.f32 %v3304, %v59
    %v3369 = vmul.f32 %v3305, %v59
    %v3370 = vmul.f32 %v3306, %v59
    %v3371 = vmul.f32 %v3307, %v59
    %v3372 = vmul.f32 %v3308, %v59
    %v3373 = vmul.f32 %v3309, %v59
    %v3374 = vmul.f32 %v3310, %v59
    %v3375 = vmul.f32 %v3311, %v59
    %v3376 = vmul.f32 %v3312, %v59
    %v3377 = vmul.f32 %v3313, %v59
    %v3378 = vmul.f32 %v3314, %v59
    %v3379 = vmul.f32 %v3315, %v59
    %v3380 = vmul.f32 %v3316, %v59
    %v3381 = vmul.f32 %v3317, %v59
    %v3382 = vmul.f32 %v3318, %v59
    %v3383 = vmul.f32 %v3319, %v59
    %v3384 = vmul.f32 %v3320, %v59
    %v3385 = vmul.f32 %v3321, %v59
    %v3386 = vmul.f32 %v3322, %v59
    %v3387 = vmul.f32 %v3323, %v59
    %v3388 = vmul.f32 %v3324, %v59
    %v3389 = vmul.f32 %v3325, %v59
    %v3390 = vmul.f32 %v3326, %v59
    %v3391 = vmul.f32 %v3327, %v59
    %v3392 = vmul.f32 %v3328, %v59
    %v3393 = vmul.f32 %v3329, %v59
    %v3394 = vmul.f32 %v3330, %v59
    %v3395 = vmul.f32 %v3331, %v59
    %v3396 = vmul.f32 %v3332, %v62
    %v3397 = vmul.f32 %v3333, %v62
    %v3398 = vmul.f32 %v3334, %v62
    %v3399 = vmul.f32 %v3335, %v62
    %v3400 = vmul.f32 %v3336, %v62
    %v3401 = vmul.f32 %v3337, %v62
    %v3402 = vmul.f32 %v3338, %v62
    %v3403 = vmul.f32 %v3339, %v62
    %v3404 = vmul.f32 %v3340, %v62
    %v3405 = vmul.f32 %v3341, %v62
    %v3406 = vmul.f32 %v3342, %v62
    %v3407 = vmul.f32 %v3343, %v62
    %v3408 = vmul.f32 %v3344, %v62
    %v3409 = vmul.f32 %v3345, %v62
    %v3410 = vmul.f32 %v3346, %v62
    %v3411 = vmul.f32 %v3347, %v62
    %v3412 = vmul.f32 %v3348, %v62
    %v3413 = vmul.f32 %v3349, %v62
    %v3414 = vmul.f32 %v3350, %v62
    %v3415 = vmul.f32 %v3351, %v62
    %v3416 = vmul.f32 %v3352, %v62
    %v3417 = vmul.f32 %v3353, %v62
    %v3418 = vmul.f32 %v3354, %v62
    %v3419 = vmul.f32 %v3355, %v62
    %v3420 = vmul.f32 %v3356, %v62
    %v3421 = vmul.f32 %v3357, %v62
    %v3422 = vmul.f32 %v3358, %v62
    %v3423 = vmul.f32 %v3359, %v62
    %v3424 = vmul.f32 %v3360, %v62
    %v3425 = vmul.f32 %v3361, %v62
    %v3426 = vmul.f32 %v3362, %v62
    %v3427 = vmul.f32 %v3363, %v62
    %v3428 = vmul.f32 %v3364, %v62
    %v3429 = vmul.f32 %v3365, %v62
    %v3430 = vmul.f32 %v3366, %v62
    %v3431 = vmul.f32 %v3367, %v62
    %v3432 = vmul.f32 %v3368, %v62
    %v3433 = vmul.f32 %v3369, %v62
    %v3434 = vmul.f32 %v3370, %v62
    %v3435 = vmul.f32 %v3371, %v62
    %v3436 = vmul.f32 %v3372, %v62
    %v3437 = vmul.f32 %v3373, %v62
    %v3438 = vmul.f32 %v3374, %v62
    %v3439 = vmul.f32 %v3375, %v62
    %v3440 = vmul.f32 %v3376, %v62
    %v3441 = vmul.f32 %v3377, %v62
    %v3442 = vmul.f32 %v3378, %v62
    %v3443 = vmul.f32 %v3379, %v62
    %v3444 = vmul.f32 %v3380, %v62
    %v3445 = vmul.f32 %v3381, %v62
    %v3446 = vmul.f32 %v3382, %v62
    %v3447 = vmul.f32 %v3383, %v62
    %v3448 = vmul.f32 %v3384, %v62
    %v3449 = vmul.f32 %v3385, %v62
    %v3450 = vmul.f32 %v3386, %v62
    %v3451 = vmul.f32 %v3387, %v62
    %v3452 = vmul.f32 %v3388, %v62
    %v3453 = vmul.f32 %v3389, %v62
    %v3454 = vmul.f32 %v3390, %v62
    %v3455 = vmul.f32 %v3391, %v62
    %v3456 = vmul.f32 %v3392, %v62
    %v3457 = vmul.f32 %v3393, %v62
    %v3458 = vmul.f32 %v3394, %v62
    %v3459 = vmul.f32 %v3395, %v62
    %v3460 = vmul.f32 %v3332, %v65
    %v3461 = vmul.f32 %v3333, %v65
    %v3462 = vmul.f32 %v3334, %v65
    %v3463 = vmul.f32 %v3335, %v65
    %v3464 = vmul.f32 %v3336, %v65
    %v3465 = vmul.f32 %v3337, %v65
    %v3466 = vmul.f32 %v3338, %v65
    %v3467 = vmul.f32 %v3339, %v65
    %v3468 = vmul.f32 %v3340, %v65
    %v3469 = vmul.f32 %v3341, %v65
    %v3470 = vmul.f32 %v3342, %v65
    %v3471 = vmul.f32 %v3343, %v65
    %v3472 = vmul.f32 %v3344, %v65
    %v3473 = vmul.f32 %v3345, %v65
    %v3474 = vmul.f32 %v3346, %v65
    %v3475 = vmul.f32 %v3347, %v65
    %v3476 = vmul.f32 %v3348, %v65
    %v3477 = vmul.f32 %v3349, %v65
    %v3478 = vmul.f32 %v3350, %v65
    %v3479 = vmul.f32 %v3351, %v65
    %v3480 = vmul.f32 %v3352, %v65
    %v3481 = vmul.f32 %v3353, %v65
    %v3482 = vmul.f32 %v3354, %v65
    %v3483 = vmul.f32 %v3355, %v65
    %v3484 = vmul.f32 %v3356, %v65
    %v3485 = vmul.f32 %v3357, %v65
    %v3486 = vmul.f32 %v3358, %v65
    %v3487 = vmul.f32 %v3359, %v65
    %v3488 = vmul.f32 %v3360, %v65
    %v3489 = vmul.f32 %v3361, %v65
    %v3490 = vmul.f32 %v3362, %v65
    %v3491 = vmul.f32 %v3363, %v65
    %v3492 = vmul.f32 %v3364, %v65
    %v3493 = vmul.f32 %v3365, %v65
    %v3494 = vmul.f32 %v3366, %v65
    %v3495 = vmul.f32 %v3367, %v65
    %v3496 = vmul.f32 %v3368, %v65
    %v3497 = vmul.f32 %v3369, %v65
    %v3498 = vmul.f32 %v3370, %v65
    %v3499 = vmul.f32 %v3371, %v65
    %v3500 = vmul.f32 %v3372, %v65
    %v3501 = vmul.f32 %v3373, %v65
    %v3502 = vmul.f32 %v3374, %v65
    %v3503 = vmul.f32 %v3375, %v65
    %v3504 = vmul.f32 %v3376, %v65
    %v3505 = vmul.f32 %v3377, %v65
    %v3506 = vmul.f32 %v3378, %v65
    %v3507 = vmul.f32 %v3379, %v65
    %v3508 = vmul.f32 %v3380, %v65
    %v3509 = vmul.f32 %v3381, %v65
    %v3510 = vmul.f32 %v3382, %v65
    %v3511 = vmul.f32 %v3383, %v65
    %v3512 = vmul.f32 %v3384, %v65
    %v3513 = vmul.f32 %v3385, %v65
    %v3514 = vmul.f32 %v3386, %v65
    %v3515 = vmul.f32 %v3387, %v65
    %v3516 = vmul.f32 %v3388, %v65
    %v3517 = vmul.f32 %v3389, %v65
    %v3518 = vmul.f32 %v3390, %v65
    %v3519 = vmul.f32 %v3391, %v65
    %v3520 = vmul.f32 %v3392, %v65
    %v3521 = vmul.f32 %v3393, %v65
    %v3522 = vmul.f32 %v3394, %v65
    %v3523 = vmul.f32 %v3395, %v65
    %3524 = vrot.lane.b32.xlu0 %v3460, 8
    %v3525 = vpop.permute.xlu0 %3524
    %3526 = vrot.lane.b32.xlu0 %v3461, 8
    %v3527 = vpop.permute.xlu0 %3526
    %3528 = vrot.lane.b32.xlu0 %v3462, 8
    %v3529 = vpop.permute.xlu0 %3528
    %3530 = vrot.lane.b32.xlu0 %v3463, 8
    %v3531 = vpop.permute.xlu0 %3530
    %3532 = vrot.lane.b32.xlu0 %v3464, 8
    %v3533 = vpop.permute.xlu0 %3532
    %3534 = vrot.lane.b32.xlu0 %v3465, 8
    %v3535 = vpop.permute.xlu0 %3534
    %3536 = vrot.lane.b32.xlu0 %v3466, 8
    %v3537 = vpop.permute.xlu0 %3536
    %3538 = vrot.lane.b32.xlu0 %v3467, 8
    %v3539 = vpop.permute.xlu0 %3538
    %3540 = vrot.lane.b32.xlu0 %v3468, 8
    %v3541 = vpop.permute.xlu0 %3540
    %3542 = vrot.lane.b32.xlu0 %v3469, 8
    %v3543 = vpop.permute.xlu0 %3542
    %3544 = vrot.lane.b32.xlu0 %v3470, 8
    %v3545 = vpop.permute.xlu0 %3544
    %3546 = vrot.lane.b32.xlu0 %v3471, 8
    %v3547 = vpop.permute.xlu0 %3546
    %3548 = vrot.lane.b32.xlu0 %v3472, 8
    %v3549 = vpop.permute.xlu0 %3548
    %3550 = vrot.lane.b32.xlu0 %v3473, 8
    %v3551 = vpop.permute.xlu0 %3550
    %3552 = vrot.lane.b32.xlu0 %v3474, 8
    %v3553 = vpop.permute.xlu0 %3552
    %3554 = vrot.lane.b32.xlu0 %v3475, 8
    %v3555 = vpop.permute.xlu0 %3554
    %3556 = vrot.lane.b32.xlu0 %v3476, 8
    %v3557 = vpop.permute.xlu0 %3556
    %3558 = vrot.lane.b32.xlu0 %v3477, 8
    %v3559 = vpop.permute.xlu0 %3558
    %3560 = vrot.lane.b32.xlu0 %v3478, 8
    %v3561 = vpop.permute.xlu0 %3560
    %3562 = vrot.lane.b32.xlu0 %v3479, 8
    %v3563 = vpop.permute.xlu0 %3562
    %3564 = vrot.lane.b32.xlu0 %v3480, 8
    %v3565 = vpop.permute.xlu0 %3564
    %3566 = vrot.lane.b32.xlu0 %v3481, 8
    %v3567 = vpop.permute.xlu0 %3566
    %3568 = vrot.lane.b32.xlu0 %v3482, 8
    %v3569 = vpop.permute.xlu0 %3568
    %3570 = vrot.lane.b32.xlu0 %v3483, 8
    %v3571 = vpop.permute.xlu0 %3570
    %3572 = vrot.lane.b32.xlu0 %v3484, 8
    %v3573 = vpop.permute.xlu0 %3572
    %3574 = vrot.lane.b32.xlu0 %v3485, 8
    %v3575 = vpop.permute.xlu0 %3574
    %3576 = vrot.lane.b32.xlu0 %v3486, 8
    %v3577 = vpop.permute.xlu0 %3576
    %3578 = vrot.lane.b32.xlu0 %v3487, 8
    %v3579 = vpop.permute.xlu0 %3578
    %3580 = vrot.lane.b32.xlu0 %v3488, 8
    %v3581 = vpop.permute.xlu0 %3580
    %3582 = vrot.lane.b32.xlu0 %v3489, 8
    %v3583 = vpop.permute.xlu0 %3582
    %3584 = vrot.lane.b32.xlu0 %v3490, 8
    %v3585 = vpop.permute.xlu0 %3584
    %3586 = vrot.lane.b32.xlu0 %v3491, 8
    %v3587 = vpop.permute.xlu0 %3586
    %3588 = vrot.lane.b32.xlu0 %v3492, 8
    %v3589 = vpop.permute.xlu0 %3588
    %3590 = vrot.lane.b32.xlu0 %v3493, 8
    %v3591 = vpop.permute.xlu0 %3590
    %3592 = vrot.lane.b32.xlu0 %v3494, 8
    %v3593 = vpop.permute.xlu0 %3592
    %3594 = vrot.lane.b32.xlu0 %v3495, 8
    %v3595 = vpop.permute.xlu0 %3594
    %3596 = vrot.lane.b32.xlu0 %v3496, 8
    %v3597 = vpop.permute.xlu0 %3596
    %3598 = vrot.lane.b32.xlu0 %v3497, 8
    %v3599 = vpop.permute.xlu0 %3598
    %3600 = vrot.lane.b32.xlu0 %v3498, 8
    %v3601 = vpop.permute.xlu0 %3600
    %3602 = vrot.lane.b32.xlu0 %v3499, 8
    %v3603 = vpop.permute.xlu0 %3602
    %3604 = vrot.lane.b32.xlu0 %v3500, 8
    %v3605 = vpop.permute.xlu0 %3604
    %3606 = vrot.lane.b32.xlu0 %v3501, 8
    %v3607 = vpop.permute.xlu0 %3606
    %3608 = vrot.lane.b32.xlu0 %v3502, 8
    %v3609 = vpop.permute.xlu0 %3608
    %3610 = vrot.lane.b32.xlu0 %v3503, 8
    %v3611 = vpop.permute.xlu0 %3610
    %3612 = vrot.lane.b32.xlu0 %v3504, 8
    %v3613 = vpop.permute.xlu0 %3612
    %3614 = vrot.lane.b32.xlu0 %v3505, 8
    %v3615 = vpop.permute.xlu0 %3614
    %3616 = vrot.lane.b32.xlu0 %v3506, 8
    %v3617 = vpop.permute.xlu0 %3616
    %3618 = vrot.lane.b32.xlu0 %v3507, 8
    %v3619 = vpop.permute.xlu0 %3618
    %3620 = vrot.lane.b32.xlu0 %v3508, 8
    %v3621 = vpop.permute.xlu0 %3620
    %3622 = vrot.lane.b32.xlu0 %v3509, 8
    %v3623 = vpop.permute.xlu0 %3622
    %3624 = vrot.lane.b32.xlu0 %v3510, 8
    %v3625 = vpop.permute.xlu0 %3624
    %3626 = vrot.lane.b32.xlu0 %v3511, 8
    %v3627 = vpop.permute.xlu0 %3626
    %3628 = vrot.lane.b32.xlu0 %v3512, 8
    %v3629 = vpop.permute.xlu0 %3628
    %3630 = vrot.lane.b32.xlu0 %v3513, 8
    %v3631 = vpop.permute.xlu0 %3630
    %3632 = vrot.lane.b32.xlu0 %v3514, 8
    %v3633 = vpop.permute.xlu0 %3632
    %3634 = vrot.lane.b32.xlu0 %v3515, 8
    %v3635 = vpop.permute.xlu0 %3634
    %3636 = vrot.lane.b32.xlu0 %v3516, 8
    %v3637 = vpop.permute.xlu0 %3636
    %3638 = vrot.lane.b32.xlu0 %v3517, 8
    %v3639 = vpop.permute.xlu0 %3638
    %3640 = vrot.lane.b32.xlu0 %v3518, 8
    %v3641 = vpop.permute.xlu0 %3640
    %3642 = vrot.lane.b32.xlu0 %v3519, 8
    %v3643 = vpop.permute.xlu0 %3642
    %3644 = vrot.lane.b32.xlu0 %v3520, 8
    %v3645 = vpop.permute.xlu0 %3644
    %3646 = vrot.lane.b32.xlu0 %v3521, 8
    %v3647 = vpop.permute.xlu0 %3646
    %3648 = vrot.lane.b32.xlu0 %v3522, 8
    %v3649 = vpop.permute.xlu0 %3648
    %3650 = vrot.lane.b32.xlu0 %v3523, 8
    %v3651 = vpop.permute.xlu0 %3650
    %3652 = vset.pattern.permute.xlu0 0
    %3653 = vperm.xlu0 %3652, %v66
    %v3654 = vpop.permute.xlu0 %3653
    %3656 = vset.pattern.permute.xlu0 0
    %3657 = vperm.xlu0 %3656, %v67
    %v3658 = vpop.permute.xlu0 %3657
    %3660 = vset.pattern.permute.xlu0 0
    %3661 = vperm.xlu0 %3660, %v68
    %v3662 = vpop.permute.xlu0 %3661
    %3664 = vset.pattern.permute.xlu0 0
    %3665 = vperm.xlu0 %3664, %v69
    %v3666 = vpop.permute.xlu0 %3665
    %3668 = vset.pattern.permute.xlu0 0
    %3669 = vperm.xlu0 %3668, %v70
    %v3670 = vpop.permute.xlu0 %3669
    %3672 = vset.pattern.permute.xlu0 0
    %3673 = vperm.xlu0 %3672, %v71
    %v3674 = vpop.permute.xlu0 %3673
    %3676 = vset.pattern.permute.xlu0 0
    %3677 = vperm.xlu0 %3676, %v72
    %v3678 = vpop.permute.xlu0 %3677
    %3680 = vset.pattern.permute.xlu0 0
    %3681 = vperm.xlu0 %3680, %v73
    %v3682 = vpop.permute.xlu0 %3681
    %3684 = vset.pattern.permute.xlu0 0
    %3685 = vperm.xlu0 %3684, %v74
    %v3686 = vpop.permute.xlu0 %3685
    %3688 = vset.pattern.permute.xlu0 0
    %3689 = vperm.xlu0 %3688, %v75
    %v3690 = vpop.permute.xlu0 %3689
    %3692 = vset.pattern.permute.xlu0 0
    %3693 = vperm.xlu0 %3692, %v76
    %v3694 = vpop.permute.xlu0 %3693
    %3696 = vset.pattern.permute.xlu0 0
    %3697 = vperm.xlu0 %3696, %v77
    %v3698 = vpop.permute.xlu0 %3697
    %3700 = vset.pattern.permute.xlu0 0
    %3701 = vperm.xlu0 %3700, %v78
    %v3702 = vpop.permute.xlu0 %3701
    %3704 = vset.pattern.permute.xlu0 0
    %3705 = vperm.xlu0 %3704, %v79
    %v3706 = vpop.permute.xlu0 %3705
    %3708 = vset.pattern.permute.xlu0 0
    %3709 = vperm.xlu0 %3708, %v80
    %v3710 = vpop.permute.xlu0 %3709
    %3712 = vset.pattern.permute.xlu0 0
    %3713 = vperm.xlu0 %3712, %v81
    %v3714 = vpop.permute.xlu0 %3713
    %3716 = vset.pattern.permute.xlu0 0
    %3717 = vperm.xlu0 %3716, %v82
    %v3718 = vpop.permute.xlu0 %3717
    %3720 = vset.pattern.permute.xlu0 0
    %3721 = vperm.xlu0 %3720, %v83
    %v3722 = vpop.permute.xlu0 %3721
    %3724 = vset.pattern.permute.xlu0 0
    %3725 = vperm.xlu0 %3724, %v84
    %v3726 = vpop.permute.xlu0 %3725
    %3728 = vset.pattern.permute.xlu0 0
    %3729 = vperm.xlu0 %3728, %v85
    %v3730 = vpop.permute.xlu0 %3729
    %3732 = vset.pattern.permute.xlu0 0
    %3733 = vperm.xlu0 %3732, %v86
    %v3734 = vpop.permute.xlu0 %3733
    %3736 = vset.pattern.permute.xlu0 0
    %3737 = vperm.xlu0 %3736, %v87
    %v3738 = vpop.permute.xlu0 %3737
    %3740 = vset.pattern.permute.xlu0 0
    %3741 = vperm.xlu0 %3740, %v88
    %v3742 = vpop.permute.xlu0 %3741
    %3744 = vset.pattern.permute.xlu0 0
    %3745 = vperm.xlu0 %3744, %v89
    %v3746 = vpop.permute.xlu0 %3745
    %3748 = vset.pattern.permute.xlu0 0
    %3749 = vperm.xlu0 %3748, %v90
    %v3750 = vpop.permute.xlu0 %3749
    %3752 = vset.pattern.permute.xlu0 0
    %3753 = vperm.xlu0 %3752, %v91
    %v3754 = vpop.permute.xlu0 %3753
    %3756 = vset.pattern.permute.xlu0 0
    %3757 = vperm.xlu0 %3756, %v92
    %v3758 = vpop.permute.xlu0 %3757
    %3760 = vset.pattern.permute.xlu0 0
    %3761 = vperm.xlu0 %3760, %v93
    %v3762 = vpop.permute.xlu0 %3761
    %3764 = vset.pattern.permute.xlu0 0
    %3765 = vperm.xlu0 %3764, %v94
    %v3766 = vpop.permute.xlu0 %3765
    %3768 = vset.pattern.permute.xlu0 0
    %3769 = vperm.xlu0 %3768, %v95
    %v3770 = vpop.permute.xlu0 %3769
    %3772 = vset.pattern.permute.xlu0 0
    %3773 = vperm.xlu0 %3772, %v96
    %v3774 = vpop.permute.xlu0 %3773
    %3776 = vset.pattern.permute.xlu0 0
    %3777 = vperm.xlu0 %3776, %v97
    %v3778 = vpop.permute.xlu0 %3777
    %3780 = vset.pattern.permute.xlu0 0
    %3781 = vperm.xlu0 %3780, %v98
    %v3782 = vpop.permute.xlu0 %3781
    %3784 = vset.pattern.permute.xlu0 0
    %3785 = vperm.xlu0 %3784, %v99
    %v3786 = vpop.permute.xlu0 %3785
    %3788 = vset.pattern.permute.xlu0 0
    %3789 = vperm.xlu0 %3788, %v100
    %v3790 = vpop.permute.xlu0 %3789
    %3792 = vset.pattern.permute.xlu0 0
    %3793 = vperm.xlu0 %3792, %v101
    %v3794 = vpop.permute.xlu0 %3793
    %3796 = vset.pattern.permute.xlu0 0
    %3797 = vperm.xlu0 %3796, %v102
    %v3798 = vpop.permute.xlu0 %3797
    %3800 = vset.pattern.permute.xlu0 0
    %3801 = vperm.xlu0 %3800, %v103
    %v3802 = vpop.permute.xlu0 %3801
    %3804 = vset.pattern.permute.xlu0 0
    %3805 = vperm.xlu0 %3804, %v104
    %v3806 = vpop.permute.xlu0 %3805
    %3808 = vset.pattern.permute.xlu0 0
    %3809 = vperm.xlu0 %3808, %v105
    %v3810 = vpop.permute.xlu0 %3809
    %3812 = vset.pattern.permute.xlu0 0
    %3813 = vperm.xlu0 %3812, %v106
    %v3814 = vpop.permute.xlu0 %3813
    %3816 = vset.pattern.permute.xlu0 0
    %3817 = vperm.xlu0 %3816, %v107
    %v3818 = vpop.permute.xlu0 %3817
    %3820 = vset.pattern.permute.xlu0 0
    %3821 = vperm.xlu0 %3820, %v108
    %v3822 = vpop.permute.xlu0 %3821
    %3824 = vset.pattern.permute.xlu0 0
    %3825 = vperm.xlu0 %3824, %v109
    %v3826 = vpop.permute.xlu0 %3825
    %3828 = vset.pattern.permute.xlu0 0
    %3829 = vperm.xlu0 %3828, %v110
    %v3830 = vpop.permute.xlu0 %3829
    %3832 = vset.pattern.permute.xlu0 0
    %3833 = vperm.xlu0 %3832, %v111
    %v3834 = vpop.permute.xlu0 %3833
    %3836 = vset.pattern.permute.xlu0 0
    %3837 = vperm.xlu0 %3836, %v112
    %v3838 = vpop.permute.xlu0 %3837
    %3840 = vset.pattern.permute.xlu0 0
    %3841 = vperm.xlu0 %3840, %v113
    %v3842 = vpop.permute.xlu0 %3841
    %3844 = vset.pattern.permute.xlu0 0
    %3845 = vperm.xlu0 %3844, %v114
    %v3846 = vpop.permute.xlu0 %3845
    %3848 = vset.pattern.permute.xlu0 0
    %3849 = vperm.xlu0 %3848, %v115
    %v3850 = vpop.permute.xlu0 %3849
    %3852 = vset.pattern.permute.xlu0 0
    %3853 = vperm.xlu0 %3852, %v116
    %v3854 = vpop.permute.xlu0 %3853
    %3856 = vset.pattern.permute.xlu0 0
    %3857 = vperm.xlu0 %3856, %v117
    %v3858 = vpop.permute.xlu0 %3857
    %3860 = vset.pattern.permute.xlu0 0
    %3861 = vperm.xlu0 %3860, %v118
    %v3862 = vpop.permute.xlu0 %3861
    %3864 = vset.pattern.permute.xlu0 0
    %3865 = vperm.xlu0 %3864, %v119
    %v3866 = vpop.permute.xlu0 %3865
    %3868 = vset.pattern.permute.xlu0 0
    %3869 = vperm.xlu0 %3868, %v120
    %v3870 = vpop.permute.xlu0 %3869
    %3872 = vset.pattern.permute.xlu0 0
    %3873 = vperm.xlu0 %3872, %v121
    %v3874 = vpop.permute.xlu0 %3873
    %3876 = vset.pattern.permute.xlu0 0
    %3877 = vperm.xlu0 %3876, %v122
    %v3878 = vpop.permute.xlu0 %3877
    %3880 = vset.pattern.permute.xlu0 0
    %3881 = vperm.xlu0 %3880, %v123
    %v3882 = vpop.permute.xlu0 %3881
    %3884 = vset.pattern.permute.xlu0 0
    %3885 = vperm.xlu0 %3884, %v124
    %v3886 = vpop.permute.xlu0 %3885
    %3888 = vset.pattern.permute.xlu0 0
    %3889 = vperm.xlu0 %3888, %v125
    %v3890 = vpop.permute.xlu0 %3889
    %3892 = vset.pattern.permute.xlu0 0
    %3893 = vperm.xlu0 %3892, %v126
    %v3894 = vpop.permute.xlu0 %3893
    %3896 = vset.pattern.permute.xlu0 0
    %3897 = vperm.xlu0 %3896, %v127
    %v3898 = vpop.permute.xlu0 %3897
    %3900 = vset.pattern.permute.xlu0 0
    %3901 = vperm.xlu0 %3900, %v128
    %v3902 = vpop.permute.xlu0 %3901
    %3904 = vset.pattern.permute.xlu0 0
    %3905 = vperm.xlu0 %3904, %v129
    %v3906 = vpop.permute.xlu0 %3905
    %v3908 = vmul.f32 %v3525, %v3654
    %v3909 = vmul.f32 %v3527, %v3658
    %v3910 = vmul.f32 %v3529, %v3662
    %v3911 = vmul.f32 %v3531, %v3666
    %v3912 = vmul.f32 %v3533, %v3670
    %v3913 = vmul.f32 %v3535, %v3674
    %v3914 = vmul.f32 %v3537, %v3678
    %v3915 = vmul.f32 %v3539, %v3682
    %v3916 = vmul.f32 %v3541, %v3686
    %v3917 = vmul.f32 %v3543, %v3690
    %v3918 = vmul.f32 %v3545, %v3694
    %v3919 = vmul.f32 %v3547, %v3698
    %v3920 = vmul.f32 %v3549, %v3702
    %v3921 = vmul.f32 %v3551, %v3706
    %v3922 = vmul.f32 %v3553, %v3710
    %v3923 = vmul.f32 %v3555, %v3714
    %v3924 = vmul.f32 %v3557, %v3718
    %v3925 = vmul.f32 %v3559, %v3722
    %v3926 = vmul.f32 %v3561, %v3726
    %v3927 = vmul.f32 %v3563, %v3730
    %v3928 = vmul.f32 %v3565, %v3734
    %v3929 = vmul.f32 %v3567, %v3738
    %v3930 = vmul.f32 %v3569, %v3742
    %v3931 = vmul.f32 %v3571, %v3746
    %v3932 = vmul.f32 %v3573, %v3750
    %v3933 = vmul.f32 %v3575, %v3754
    %v3934 = vmul.f32 %v3577, %v3758
    %v3935 = vmul.f32 %v3579, %v3762
    %v3936 = vmul.f32 %v3581, %v3766
    %v3937 = vmul.f32 %v3583, %v3770
    %v3938 = vmul.f32 %v3585, %v3774
    %v3939 = vmul.f32 %v3587, %v3778
    %v3940 = vmul.f32 %v3589, %v3782
    %v3941 = vmul.f32 %v3591, %v3786
    %v3942 = vmul.f32 %v3593, %v3790
    %v3943 = vmul.f32 %v3595, %v3794
    %v3944 = vmul.f32 %v3597, %v3798
    %v3945 = vmul.f32 %v3599, %v3802
    %v3946 = vmul.f32 %v3601, %v3806
    %v3947 = vmul.f32 %v3603, %v3810
    %v3948 = vmul.f32 %v3605, %v3814
    %v3949 = vmul.f32 %v3607, %v3818
    %v3950 = vmul.f32 %v3609, %v3822
    %v3951 = vmul.f32 %v3611, %v3826
    %v3952 = vmul.f32 %v3613, %v3830
    %v3953 = vmul.f32 %v3615, %v3834
    %v3954 = vmul.f32 %v3617, %v3838
    %v3955 = vmul.f32 %v3619, %v3842
    %v3956 = vmul.f32 %v3621, %v3846
    %v3957 = vmul.f32 %v3623, %v3850
    %v3958 = vmul.f32 %v3625, %v3854
    %v3959 = vmul.f32 %v3627, %v3858
    %v3960 = vmul.f32 %v3629, %v3862
    %v3961 = vmul.f32 %v3631, %v3866
    %v3962 = vmul.f32 %v3633, %v3870
    %v3963 = vmul.f32 %v3635, %v3874
    %v3964 = vmul.f32 %v3637, %v3878
    %v3965 = vmul.f32 %v3639, %v3882
    %v3966 = vmul.f32 %v3641, %v3886
    %v3967 = vmul.f32 %v3643, %v3890
    %v3968 = vmul.f32 %v3645, %v3894
    %v3969 = vmul.f32 %v3647, %v3898
    %v3970 = vmul.f32 %v3649, %v3902
    %v3971 = vmul.f32 %v3651, %v3906
    %3972 = vrot.lane.b32.xlu0 %v3332, 7
    %v3973 = vpop.permute.xlu0 %3972
    %3974 = vrot.lane.b32.xlu0 %v3333, 7
    %v3975 = vpop.permute.xlu0 %3974
    %3976 = vrot.lane.b32.xlu0 %v3334, 7
    %v3977 = vpop.permute.xlu0 %3976
    %3978 = vrot.lane.b32.xlu0 %v3335, 7
    %v3979 = vpop.permute.xlu0 %3978
    %3980 = vrot.lane.b32.xlu0 %v3336, 7
    %v3981 = vpop.permute.xlu0 %3980
    %3982 = vrot.lane.b32.xlu0 %v3337, 7
    %v3983 = vpop.permute.xlu0 %3982
    %3984 = vrot.lane.b32.xlu0 %v3338, 7
    %v3985 = vpop.permute.xlu0 %3984
    %3986 = vrot.lane.b32.xlu0 %v3339, 7
    %v3987 = vpop.permute.xlu0 %3986
    %3988 = vrot.lane.b32.xlu0 %v3340, 7
    %v3989 = vpop.permute.xlu0 %3988
    %3990 = vrot.lane.b32.xlu0 %v3341, 7
    %v3991 = vpop.permute.xlu0 %3990
    %3992 = vrot.lane.b32.xlu0 %v3342, 7
    %v3993 = vpop.permute.xlu0 %3992
    %3994 = vrot.lane.b32.xlu0 %v3343, 7
    %v3995 = vpop.permute.xlu0 %3994
    %3996 = vrot.lane.b32.xlu0 %v3344, 7
    %v3997 = vpop.permute.xlu0 %3996
    %3998 = vrot.lane.b32.xlu0 %v3345, 7
    %v3999 = vpop.permute.xlu0 %3998
    %4000 = vrot.lane.b32.xlu0 %v3346, 7
    %v4001 = vpop.permute.xlu0 %4000
    %4002 = vrot.lane.b32.xlu0 %v3347, 7
    %v4003 = vpop.permute.xlu0 %4002
    %4004 = vrot.lane.b32.xlu0 %v3348, 7
    %v4005 = vpop.permute.xlu0 %4004
    %4006 = vrot.lane.b32.xlu0 %v3349, 7
    %v4007 = vpop.permute.xlu0 %4006
    %4008 = vrot.lane.b32.xlu0 %v3350, 7
    %v4009 = vpop.permute.xlu0 %4008
    %4010 = vrot.lane.b32.xlu0 %v3351, 7
    %v4011 = vpop.permute.xlu0 %4010
    %4012 = vrot.lane.b32.xlu0 %v3352, 7
    %v4013 = vpop.permute.xlu0 %4012
    %4014 = vrot.lane.b32.xlu0 %v3353, 7
    %v4015 = vpop.permute.xlu0 %4014
    %4016 = vrot.lane.b32.xlu0 %v3354, 7
    %v4017 = vpop.permute.xlu0 %4016
    %4018 = vrot.lane.b32.xlu0 %v3355, 7
    %v4019 = vpop.permute.xlu0 %4018
    %4020 = vrot.lane.b32.xlu0 %v3356, 7
    %v4021 = vpop.permute.xlu0 %4020
    %4022 = vrot.lane.b32.xlu0 %v3357, 7
    %v4023 = vpop.permute.xlu0 %4022
    %4024 = vrot.lane.b32.xlu0 %v3358, 7
    %v4025 = vpop.permute.xlu0 %4024
    %4026 = vrot.lane.b32.xlu0 %v3359, 7
    %v4027 = vpop.permute.xlu0 %4026
    %4028 = vrot.lane.b32.xlu0 %v3360, 7
    %v4029 = vpop.permute.xlu0 %4028
    %4030 = vrot.lane.b32.xlu0 %v3361, 7
    %v4031 = vpop.permute.xlu0 %4030
    %4032 = vrot.lane.b32.xlu0 %v3362, 7
    %v4033 = vpop.permute.xlu0 %4032
    %4034 = vrot.lane.b32.xlu0 %v3363, 7
    %v4035 = vpop.permute.xlu0 %4034
    %4036 = vrot.lane.b32.xlu0 %v3364, 7
    %v4037 = vpop.permute.xlu0 %4036
    %4038 = vrot.lane.b32.xlu0 %v3365, 7
    %v4039 = vpop.permute.xlu0 %4038
    %4040 = vrot.lane.b32.xlu0 %v3366, 7
    %v4041 = vpop.permute.xlu0 %4040
    %4042 = vrot.lane.b32.xlu0 %v3367, 7
    %v4043 = vpop.permute.xlu0 %4042
    %4044 = vrot.lane.b32.xlu0 %v3368, 7
    %v4045 = vpop.permute.xlu0 %4044
    %4046 = vrot.lane.b32.xlu0 %v3369, 7
    %v4047 = vpop.permute.xlu0 %4046
    %4048 = vrot.lane.b32.xlu0 %v3370, 7
    %v4049 = vpop.permute.xlu0 %4048
    %4050 = vrot.lane.b32.xlu0 %v3371, 7
    %v4051 = vpop.permute.xlu0 %4050
    %4052 = vrot.lane.b32.xlu0 %v3372, 7
    %v4053 = vpop.permute.xlu0 %4052
    %4054 = vrot.lane.b32.xlu0 %v3373, 7
    %v4055 = vpop.permute.xlu0 %4054
    %4056 = vrot.lane.b32.xlu0 %v3374, 7
    %v4057 = vpop.permute.xlu0 %4056
    %4058 = vrot.lane.b32.xlu0 %v3375, 7
    %v4059 = vpop.permute.xlu0 %4058
    %4060 = vrot.lane.b32.xlu0 %v3376, 7
    %v4061 = vpop.permute.xlu0 %4060
    %4062 = vrot.lane.b32.xlu0 %v3377, 7
    %v4063 = vpop.permute.xlu0 %4062
    %4064 = vrot.lane.b32.xlu0 %v3378, 7
    %v4065 = vpop.permute.xlu0 %4064
    %4066 = vrot.lane.b32.xlu0 %v3379, 7
    %v4067 = vpop.permute.xlu0 %4066
    %4068 = vrot.lane.b32.xlu0 %v3380, 7
    %v4069 = vpop.permute.xlu0 %4068
    %4070 = vrot.lane.b32.xlu0 %v3381, 7
    %v4071 = vpop.permute.xlu0 %4070
    %4072 = vrot.lane.b32.xlu0 %v3382, 7
    %v4073 = vpop.permute.xlu0 %4072
    %4074 = vrot.lane.b32.xlu0 %v3383, 7
    %v4075 = vpop.permute.xlu0 %4074
    %4076 = vrot.lane.b32.xlu0 %v3384, 7
    %v4077 = vpop.permute.xlu0 %4076
    %4078 = vrot.lane.b32.xlu0 %v3385, 7
    %v4079 = vpop.permute.xlu0 %4078
    %4080 = vrot.lane.b32.xlu0 %v3386, 7
    %v4081 = vpop.permute.xlu0 %4080
    %4082 = vrot.lane.b32.xlu0 %v3387, 7
    %v4083 = vpop.permute.xlu0 %4082
    %4084 = vrot.lane.b32.xlu0 %v3388, 7
    %v4085 = vpop.permute.xlu0 %4084
    %4086 = vrot.lane.b32.xlu0 %v3389, 7
    %v4087 = vpop.permute.xlu0 %4086
    %4088 = vrot.lane.b32.xlu0 %v3390, 7
    %v4089 = vpop.permute.xlu0 %4088
    %4090 = vrot.lane.b32.xlu0 %v3391, 7
    %v4091 = vpop.permute.xlu0 %4090
    %4092 = vrot.lane.b32.xlu0 %v3392, 7
    %v4093 = vpop.permute.xlu0 %4092
    %4094 = vrot.lane.b32.xlu0 %v3393, 7
    %v4095 = vpop.permute.xlu0 %4094
    %4096 = vrot.lane.b32.xlu0 %v3394, 7
    %v4097 = vpop.permute.xlu0 %4096
    %4098 = vrot.lane.b32.xlu0 %v3395, 7
    %v4099 = vpop.permute.xlu0 %4098
    %4100 = vset.pattern.permute.xlu0 1
    %4101 = vperm.xlu0 %4100, %v66
    %v4102 = vpop.permute.xlu0 %4101
    %4104 = vset.pattern.permute.xlu0 1
    %4105 = vperm.xlu0 %4104, %v67
    %v4106 = vpop.permute.xlu0 %4105
    %4108 = vset.pattern.permute.xlu0 1
    %4109 = vperm.xlu0 %4108, %v68
    %v4110 = vpop.permute.xlu0 %4109
    %4112 = vset.pattern.permute.xlu0 1
    %4113 = vperm.xlu0 %4112, %v69
    %v4114 = vpop.permute.xlu0 %4113
    %4116 = vset.pattern.permute.xlu0 1
    %4117 = vperm.xlu0 %4116, %v70
    %v4118 = vpop.permute.xlu0 %4117
    %4120 = vset.pattern.permute.xlu0 1
    %4121 = vperm.xlu0 %4120, %v71
    %v4122 = vpop.permute.xlu0 %4121
    %4124 = vset.pattern.permute.xlu0 1
    %4125 = vperm.xlu0 %4124, %v72
    %v4126 = vpop.permute.xlu0 %4125
    %4128 = vset.pattern.permute.xlu0 1
    %4129 = vperm.xlu0 %4128, %v73
    %v4130 = vpop.permute.xlu0 %4129
    %4132 = vset.pattern.permute.xlu0 1
    %4133 = vperm.xlu0 %4132, %v74
    %v4134 = vpop.permute.xlu0 %4133
    %4136 = vset.pattern.permute.xlu0 1
    %4137 = vperm.xlu0 %4136, %v75
    %v4138 = vpop.permute.xlu0 %4137
    %4140 = vset.pattern.permute.xlu0 1
    %4141 = vperm.xlu0 %4140, %v76
    %v4142 = vpop.permute.xlu0 %4141
    %4144 = vset.pattern.permute.xlu0 1
    %4145 = vperm.xlu0 %4144, %v77
    %v4146 = vpop.permute.xlu0 %4145
    %4148 = vset.pattern.permute.xlu0 1
    %4149 = vperm.xlu0 %4148, %v78
    %v4150 = vpop.permute.xlu0 %4149
    %4152 = vset.pattern.permute.xlu0 1
    %4153 = vperm.xlu0 %4152, %v79
    %v4154 = vpop.permute.xlu0 %4153
    %4156 = vset.pattern.permute.xlu0 1
    %4157 = vperm.xlu0 %4156, %v80
    %v4158 = vpop.permute.xlu0 %4157
    %4160 = vset.pattern.permute.xlu0 1
    %4161 = vperm.xlu0 %4160, %v81
    %v4162 = vpop.permute.xlu0 %4161
    %4164 = vset.pattern.permute.xlu0 1
    %4165 = vperm.xlu0 %4164, %v82
    %v4166 = vpop.permute.xlu0 %4165
    %4168 = vset.pattern.permute.xlu0 1
    %4169 = vperm.xlu0 %4168, %v83
    %v4170 = vpop.permute.xlu0 %4169
    %4172 = vset.pattern.permute.xlu0 1
    %4173 = vperm.xlu0 %4172, %v84
    %v4174 = vpop.permute.xlu0 %4173
    %4176 = vset.pattern.permute.xlu0 1
    %4177 = vperm.xlu0 %4176, %v85
    %v4178 = vpop.permute.xlu0 %4177
    %4180 = vset.pattern.permute.xlu0 1
    %4181 = vperm.xlu0 %4180, %v86
    %v4182 = vpop.permute.xlu0 %4181
    %4184 = vset.pattern.permute.xlu0 1
    %4185 = vperm.xlu0 %4184, %v87
    %v4186 = vpop.permute.xlu0 %4185
    %4188 = vset.pattern.permute.xlu0 1
    %4189 = vperm.xlu0 %4188, %v88
    %v4190 = vpop.permute.xlu0 %4189
    %4192 = vset.pattern.permute.xlu0 1
    %4193 = vperm.xlu0 %4192, %v89
    %v4194 = vpop.permute.xlu0 %4193
    %4196 = vset.pattern.permute.xlu0 1
    %4197 = vperm.xlu0 %4196, %v90
    %v4198 = vpop.permute.xlu0 %4197
    %4200 = vset.pattern.permute.xlu0 1
    %4201 = vperm.xlu0 %4200, %v91
    %v4202 = vpop.permute.xlu0 %4201
    %4204 = vset.pattern.permute.xlu0 1
    %4205 = vperm.xlu0 %4204, %v92
    %v4206 = vpop.permute.xlu0 %4205
    %4208 = vset.pattern.permute.xlu0 1
    %4209 = vperm.xlu0 %4208, %v93
    %v4210 = vpop.permute.xlu0 %4209
    %4212 = vset.pattern.permute.xlu0 1
    %4213 = vperm.xlu0 %4212, %v94
    %v4214 = vpop.permute.xlu0 %4213
    %4216 = vset.pattern.permute.xlu0 1
    %4217 = vperm.xlu0 %4216, %v95
    %v4218 = vpop.permute.xlu0 %4217
    %4220 = vset.pattern.permute.xlu0 1
    %4221 = vperm.xlu0 %4220, %v96
    %v4222 = vpop.permute.xlu0 %4221
    %4224 = vset.pattern.permute.xlu0 1
    %4225 = vperm.xlu0 %4224, %v97
    %v4226 = vpop.permute.xlu0 %4225
    %4228 = vset.pattern.permute.xlu0 1
    %4229 = vperm.xlu0 %4228, %v98
    %v4230 = vpop.permute.xlu0 %4229
    %4232 = vset.pattern.permute.xlu0 1
    %4233 = vperm.xlu0 %4232, %v99
    %v4234 = vpop.permute.xlu0 %4233
    %4236 = vset.pattern.permute.xlu0 1
    %4237 = vperm.xlu0 %4236, %v100
    %v4238 = vpop.permute.xlu0 %4237
    %4240 = vset.pattern.permute.xlu0 1
    %4241 = vperm.xlu0 %4240, %v101
    %v4242 = vpop.permute.xlu0 %4241
    %4244 = vset.pattern.permute.xlu0 1
    %4245 = vperm.xlu0 %4244, %v102
    %v4246 = vpop.permute.xlu0 %4245
    %4248 = vset.pattern.permute.xlu0 1
    %4249 = vperm.xlu0 %4248, %v103
    %v4250 = vpop.permute.xlu0 %4249
    %4252 = vset.pattern.permute.xlu0 1
    %4253 = vperm.xlu0 %4252, %v104
    %v4254 = vpop.permute.xlu0 %4253
    %4256 = vset.pattern.permute.xlu0 1
    %4257 = vperm.xlu0 %4256, %v105
    %v4258 = vpop.permute.xlu0 %4257
    %4260 = vset.pattern.permute.xlu0 1
    %4261 = vperm.xlu0 %4260, %v106
    %v4262 = vpop.permute.xlu0 %4261
    %4264 = vset.pattern.permute.xlu0 1
    %4265 = vperm.xlu0 %4264, %v107
    %v4266 = vpop.permute.xlu0 %4265
    %4268 = vset.pattern.permute.xlu0 1
    %4269 = vperm.xlu0 %4268, %v108
    %v4270 = vpop.permute.xlu0 %4269
    %4272 = vset.pattern.permute.xlu0 1
    %4273 = vperm.xlu0 %4272, %v109
    %v4274 = vpop.permute.xlu0 %4273
    %4276 = vset.pattern.permute.xlu0 1
    %4277 = vperm.xlu0 %4276, %v110
    %v4278 = vpop.permute.xlu0 %4277
    %4280 = vset.pattern.permute.xlu0 1
    %4281 = vperm.xlu0 %4280, %v111
    %v4282 = vpop.permute.xlu0 %4281
    %4284 = vset.pattern.permute.xlu0 1
    %4285 = vperm.xlu0 %4284, %v112
    %v4286 = vpop.permute.xlu0 %4285
    %4288 = vset.pattern.permute.xlu0 1
    %4289 = vperm.xlu0 %4288, %v113
    %v4290 = vpop.permute.xlu0 %4289
    %4292 = vset.pattern.permute.xlu0 1
    %4293 = vperm.xlu0 %4292, %v114
    %v4294 = vpop.permute.xlu0 %4293
    %4296 = vset.pattern.permute.xlu0 1
    %4297 = vperm.xlu0 %4296, %v115
    %v4298 = vpop.permute.xlu0 %4297
    %4300 = vset.pattern.permute.xlu0 1
    %4301 = vperm.xlu0 %4300, %v116
    %v4302 = vpop.permute.xlu0 %4301
    %4304 = vset.pattern.permute.xlu0 1
    %4305 = vperm.xlu0 %4304, %v117
    %v4306 = vpop.permute.xlu0 %4305
    %4308 = vset.pattern.permute.xlu0 1
    %4309 = vperm.xlu0 %4308, %v118
    %v4310 = vpop.permute.xlu0 %4309
    %4312 = vset.pattern.permute.xlu0 1
    %4313 = vperm.xlu0 %4312, %v119
    %v4314 = vpop.permute.xlu0 %4313
    %4316 = vset.pattern.permute.xlu0 1
    %4317 = vperm.xlu0 %4316, %v120
    %v4318 = vpop.permute.xlu0 %4317
    %4320 = vset.pattern.permute.xlu0 1
    %4321 = vperm.xlu0 %4320, %v121
    %v4322 = vpop.permute.xlu0 %4321
    %4324 = vset.pattern.permute.xlu0 1
    %4325 = vperm.xlu0 %4324, %v122
    %v4326 = vpop.permute.xlu0 %4325
    %4328 = vset.pattern.permute.xlu0 1
    %4329 = vperm.xlu0 %4328, %v123
    %v4330 = vpop.permute.xlu0 %4329
    %4332 = vset.pattern.permute.xlu0 1
    %4333 = vperm.xlu0 %4332, %v124
    %v4334 = vpop.permute.xlu0 %4333
    %4336 = vset.pattern.permute.xlu0 1
    %4337 = vperm.xlu0 %4336, %v125
    %v4338 = vpop.permute.xlu0 %4337
    %4340 = vset.pattern.permute.xlu0 1
    %4341 = vperm.xlu0 %4340, %v126
    %v4342 = vpop.permute.xlu0 %4341
    %4344 = vset.pattern.permute.xlu0 1
    %4345 = vperm.xlu0 %4344, %v127
    %v4346 = vpop.permute.xlu0 %4345
    %4348 = vset.pattern.permute.xlu0 1
    %4349 = vperm.xlu0 %4348, %v128
    %v4350 = vpop.permute.xlu0 %4349
    %4352 = vset.pattern.permute.xlu0 1
    %4353 = vperm.xlu0 %4352, %v129
    %v4354 = vpop.permute.xlu0 %4353
    %v4356 = vmul.f32 %v3973, %v4102
    %v4357 = vmul.f32 %v3975, %v4106
    %v4358 = vmul.f32 %v3977, %v4110
    %v4359 = vmul.f32 %v3979, %v4114
    %v4360 = vmul.f32 %v3981, %v4118
    %v4361 = vmul.f32 %v3983, %v4122
    %v4362 = vmul.f32 %v3985, %v4126
    %v4363 = vmul.f32 %v3987, %v4130
    %v4364 = vmul.f32 %v3989, %v4134
    %v4365 = vmul.f32 %v3991, %v4138
    %v4366 = vmul.f32 %v3993, %v4142
    %v4367 = vmul.f32 %v3995, %v4146
    %v4368 = vmul.f32 %v3997, %v4150
    %v4369 = vmul.f32 %v3999, %v4154
    %v4370 = vmul.f32 %v4001, %v4158
    %v4371 = vmul.f32 %v4003, %v4162
    %v4372 = vmul.f32 %v4005, %v4166
    %v4373 = vmul.f32 %v4007, %v4170
    %v4374 = vmul.f32 %v4009, %v4174
    %v4375 = vmul.f32 %v4011, %v4178
    %v4376 = vmul.f32 %v4013, %v4182
    %v4377 = vmul.f32 %v4015, %v4186
    %v4378 = vmul.f32 %v4017, %v4190
    %v4379 = vmul.f32 %v4019, %v4194
    %v4380 = vmul.f32 %v4021, %v4198
    %v4381 = vmul.f32 %v4023, %v4202
    %v4382 = vmul.f32 %v4025, %v4206
    %v4383 = vmul.f32 %v4027, %v4210
    %v4384 = vmul.f32 %v4029, %v4214
    %v4385 = vmul.f32 %v4031, %v4218
    %v4386 = vmul.f32 %v4033, %v4222
    %v4387 = vmul.f32 %v4035, %v4226
    %v4388 = vmul.f32 %v4037, %v4230
    %v4389 = vmul.f32 %v4039, %v4234
    %v4390 = vmul.f32 %v4041, %v4238
    %v4391 = vmul.f32 %v4043, %v4242
    %v4392 = vmul.f32 %v4045, %v4246
    %v4393 = vmul.f32 %v4047, %v4250
    %v4394 = vmul.f32 %v4049, %v4254
    %v4395 = vmul.f32 %v4051, %v4258
    %v4396 = vmul.f32 %v4053, %v4262
    %v4397 = vmul.f32 %v4055, %v4266
    %v4398 = vmul.f32 %v4057, %v4270
    %v4399 = vmul.f32 %v4059, %v4274
    %v4400 = vmul.f32 %v4061, %v4278
    %v4401 = vmul.f32 %v4063, %v4282
    %v4402 = vmul.f32 %v4065, %v4286
    %v4403 = vmul.f32 %v4067, %v4290
    %v4404 = vmul.f32 %v4069, %v4294
    %v4405 = vmul.f32 %v4071, %v4298
    %v4406 = vmul.f32 %v4073, %v4302
    %v4407 = vmul.f32 %v4075, %v4306
    %v4408 = vmul.f32 %v4077, %v4310
    %v4409 = vmul.f32 %v4079, %v4314
    %v4410 = vmul.f32 %v4081, %v4318
    %v4411 = vmul.f32 %v4083, %v4322
    %v4412 = vmul.f32 %v4085, %v4326
    %v4413 = vmul.f32 %v4087, %v4330
    %v4414 = vmul.f32 %v4089, %v4334
    %v4415 = vmul.f32 %v4091, %v4338
    %v4416 = vmul.f32 %v4093, %v4342
    %v4417 = vmul.f32 %v4095, %v4346
    %v4418 = vmul.f32 %v4097, %v4350
    %v4419 = vmul.f32 %v4099, %v4354
    %4420 = vrot.lane.b32.xlu0 %v3396, 6
    %v4421 = vpop.permute.xlu0 %4420
    %4422 = vrot.lane.b32.xlu0 %v3397, 6
    %v4423 = vpop.permute.xlu0 %4422
    %4424 = vrot.lane.b32.xlu0 %v3398, 6
    %v4425 = vpop.permute.xlu0 %4424
    %4426 = vrot.lane.b32.xlu0 %v3399, 6
    %v4427 = vpop.permute.xlu0 %4426
    %4428 = vrot.lane.b32.xlu0 %v3400, 6
    %v4429 = vpop.permute.xlu0 %4428
    %4430 = vrot.lane.b32.xlu0 %v3401, 6
    %v4431 = vpop.permute.xlu0 %4430
    %4432 = vrot.lane.b32.xlu0 %v3402, 6
    %v4433 = vpop.permute.xlu0 %4432
    %4434 = vrot.lane.b32.xlu0 %v3403, 6
    %v4435 = vpop.permute.xlu0 %4434
    %4436 = vrot.lane.b32.xlu0 %v3404, 6
    %v4437 = vpop.permute.xlu0 %4436
    %4438 = vrot.lane.b32.xlu0 %v3405, 6
    %v4439 = vpop.permute.xlu0 %4438
    %4440 = vrot.lane.b32.xlu0 %v3406, 6
    %v4441 = vpop.permute.xlu0 %4440
    %4442 = vrot.lane.b32.xlu0 %v3407, 6
    %v4443 = vpop.permute.xlu0 %4442
    %4444 = vrot.lane.b32.xlu0 %v3408, 6
    %v4445 = vpop.permute.xlu0 %4444
    %4446 = vrot.lane.b32.xlu0 %v3409, 6
    %v4447 = vpop.permute.xlu0 %4446
    %4448 = vrot.lane.b32.xlu0 %v3410, 6
    %v4449 = vpop.permute.xlu0 %4448
    %4450 = vrot.lane.b32.xlu0 %v3411, 6
    %v4451 = vpop.permute.xlu0 %4450
    %4452 = vrot.lane.b32.xlu0 %v3412, 6
    %v4453 = vpop.permute.xlu0 %4452
    %4454 = vrot.lane.b32.xlu0 %v3413, 6
    %v4455 = vpop.permute.xlu0 %4454
    %4456 = vrot.lane.b32.xlu0 %v3414, 6
    %v4457 = vpop.permute.xlu0 %4456
    %4458 = vrot.lane.b32.xlu0 %v3415, 6
    %v4459 = vpop.permute.xlu0 %4458
    %4460 = vrot.lane.b32.xlu0 %v3416, 6
    %v4461 = vpop.permute.xlu0 %4460
    %4462 = vrot.lane.b32.xlu0 %v3417, 6
    %v4463 = vpop.permute.xlu0 %4462
    %4464 = vrot.lane.b32.xlu0 %v3418, 6
    %v4465 = vpop.permute.xlu0 %4464
    %4466 = vrot.lane.b32.xlu0 %v3419, 6
    %v4467 = vpop.permute.xlu0 %4466
    %4468 = vrot.lane.b32.xlu0 %v3420, 6
    %v4469 = vpop.permute.xlu0 %4468
    %4470 = vrot.lane.b32.xlu0 %v3421, 6
    %v4471 = vpop.permute.xlu0 %4470
    %4472 = vrot.lane.b32.xlu0 %v3422, 6
    %v4473 = vpop.permute.xlu0 %4472
    %4474 = vrot.lane.b32.xlu0 %v3423, 6
    %v4475 = vpop.permute.xlu0 %4474
    %4476 = vrot.lane.b32.xlu0 %v3424, 6
    %v4477 = vpop.permute.xlu0 %4476
    %4478 = vrot.lane.b32.xlu0 %v3425, 6
    %v4479 = vpop.permute.xlu0 %4478
    %4480 = vrot.lane.b32.xlu0 %v3426, 6
    %v4481 = vpop.permute.xlu0 %4480
    %4482 = vrot.lane.b32.xlu0 %v3427, 6
    %v4483 = vpop.permute.xlu0 %4482
    %4484 = vrot.lane.b32.xlu0 %v3428, 6
    %v4485 = vpop.permute.xlu0 %4484
    %4486 = vrot.lane.b32.xlu0 %v3429, 6
    %v4487 = vpop.permute.xlu0 %4486
    %4488 = vrot.lane.b32.xlu0 %v3430, 6
    %v4489 = vpop.permute.xlu0 %4488
    %4490 = vrot.lane.b32.xlu0 %v3431, 6
    %v4491 = vpop.permute.xlu0 %4490
    %4492 = vrot.lane.b32.xlu0 %v3432, 6
    %v4493 = vpop.permute.xlu0 %4492
    %4494 = vrot.lane.b32.xlu0 %v3433, 6
    %v4495 = vpop.permute.xlu0 %4494
    %4496 = vrot.lane.b32.xlu0 %v3434, 6
    %v4497 = vpop.permute.xlu0 %4496
    %4498 = vrot.lane.b32.xlu0 %v3435, 6
    %v4499 = vpop.permute.xlu0 %4498
    %4500 = vrot.lane.b32.xlu0 %v3436, 6
    %v4501 = vpop.permute.xlu0 %4500
    %4502 = vrot.lane.b32.xlu0 %v3437, 6
    %v4503 = vpop.permute.xlu0 %4502
    %4504 = vrot.lane.b32.xlu0 %v3438, 6
    %v4505 = vpop.permute.xlu0 %4504
    %4506 = vrot.lane.b32.xlu0 %v3439, 6
    %v4507 = vpop.permute.xlu0 %4506
    %4508 = vrot.lane.b32.xlu0 %v3440, 6
    %v4509 = vpop.permute.xlu0 %4508
    %4510 = vrot.lane.b32.xlu0 %v3441, 6
    %v4511 = vpop.permute.xlu0 %4510
    %4512 = vrot.lane.b32.xlu0 %v3442, 6
    %v4513 = vpop.permute.xlu0 %4512
    %4514 = vrot.lane.b32.xlu0 %v3443, 6
    %v4515 = vpop.permute.xlu0 %4514
    %4516 = vrot.lane.b32.xlu0 %v3444, 6
    %v4517 = vpop.permute.xlu0 %4516
    %4518 = vrot.lane.b32.xlu0 %v3445, 6
    %v4519 = vpop.permute.xlu0 %4518
    %4520 = vrot.lane.b32.xlu0 %v3446, 6
    %v4521 = vpop.permute.xlu0 %4520
    %4522 = vrot.lane.b32.xlu0 %v3447, 6
    %v4523 = vpop.permute.xlu0 %4522
    %4524 = vrot.lane.b32.xlu0 %v3448, 6
    %v4525 = vpop.permute.xlu0 %4524
    %4526 = vrot.lane.b32.xlu0 %v3449, 6
    %v4527 = vpop.permute.xlu0 %4526
    %4528 = vrot.lane.b32.xlu0 %v3450, 6
    %v4529 = vpop.permute.xlu0 %4528
    %4530 = vrot.lane.b32.xlu0 %v3451, 6
    %v4531 = vpop.permute.xlu0 %4530
    %4532 = vrot.lane.b32.xlu0 %v3452, 6
    %v4533 = vpop.permute.xlu0 %4532
    %4534 = vrot.lane.b32.xlu0 %v3453, 6
    %v4535 = vpop.permute.xlu0 %4534
    %4536 = vrot.lane.b32.xlu0 %v3454, 6
    %v4537 = vpop.permute.xlu0 %4536
    %4538 = vrot.lane.b32.xlu0 %v3455, 6
    %v4539 = vpop.permute.xlu0 %4538
    %4540 = vrot.lane.b32.xlu0 %v3456, 6
    %v4541 = vpop.permute.xlu0 %4540
    %4542 = vrot.lane.b32.xlu0 %v3457, 6
    %v4543 = vpop.permute.xlu0 %4542
    %4544 = vrot.lane.b32.xlu0 %v3458, 6
    %v4545 = vpop.permute.xlu0 %4544
    %4546 = vrot.lane.b32.xlu0 %v3459, 6
    %v4547 = vpop.permute.xlu0 %4546
    %4548 = vset.pattern.permute.xlu0 2
    %4549 = vperm.xlu0 %4548, %v66
    %v4550 = vpop.permute.xlu0 %4549
    %4552 = vset.pattern.permute.xlu0 2
    %4553 = vperm.xlu0 %4552, %v67
    %v4554 = vpop.permute.xlu0 %4553
    %4556 = vset.pattern.permute.xlu0 2
    %4557 = vperm.xlu0 %4556, %v68
    %v4558 = vpop.permute.xlu0 %4557
    %4560 = vset.pattern.permute.xlu0 2
    %4561 = vperm.xlu0 %4560, %v69
    %v4562 = vpop.permute.xlu0 %4561
    %4564 = vset.pattern.permute.xlu0 2
    %4565 = vperm.xlu0 %4564, %v70
    %v4566 = vpop.permute.xlu0 %4565
    %4568 = vset.pattern.permute.xlu0 2
    %4569 = vperm.xlu0 %4568, %v71
    %v4570 = vpop.permute.xlu0 %4569
    %4572 = vset.pattern.permute.xlu0 2
    %4573 = vperm.xlu0 %4572, %v72
    %v4574 = vpop.permute.xlu0 %4573
    %4576 = vset.pattern.permute.xlu0 2
    %4577 = vperm.xlu0 %4576, %v73
    %v4578 = vpop.permute.xlu0 %4577
    %4580 = vset.pattern.permute.xlu0 2
    %4581 = vperm.xlu0 %4580, %v74
    %v4582 = vpop.permute.xlu0 %4581
    %4584 = vset.pattern.permute.xlu0 2
    %4585 = vperm.xlu0 %4584, %v75
    %v4586 = vpop.permute.xlu0 %4585
    %4588 = vset.pattern.permute.xlu0 2
    %4589 = vperm.xlu0 %4588, %v76
    %v4590 = vpop.permute.xlu0 %4589
    %4592 = vset.pattern.permute.xlu0 2
    %4593 = vperm.xlu0 %4592, %v77
    %v4594 = vpop.permute.xlu0 %4593
    %4596 = vset.pattern.permute.xlu0 2
    %4597 = vperm.xlu0 %4596, %v78
    %v4598 = vpop.permute.xlu0 %4597
    %4600 = vset.pattern.permute.xlu0 2
    %4601 = vperm.xlu0 %4600, %v79
    %v4602 = vpop.permute.xlu0 %4601
    %4604 = vset.pattern.permute.xlu0 2
    %4605 = vperm.xlu0 %4604, %v80
    %v4606 = vpop.permute.xlu0 %4605
    %4608 = vset.pattern.permute.xlu0 2
    %4609 = vperm.xlu0 %4608, %v81
    %v4610 = vpop.permute.xlu0 %4609
    %4612 = vset.pattern.permute.xlu0 2
    %4613 = vperm.xlu0 %4612, %v82
    %v4614 = vpop.permute.xlu0 %4613
    %4616 = vset.pattern.permute.xlu0 2
    %4617 = vperm.xlu0 %4616, %v83
    %v4618 = vpop.permute.xlu0 %4617
    %4620 = vset.pattern.permute.xlu0 2
    %4621 = vperm.xlu0 %4620, %v84
    %v4622 = vpop.permute.xlu0 %4621
    %4624 = vset.pattern.permute.xlu0 2
    %4625 = vperm.xlu0 %4624, %v85
    %v4626 = vpop.permute.xlu0 %4625
    %4628 = vset.pattern.permute.xlu0 2
    %4629 = vperm.xlu0 %4628, %v86
    %v4630 = vpop.permute.xlu0 %4629
    %4632 = vset.pattern.permute.xlu0 2
    %4633 = vperm.xlu0 %4632, %v87
    %v4634 = vpop.permute.xlu0 %4633
    %4636 = vset.pattern.permute.xlu0 2
    %4637 = vperm.xlu0 %4636, %v88
    %v4638 = vpop.permute.xlu0 %4637
    %4640 = vset.pattern.permute.xlu0 2
    %4641 = vperm.xlu0 %4640, %v89
    %v4642 = vpop.permute.xlu0 %4641
    %4644 = vset.pattern.permute.xlu0 2
    %4645 = vperm.xlu0 %4644, %v90
    %v4646 = vpop.permute.xlu0 %4645
    %4648 = vset.pattern.permute.xlu0 2
    %4649 = vperm.xlu0 %4648, %v91
    %v4650 = vpop.permute.xlu0 %4649
    %4652 = vset.pattern.permute.xlu0 2
    %4653 = vperm.xlu0 %4652, %v92
    %v4654 = vpop.permute.xlu0 %4653
    %4656 = vset.pattern.permute.xlu0 2
    %4657 = vperm.xlu0 %4656, %v93
    %v4658 = vpop.permute.xlu0 %4657
    %4660 = vset.pattern.permute.xlu0 2
    %4661 = vperm.xlu0 %4660, %v94
    %v4662 = vpop.permute.xlu0 %4661
    %4664 = vset.pattern.permute.xlu0 2
    %4665 = vperm.xlu0 %4664, %v95
    %v4666 = vpop.permute.xlu0 %4665
    %4668 = vset.pattern.permute.xlu0 2
    %4669 = vperm.xlu0 %4668, %v96
    %v4670 = vpop.permute.xlu0 %4669
    %4672 = vset.pattern.permute.xlu0 2
    %4673 = vperm.xlu0 %4672, %v97
    %v4674 = vpop.permute.xlu0 %4673
    %4676 = vset.pattern.permute.xlu0 2
    %4677 = vperm.xlu0 %4676, %v98
    %v4678 = vpop.permute.xlu0 %4677
    %4680 = vset.pattern.permute.xlu0 2
    %4681 = vperm.xlu0 %4680, %v99
    %v4682 = vpop.permute.xlu0 %4681
    %4684 = vset.pattern.permute.xlu0 2
    %4685 = vperm.xlu0 %4684, %v100
    %v4686 = vpop.permute.xlu0 %4685
    %4688 = vset.pattern.permute.xlu0 2
    %4689 = vperm.xlu0 %4688, %v101
    %v4690 = vpop.permute.xlu0 %4689
    %4692 = vset.pattern.permute.xlu0 2
    %4693 = vperm.xlu0 %4692, %v102
    %v4694 = vpop.permute.xlu0 %4693
    %4696 = vset.pattern.permute.xlu0 2
    %4697 = vperm.xlu0 %4696, %v103
    %v4698 = vpop.permute.xlu0 %4697
    %4700 = vset.pattern.permute.xlu0 2
    %4701 = vperm.xlu0 %4700, %v104
    %v4702 = vpop.permute.xlu0 %4701
    %4704 = vset.pattern.permute.xlu0 2
    %4705 = vperm.xlu0 %4704, %v105
    %v4706 = vpop.permute.xlu0 %4705
    %4708 = vset.pattern.permute.xlu0 2
    %4709 = vperm.xlu0 %4708, %v106
    %v4710 = vpop.permute.xlu0 %4709
    %4712 = vset.pattern.permute.xlu0 2
    %4713 = vperm.xlu0 %4712, %v107
    %v4714 = vpop.permute.xlu0 %4713
    %4716 = vset.pattern.permute.xlu0 2
    %4717 = vperm.xlu0 %4716, %v108
    %v4718 = vpop.permute.xlu0 %4717
    %4720 = vset.pattern.permute.xlu0 2
    %4721 = vperm.xlu0 %4720, %v109
    %v4722 = vpop.permute.xlu0 %4721
    %4724 = vset.pattern.permute.xlu0 2
    %4725 = vperm.xlu0 %4724, %v110
    %v4726 = vpop.permute.xlu0 %4725
    %4728 = vset.pattern.permute.xlu0 2
    %4729 = vperm.xlu0 %4728, %v111
    %v4730 = vpop.permute.xlu0 %4729
    %4732 = vset.pattern.permute.xlu0 2
    %4733 = vperm.xlu0 %4732, %v112
    %v4734 = vpop.permute.xlu0 %4733
    %4736 = vset.pattern.permute.xlu0 2
    %4737 = vperm.xlu0 %4736, %v113
    %v4738 = vpop.permute.xlu0 %4737
    %4740 = vset.pattern.permute.xlu0 2
    %4741 = vperm.xlu0 %4740, %v114
    %v4742 = vpop.permute.xlu0 %4741
    %4744 = vset.pattern.permute.xlu0 2
    %4745 = vperm.xlu0 %4744, %v115
    %v4746 = vpop.permute.xlu0 %4745
    %4748 = vset.pattern.permute.xlu0 2
    %4749 = vperm.xlu0 %4748, %v116
    %v4750 = vpop.permute.xlu0 %4749
    %4752 = vset.pattern.permute.xlu0 2
    %4753 = vperm.xlu0 %4752, %v117
    %v4754 = vpop.permute.xlu0 %4753
    %4756 = vset.pattern.permute.xlu0 2
    %4757 = vperm.xlu0 %4756, %v118
    %v4758 = vpop.permute.xlu0 %4757
    %4760 = vset.pattern.permute.xlu0 2
    %4761 = vperm.xlu0 %4760, %v119
    %v4762 = vpop.permute.xlu0 %4761
    %4764 = vset.pattern.permute.xlu0 2
    %4765 = vperm.xlu0 %4764, %v120
    %v4766 = vpop.permute.xlu0 %4765
    %4768 = vset.pattern.permute.xlu0 2
    %4769 = vperm.xlu0 %4768, %v121
    %v4770 = vpop.permute.xlu0 %4769
    %4772 = vset.pattern.permute.xlu0 2
    %4773 = vperm.xlu0 %4772, %v122
    %v4774 = vpop.permute.xlu0 %4773
    %4776 = vset.pattern.permute.xlu0 2
    %4777 = vperm.xlu0 %4776, %v123
    %v4778 = vpop.permute.xlu0 %4777
    %4780 = vset.pattern.permute.xlu0 2
    %4781 = vperm.xlu0 %4780, %v124
    %v4782 = vpop.permute.xlu0 %4781
    %4784 = vset.pattern.permute.xlu0 2
    %4785 = vperm.xlu0 %4784, %v125
    %v4786 = vpop.permute.xlu0 %4785
    %4788 = vset.pattern.permute.xlu0 2
    %4789 = vperm.xlu0 %4788, %v126
    %v4790 = vpop.permute.xlu0 %4789
    %4792 = vset.pattern.permute.xlu0 2
    %4793 = vperm.xlu0 %4792, %v127
    %v4794 = vpop.permute.xlu0 %4793
    %4796 = vset.pattern.permute.xlu0 2
    %4797 = vperm.xlu0 %4796, %v128
    %v4798 = vpop.permute.xlu0 %4797
    %4800 = vset.pattern.permute.xlu0 2
    %4801 = vperm.xlu0 %4800, %v129
    %v4802 = vpop.permute.xlu0 %4801
    %v4804 = vmul.f32 %v4421, %v4550
    %v4805 = vmul.f32 %v4423, %v4554
    %v4806 = vmul.f32 %v4425, %v4558
    %v4807 = vmul.f32 %v4427, %v4562
    %v4808 = vmul.f32 %v4429, %v4566
    %v4809 = vmul.f32 %v4431, %v4570
    %v4810 = vmul.f32 %v4433, %v4574
    %v4811 = vmul.f32 %v4435, %v4578
    %v4812 = vmul.f32 %v4437, %v4582
    %v4813 = vmul.f32 %v4439, %v4586
    %v4814 = vmul.f32 %v4441, %v4590
    %v4815 = vmul.f32 %v4443, %v4594
    %v4816 = vmul.f32 %v4445, %v4598
    %v4817 = vmul.f32 %v4447, %v4602
    %v4818 = vmul.f32 %v4449, %v4606
    %v4819 = vmul.f32 %v4451, %v4610
    %v4820 = vmul.f32 %v4453, %v4614
    %v4821 = vmul.f32 %v4455, %v4618
    %v4822 = vmul.f32 %v4457, %v4622
    %v4823 = vmul.f32 %v4459, %v4626
    %v4824 = vmul.f32 %v4461, %v4630
    %v4825 = vmul.f32 %v4463, %v4634
    %v4826 = vmul.f32 %v4465, %v4638
    %v4827 = vmul.f32 %v4467, %v4642
    %v4828 = vmul.f32 %v4469, %v4646
    %v4829 = vmul.f32 %v4471, %v4650
    %v4830 = vmul.f32 %v4473, %v4654
    %v4831 = vmul.f32 %v4475, %v4658
    %v4832 = vmul.f32 %v4477, %v4662
    %v4833 = vmul.f32 %v4479, %v4666
    %v4834 = vmul.f32 %v4481, %v4670
    %v4835 = vmul.f32 %v4483, %v4674
    %v4836 = vmul.f32 %v4485, %v4678
    %v4837 = vmul.f32 %v4487, %v4682
    %v4838 = vmul.f32 %v4489, %v4686
    %v4839 = vmul.f32 %v4491, %v4690
    %v4840 = vmul.f32 %v4493, %v4694
    %v4841 = vmul.f32 %v4495, %v4698
    %v4842 = vmul.f32 %v4497, %v4702
    %v4843 = vmul.f32 %v4499, %v4706
    %v4844 = vmul.f32 %v4501, %v4710
    %v4845 = vmul.f32 %v4503, %v4714
    %v4846 = vmul.f32 %v4505, %v4718
    %v4847 = vmul.f32 %v4507, %v4722
    %v4848 = vmul.f32 %v4509, %v4726
    %v4849 = vmul.f32 %v4511, %v4730
    %v4850 = vmul.f32 %v4513, %v4734
    %v4851 = vmul.f32 %v4515, %v4738
    %v4852 = vmul.f32 %v4517, %v4742
    %v4853 = vmul.f32 %v4519, %v4746
    %v4854 = vmul.f32 %v4521, %v4750
    %v4855 = vmul.f32 %v4523, %v4754
    %v4856 = vmul.f32 %v4525, %v4758
    %v4857 = vmul.f32 %v4527, %v4762
    %v4858 = vmul.f32 %v4529, %v4766
    %v4859 = vmul.f32 %v4531, %v4770
    %v4860 = vmul.f32 %v4533, %v4774
    %v4861 = vmul.f32 %v4535, %v4778
    %v4862 = vmul.f32 %v4537, %v4782
    %v4863 = vmul.f32 %v4539, %v4786
    %v4864 = vmul.f32 %v4541, %v4790
    %v4865 = vmul.f32 %v4543, %v4794
    %v4866 = vmul.f32 %v4545, %v4798
    %v4867 = vmul.f32 %v4547, %v4802
    %v4868 = vadd.f32 %v3908, %v4804
    %v4869 = vadd.f32 %v3909, %v4805
    %v4870 = vadd.f32 %v3910, %v4806
    %v4871 = vadd.f32 %v3911, %v4807
    %v4872 = vadd.f32 %v3912, %v4808
    %v4873 = vadd.f32 %v3913, %v4809
    %v4874 = vadd.f32 %v3914, %v4810
    %v4875 = vadd.f32 %v3915, %v4811
    %v4876 = vadd.f32 %v3916, %v4812
    %v4877 = vadd.f32 %v3917, %v4813
    %v4878 = vadd.f32 %v3918, %v4814
    %v4879 = vadd.f32 %v3919, %v4815
    %v4880 = vadd.f32 %v3920, %v4816
    %v4881 = vadd.f32 %v3921, %v4817
    %v4882 = vadd.f32 %v3922, %v4818
    %v4883 = vadd.f32 %v3923, %v4819
    %v4884 = vadd.f32 %v3924, %v4820
    %v4885 = vadd.f32 %v3925, %v4821
    %v4886 = vadd.f32 %v3926, %v4822
    %v4887 = vadd.f32 %v3927, %v4823
    %v4888 = vadd.f32 %v3928, %v4824
    %v4889 = vadd.f32 %v3929, %v4825
    %v4890 = vadd.f32 %v3930, %v4826
    %v4891 = vadd.f32 %v3931, %v4827
    %v4892 = vadd.f32 %v3932, %v4828
    %v4893 = vadd.f32 %v3933, %v4829
    %v4894 = vadd.f32 %v3934, %v4830
    %v4895 = vadd.f32 %v3935, %v4831
    %v4896 = vadd.f32 %v3936, %v4832
    %v4897 = vadd.f32 %v3937, %v4833
    %v4898 = vadd.f32 %v3938, %v4834
    %v4899 = vadd.f32 %v3939, %v4835
    %v4900 = vadd.f32 %v3940, %v4836
    %v4901 = vadd.f32 %v3941, %v4837
    %v4902 = vadd.f32 %v3942, %v4838
    %v4903 = vadd.f32 %v3943, %v4839
    %v4904 = vadd.f32 %v3944, %v4840
    %v4905 = vadd.f32 %v3945, %v4841
    %v4906 = vadd.f32 %v3946, %v4842
    %v4907 = vadd.f32 %v3947, %v4843
    %v4908 = vadd.f32 %v3948, %v4844
    %v4909 = vadd.f32 %v3949, %v4845
    %v4910 = vadd.f32 %v3950, %v4846
    %v4911 = vadd.f32 %v3951, %v4847
    %v4912 = vadd.f32 %v3952, %v4848
    %v4913 = vadd.f32 %v3953, %v4849
    %v4914 = vadd.f32 %v3954, %v4850
    %v4915 = vadd.f32 %v3955, %v4851
    %v4916 = vadd.f32 %v3956, %v4852
    %v4917 = vadd.f32 %v3957, %v4853
    %v4918 = vadd.f32 %v3958, %v4854
    %v4919 = vadd.f32 %v3959, %v4855
    %v4920 = vadd.f32 %v3960, %v4856
    %v4921 = vadd.f32 %v3961, %v4857
    %v4922 = vadd.f32 %v3962, %v4858
    %v4923 = vadd.f32 %v3963, %v4859
    %v4924 = vadd.f32 %v3964, %v4860
    %v4925 = vadd.f32 %v3965, %v4861
    %v4926 = vadd.f32 %v3966, %v4862
    %v4927 = vadd.f32 %v3967, %v4863
    %v4928 = vadd.f32 %v3968, %v4864
    %v4929 = vadd.f32 %v3969, %v4865
    %v4930 = vadd.f32 %v3970, %v4866
    %v4931 = vadd.f32 %v3971, %v4867
    %4932 = vrot.lane.b32.xlu0 %v3460, 1
    %v4933 = vpop.permute.xlu0 %4932
    %4934 = vrot.lane.b32.xlu0 %v3461, 1
    %v4935 = vpop.permute.xlu0 %4934
    %4936 = vrot.lane.b32.xlu0 %v3462, 1
    %v4937 = vpop.permute.xlu0 %4936
    %4938 = vrot.lane.b32.xlu0 %v3463, 1
    %v4939 = vpop.permute.xlu0 %4938
    %4940 = vrot.lane.b32.xlu0 %v3464, 1
    %v4941 = vpop.permute.xlu0 %4940
    %4942 = vrot.lane.b32.xlu0 %v3465, 1
    %v4943 = vpop.permute.xlu0 %4942
    %4944 = vrot.lane.b32.xlu0 %v3466, 1
    %v4945 = vpop.permute.xlu0 %4944
    %4946 = vrot.lane.b32.xlu0 %v3467, 1
    %v4947 = vpop.permute.xlu0 %4946
    %4948 = vrot.lane.b32.xlu0 %v3468, 1
    %v4949 = vpop.permute.xlu0 %4948
    %4950 = vrot.lane.b32.xlu0 %v3469, 1
    %v4951 = vpop.permute.xlu0 %4950
    %4952 = vrot.lane.b32.xlu0 %v3470, 1
    %v4953 = vpop.permute.xlu0 %4952
    %4954 = vrot.lane.b32.xlu0 %v3471, 1
    %v4955 = vpop.permute.xlu0 %4954
    %4956 = vrot.lane.b32.xlu0 %v3472, 1
    %v4957 = vpop.permute.xlu0 %4956
    %4958 = vrot.lane.b32.xlu0 %v3473, 1
    %v4959 = vpop.permute.xlu0 %4958
    %4960 = vrot.lane.b32.xlu0 %v3474, 1
    %v4961 = vpop.permute.xlu0 %4960
    %4962 = vrot.lane.b32.xlu0 %v3475, 1
    %v4963 = vpop.permute.xlu0 %4962
    %4964 = vrot.lane.b32.xlu0 %v3476, 1
    %v4965 = vpop.permute.xlu0 %4964
    %4966 = vrot.lane.b32.xlu0 %v3477, 1
    %v4967 = vpop.permute.xlu0 %4966
    %4968 = vrot.lane.b32.xlu0 %v3478, 1
    %v4969 = vpop.permute.xlu0 %4968
    %4970 = vrot.lane.b32.xlu0 %v3479, 1
    %v4971 = vpop.permute.xlu0 %4970
    %4972 = vrot.lane.b32.xlu0 %v3480, 1
    %v4973 = vpop.permute.xlu0 %4972
    %4974 = vrot.lane.b32.xlu0 %v3481, 1
    %v4975 = vpop.permute.xlu0 %4974
    %4976 = vrot.lane.b32.xlu0 %v3482, 1
    %v4977 = vpop.permute.xlu0 %4976
    %4978 = vrot.lane.b32.xlu0 %v3483, 1
    %v4979 = vpop.permute.xlu0 %4978
    %4980 = vrot.lane.b32.xlu0 %v3484, 1
    %v4981 = vpop.permute.xlu0 %4980
    %4982 = vrot.lane.b32.xlu0 %v3485, 1
    %v4983 = vpop.permute.xlu0 %4982
    %4984 = vrot.lane.b32.xlu0 %v3486, 1
    %v4985 = vpop.permute.xlu0 %4984
    %4986 = vrot.lane.b32.xlu0 %v3487, 1
    %v4987 = vpop.permute.xlu0 %4986
    %4988 = vrot.lane.b32.xlu0 %v3488, 1
    %v4989 = vpop.permute.xlu0 %4988
    %4990 = vrot.lane.b32.xlu0 %v3489, 1
    %v4991 = vpop.permute.xlu0 %4990
    %4992 = vrot.lane.b32.xlu0 %v3490, 1
    %v4993 = vpop.permute.xlu0 %4992
    %4994 = vrot.lane.b32.xlu0 %v3491, 1
    %v4995 = vpop.permute.xlu0 %4994
    %4996 = vrot.lane.b32.xlu0 %v3492, 1
    %v4997 = vpop.permute.xlu0 %4996
    %4998 = vrot.lane.b32.xlu0 %v3493, 1
    %v4999 = vpop.permute.xlu0 %4998
    %5000 = vrot.lane.b32.xlu0 %v3494, 1
    %v5001 = vpop.permute.xlu0 %5000
    %5002 = vrot.lane.b32.xlu0 %v3495, 1
    %v5003 = vpop.permute.xlu0 %5002
    %5004 = vrot.lane.b32.xlu0 %v3496, 1
    %v5005 = vpop.permute.xlu0 %5004
    %5006 = vrot.lane.b32.xlu0 %v3497, 1
    %v5007 = vpop.permute.xlu0 %5006
    %5008 = vrot.lane.b32.xlu0 %v3498, 1
    %v5009 = vpop.permute.xlu0 %5008
    %5010 = vrot.lane.b32.xlu0 %v3499, 1
    %v5011 = vpop.permute.xlu0 %5010
    %5012 = vrot.lane.b32.xlu0 %v3500, 1
    %v5013 = vpop.permute.xlu0 %5012
    %5014 = vrot.lane.b32.xlu0 %v3501, 1
    %v5015 = vpop.permute.xlu0 %5014
    %5016 = vrot.lane.b32.xlu0 %v3502, 1
    %v5017 = vpop.permute.xlu0 %5016
    %5018 = vrot.lane.b32.xlu0 %v3503, 1
    %v5019 = vpop.permute.xlu0 %5018
    %5020 = vrot.lane.b32.xlu0 %v3504, 1
    %v5021 = vpop.permute.xlu0 %5020
    %5022 = vrot.lane.b32.xlu0 %v3505, 1
    %v5023 = vpop.permute.xlu0 %5022
    %5024 = vrot.lane.b32.xlu0 %v3506, 1
    %v5025 = vpop.permute.xlu0 %5024
    %5026 = vrot.lane.b32.xlu0 %v3507, 1
    %v5027 = vpop.permute.xlu0 %5026
    %5028 = vrot.lane.b32.xlu0 %v3508, 1
    %v5029 = vpop.permute.xlu0 %5028
    %5030 = vrot.lane.b32.xlu0 %v3509, 1
    %v5031 = vpop.permute.xlu0 %5030
    %5032 = vrot.lane.b32.xlu0 %v3510, 1
    %v5033 = vpop.permute.xlu0 %5032
    %5034 = vrot.lane.b32.xlu0 %v3511, 1
    %v5035 = vpop.permute.xlu0 %5034
    %5036 = vrot.lane.b32.xlu0 %v3512, 1
    %v5037 = vpop.permute.xlu0 %5036
    %5038 = vrot.lane.b32.xlu0 %v3513, 1
    %v5039 = vpop.permute.xlu0 %5038
    %5040 = vrot.lane.b32.xlu0 %v3514, 1
    %v5041 = vpop.permute.xlu0 %5040
    %5042 = vrot.lane.b32.xlu0 %v3515, 1
    %v5043 = vpop.permute.xlu0 %5042
    %5044 = vrot.lane.b32.xlu0 %v3516, 1
    %v5045 = vpop.permute.xlu0 %5044
    %5046 = vrot.lane.b32.xlu0 %v3517, 1
    %v5047 = vpop.permute.xlu0 %5046
    %5048 = vrot.lane.b32.xlu0 %v3518, 1
    %v5049 = vpop.permute.xlu0 %5048
    %5050 = vrot.lane.b32.xlu0 %v3519, 1
    %v5051 = vpop.permute.xlu0 %5050
    %5052 = vrot.lane.b32.xlu0 %v3520, 1
    %v5053 = vpop.permute.xlu0 %5052
    %5054 = vrot.lane.b32.xlu0 %v3521, 1
    %v5055 = vpop.permute.xlu0 %5054
    %5056 = vrot.lane.b32.xlu0 %v3522, 1
    %v5057 = vpop.permute.xlu0 %5056
    %5058 = vrot.lane.b32.xlu0 %v3523, 1
    %v5059 = vpop.permute.xlu0 %5058
    %5060 = vset.pattern.permute.xlu0 3
    %5061 = vperm.xlu0 %5060, %v66
    %v5062 = vpop.permute.xlu0 %5061
    %5064 = vset.pattern.permute.xlu0 3
    %5065 = vperm.xlu0 %5064, %v67
    %v5066 = vpop.permute.xlu0 %5065
    %5068 = vset.pattern.permute.xlu0 3
    %5069 = vperm.xlu0 %5068, %v68
    %v5070 = vpop.permute.xlu0 %5069
    %5072 = vset.pattern.permute.xlu0 3
    %5073 = vperm.xlu0 %5072, %v69
    %v5074 = vpop.permute.xlu0 %5073
    %5076 = vset.pattern.permute.xlu0 3
    %5077 = vperm.xlu0 %5076, %v70
    %v5078 = vpop.permute.xlu0 %5077
    %5080 = vset.pattern.permute.xlu0 3
    %5081 = vperm.xlu0 %5080, %v71
    %v5082 = vpop.permute.xlu0 %5081
    %5084 = vset.pattern.permute.xlu0 3
    %5085 = vperm.xlu0 %5084, %v72
    %v5086 = vpop.permute.xlu0 %5085
    %5088 = vset.pattern.permute.xlu0 3
    %5089 = vperm.xlu0 %5088, %v73
    %v5090 = vpop.permute.xlu0 %5089
    %5092 = vset.pattern.permute.xlu0 3
    %5093 = vperm.xlu0 %5092, %v74
    %v5094 = vpop.permute.xlu0 %5093
    %5096 = vset.pattern.permute.xlu0 3
    %5097 = vperm.xlu0 %5096, %v75
    %v5098 = vpop.permute.xlu0 %5097
    %5100 = vset.pattern.permute.xlu0 3
    %5101 = vperm.xlu0 %5100, %v76
    %v5102 = vpop.permute.xlu0 %5101
    %5104 = vset.pattern.permute.xlu0 3
    %5105 = vperm.xlu0 %5104, %v77
    %v5106 = vpop.permute.xlu0 %5105
    %5108 = vset.pattern.permute.xlu0 3
    %5109 = vperm.xlu0 %5108, %v78
    %v5110 = vpop.permute.xlu0 %5109
    %5112 = vset.pattern.permute.xlu0 3
    %5113 = vperm.xlu0 %5112, %v79
    %v5114 = vpop.permute.xlu0 %5113
    %5116 = vset.pattern.permute.xlu0 3
    %5117 = vperm.xlu0 %5116, %v80
    %v5118 = vpop.permute.xlu0 %5117
    %5120 = vset.pattern.permute.xlu0 3
    %5121 = vperm.xlu0 %5120, %v81
    %v5122 = vpop.permute.xlu0 %5121
    %5124 = vset.pattern.permute.xlu0 3
    %5125 = vperm.xlu0 %5124, %v82
    %v5126 = vpop.permute.xlu0 %5125
    %5128 = vset.pattern.permute.xlu0 3
    %5129 = vperm.xlu0 %5128, %v83
    %v5130 = vpop.permute.xlu0 %5129
    %5132 = vset.pattern.permute.xlu0 3
    %5133 = vperm.xlu0 %5132, %v84
    %v5134 = vpop.permute.xlu0 %5133
    %5136 = vset.pattern.permute.xlu0 3
    %5137 = vperm.xlu0 %5136, %v85
    %v5138 = vpop.permute.xlu0 %5137
    %5140 = vset.pattern.permute.xlu0 3
    %5141 = vperm.xlu0 %5140, %v86
    %v5142 = vpop.permute.xlu0 %5141
    %5144 = vset.pattern.permute.xlu0 3
    %5145 = vperm.xlu0 %5144, %v87
    %v5146 = vpop.permute.xlu0 %5145
    %5148 = vset.pattern.permute.xlu0 3
    %5149 = vperm.xlu0 %5148, %v88
    %v5150 = vpop.permute.xlu0 %5149
    %5152 = vset.pattern.permute.xlu0 3
    %5153 = vperm.xlu0 %5152, %v89
    %v5154 = vpop.permute.xlu0 %5153
    %5156 = vset.pattern.permute.xlu0 3
    %5157 = vperm.xlu0 %5156, %v90
    %v5158 = vpop.permute.xlu0 %5157
    %5160 = vset.pattern.permute.xlu0 3
    %5161 = vperm.xlu0 %5160, %v91
    %v5162 = vpop.permute.xlu0 %5161
    %5164 = vset.pattern.permute.xlu0 3
    %5165 = vperm.xlu0 %5164, %v92
    %v5166 = vpop.permute.xlu0 %5165
    %5168 = vset.pattern.permute.xlu0 3
    %5169 = vperm.xlu0 %5168, %v93
    %v5170 = vpop.permute.xlu0 %5169
    %5172 = vset.pattern.permute.xlu0 3
    %5173 = vperm.xlu0 %5172, %v94
    %v5174 = vpop.permute.xlu0 %5173
    %5176 = vset.pattern.permute.xlu0 3
    %5177 = vperm.xlu0 %5176, %v95
    %v5178 = vpop.permute.xlu0 %5177
    %5180 = vset.pattern.permute.xlu0 3
    %5181 = vperm.xlu0 %5180, %v96
    %v5182 = vpop.permute.xlu0 %5181
    %5184 = vset.pattern.permute.xlu0 3
    %5185 = vperm.xlu0 %5184, %v97
    %v5186 = vpop.permute.xlu0 %5185
    %5188 = vset.pattern.permute.xlu0 3
    %5189 = vperm.xlu0 %5188, %v98
    %v5190 = vpop.permute.xlu0 %5189
    %5192 = vset.pattern.permute.xlu0 3
    %5193 = vperm.xlu0 %5192, %v99
    %v5194 = vpop.permute.xlu0 %5193
    %5196 = vset.pattern.permute.xlu0 3
    %5197 = vperm.xlu0 %5196, %v100
    %v5198 = vpop.permute.xlu0 %5197
    %5200 = vset.pattern.permute.xlu0 3
    %5201 = vperm.xlu0 %5200, %v101
    %v5202 = vpop.permute.xlu0 %5201
    %5204 = vset.pattern.permute.xlu0 3
    %5205 = vperm.xlu0 %5204, %v102
    %v5206 = vpop.permute.xlu0 %5205
    %5208 = vset.pattern.permute.xlu0 3
    %5209 = vperm.xlu0 %5208, %v103
    %v5210 = vpop.permute.xlu0 %5209
    %5212 = vset.pattern.permute.xlu0 3
    %5213 = vperm.xlu0 %5212, %v104
    %v5214 = vpop.permute.xlu0 %5213
    %5216 = vset.pattern.permute.xlu0 3
    %5217 = vperm.xlu0 %5216, %v105
    %v5218 = vpop.permute.xlu0 %5217
    %5220 = vset.pattern.permute.xlu0 3
    %5221 = vperm.xlu0 %5220, %v106
    %v5222 = vpop.permute.xlu0 %5221
    %5224 = vset.pattern.permute.xlu0 3
    %5225 = vperm.xlu0 %5224, %v107
    %v5226 = vpop.permute.xlu0 %5225
    %5228 = vset.pattern.permute.xlu0 3
    %5229 = vperm.xlu0 %5228, %v108
    %v5230 = vpop.permute.xlu0 %5229
    %5232 = vset.pattern.permute.xlu0 3
    %5233 = vperm.xlu0 %5232, %v109
    %v5234 = vpop.permute.xlu0 %5233
    %5236 = vset.pattern.permute.xlu0 3
    %5237 = vperm.xlu0 %5236, %v110
    %v5238 = vpop.permute.xlu0 %5237
    %5240 = vset.pattern.permute.xlu0 3
    %5241 = vperm.xlu0 %5240, %v111
    %v5242 = vpop.permute.xlu0 %5241
    %5244 = vset.pattern.permute.xlu0 3
    %5245 = vperm.xlu0 %5244, %v112
    %v5246 = vpop.permute.xlu0 %5245
    %5248 = vset.pattern.permute.xlu0 3
    %5249 = vperm.xlu0 %5248, %v113
    %v5250 = vpop.permute.xlu0 %5249
    %5252 = vset.pattern.permute.xlu0 3
    %5253 = vperm.xlu0 %5252, %v114
    %v5254 = vpop.permute.xlu0 %5253
    %5256 = vset.pattern.permute.xlu0 3
    %5257 = vperm.xlu0 %5256, %v115
    %v5258 = vpop.permute.xlu0 %5257
    %5260 = vset.pattern.permute.xlu0 3
    %5261 = vperm.xlu0 %5260, %v116
    %v5262 = vpop.permute.xlu0 %5261
    %5264 = vset.pattern.permute.xlu0 3
    %5265 = vperm.xlu0 %5264, %v117
    %v5266 = vpop.permute.xlu0 %5265
    %5268 = vset.pattern.permute.xlu0 3
    %5269 = vperm.xlu0 %5268, %v118
    %v5270 = vpop.permute.xlu0 %5269
    %5272 = vset.pattern.permute.xlu0 3
    %5273 = vperm.xlu0 %5272, %v119
    %v5274 = vpop.permute.xlu0 %5273
    %5276 = vset.pattern.permute.xlu0 3
    %5277 = vperm.xlu0 %5276, %v120
    %v5278 = vpop.permute.xlu0 %5277
    %5280 = vset.pattern.permute.xlu0 3
    %5281 = vperm.xlu0 %5280, %v121
    %v5282 = vpop.permute.xlu0 %5281
    %5284 = vset.pattern.permute.xlu0 3
    %5285 = vperm.xlu0 %5284, %v122
    %v5286 = vpop.permute.xlu0 %5285
    %5288 = vset.pattern.permute.xlu0 3
    %5289 = vperm.xlu0 %5288, %v123
    %v5290 = vpop.permute.xlu0 %5289
    %5292 = vset.pattern.permute.xlu0 3
    %5293 = vperm.xlu0 %5292, %v124
    %v5294 = vpop.permute.xlu0 %5293
    %5296 = vset.pattern.permute.xlu0 3
    %5297 = vperm.xlu0 %5296, %v125
    %v5298 = vpop.permute.xlu0 %5297
    %5300 = vset.pattern.permute.xlu0 3
    %5301 = vperm.xlu0 %5300, %v126
    %v5302 = vpop.permute.xlu0 %5301
    %5304 = vset.pattern.permute.xlu0 3
    %5305 = vperm.xlu0 %5304, %v127
    %v5306 = vpop.permute.xlu0 %5305
    %5308 = vset.pattern.permute.xlu0 3
    %5309 = vperm.xlu0 %5308, %v128
    %v5310 = vpop.permute.xlu0 %5309
    %5312 = vset.pattern.permute.xlu0 3
    %5313 = vperm.xlu0 %5312, %v129
    %v5314 = vpop.permute.xlu0 %5313
    %v5316 = vmul.f32 %v4933, %v5062
    %v5317 = vmul.f32 %v4935, %v5066
    %v5318 = vmul.f32 %v4937, %v5070
    %v5319 = vmul.f32 %v4939, %v5074
    %v5320 = vmul.f32 %v4941, %v5078
    %v5321 = vmul.f32 %v4943, %v5082
    %v5322 = vmul.f32 %v4945, %v5086
    %v5323 = vmul.f32 %v4947, %v5090
    %v5324 = vmul.f32 %v4949, %v5094
    %v5325 = vmul.f32 %v4951, %v5098
    %v5326 = vmul.f32 %v4953, %v5102
    %v5327 = vmul.f32 %v4955, %v5106
    %v5328 = vmul.f32 %v4957, %v5110
    %v5329 = vmul.f32 %v4959, %v5114
    %v5330 = vmul.f32 %v4961, %v5118
    %v5331 = vmul.f32 %v4963, %v5122
    %v5332 = vmul.f32 %v4965, %v5126
    %v5333 = vmul.f32 %v4967, %v5130
    %v5334 = vmul.f32 %v4969, %v5134
    %v5335 = vmul.f32 %v4971, %v5138
    %v5336 = vmul.f32 %v4973, %v5142
    %v5337 = vmul.f32 %v4975, %v5146
    %v5338 = vmul.f32 %v4977, %v5150
    %v5339 = vmul.f32 %v4979, %v5154
    %v5340 = vmul.f32 %v4981, %v5158
    %v5341 = vmul.f32 %v4983, %v5162
    %v5342 = vmul.f32 %v4985, %v5166
    %v5343 = vmul.f32 %v4987, %v5170
    %v5344 = vmul.f32 %v4989, %v5174
    %v5345 = vmul.f32 %v4991, %v5178
    %v5346 = vmul.f32 %v4993, %v5182
    %v5347 = vmul.f32 %v4995, %v5186
    %v5348 = vmul.f32 %v4997, %v5190
    %v5349 = vmul.f32 %v4999, %v5194
    %v5350 = vmul.f32 %v5001, %v5198
    %v5351 = vmul.f32 %v5003, %v5202
    %v5352 = vmul.f32 %v5005, %v5206
    %v5353 = vmul.f32 %v5007, %v5210
    %v5354 = vmul.f32 %v5009, %v5214
    %v5355 = vmul.f32 %v5011, %v5218
    %v5356 = vmul.f32 %v5013, %v5222
    %v5357 = vmul.f32 %v5015, %v5226
    %v5358 = vmul.f32 %v5017, %v5230
    %v5359 = vmul.f32 %v5019, %v5234
    %v5360 = vmul.f32 %v5021, %v5238
    %v5361 = vmul.f32 %v5023, %v5242
    %v5362 = vmul.f32 %v5025, %v5246
    %v5363 = vmul.f32 %v5027, %v5250
    %v5364 = vmul.f32 %v5029, %v5254
    %v5365 = vmul.f32 %v5031, %v5258
    %v5366 = vmul.f32 %v5033, %v5262
    %v5367 = vmul.f32 %v5035, %v5266
    %v5368 = vmul.f32 %v5037, %v5270
    %v5369 = vmul.f32 %v5039, %v5274
    %v5370 = vmul.f32 %v5041, %v5278
    %v5371 = vmul.f32 %v5043, %v5282
    %v5372 = vmul.f32 %v5045, %v5286
    %v5373 = vmul.f32 %v5047, %v5290
    %v5374 = vmul.f32 %v5049, %v5294
    %v5375 = vmul.f32 %v5051, %v5298
    %v5376 = vmul.f32 %v5053, %v5302
    %v5377 = vmul.f32 %v5055, %v5306
    %v5378 = vmul.f32 %v5057, %v5310
    %v5379 = vmul.f32 %v5059, %v5314
    %v5380 = vadd.f32 %v4356, %v5316
    %v5381 = vadd.f32 %v4357, %v5317
    %v5382 = vadd.f32 %v4358, %v5318
    %v5383 = vadd.f32 %v4359, %v5319
    %v5384 = vadd.f32 %v4360, %v5320
    %v5385 = vadd.f32 %v4361, %v5321
    %v5386 = vadd.f32 %v4362, %v5322
    %v5387 = vadd.f32 %v4363, %v5323
    %v5388 = vadd.f32 %v4364, %v5324
    %v5389 = vadd.f32 %v4365, %v5325
    %v5390 = vadd.f32 %v4366, %v5326
    %v5391 = vadd.f32 %v4367, %v5327
    %v5392 = vadd.f32 %v4368, %v5328
    %v5393 = vadd.f32 %v4369, %v5329
    %v5394 = vadd.f32 %v4370, %v5330
    %v5395 = vadd.f32 %v4371, %v5331
    %v5396 = vadd.f32 %v4372, %v5332
    %v5397 = vadd.f32 %v4373, %v5333
    %v5398 = vadd.f32 %v4374, %v5334
    %v5399 = vadd.f32 %v4375, %v5335
    %v5400 = vadd.f32 %v4376, %v5336
    %v5401 = vadd.f32 %v4377, %v5337
    %v5402 = vadd.f32 %v4378, %v5338
    %v5403 = vadd.f32 %v4379, %v5339
    %v5404 = vadd.f32 %v4380, %v5340
    %v5405 = vadd.f32 %v4381, %v5341
    %v5406 = vadd.f32 %v4382, %v5342
    %v5407 = vadd.f32 %v4383, %v5343
    %v5408 = vadd.f32 %v4384, %v5344
    %v5409 = vadd.f32 %v4385, %v5345
    %v5410 = vadd.f32 %v4386, %v5346
    %v5411 = vadd.f32 %v4387, %v5347
    %v5412 = vadd.f32 %v4388, %v5348
    %v5413 = vadd.f32 %v4389, %v5349
    %v5414 = vadd.f32 %v4390, %v5350
    %v5415 = vadd.f32 %v4391, %v5351
    %v5416 = vadd.f32 %v4392, %v5352
    %v5417 = vadd.f32 %v4393, %v5353
    %v5418 = vadd.f32 %v4394, %v5354
    %v5419 = vadd.f32 %v4395, %v5355
    %v5420 = vadd.f32 %v4396, %v5356
    %v5421 = vadd.f32 %v4397, %v5357
    %v5422 = vadd.f32 %v4398, %v5358
    %v5423 = vadd.f32 %v4399, %v5359
    %v5424 = vadd.f32 %v4400, %v5360
    %v5425 = vadd.f32 %v4401, %v5361
    %v5426 = vadd.f32 %v4402, %v5362
    %v5427 = vadd.f32 %v4403, %v5363
    %v5428 = vadd.f32 %v4404, %v5364
    %v5429 = vadd.f32 %v4405, %v5365
    %v5430 = vadd.f32 %v4406, %v5366
    %v5431 = vadd.f32 %v4407, %v5367
    %v5432 = vadd.f32 %v4408, %v5368
    %v5433 = vadd.f32 %v4409, %v5369
    %v5434 = vadd.f32 %v4410, %v5370
    %v5435 = vadd.f32 %v4411, %v5371
    %v5436 = vadd.f32 %v4412, %v5372
    %v5437 = vadd.f32 %v4413, %v5373
    %v5438 = vadd.f32 %v4414, %v5374
    %v5439 = vadd.f32 %v4415, %v5375
    %v5440 = vadd.f32 %v4416, %v5376
    %v5441 = vadd.f32 %v4417, %v5377
    %v5442 = vadd.f32 %v4418, %v5378
    %v5443 = vadd.f32 %v4419, %v5379
    %5444 = vset.pattern.permute.xlu0 4
    %5445 = vperm.xlu0 %5444, %v66
    %v5446 = vpop.permute.xlu0 %5445
    %5448 = vset.pattern.permute.xlu0 4
    %5449 = vperm.xlu0 %5448, %v67
    %v5450 = vpop.permute.xlu0 %5449
    %5452 = vset.pattern.permute.xlu0 4
    %5453 = vperm.xlu0 %5452, %v68
    %v5454 = vpop.permute.xlu0 %5453
    %5456 = vset.pattern.permute.xlu0 4
    %5457 = vperm.xlu0 %5456, %v69
    %v5458 = vpop.permute.xlu0 %5457
    %5460 = vset.pattern.permute.xlu0 4
    %5461 = vperm.xlu0 %5460, %v70
    %v5462 = vpop.permute.xlu0 %5461
    %5464 = vset.pattern.permute.xlu0 4
    %5465 = vperm.xlu0 %5464, %v71
    %v5466 = vpop.permute.xlu0 %5465
    %5468 = vset.pattern.permute.xlu0 4
    %5469 = vperm.xlu0 %5468, %v72
    %v5470 = vpop.permute.xlu0 %5469
    %5472 = vset.pattern.permute.xlu0 4
    %5473 = vperm.xlu0 %5472, %v73
    %v5474 = vpop.permute.xlu0 %5473
    %5476 = vset.pattern.permute.xlu0 4
    %5477 = vperm.xlu0 %5476, %v74
    %v5478 = vpop.permute.xlu0 %5477
    %5480 = vset.pattern.permute.xlu0 4
    %5481 = vperm.xlu0 %5480, %v75
    %v5482 = vpop.permute.xlu0 %5481
    %5484 = vset.pattern.permute.xlu0 4
    %5485 = vperm.xlu0 %5484, %v76
    %v5486 = vpop.permute.xlu0 %5485
    %5488 = vset.pattern.permute.xlu0 4
    %5489 = vperm.xlu0 %5488, %v77
    %v5490 = vpop.permute.xlu0 %5489
    %5492 = vset.pattern.permute.xlu0 4
    %5493 = vperm.xlu0 %5492, %v78
    %v5494 = vpop.permute.xlu0 %5493
    %5496 = vset.pattern.permute.xlu0 4
    %5497 = vperm.xlu0 %5496, %v79
    %v5498 = vpop.permute.xlu0 %5497
    %5500 = vset.pattern.permute.xlu0 4
    %5501 = vperm.xlu0 %5500, %v80
    %v5502 = vpop.permute.xlu0 %5501
    %5504 = vset.pattern.permute.xlu0 4
    %5505 = vperm.xlu0 %5504, %v81
    %v5506 = vpop.permute.xlu0 %5505
    %5508 = vset.pattern.permute.xlu0 4
    %5509 = vperm.xlu0 %5508, %v82
    %v5510 = vpop.permute.xlu0 %5509
    %5512 = vset.pattern.permute.xlu0 4
    %5513 = vperm.xlu0 %5512, %v83
    %v5514 = vpop.permute.xlu0 %5513
    %5516 = vset.pattern.permute.xlu0 4
    %5517 = vperm.xlu0 %5516, %v84
    %v5518 = vpop.permute.xlu0 %5517
    %5520 = vset.pattern.permute.xlu0 4
    %5521 = vperm.xlu0 %5520, %v85
    %v5522 = vpop.permute.xlu0 %5521
    %5524 = vset.pattern.permute.xlu0 4
    %5525 = vperm.xlu0 %5524, %v86
    %v5526 = vpop.permute.xlu0 %5525
    %5528 = vset.pattern.permute.xlu0 4
    %5529 = vperm.xlu0 %5528, %v87
    %v5530 = vpop.permute.xlu0 %5529
    %5532 = vset.pattern.permute.xlu0 4
    %5533 = vperm.xlu0 %5532, %v88
    %v5534 = vpop.permute.xlu0 %5533
    %5536 = vset.pattern.permute.xlu0 4
    %5537 = vperm.xlu0 %5536, %v89
    %v5538 = vpop.permute.xlu0 %5537
    %5540 = vset.pattern.permute.xlu0 4
    %5541 = vperm.xlu0 %5540, %v90
    %v5542 = vpop.permute.xlu0 %5541
    %5544 = vset.pattern.permute.xlu0 4
    %5545 = vperm.xlu0 %5544, %v91
    %v5546 = vpop.permute.xlu0 %5545
    %5548 = vset.pattern.permute.xlu0 4
    %5549 = vperm.xlu0 %5548, %v92
    %v5550 = vpop.permute.xlu0 %5549
    %5552 = vset.pattern.permute.xlu0 4
    %5553 = vperm.xlu0 %5552, %v93
    %v5554 = vpop.permute.xlu0 %5553
    %5556 = vset.pattern.permute.xlu0 4
    %5557 = vperm.xlu0 %5556, %v94
    %v5558 = vpop.permute.xlu0 %5557
    %5560 = vset.pattern.permute.xlu0 4
    %5561 = vperm.xlu0 %5560, %v95
    %v5562 = vpop.permute.xlu0 %5561
    %5564 = vset.pattern.permute.xlu0 4
    %5565 = vperm.xlu0 %5564, %v96
    %v5566 = vpop.permute.xlu0 %5565
    %5568 = vset.pattern.permute.xlu0 4
    %5569 = vperm.xlu0 %5568, %v97
    %v5570 = vpop.permute.xlu0 %5569
    %5572 = vset.pattern.permute.xlu0 4
    %5573 = vperm.xlu0 %5572, %v98
    %v5574 = vpop.permute.xlu0 %5573
    %5576 = vset.pattern.permute.xlu0 4
    %5577 = vperm.xlu0 %5576, %v99
    %v5578 = vpop.permute.xlu0 %5577
    %5580 = vset.pattern.permute.xlu0 4
    %5581 = vperm.xlu0 %5580, %v100
    %v5582 = vpop.permute.xlu0 %5581
    %5584 = vset.pattern.permute.xlu0 4
    %5585 = vperm.xlu0 %5584, %v101
    %v5586 = vpop.permute.xlu0 %5585
    %5588 = vset.pattern.permute.xlu0 4
    %5589 = vperm.xlu0 %5588, %v102
    %v5590 = vpop.permute.xlu0 %5589
    %5592 = vset.pattern.permute.xlu0 4
    %5593 = vperm.xlu0 %5592, %v103
    %v5594 = vpop.permute.xlu0 %5593
    %5596 = vset.pattern.permute.xlu0 4
    %5597 = vperm.xlu0 %5596, %v104
    %v5598 = vpop.permute.xlu0 %5597
    %5600 = vset.pattern.permute.xlu0 4
    %5601 = vperm.xlu0 %5600, %v105
    %v5602 = vpop.permute.xlu0 %5601
    %5604 = vset.pattern.permute.xlu0 4
    %5605 = vperm.xlu0 %5604, %v106
    %v5606 = vpop.permute.xlu0 %5605
    %5608 = vset.pattern.permute.xlu0 4
    %5609 = vperm.xlu0 %5608, %v107
    %v5610 = vpop.permute.xlu0 %5609
    %5612 = vset.pattern.permute.xlu0 4
    %5613 = vperm.xlu0 %5612, %v108
    %v5614 = vpop.permute.xlu0 %5613
    %5616 = vset.pattern.permute.xlu0 4
    %5617 = vperm.xlu0 %5616, %v109
    %v5618 = vpop.permute.xlu0 %5617
    %5620 = vset.pattern.permute.xlu0 4
    %5621 = vperm.xlu0 %5620, %v110
    %v5622 = vpop.permute.xlu0 %5621
    %5624 = vset.pattern.permute.xlu0 4
    %5625 = vperm.xlu0 %5624, %v111
    %v5626 = vpop.permute.xlu0 %5625
    %5628 = vset.pattern.permute.xlu0 4
    %5629 = vperm.xlu0 %5628, %v112
    %v5630 = vpop.permute.xlu0 %5629
    %5632 = vset.pattern.permute.xlu0 4
    %5633 = vperm.xlu0 %5632, %v113
    %v5634 = vpop.permute.xlu0 %5633
    %5636 = vset.pattern.permute.xlu0 4
    %5637 = vperm.xlu0 %5636, %v114
    %v5638 = vpop.permute.xlu0 %5637
    %5640 = vset.pattern.permute.xlu0 4
    %5641 = vperm.xlu0 %5640, %v115
    %v5642 = vpop.permute.xlu0 %5641
    %5644 = vset.pattern.permute.xlu0 4
    %5645 = vperm.xlu0 %5644, %v116
    %v5646 = vpop.permute.xlu0 %5645
    %5648 = vset.pattern.permute.xlu0 4
    %5649 = vperm.xlu0 %5648, %v117
    %v5650 = vpop.permute.xlu0 %5649
    %5652 = vset.pattern.permute.xlu0 4
    %5653 = vperm.xlu0 %5652, %v118
    %v5654 = vpop.permute.xlu0 %5653
    %5656 = vset.pattern.permute.xlu0 4
    %5657 = vperm.xlu0 %5656, %v119
    %v5658 = vpop.permute.xlu0 %5657
    %5660 = vset.pattern.permute.xlu0 4
    %5661 = vperm.xlu0 %5660, %v120
    %v5662 = vpop.permute.xlu0 %5661
    %5664 = vset.pattern.permute.xlu0 4
    %5665 = vperm.xlu0 %5664, %v121
    %v5666 = vpop.permute.xlu0 %5665
    %5668 = vset.pattern.permute.xlu0 4
    %5669 = vperm.xlu0 %5668, %v122
    %v5670 = vpop.permute.xlu0 %5669
    %5672 = vset.pattern.permute.xlu0 4
    %5673 = vperm.xlu0 %5672, %v123
    %v5674 = vpop.permute.xlu0 %5673
    %5676 = vset.pattern.permute.xlu0 4
    %5677 = vperm.xlu0 %5676, %v124
    %v5678 = vpop.permute.xlu0 %5677
    %5680 = vset.pattern.permute.xlu0 4
    %5681 = vperm.xlu0 %5680, %v125
    %v5682 = vpop.permute.xlu0 %5681
    %5684 = vset.pattern.permute.xlu0 4
    %5685 = vperm.xlu0 %5684, %v126
    %v5686 = vpop.permute.xlu0 %5685
    %5688 = vset.pattern.permute.xlu0 4
    %5689 = vperm.xlu0 %5688, %v127
    %v5690 = vpop.permute.xlu0 %5689
    %5692 = vset.pattern.permute.xlu0 4
    %5693 = vperm.xlu0 %5692, %v128
    %v5694 = vpop.permute.xlu0 %5693
    %5696 = vset.pattern.permute.xlu0 4
    %5697 = vperm.xlu0 %5696, %v129
    %v5698 = vpop.permute.xlu0 %5697
    %v5700 = vmul.f32 %v3332, %v5446
    %v5701 = vmul.f32 %v3333, %v5450
    %v5702 = vmul.f32 %v3334, %v5454
    %v5703 = vmul.f32 %v3335, %v5458
    %v5704 = vmul.f32 %v3336, %v5462
    %v5705 = vmul.f32 %v3337, %v5466
    %v5706 = vmul.f32 %v3338, %v5470
    %v5707 = vmul.f32 %v3339, %v5474
    %v5708 = vmul.f32 %v3340, %v5478
    %v5709 = vmul.f32 %v3341, %v5482
    %v5710 = vmul.f32 %v3342, %v5486
    %v5711 = vmul.f32 %v3343, %v5490
    %v5712 = vmul.f32 %v3344, %v5494
    %v5713 = vmul.f32 %v3345, %v5498
    %v5714 = vmul.f32 %v3346, %v5502
    %v5715 = vmul.f32 %v3347, %v5506
    %v5716 = vmul.f32 %v3348, %v5510
    %v5717 = vmul.f32 %v3349, %v5514
    %v5718 = vmul.f32 %v3350, %v5518
    %v5719 = vmul.f32 %v3351, %v5522
    %v5720 = vmul.f32 %v3352, %v5526
    %v5721 = vmul.f32 %v3353, %v5530
    %v5722 = vmul.f32 %v3354, %v5534
    %v5723 = vmul.f32 %v3355, %v5538
    %v5724 = vmul.f32 %v3356, %v5542
    %v5725 = vmul.f32 %v3357, %v5546
    %v5726 = vmul.f32 %v3358, %v5550
    %v5727 = vmul.f32 %v3359, %v5554
    %v5728 = vmul.f32 %v3360, %v5558
    %v5729 = vmul.f32 %v3361, %v5562
    %v5730 = vmul.f32 %v3362, %v5566
    %v5731 = vmul.f32 %v3363, %v5570
    %v5732 = vmul.f32 %v3364, %v5574
    %v5733 = vmul.f32 %v3365, %v5578
    %v5734 = vmul.f32 %v3366, %v5582
    %v5735 = vmul.f32 %v3367, %v5586
    %v5736 = vmul.f32 %v3368, %v5590
    %v5737 = vmul.f32 %v3369, %v5594
    %v5738 = vmul.f32 %v3370, %v5598
    %v5739 = vmul.f32 %v3371, %v5602
    %v5740 = vmul.f32 %v3372, %v5606
    %v5741 = vmul.f32 %v3373, %v5610
    %v5742 = vmul.f32 %v3374, %v5614
    %v5743 = vmul.f32 %v3375, %v5618
    %v5744 = vmul.f32 %v3376, %v5622
    %v5745 = vmul.f32 %v3377, %v5626
    %v5746 = vmul.f32 %v3378, %v5630
    %v5747 = vmul.f32 %v3379, %v5634
    %v5748 = vmul.f32 %v3380, %v5638
    %v5749 = vmul.f32 %v3381, %v5642
    %v5750 = vmul.f32 %v3382, %v5646
    %v5751 = vmul.f32 %v3383, %v5650
    %v5752 = vmul.f32 %v3384, %v5654
    %v5753 = vmul.f32 %v3385, %v5658
    %v5754 = vmul.f32 %v3386, %v5662
    %v5755 = vmul.f32 %v3387, %v5666
    %v5756 = vmul.f32 %v3388, %v5670
    %v5757 = vmul.f32 %v3389, %v5674
    %v5758 = vmul.f32 %v3390, %v5678
    %v5759 = vmul.f32 %v3391, %v5682
    %v5760 = vmul.f32 %v3392, %v5686
    %v5761 = vmul.f32 %v3393, %v5690
    %v5762 = vmul.f32 %v3394, %v5694
    %v5763 = vmul.f32 %v3395, %v5698
    %v5764 = vadd.f32 %v4868, %v5700
    %v5765 = vadd.f32 %v4869, %v5701
    %v5766 = vadd.f32 %v4870, %v5702
    %v5767 = vadd.f32 %v4871, %v5703
    %v5768 = vadd.f32 %v4872, %v5704
    %v5769 = vadd.f32 %v4873, %v5705
    %v5770 = vadd.f32 %v4874, %v5706
    %v5771 = vadd.f32 %v4875, %v5707
    %v5772 = vadd.f32 %v4876, %v5708
    %v5773 = vadd.f32 %v4877, %v5709
    %v5774 = vadd.f32 %v4878, %v5710
    %v5775 = vadd.f32 %v4879, %v5711
    %v5776 = vadd.f32 %v4880, %v5712
    %v5777 = vadd.f32 %v4881, %v5713
    %v5778 = vadd.f32 %v4882, %v5714
    %v5779 = vadd.f32 %v4883, %v5715
    %v5780 = vadd.f32 %v4884, %v5716
    %v5781 = vadd.f32 %v4885, %v5717
    %v5782 = vadd.f32 %v4886, %v5718
    %v5783 = vadd.f32 %v4887, %v5719
    %v5784 = vadd.f32 %v4888, %v5720
    %v5785 = vadd.f32 %v4889, %v5721
    %v5786 = vadd.f32 %v4890, %v5722
    %v5787 = vadd.f32 %v4891, %v5723
    %v5788 = vadd.f32 %v4892, %v5724
    %v5789 = vadd.f32 %v4893, %v5725
    %v5790 = vadd.f32 %v4894, %v5726
    %v5791 = vadd.f32 %v4895, %v5727
    %v5792 = vadd.f32 %v4896, %v5728
    %v5793 = vadd.f32 %v4897, %v5729
    %v5794 = vadd.f32 %v4898, %v5730
    %v5795 = vadd.f32 %v4899, %v5731
    %v5796 = vadd.f32 %v4900, %v5732
    %v5797 = vadd.f32 %v4901, %v5733
    %v5798 = vadd.f32 %v4902, %v5734
    %v5799 = vadd.f32 %v4903, %v5735
    %v5800 = vadd.f32 %v4904, %v5736
    %v5801 = vadd.f32 %v4905, %v5737
    %v5802 = vadd.f32 %v4906, %v5738
    %v5803 = vadd.f32 %v4907, %v5739
    %v5804 = vadd.f32 %v4908, %v5740
    %v5805 = vadd.f32 %v4909, %v5741
    %v5806 = vadd.f32 %v4910, %v5742
    %v5807 = vadd.f32 %v4911, %v5743
    %v5808 = vadd.f32 %v4912, %v5744
    %v5809 = vadd.f32 %v4913, %v5745
    %v5810 = vadd.f32 %v4914, %v5746
    %v5811 = vadd.f32 %v4915, %v5747
    %v5812 = vadd.f32 %v4916, %v5748
    %v5813 = vadd.f32 %v4917, %v5749
    %v5814 = vadd.f32 %v4918, %v5750
    %v5815 = vadd.f32 %v4919, %v5751
    %v5816 = vadd.f32 %v4920, %v5752
    %v5817 = vadd.f32 %v4921, %v5753
    %v5818 = vadd.f32 %v4922, %v5754
    %v5819 = vadd.f32 %v4923, %v5755
    %v5820 = vadd.f32 %v4924, %v5756
    %v5821 = vadd.f32 %v4925, %v5757
    %v5822 = vadd.f32 %v4926, %v5758
    %v5823 = vadd.f32 %v4927, %v5759
    %v5824 = vadd.f32 %v4928, %v5760
    %v5825 = vadd.f32 %v4929, %v5761
    %v5826 = vadd.f32 %v4930, %v5762
    %v5827 = vadd.f32 %v4931, %v5763
    %5828 = vrot.lane.b32.xlu0 %v3396, 127
    %v5829 = vpop.permute.xlu0 %5828
    %5830 = vrot.lane.b32.xlu0 %v3397, 127
    %v5831 = vpop.permute.xlu0 %5830
    %5832 = vrot.lane.b32.xlu0 %v3398, 127
    %v5833 = vpop.permute.xlu0 %5832
    %5834 = vrot.lane.b32.xlu0 %v3399, 127
    %v5835 = vpop.permute.xlu0 %5834
    %5836 = vrot.lane.b32.xlu0 %v3400, 127
    %v5837 = vpop.permute.xlu0 %5836
    %5838 = vrot.lane.b32.xlu0 %v3401, 127
    %v5839 = vpop.permute.xlu0 %5838
    %5840 = vrot.lane.b32.xlu0 %v3402, 127
    %v5841 = vpop.permute.xlu0 %5840
    %5842 = vrot.lane.b32.xlu0 %v3403, 127
    %v5843 = vpop.permute.xlu0 %5842
    %5844 = vrot.lane.b32.xlu0 %v3404, 127
    %v5845 = vpop.permute.xlu0 %5844
    %5846 = vrot.lane.b32.xlu0 %v3405, 127
    %v5847 = vpop.permute.xlu0 %5846
    %5848 = vrot.lane.b32.xlu0 %v3406, 127
    %v5849 = vpop.permute.xlu0 %5848
    %5850 = vrot.lane.b32.xlu0 %v3407, 127
    %v5851 = vpop.permute.xlu0 %5850
    %5852 = vrot.lane.b32.xlu0 %v3408, 127
    %v5853 = vpop.permute.xlu0 %5852
    %5854 = vrot.lane.b32.xlu0 %v3409, 127
    %v5855 = vpop.permute.xlu0 %5854
    %5856 = vrot.lane.b32.xlu0 %v3410, 127
    %v5857 = vpop.permute.xlu0 %5856
    %5858 = vrot.lane.b32.xlu0 %v3411, 127
    %v5859 = vpop.permute.xlu0 %5858
    %5860 = vrot.lane.b32.xlu0 %v3412, 127
    %v5861 = vpop.permute.xlu0 %5860
    %5862 = vrot.lane.b32.xlu0 %v3413, 127
    %v5863 = vpop.permute.xlu0 %5862
    %5864 = vrot.lane.b32.xlu0 %v3414, 127
    %v5865 = vpop.permute.xlu0 %5864
    %5866 = vrot.lane.b32.xlu0 %v3415, 127
    %v5867 = vpop.permute.xlu0 %5866
    %5868 = vrot.lane.b32.xlu0 %v3416, 127
    %v5869 = vpop.permute.xlu0 %5868
    %5870 = vrot.lane.b32.xlu0 %v3417, 127
    %v5871 = vpop.permute.xlu0 %5870
    %5872 = vrot.lane.b32.xlu0 %v3418, 127
    %v5873 = vpop.permute.xlu0 %5872
    %5874 = vrot.lane.b32.xlu0 %v3419, 127
    %v5875 = vpop.permute.xlu0 %5874
    %5876 = vrot.lane.b32.xlu0 %v3420, 127
    %v5877 = vpop.permute.xlu0 %5876
    %5878 = vrot.lane.b32.xlu0 %v3421, 127
    %v5879 = vpop.permute.xlu0 %5878
    %5880 = vrot.lane.b32.xlu0 %v3422, 127
    %v5881 = vpop.permute.xlu0 %5880
    %5882 = vrot.lane.b32.xlu0 %v3423, 127
    %v5883 = vpop.permute.xlu0 %5882
    %5884 = vrot.lane.b32.xlu0 %v3424, 127
    %v5885 = vpop.permute.xlu0 %5884
    %5886 = vrot.lane.b32.xlu0 %v3425, 127
    %v5887 = vpop.permute.xlu0 %5886
    %5888 = vrot.lane.b32.xlu0 %v3426, 127
    %v5889 = vpop.permute.xlu0 %5888
    %5890 = vrot.lane.b32.xlu0 %v3427, 127
    %v5891 = vpop.permute.xlu0 %5890
    %5892 = vrot.lane.b32.xlu0 %v3428, 127
    %v5893 = vpop.permute.xlu0 %5892
    %5894 = vrot.lane.b32.xlu0 %v3429, 127
    %v5895 = vpop.permute.xlu0 %5894
    %5896 = vrot.lane.b32.xlu0 %v3430, 127
    %v5897 = vpop.permute.xlu0 %5896
    %5898 = vrot.lane.b32.xlu0 %v3431, 127
    %v5899 = vpop.permute.xlu0 %5898
    %5900 = vrot.lane.b32.xlu0 %v3432, 127
    %v5901 = vpop.permute.xlu0 %5900
    %5902 = vrot.lane.b32.xlu0 %v3433, 127
    %v5903 = vpop.permute.xlu0 %5902
    %5904 = vrot.lane.b32.xlu0 %v3434, 127
    %v5905 = vpop.permute.xlu0 %5904
    %5906 = vrot.lane.b32.xlu0 %v3435, 127
    %v5907 = vpop.permute.xlu0 %5906
    %5908 = vrot.lane.b32.xlu0 %v3436, 127
    %v5909 = vpop.permute.xlu0 %5908
    %5910 = vrot.lane.b32.xlu0 %v3437, 127
    %v5911 = vpop.permute.xlu0 %5910
    %5912 = vrot.lane.b32.xlu0 %v3438, 127
    %v5913 = vpop.permute.xlu0 %5912
    %5914 = vrot.lane.b32.xlu0 %v3439, 127
    %v5915 = vpop.permute.xlu0 %5914
    %5916 = vrot.lane.b32.xlu0 %v3440, 127
    %v5917 = vpop.permute.xlu0 %5916
    %5918 = vrot.lane.b32.xlu0 %v3441, 127
    %v5919 = vpop.permute.xlu0 %5918
    %5920 = vrot.lane.b32.xlu0 %v3442, 127
    %v5921 = vpop.permute.xlu0 %5920
    %5922 = vrot.lane.b32.xlu0 %v3443, 127
    %v5923 = vpop.permute.xlu0 %5922
    %5924 = vrot.lane.b32.xlu0 %v3444, 127
    %v5925 = vpop.permute.xlu0 %5924
    %5926 = vrot.lane.b32.xlu0 %v3445, 127
    %v5927 = vpop.permute.xlu0 %5926
    %5928 = vrot.lane.b32.xlu0 %v3446, 127
    %v5929 = vpop.permute.xlu0 %5928
    %5930 = vrot.lane.b32.xlu0 %v3447, 127
    %v5931 = vpop.permute.xlu0 %5930
    %5932 = vrot.lane.b32.xlu0 %v3448, 127
    %v5933 = vpop.permute.xlu0 %5932
    %5934 = vrot.lane.b32.xlu0 %v3449, 127
    %v5935 = vpop.permute.xlu0 %5934
    %5936 = vrot.lane.b32.xlu0 %v3450, 127
    %v5937 = vpop.permute.xlu0 %5936
    %5938 = vrot.lane.b32.xlu0 %v3451, 127
    %v5939 = vpop.permute.xlu0 %5938
    %5940 = vrot.lane.b32.xlu0 %v3452, 127
    %v5941 = vpop.permute.xlu0 %5940
    %5942 = vrot.lane.b32.xlu0 %v3453, 127
    %v5943 = vpop.permute.xlu0 %5942
    %5944 = vrot.lane.b32.xlu0 %v3454, 127
    %v5945 = vpop.permute.xlu0 %5944
    %5946 = vrot.lane.b32.xlu0 %v3455, 127
    %v5947 = vpop.permute.xlu0 %5946
    %5948 = vrot.lane.b32.xlu0 %v3456, 127
    %v5949 = vpop.permute.xlu0 %5948
    %5950 = vrot.lane.b32.xlu0 %v3457, 127
    %v5951 = vpop.permute.xlu0 %5950
    %5952 = vrot.lane.b32.xlu0 %v3458, 127
    %v5953 = vpop.permute.xlu0 %5952
    %5954 = vrot.lane.b32.xlu0 %v3459, 127
    %v5955 = vpop.permute.xlu0 %5954
    %5956 = vset.pattern.permute.xlu0 5
    %5957 = vperm.xlu0 %5956, %v66
    %v5958 = vpop.permute.xlu0 %5957
    %5960 = vset.pattern.permute.xlu0 5
    %5961 = vperm.xlu0 %5960, %v67
    %v5962 = vpop.permute.xlu0 %5961
    %5964 = vset.pattern.permute.xlu0 5
    %5965 = vperm.xlu0 %5964, %v68
    %v5966 = vpop.permute.xlu0 %5965
    %5968 = vset.pattern.permute.xlu0 5
    %5969 = vperm.xlu0 %5968, %v69
    %v5970 = vpop.permute.xlu0 %5969
    %5972 = vset.pattern.permute.xlu0 5
    %5973 = vperm.xlu0 %5972, %v70
    %v5974 = vpop.permute.xlu0 %5973
    %5976 = vset.pattern.permute.xlu0 5
    %5977 = vperm.xlu0 %5976, %v71
    %v5978 = vpop.permute.xlu0 %5977
    %5980 = vset.pattern.permute.xlu0 5
    %5981 = vperm.xlu0 %5980, %v72
    %v5982 = vpop.permute.xlu0 %5981
    %5984 = vset.pattern.permute.xlu0 5
    %5985 = vperm.xlu0 %5984, %v73
    %v5986 = vpop.permute.xlu0 %5985
    %5988 = vset.pattern.permute.xlu0 5
    %5989 = vperm.xlu0 %5988, %v74
    %v5990 = vpop.permute.xlu0 %5989
    %5992 = vset.pattern.permute.xlu0 5
    %5993 = vperm.xlu0 %5992, %v75
    %v5994 = vpop.permute.xlu0 %5993
    %5996 = vset.pattern.permute.xlu0 5
    %5997 = vperm.xlu0 %5996, %v76
    %v5998 = vpop.permute.xlu0 %5997
    %6000 = vset.pattern.permute.xlu0 5
    %6001 = vperm.xlu0 %6000, %v77
    %v6002 = vpop.permute.xlu0 %6001
    %6004 = vset.pattern.permute.xlu0 5
    %6005 = vperm.xlu0 %6004, %v78
    %v6006 = vpop.permute.xlu0 %6005
    %6008 = vset.pattern.permute.xlu0 5
    %6009 = vperm.xlu0 %6008, %v79
    %v6010 = vpop.permute.xlu0 %6009
    %6012 = vset.pattern.permute.xlu0 5
    %6013 = vperm.xlu0 %6012, %v80
    %v6014 = vpop.permute.xlu0 %6013
    %6016 = vset.pattern.permute.xlu0 5
    %6017 = vperm.xlu0 %6016, %v81
    %v6018 = vpop.permute.xlu0 %6017
    %6020 = vset.pattern.permute.xlu0 5
    %6021 = vperm.xlu0 %6020, %v82
    %v6022 = vpop.permute.xlu0 %6021
    %6024 = vset.pattern.permute.xlu0 5
    %6025 = vperm.xlu0 %6024, %v83
    %v6026 = vpop.permute.xlu0 %6025
    %6028 = vset.pattern.permute.xlu0 5
    %6029 = vperm.xlu0 %6028, %v84
    %v6030 = vpop.permute.xlu0 %6029
    %6032 = vset.pattern.permute.xlu0 5
    %6033 = vperm.xlu0 %6032, %v85
    %v6034 = vpop.permute.xlu0 %6033
    %6036 = vset.pattern.permute.xlu0 5
    %6037 = vperm.xlu0 %6036, %v86
    %v6038 = vpop.permute.xlu0 %6037
    %6040 = vset.pattern.permute.xlu0 5
    %6041 = vperm.xlu0 %6040, %v87
    %v6042 = vpop.permute.xlu0 %6041
    %6044 = vset.pattern.permute.xlu0 5
    %6045 = vperm.xlu0 %6044, %v88
    %v6046 = vpop.permute.xlu0 %6045
    %6048 = vset.pattern.permute.xlu0 5
    %6049 = vperm.xlu0 %6048, %v89
    %v6050 = vpop.permute.xlu0 %6049
    %6052 = vset.pattern.permute.xlu0 5
    %6053 = vperm.xlu0 %6052, %v90
    %v6054 = vpop.permute.xlu0 %6053
    %6056 = vset.pattern.permute.xlu0 5
    %6057 = vperm.xlu0 %6056, %v91
    %v6058 = vpop.permute.xlu0 %6057
    %6060 = vset.pattern.permute.xlu0 5
    %6061 = vperm.xlu0 %6060, %v92
    %v6062 = vpop.permute.xlu0 %6061
    %6064 = vset.pattern.permute.xlu0 5
    %6065 = vperm.xlu0 %6064, %v93
    %v6066 = vpop.permute.xlu0 %6065
    %6068 = vset.pattern.permute.xlu0 5
    %6069 = vperm.xlu0 %6068, %v94
    %v6070 = vpop.permute.xlu0 %6069
    %6072 = vset.pattern.permute.xlu0 5
    %6073 = vperm.xlu0 %6072, %v95
    %v6074 = vpop.permute.xlu0 %6073
    %6076 = vset.pattern.permute.xlu0 5
    %6077 = vperm.xlu0 %6076, %v96
    %v6078 = vpop.permute.xlu0 %6077
    %6080 = vset.pattern.permute.xlu0 5
    %6081 = vperm.xlu0 %6080, %v97
    %v6082 = vpop.permute.xlu0 %6081
    %6084 = vset.pattern.permute.xlu0 5
    %6085 = vperm.xlu0 %6084, %v98
    %v6086 = vpop.permute.xlu0 %6085
    %6088 = vset.pattern.permute.xlu0 5
    %6089 = vperm.xlu0 %6088, %v99
    %v6090 = vpop.permute.xlu0 %6089
    %6092 = vset.pattern.permute.xlu0 5
    %6093 = vperm.xlu0 %6092, %v100
    %v6094 = vpop.permute.xlu0 %6093
    %6096 = vset.pattern.permute.xlu0 5
    %6097 = vperm.xlu0 %6096, %v101
    %v6098 = vpop.permute.xlu0 %6097
    %6100 = vset.pattern.permute.xlu0 5
    %6101 = vperm.xlu0 %6100, %v102
    %v6102 = vpop.permute.xlu0 %6101
    %6104 = vset.pattern.permute.xlu0 5
    %6105 = vperm.xlu0 %6104, %v103
    %v6106 = vpop.permute.xlu0 %6105
    %6108 = vset.pattern.permute.xlu0 5
    %6109 = vperm.xlu0 %6108, %v104
    %v6110 = vpop.permute.xlu0 %6109
    %6112 = vset.pattern.permute.xlu0 5
    %6113 = vperm.xlu0 %6112, %v105
    %v6114 = vpop.permute.xlu0 %6113
    %6116 = vset.pattern.permute.xlu0 5
    %6117 = vperm.xlu0 %6116, %v106
    %v6118 = vpop.permute.xlu0 %6117
    %6120 = vset.pattern.permute.xlu0 5
    %6121 = vperm.xlu0 %6120, %v107
    %v6122 = vpop.permute.xlu0 %6121
    %6124 = vset.pattern.permute.xlu0 5
    %6125 = vperm.xlu0 %6124, %v108
    %v6126 = vpop.permute.xlu0 %6125
    %6128 = vset.pattern.permute.xlu0 5
    %6129 = vperm.xlu0 %6128, %v109
    %v6130 = vpop.permute.xlu0 %6129
    %6132 = vset.pattern.permute.xlu0 5
    %6133 = vperm.xlu0 %6132, %v110
    %v6134 = vpop.permute.xlu0 %6133
    %6136 = vset.pattern.permute.xlu0 5
    %6137 = vperm.xlu0 %6136, %v111
    %v6138 = vpop.permute.xlu0 %6137
    %6140 = vset.pattern.permute.xlu0 5
    %6141 = vperm.xlu0 %6140, %v112
    %v6142 = vpop.permute.xlu0 %6141
    %6144 = vset.pattern.permute.xlu0 5
    %6145 = vperm.xlu0 %6144, %v113
    %v6146 = vpop.permute.xlu0 %6145
    %6148 = vset.pattern.permute.xlu0 5
    %6149 = vperm.xlu0 %6148, %v114
    %v6150 = vpop.permute.xlu0 %6149
    %6152 = vset.pattern.permute.xlu0 5
    %6153 = vperm.xlu0 %6152, %v115
    %v6154 = vpop.permute.xlu0 %6153
    %6156 = vset.pattern.permute.xlu0 5
    %6157 = vperm.xlu0 %6156, %v116
    %v6158 = vpop.permute.xlu0 %6157
    %6160 = vset.pattern.permute.xlu0 5
    %6161 = vperm.xlu0 %6160, %v117
    %v6162 = vpop.permute.xlu0 %6161
    %6164 = vset.pattern.permute.xlu0 5
    %6165 = vperm.xlu0 %6164, %v118
    %v6166 = vpop.permute.xlu0 %6165
    %6168 = vset.pattern.permute.xlu0 5
    %6169 = vperm.xlu0 %6168, %v119
    %v6170 = vpop.permute.xlu0 %6169
    %6172 = vset.pattern.permute.xlu0 5
    %6173 = vperm.xlu0 %6172, %v120
    %v6174 = vpop.permute.xlu0 %6173
    %6176 = vset.pattern.permute.xlu0 5
    %6177 = vperm.xlu0 %6176, %v121
    %v6178 = vpop.permute.xlu0 %6177
    %6180 = vset.pattern.permute.xlu0 5
    %6181 = vperm.xlu0 %6180, %v122
    %v6182 = vpop.permute.xlu0 %6181
    %6184 = vset.pattern.permute.xlu0 5
    %6185 = vperm.xlu0 %6184, %v123
    %v6186 = vpop.permute.xlu0 %6185
    %6188 = vset.pattern.permute.xlu0 5
    %6189 = vperm.xlu0 %6188, %v124
    %v6190 = vpop.permute.xlu0 %6189
    %6192 = vset.pattern.permute.xlu0 5
    %6193 = vperm.xlu0 %6192, %v125
    %v6194 = vpop.permute.xlu0 %6193
    %6196 = vset.pattern.permute.xlu0 5
    %6197 = vperm.xlu0 %6196, %v126
    %v6198 = vpop.permute.xlu0 %6197
    %6200 = vset.pattern.permute.xlu0 5
    %6201 = vperm.xlu0 %6200, %v127
    %v6202 = vpop.permute.xlu0 %6201
    %6204 = vset.pattern.permute.xlu0 5
    %6205 = vperm.xlu0 %6204, %v128
    %v6206 = vpop.permute.xlu0 %6205
    %6208 = vset.pattern.permute.xlu0 5
    %6209 = vperm.xlu0 %6208, %v129
    %v6210 = vpop.permute.xlu0 %6209
    %v6212 = vmul.f32 %v5829, %v5958
    %v6213 = vmul.f32 %v5831, %v5962
    %v6214 = vmul.f32 %v5833, %v5966
    %v6215 = vmul.f32 %v5835, %v5970
    %v6216 = vmul.f32 %v5837, %v5974
    %v6217 = vmul.f32 %v5839, %v5978
    %v6218 = vmul.f32 %v5841, %v5982
    %v6219 = vmul.f32 %v5843, %v5986
    %v6220 = vmul.f32 %v5845, %v5990
    %v6221 = vmul.f32 %v5847, %v5994
    %v6222 = vmul.f32 %v5849, %v5998
    %v6223 = vmul.f32 %v5851, %v6002
    %v6224 = vmul.f32 %v5853, %v6006
    %v6225 = vmul.f32 %v5855, %v6010
    %v6226 = vmul.f32 %v5857, %v6014
    %v6227 = vmul.f32 %v5859, %v6018
    %v6228 = vmul.f32 %v5861, %v6022
    %v6229 = vmul.f32 %v5863, %v6026
    %v6230 = vmul.f32 %v5865, %v6030
    %v6231 = vmul.f32 %v5867, %v6034
    %v6232 = vmul.f32 %v5869, %v6038
    %v6233 = vmul.f32 %v5871, %v6042
    %v6234 = vmul.f32 %v5873, %v6046
    %v6235 = vmul.f32 %v5875, %v6050
    %v6236 = vmul.f32 %v5877, %v6054
    %v6237 = vmul.f32 %v5879, %v6058
    %v6238 = vmul.f32 %v5881, %v6062
    %v6239 = vmul.f32 %v5883, %v6066
    %v6240 = vmul.f32 %v5885, %v6070
    %v6241 = vmul.f32 %v5887, %v6074
    %v6242 = vmul.f32 %v5889, %v6078
    %v6243 = vmul.f32 %v5891, %v6082
    %v6244 = vmul.f32 %v5893, %v6086
    %v6245 = vmul.f32 %v5895, %v6090
    %v6246 = vmul.f32 %v5897, %v6094
    %v6247 = vmul.f32 %v5899, %v6098
    %v6248 = vmul.f32 %v5901, %v6102
    %v6249 = vmul.f32 %v5903, %v6106
    %v6250 = vmul.f32 %v5905, %v6110
    %v6251 = vmul.f32 %v5907, %v6114
    %v6252 = vmul.f32 %v5909, %v6118
    %v6253 = vmul.f32 %v5911, %v6122
    %v6254 = vmul.f32 %v5913, %v6126
    %v6255 = vmul.f32 %v5915, %v6130
    %v6256 = vmul.f32 %v5917, %v6134
    %v6257 = vmul.f32 %v5919, %v6138
    %v6258 = vmul.f32 %v5921, %v6142
    %v6259 = vmul.f32 %v5923, %v6146
    %v6260 = vmul.f32 %v5925, %v6150
    %v6261 = vmul.f32 %v5927, %v6154
    %v6262 = vmul.f32 %v5929, %v6158
    %v6263 = vmul.f32 %v5931, %v6162
    %v6264 = vmul.f32 %v5933, %v6166
    %v6265 = vmul.f32 %v5935, %v6170
    %v6266 = vmul.f32 %v5937, %v6174
    %v6267 = vmul.f32 %v5939, %v6178
    %v6268 = vmul.f32 %v5941, %v6182
    %v6269 = vmul.f32 %v5943, %v6186
    %v6270 = vmul.f32 %v5945, %v6190
    %v6271 = vmul.f32 %v5947, %v6194
    %v6272 = vmul.f32 %v5949, %v6198
    %v6273 = vmul.f32 %v5951, %v6202
    %v6274 = vmul.f32 %v5953, %v6206
    %v6275 = vmul.f32 %v5955, %v6210
    %v6276 = vadd.f32 %v5380, %v6212
    %v6277 = vadd.f32 %v5381, %v6213
    %v6278 = vadd.f32 %v5382, %v6214
    %v6279 = vadd.f32 %v5383, %v6215
    %v6280 = vadd.f32 %v5384, %v6216
    %v6281 = vadd.f32 %v5385, %v6217
    %v6282 = vadd.f32 %v5386, %v6218
    %v6283 = vadd.f32 %v5387, %v6219
    %v6284 = vadd.f32 %v5388, %v6220
    %v6285 = vadd.f32 %v5389, %v6221
    %v6286 = vadd.f32 %v5390, %v6222
    %v6287 = vadd.f32 %v5391, %v6223
    %v6288 = vadd.f32 %v5392, %v6224
    %v6289 = vadd.f32 %v5393, %v6225
    %v6290 = vadd.f32 %v5394, %v6226
    %v6291 = vadd.f32 %v5395, %v6227
    %v6292 = vadd.f32 %v5396, %v6228
    %v6293 = vadd.f32 %v5397, %v6229
    %v6294 = vadd.f32 %v5398, %v6230
    %v6295 = vadd.f32 %v5399, %v6231
    %v6296 = vadd.f32 %v5400, %v6232
    %v6297 = vadd.f32 %v5401, %v6233
    %v6298 = vadd.f32 %v5402, %v6234
    %v6299 = vadd.f32 %v5403, %v6235
    %v6300 = vadd.f32 %v5404, %v6236
    %v6301 = vadd.f32 %v5405, %v6237
    %v6302 = vadd.f32 %v5406, %v6238
    %v6303 = vadd.f32 %v5407, %v6239
    %v6304 = vadd.f32 %v5408, %v6240
    %v6305 = vadd.f32 %v5409, %v6241
    %v6306 = vadd.f32 %v5410, %v6242
    %v6307 = vadd.f32 %v5411, %v6243
    %v6308 = vadd.f32 %v5412, %v6244
    %v6309 = vadd.f32 %v5413, %v6245
    %v6310 = vadd.f32 %v5414, %v6246
    %v6311 = vadd.f32 %v5415, %v6247
    %v6312 = vadd.f32 %v5416, %v6248
    %v6313 = vadd.f32 %v5417, %v6249
    %v6314 = vadd.f32 %v5418, %v6250
    %v6315 = vadd.f32 %v5419, %v6251
    %v6316 = vadd.f32 %v5420, %v6252
    %v6317 = vadd.f32 %v5421, %v6253
    %v6318 = vadd.f32 %v5422, %v6254
    %v6319 = vadd.f32 %v5423, %v6255
    %v6320 = vadd.f32 %v5424, %v6256
    %v6321 = vadd.f32 %v5425, %v6257
    %v6322 = vadd.f32 %v5426, %v6258
    %v6323 = vadd.f32 %v5427, %v6259
    %v6324 = vadd.f32 %v5428, %v6260
    %v6325 = vadd.f32 %v5429, %v6261
    %v6326 = vadd.f32 %v5430, %v6262
    %v6327 = vadd.f32 %v5431, %v6263
    %v6328 = vadd.f32 %v5432, %v6264
    %v6329 = vadd.f32 %v5433, %v6265
    %v6330 = vadd.f32 %v5434, %v6266
    %v6331 = vadd.f32 %v5435, %v6267
    %v6332 = vadd.f32 %v5436, %v6268
    %v6333 = vadd.f32 %v5437, %v6269
    %v6334 = vadd.f32 %v5438, %v6270
    %v6335 = vadd.f32 %v5439, %v6271
    %v6336 = vadd.f32 %v5440, %v6272
    %v6337 = vadd.f32 %v5441, %v6273
    %v6338 = vadd.f32 %v5442, %v6274
    %v6339 = vadd.f32 %v5443, %v6275
    %6340 = vrot.lane.b32.xlu0 %v3460, 122
    %v6341 = vpop.permute.xlu0 %6340
    %6342 = vrot.lane.b32.xlu0 %v3461, 122
    %v6343 = vpop.permute.xlu0 %6342
    %6344 = vrot.lane.b32.xlu0 %v3462, 122
    %v6345 = vpop.permute.xlu0 %6344
    %6346 = vrot.lane.b32.xlu0 %v3463, 122
    %v6347 = vpop.permute.xlu0 %6346
    %6348 = vrot.lane.b32.xlu0 %v3464, 122
    %v6349 = vpop.permute.xlu0 %6348
    %6350 = vrot.lane.b32.xlu0 %v3465, 122
    %v6351 = vpop.permute.xlu0 %6350
    %6352 = vrot.lane.b32.xlu0 %v3466, 122
    %v6353 = vpop.permute.xlu0 %6352
    %6354 = vrot.lane.b32.xlu0 %v3467, 122
    %v6355 = vpop.permute.xlu0 %6354
    %6356 = vrot.lane.b32.xlu0 %v3468, 122
    %v6357 = vpop.permute.xlu0 %6356
    %6358 = vrot.lane.b32.xlu0 %v3469, 122
    %v6359 = vpop.permute.xlu0 %6358
    %6360 = vrot.lane.b32.xlu0 %v3470, 122
    %v6361 = vpop.permute.xlu0 %6360
    %6362 = vrot.lane.b32.xlu0 %v3471, 122
    %v6363 = vpop.permute.xlu0 %6362
    %6364 = vrot.lane.b32.xlu0 %v3472, 122
    %v6365 = vpop.permute.xlu0 %6364
    %6366 = vrot.lane.b32.xlu0 %v3473, 122
    %v6367 = vpop.permute.xlu0 %6366
    %6368 = vrot.lane.b32.xlu0 %v3474, 122
    %v6369 = vpop.permute.xlu0 %6368
    %6370 = vrot.lane.b32.xlu0 %v3475, 122
    %v6371 = vpop.permute.xlu0 %6370
    %6372 = vrot.lane.b32.xlu0 %v3476, 122
    %v6373 = vpop.permute.xlu0 %6372
    %6374 = vrot.lane.b32.xlu0 %v3477, 122
    %v6375 = vpop.permute.xlu0 %6374
    %6376 = vrot.lane.b32.xlu0 %v3478, 122
    %v6377 = vpop.permute.xlu0 %6376
    %6378 = vrot.lane.b32.xlu0 %v3479, 122
    %v6379 = vpop.permute.xlu0 %6378
    %6380 = vrot.lane.b32.xlu0 %v3480, 122
    %v6381 = vpop.permute.xlu0 %6380
    %6382 = vrot.lane.b32.xlu0 %v3481, 122
    %v6383 = vpop.permute.xlu0 %6382
    %6384 = vrot.lane.b32.xlu0 %v3482, 122
    %v6385 = vpop.permute.xlu0 %6384
    %6386 = vrot.lane.b32.xlu0 %v3483, 122
    %v6387 = vpop.permute.xlu0 %6386
    %6388 = vrot.lane.b32.xlu0 %v3484, 122
    %v6389 = vpop.permute.xlu0 %6388
    %6390 = vrot.lane.b32.xlu0 %v3485, 122
    %v6391 = vpop.permute.xlu0 %6390
    %6392 = vrot.lane.b32.xlu0 %v3486, 122
    %v6393 = vpop.permute.xlu0 %6392
    %6394 = vrot.lane.b32.xlu0 %v3487, 122
    %v6395 = vpop.permute.xlu0 %6394
    %6396 = vrot.lane.b32.xlu0 %v3488, 122
    %v6397 = vpop.permute.xlu0 %6396
    %6398 = vrot.lane.b32.xlu0 %v3489, 122
    %v6399 = vpop.permute.xlu0 %6398
    %6400 = vrot.lane.b32.xlu0 %v3490, 122
    %v6401 = vpop.permute.xlu0 %6400
    %6402 = vrot.lane.b32.xlu0 %v3491, 122
    %v6403 = vpop.permute.xlu0 %6402
    %6404 = vrot.lane.b32.xlu0 %v3492, 122
    %v6405 = vpop.permute.xlu0 %6404
    %6406 = vrot.lane.b32.xlu0 %v3493, 122
    %v6407 = vpop.permute.xlu0 %6406
    %6408 = vrot.lane.b32.xlu0 %v3494, 122
    %v6409 = vpop.permute.xlu0 %6408
    %6410 = vrot.lane.b32.xlu0 %v3495, 122
    %v6411 = vpop.permute.xlu0 %6410
    %6412 = vrot.lane.b32.xlu0 %v3496, 122
    %v6413 = vpop.permute.xlu0 %6412
    %6414 = vrot.lane.b32.xlu0 %v3497, 122
    %v6415 = vpop.permute.xlu0 %6414
    %6416 = vrot.lane.b32.xlu0 %v3498, 122
    %v6417 = vpop.permute.xlu0 %6416
    %6418 = vrot.lane.b32.xlu0 %v3499, 122
    %v6419 = vpop.permute.xlu0 %6418
    %6420 = vrot.lane.b32.xlu0 %v3500, 122
    %v6421 = vpop.permute.xlu0 %6420
    %6422 = vrot.lane.b32.xlu0 %v3501, 122
    %v6423 = vpop.permute.xlu0 %6422
    %6424 = vrot.lane.b32.xlu0 %v3502, 122
    %v6425 = vpop.permute.xlu0 %6424
    %6426 = vrot.lane.b32.xlu0 %v3503, 122
    %v6427 = vpop.permute.xlu0 %6426
    %6428 = vrot.lane.b32.xlu0 %v3504, 122
    %v6429 = vpop.permute.xlu0 %6428
    %6430 = vrot.lane.b32.xlu0 %v3505, 122
    %v6431 = vpop.permute.xlu0 %6430
    %6432 = vrot.lane.b32.xlu0 %v3506, 122
    %v6433 = vpop.permute.xlu0 %6432
    %6434 = vrot.lane.b32.xlu0 %v3507, 122
    %v6435 = vpop.permute.xlu0 %6434
    %6436 = vrot.lane.b32.xlu0 %v3508, 122
    %v6437 = vpop.permute.xlu0 %6436
    %6438 = vrot.lane.b32.xlu0 %v3509, 122
    %v6439 = vpop.permute.xlu0 %6438
    %6440 = vrot.lane.b32.xlu0 %v3510, 122
    %v6441 = vpop.permute.xlu0 %6440
    %6442 = vrot.lane.b32.xlu0 %v3511, 122
    %v6443 = vpop.permute.xlu0 %6442
    %6444 = vrot.lane.b32.xlu0 %v3512, 122
    %v6445 = vpop.permute.xlu0 %6444
    %6446 = vrot.lane.b32.xlu0 %v3513, 122
    %v6447 = vpop.permute.xlu0 %6446
    %6448 = vrot.lane.b32.xlu0 %v3514, 122
    %v6449 = vpop.permute.xlu0 %6448
    %6450 = vrot.lane.b32.xlu0 %v3515, 122
    %v6451 = vpop.permute.xlu0 %6450
    %6452 = vrot.lane.b32.xlu0 %v3516, 122
    %v6453 = vpop.permute.xlu0 %6452
    %6454 = vrot.lane.b32.xlu0 %v3517, 122
    %v6455 = vpop.permute.xlu0 %6454
    %6456 = vrot.lane.b32.xlu0 %v3518, 122
    %v6457 = vpop.permute.xlu0 %6456
    %6458 = vrot.lane.b32.xlu0 %v3519, 122
    %v6459 = vpop.permute.xlu0 %6458
    %6460 = vrot.lane.b32.xlu0 %v3520, 122
    %v6461 = vpop.permute.xlu0 %6460
    %6462 = vrot.lane.b32.xlu0 %v3521, 122
    %v6463 = vpop.permute.xlu0 %6462
    %6464 = vrot.lane.b32.xlu0 %v3522, 122
    %v6465 = vpop.permute.xlu0 %6464
    %6466 = vrot.lane.b32.xlu0 %v3523, 122
    %v6467 = vpop.permute.xlu0 %6466
    %6468 = vset.pattern.permute.xlu0 6
    %6469 = vperm.xlu0 %6468, %v66
    %v6470 = vpop.permute.xlu0 %6469
    %6472 = vset.pattern.permute.xlu0 6
    %6473 = vperm.xlu0 %6472, %v67
    %v6474 = vpop.permute.xlu0 %6473
    %6476 = vset.pattern.permute.xlu0 6
    %6477 = vperm.xlu0 %6476, %v68
    %v6478 = vpop.permute.xlu0 %6477
    %6480 = vset.pattern.permute.xlu0 6
    %6481 = vperm.xlu0 %6480, %v69
    %v6482 = vpop.permute.xlu0 %6481
    %6484 = vset.pattern.permute.xlu0 6
    %6485 = vperm.xlu0 %6484, %v70
    %v6486 = vpop.permute.xlu0 %6485
    %6488 = vset.pattern.permute.xlu0 6
    %6489 = vperm.xlu0 %6488, %v71
    %v6490 = vpop.permute.xlu0 %6489
    %6492 = vset.pattern.permute.xlu0 6
    %6493 = vperm.xlu0 %6492, %v72
    %v6494 = vpop.permute.xlu0 %6493
    %6496 = vset.pattern.permute.xlu0 6
    %6497 = vperm.xlu0 %6496, %v73
    %v6498 = vpop.permute.xlu0 %6497
    %6500 = vset.pattern.permute.xlu0 6
    %6501 = vperm.xlu0 %6500, %v74
    %v6502 = vpop.permute.xlu0 %6501
    %6504 = vset.pattern.permute.xlu0 6
    %6505 = vperm.xlu0 %6504, %v75
    %v6506 = vpop.permute.xlu0 %6505
    %6508 = vset.pattern.permute.xlu0 6
    %6509 = vperm.xlu0 %6508, %v76
    %v6510 = vpop.permute.xlu0 %6509
    %6512 = vset.pattern.permute.xlu0 6
    %6513 = vperm.xlu0 %6512, %v77
    %v6514 = vpop.permute.xlu0 %6513
    %6516 = vset.pattern.permute.xlu0 6
    %6517 = vperm.xlu0 %6516, %v78
    %v6518 = vpop.permute.xlu0 %6517
    %6520 = vset.pattern.permute.xlu0 6
    %6521 = vperm.xlu0 %6520, %v79
    %v6522 = vpop.permute.xlu0 %6521
    %6524 = vset.pattern.permute.xlu0 6
    %6525 = vperm.xlu0 %6524, %v80
    %v6526 = vpop.permute.xlu0 %6525
    %6528 = vset.pattern.permute.xlu0 6
    %6529 = vperm.xlu0 %6528, %v81
    %v6530 = vpop.permute.xlu0 %6529
    %6532 = vset.pattern.permute.xlu0 6
    %6533 = vperm.xlu0 %6532, %v82
    %v6534 = vpop.permute.xlu0 %6533
    %6536 = vset.pattern.permute.xlu0 6
    %6537 = vperm.xlu0 %6536, %v83
    %v6538 = vpop.permute.xlu0 %6537
    %6540 = vset.pattern.permute.xlu0 6
    %6541 = vperm.xlu0 %6540, %v84
    %v6542 = vpop.permute.xlu0 %6541
    %6544 = vset.pattern.permute.xlu0 6
    %6545 = vperm.xlu0 %6544, %v85
    %v6546 = vpop.permute.xlu0 %6545
    %6548 = vset.pattern.permute.xlu0 6
    %6549 = vperm.xlu0 %6548, %v86
    %v6550 = vpop.permute.xlu0 %6549
    %6552 = vset.pattern.permute.xlu0 6
    %6553 = vperm.xlu0 %6552, %v87
    %v6554 = vpop.permute.xlu0 %6553
    %6556 = vset.pattern.permute.xlu0 6
    %6557 = vperm.xlu0 %6556, %v88
    %v6558 = vpop.permute.xlu0 %6557
    %6560 = vset.pattern.permute.xlu0 6
    %6561 = vperm.xlu0 %6560, %v89
    %v6562 = vpop.permute.xlu0 %6561
    %6564 = vset.pattern.permute.xlu0 6
    %6565 = vperm.xlu0 %6564, %v90
    %v6566 = vpop.permute.xlu0 %6565
    %6568 = vset.pattern.permute.xlu0 6
    %6569 = vperm.xlu0 %6568, %v91
    %v6570 = vpop.permute.xlu0 %6569
    %6572 = vset.pattern.permute.xlu0 6
    %6573 = vperm.xlu0 %6572, %v92
    %v6574 = vpop.permute.xlu0 %6573
    %6576 = vset.pattern.permute.xlu0 6
    %6577 = vperm.xlu0 %6576, %v93
    %v6578 = vpop.permute.xlu0 %6577
    %6580 = vset.pattern.permute.xlu0 6
    %6581 = vperm.xlu0 %6580, %v94
    %v6582 = vpop.permute.xlu0 %6581
    %6584 = vset.pattern.permute.xlu0 6
    %6585 = vperm.xlu0 %6584, %v95
    %v6586 = vpop.permute.xlu0 %6585
    %6588 = vset.pattern.permute.xlu0 6
    %6589 = vperm.xlu0 %6588, %v96
    %v6590 = vpop.permute.xlu0 %6589
    %6592 = vset.pattern.permute.xlu0 6
    %6593 = vperm.xlu0 %6592, %v97
    %v6594 = vpop.permute.xlu0 %6593
    %6596 = vset.pattern.permute.xlu0 6
    %6597 = vperm.xlu0 %6596, %v98
    %v6598 = vpop.permute.xlu0 %6597
    %6600 = vset.pattern.permute.xlu0 6
    %6601 = vperm.xlu0 %6600, %v99
    %v6602 = vpop.permute.xlu0 %6601
    %6604 = vset.pattern.permute.xlu0 6
    %6605 = vperm.xlu0 %6604, %v100
    %v6606 = vpop.permute.xlu0 %6605
    %6608 = vset.pattern.permute.xlu0 6
    %6609 = vperm.xlu0 %6608, %v101
    %v6610 = vpop.permute.xlu0 %6609
    %6612 = vset.pattern.permute.xlu0 6
    %6613 = vperm.xlu0 %6612, %v102
    %v6614 = vpop.permute.xlu0 %6613
    %6616 = vset.pattern.permute.xlu0 6
    %6617 = vperm.xlu0 %6616, %v103
    %v6618 = vpop.permute.xlu0 %6617
    %6620 = vset.pattern.permute.xlu0 6
    %6621 = vperm.xlu0 %6620, %v104
    %v6622 = vpop.permute.xlu0 %6621
    %6624 = vset.pattern.permute.xlu0 6
    %6625 = vperm.xlu0 %6624, %v105
    %v6626 = vpop.permute.xlu0 %6625
    %6628 = vset.pattern.permute.xlu0 6
    %6629 = vperm.xlu0 %6628, %v106
    %v6630 = vpop.permute.xlu0 %6629
    %6632 = vset.pattern.permute.xlu0 6
    %6633 = vperm.xlu0 %6632, %v107
    %v6634 = vpop.permute.xlu0 %6633
    %6636 = vset.pattern.permute.xlu0 6
    %6637 = vperm.xlu0 %6636, %v108
    %v6638 = vpop.permute.xlu0 %6637
    %6640 = vset.pattern.permute.xlu0 6
    %6641 = vperm.xlu0 %6640, %v109
    %v6642 = vpop.permute.xlu0 %6641
    %6644 = vset.pattern.permute.xlu0 6
    %6645 = vperm.xlu0 %6644, %v110
    %v6646 = vpop.permute.xlu0 %6645
    %6648 = vset.pattern.permute.xlu0 6
    %6649 = vperm.xlu0 %6648, %v111
    %v6650 = vpop.permute.xlu0 %6649
    %6652 = vset.pattern.permute.xlu0 6
    %6653 = vperm.xlu0 %6652, %v112
    %v6654 = vpop.permute.xlu0 %6653
    %6656 = vset.pattern.permute.xlu0 6
    %6657 = vperm.xlu0 %6656, %v113
    %v6658 = vpop.permute.xlu0 %6657
    %6660 = vset.pattern.permute.xlu0 6
    %6661 = vperm.xlu0 %6660, %v114
    %v6662 = vpop.permute.xlu0 %6661
    %6664 = vset.pattern.permute.xlu0 6
    %6665 = vperm.xlu0 %6664, %v115
    %v6666 = vpop.permute.xlu0 %6665
    %6668 = vset.pattern.permute.xlu0 6
    %6669 = vperm.xlu0 %6668, %v116
    %v6670 = vpop.permute.xlu0 %6669
    %6672 = vset.pattern.permute.xlu0 6
    %6673 = vperm.xlu0 %6672, %v117
    %v6674 = vpop.permute.xlu0 %6673
    %6676 = vset.pattern.permute.xlu0 6
    %6677 = vperm.xlu0 %6676, %v118
    %v6678 = vpop.permute.xlu0 %6677
    %6680 = vset.pattern.permute.xlu0 6
    %6681 = vperm.xlu0 %6680, %v119
    %v6682 = vpop.permute.xlu0 %6681
    %6684 = vset.pattern.permute.xlu0 6
    %6685 = vperm.xlu0 %6684, %v120
    %v6686 = vpop.permute.xlu0 %6685
    %6688 = vset.pattern.permute.xlu0 6
    %6689 = vperm.xlu0 %6688, %v121
    %v6690 = vpop.permute.xlu0 %6689
    %6692 = vset.pattern.permute.xlu0 6
    %6693 = vperm.xlu0 %6692, %v122
    %v6694 = vpop.permute.xlu0 %6693
    %6696 = vset.pattern.permute.xlu0 6
    %6697 = vperm.xlu0 %6696, %v123
    %v6698 = vpop.permute.xlu0 %6697
    %6700 = vset.pattern.permute.xlu0 6
    %6701 = vperm.xlu0 %6700, %v124
    %v6702 = vpop.permute.xlu0 %6701
    %6704 = vset.pattern.permute.xlu0 6
    %6705 = vperm.xlu0 %6704, %v125
    %v6706 = vpop.permute.xlu0 %6705
    %6708 = vset.pattern.permute.xlu0 6
    %6709 = vperm.xlu0 %6708, %v126
    %v6710 = vpop.permute.xlu0 %6709
    %6712 = vset.pattern.permute.xlu0 6
    %6713 = vperm.xlu0 %6712, %v127
    %v6714 = vpop.permute.xlu0 %6713
    %6716 = vset.pattern.permute.xlu0 6
    %6717 = vperm.xlu0 %6716, %v128
    %v6718 = vpop.permute.xlu0 %6717
    %6720 = vset.pattern.permute.xlu0 6
    %6721 = vperm.xlu0 %6720, %v129
    %v6722 = vpop.permute.xlu0 %6721
    %v6724 = vmul.f32 %v6341, %v6470
    %v6725 = vmul.f32 %v6343, %v6474
    %v6726 = vmul.f32 %v6345, %v6478
    %v6727 = vmul.f32 %v6347, %v6482
    %v6728 = vmul.f32 %v6349, %v6486
    %v6729 = vmul.f32 %v6351, %v6490
    %v6730 = vmul.f32 %v6353, %v6494
    %v6731 = vmul.f32 %v6355, %v6498
    %v6732 = vmul.f32 %v6357, %v6502
    %v6733 = vmul.f32 %v6359, %v6506
    %v6734 = vmul.f32 %v6361, %v6510
    %v6735 = vmul.f32 %v6363, %v6514
    %v6736 = vmul.f32 %v6365, %v6518
    %v6737 = vmul.f32 %v6367, %v6522
    %v6738 = vmul.f32 %v6369, %v6526
    %v6739 = vmul.f32 %v6371, %v6530
    %v6740 = vmul.f32 %v6373, %v6534
    %v6741 = vmul.f32 %v6375, %v6538
    %v6742 = vmul.f32 %v6377, %v6542
    %v6743 = vmul.f32 %v6379, %v6546
    %v6744 = vmul.f32 %v6381, %v6550
    %v6745 = vmul.f32 %v6383, %v6554
    %v6746 = vmul.f32 %v6385, %v6558
    %v6747 = vmul.f32 %v6387, %v6562
    %v6748 = vmul.f32 %v6389, %v6566
    %v6749 = vmul.f32 %v6391, %v6570
    %v6750 = vmul.f32 %v6393, %v6574
    %v6751 = vmul.f32 %v6395, %v6578
    %v6752 = vmul.f32 %v6397, %v6582
    %v6753 = vmul.f32 %v6399, %v6586
    %v6754 = vmul.f32 %v6401, %v6590
    %v6755 = vmul.f32 %v6403, %v6594
    %v6756 = vmul.f32 %v6405, %v6598
    %v6757 = vmul.f32 %v6407, %v6602
    %v6758 = vmul.f32 %v6409, %v6606
    %v6759 = vmul.f32 %v6411, %v6610
    %v6760 = vmul.f32 %v6413, %v6614
    %v6761 = vmul.f32 %v6415, %v6618
    %v6762 = vmul.f32 %v6417, %v6622
    %v6763 = vmul.f32 %v6419, %v6626
    %v6764 = vmul.f32 %v6421, %v6630
    %v6765 = vmul.f32 %v6423, %v6634
    %v6766 = vmul.f32 %v6425, %v6638
    %v6767 = vmul.f32 %v6427, %v6642
    %v6768 = vmul.f32 %v6429, %v6646
    %v6769 = vmul.f32 %v6431, %v6650
    %v6770 = vmul.f32 %v6433, %v6654
    %v6771 = vmul.f32 %v6435, %v6658
    %v6772 = vmul.f32 %v6437, %v6662
    %v6773 = vmul.f32 %v6439, %v6666
    %v6774 = vmul.f32 %v6441, %v6670
    %v6775 = vmul.f32 %v6443, %v6674
    %v6776 = vmul.f32 %v6445, %v6678
    %v6777 = vmul.f32 %v6447, %v6682
    %v6778 = vmul.f32 %v6449, %v6686
    %v6779 = vmul.f32 %v6451, %v6690
    %v6780 = vmul.f32 %v6453, %v6694
    %v6781 = vmul.f32 %v6455, %v6698
    %v6782 = vmul.f32 %v6457, %v6702
    %v6783 = vmul.f32 %v6459, %v6706
    %v6784 = vmul.f32 %v6461, %v6710
    %v6785 = vmul.f32 %v6463, %v6714
    %v6786 = vmul.f32 %v6465, %v6718
    %v6787 = vmul.f32 %v6467, %v6722
    %v6788 = vadd.f32 %v5764, %v6724
    %v6789 = vadd.f32 %v5765, %v6725
    %v6790 = vadd.f32 %v5766, %v6726
    %v6791 = vadd.f32 %v5767, %v6727
    %v6792 = vadd.f32 %v5768, %v6728
    %v6793 = vadd.f32 %v5769, %v6729
    %v6794 = vadd.f32 %v5770, %v6730
    %v6795 = vadd.f32 %v5771, %v6731
    %v6796 = vadd.f32 %v5772, %v6732
    %v6797 = vadd.f32 %v5773, %v6733
    %v6798 = vadd.f32 %v5774, %v6734
    %v6799 = vadd.f32 %v5775, %v6735
    %v6800 = vadd.f32 %v5776, %v6736
    %v6801 = vadd.f32 %v5777, %v6737
    %v6802 = vadd.f32 %v5778, %v6738
    %v6803 = vadd.f32 %v5779, %v6739
    %v6804 = vadd.f32 %v5780, %v6740
    %v6805 = vadd.f32 %v5781, %v6741
    %v6806 = vadd.f32 %v5782, %v6742
    %v6807 = vadd.f32 %v5783, %v6743
    %v6808 = vadd.f32 %v5784, %v6744
    %v6809 = vadd.f32 %v5785, %v6745
    %v6810 = vadd.f32 %v5786, %v6746
    %v6811 = vadd.f32 %v5787, %v6747
    %v6812 = vadd.f32 %v5788, %v6748
    %v6813 = vadd.f32 %v5789, %v6749
    %v6814 = vadd.f32 %v5790, %v6750
    %v6815 = vadd.f32 %v5791, %v6751
    %v6816 = vadd.f32 %v5792, %v6752
    %v6817 = vadd.f32 %v5793, %v6753
    %v6818 = vadd.f32 %v5794, %v6754
    %v6819 = vadd.f32 %v5795, %v6755
    %v6820 = vadd.f32 %v5796, %v6756
    %v6821 = vadd.f32 %v5797, %v6757
    %v6822 = vadd.f32 %v5798, %v6758
    %v6823 = vadd.f32 %v5799, %v6759
    %v6824 = vadd.f32 %v5800, %v6760
    %v6825 = vadd.f32 %v5801, %v6761
    %v6826 = vadd.f32 %v5802, %v6762
    %v6827 = vadd.f32 %v5803, %v6763
    %v6828 = vadd.f32 %v5804, %v6764
    %v6829 = vadd.f32 %v5805, %v6765
    %v6830 = vadd.f32 %v5806, %v6766
    %v6831 = vadd.f32 %v5807, %v6767
    %v6832 = vadd.f32 %v5808, %v6768
    %v6833 = vadd.f32 %v5809, %v6769
    %v6834 = vadd.f32 %v5810, %v6770
    %v6835 = vadd.f32 %v5811, %v6771
    %v6836 = vadd.f32 %v5812, %v6772
    %v6837 = vadd.f32 %v5813, %v6773
    %v6838 = vadd.f32 %v5814, %v6774
    %v6839 = vadd.f32 %v5815, %v6775
    %v6840 = vadd.f32 %v5816, %v6776
    %v6841 = vadd.f32 %v5817, %v6777
    %v6842 = vadd.f32 %v5818, %v6778
    %v6843 = vadd.f32 %v5819, %v6779
    %v6844 = vadd.f32 %v5820, %v6780
    %v6845 = vadd.f32 %v5821, %v6781
    %v6846 = vadd.f32 %v5822, %v6782
    %v6847 = vadd.f32 %v5823, %v6783
    %v6848 = vadd.f32 %v5824, %v6784
    %v6849 = vadd.f32 %v5825, %v6785
    %v6850 = vadd.f32 %v5826, %v6786
    %v6851 = vadd.f32 %v5827, %v6787
    %6852 = vrot.lane.b32.xlu0 %v3332, 121
    %v6853 = vpop.permute.xlu0 %6852
    %6854 = vrot.lane.b32.xlu0 %v3333, 121
    %v6855 = vpop.permute.xlu0 %6854
    %6856 = vrot.lane.b32.xlu0 %v3334, 121
    %v6857 = vpop.permute.xlu0 %6856
    %6858 = vrot.lane.b32.xlu0 %v3335, 121
    %v6859 = vpop.permute.xlu0 %6858
    %6860 = vrot.lane.b32.xlu0 %v3336, 121
    %v6861 = vpop.permute.xlu0 %6860
    %6862 = vrot.lane.b32.xlu0 %v3337, 121
    %v6863 = vpop.permute.xlu0 %6862
    %6864 = vrot.lane.b32.xlu0 %v3338, 121
    %v6865 = vpop.permute.xlu0 %6864
    %6866 = vrot.lane.b32.xlu0 %v3339, 121
    %v6867 = vpop.permute.xlu0 %6866
    %6868 = vrot.lane.b32.xlu0 %v3340, 121
    %v6869 = vpop.permute.xlu0 %6868
    %6870 = vrot.lane.b32.xlu0 %v3341, 121
    %v6871 = vpop.permute.xlu0 %6870
    %6872 = vrot.lane.b32.xlu0 %v3342, 121
    %v6873 = vpop.permute.xlu0 %6872
    %6874 = vrot.lane.b32.xlu0 %v3343, 121
    %v6875 = vpop.permute.xlu0 %6874
    %6876 = vrot.lane.b32.xlu0 %v3344, 121
    %v6877 = vpop.permute.xlu0 %6876
    %6878 = vrot.lane.b32.xlu0 %v3345, 121
    %v6879 = vpop.permute.xlu0 %6878
    %6880 = vrot.lane.b32.xlu0 %v3346, 121
    %v6881 = vpop.permute.xlu0 %6880
    %6882 = vrot.lane.b32.xlu0 %v3347, 121
    %v6883 = vpop.permute.xlu0 %6882
    %6884 = vrot.lane.b32.xlu0 %v3348, 121
    %v6885 = vpop.permute.xlu0 %6884
    %6886 = vrot.lane.b32.xlu0 %v3349, 121
    %v6887 = vpop.permute.xlu0 %6886
    %6888 = vrot.lane.b32.xlu0 %v3350, 121
    %v6889 = vpop.permute.xlu0 %6888
    %6890 = vrot.lane.b32.xlu0 %v3351, 121
    %v6891 = vpop.permute.xlu0 %6890
    %6892 = vrot.lane.b32.xlu0 %v3352, 121
    %v6893 = vpop.permute.xlu0 %6892
    %6894 = vrot.lane.b32.xlu0 %v3353, 121
    %v6895 = vpop.permute.xlu0 %6894
    %6896 = vrot.lane.b32.xlu0 %v3354, 121
    %v6897 = vpop.permute.xlu0 %6896
    %6898 = vrot.lane.b32.xlu0 %v3355, 121
    %v6899 = vpop.permute.xlu0 %6898
    %6900 = vrot.lane.b32.xlu0 %v3356, 121
    %v6901 = vpop.permute.xlu0 %6900
    %6902 = vrot.lane.b32.xlu0 %v3357, 121
    %v6903 = vpop.permute.xlu0 %6902
    %6904 = vrot.lane.b32.xlu0 %v3358, 121
    %v6905 = vpop.permute.xlu0 %6904
    %6906 = vrot.lane.b32.xlu0 %v3359, 121
    %v6907 = vpop.permute.xlu0 %6906
    %6908 = vrot.lane.b32.xlu0 %v3360, 121
    %v6909 = vpop.permute.xlu0 %6908
    %6910 = vrot.lane.b32.xlu0 %v3361, 121
    %v6911 = vpop.permute.xlu0 %6910
    %6912 = vrot.lane.b32.xlu0 %v3362, 121
    %v6913 = vpop.permute.xlu0 %6912
    %6914 = vrot.lane.b32.xlu0 %v3363, 121
    %v6915 = vpop.permute.xlu0 %6914
    %6916 = vrot.lane.b32.xlu0 %v3364, 121
    %v6917 = vpop.permute.xlu0 %6916
    %6918 = vrot.lane.b32.xlu0 %v3365, 121
    %v6919 = vpop.permute.xlu0 %6918
    %6920 = vrot.lane.b32.xlu0 %v3366, 121
    %v6921 = vpop.permute.xlu0 %6920
    %6922 = vrot.lane.b32.xlu0 %v3367, 121
    %v6923 = vpop.permute.xlu0 %6922
    %6924 = vrot.lane.b32.xlu0 %v3368, 121
    %v6925 = vpop.permute.xlu0 %6924
    %6926 = vrot.lane.b32.xlu0 %v3369, 121
    %v6927 = vpop.permute.xlu0 %6926
    %6928 = vrot.lane.b32.xlu0 %v3370, 121
    %v6929 = vpop.permute.xlu0 %6928
    %6930 = vrot.lane.b32.xlu0 %v3371, 121
    %v6931 = vpop.permute.xlu0 %6930
    %6932 = vrot.lane.b32.xlu0 %v3372, 121
    %v6933 = vpop.permute.xlu0 %6932
    %6934 = vrot.lane.b32.xlu0 %v3373, 121
    %v6935 = vpop.permute.xlu0 %6934
    %6936 = vrot.lane.b32.xlu0 %v3374, 121
    %v6937 = vpop.permute.xlu0 %6936
    %6938 = vrot.lane.b32.xlu0 %v3375, 121
    %v6939 = vpop.permute.xlu0 %6938
    %6940 = vrot.lane.b32.xlu0 %v3376, 121
    %v6941 = vpop.permute.xlu0 %6940
    %6942 = vrot.lane.b32.xlu0 %v3377, 121
    %v6943 = vpop.permute.xlu0 %6942
    %6944 = vrot.lane.b32.xlu0 %v3378, 121
    %v6945 = vpop.permute.xlu0 %6944
    %6946 = vrot.lane.b32.xlu0 %v3379, 121
    %v6947 = vpop.permute.xlu0 %6946
    %6948 = vrot.lane.b32.xlu0 %v3380, 121
    %v6949 = vpop.permute.xlu0 %6948
    %6950 = vrot.lane.b32.xlu0 %v3381, 121
    %v6951 = vpop.permute.xlu0 %6950
    %6952 = vrot.lane.b32.xlu0 %v3382, 121
    %v6953 = vpop.permute.xlu0 %6952
    %6954 = vrot.lane.b32.xlu0 %v3383, 121
    %v6955 = vpop.permute.xlu0 %6954
    %6956 = vrot.lane.b32.xlu0 %v3384, 121
    %v6957 = vpop.permute.xlu0 %6956
    %6958 = vrot.lane.b32.xlu0 %v3385, 121
    %v6959 = vpop.permute.xlu0 %6958
    %6960 = vrot.lane.b32.xlu0 %v3386, 121
    %v6961 = vpop.permute.xlu0 %6960
    %6962 = vrot.lane.b32.xlu0 %v3387, 121
    %v6963 = vpop.permute.xlu0 %6962
    %6964 = vrot.lane.b32.xlu0 %v3388, 121
    %v6965 = vpop.permute.xlu0 %6964
    %6966 = vrot.lane.b32.xlu0 %v3389, 121
    %v6967 = vpop.permute.xlu0 %6966
    %6968 = vrot.lane.b32.xlu0 %v3390, 121
    %v6969 = vpop.permute.xlu0 %6968
    %6970 = vrot.lane.b32.xlu0 %v3391, 121
    %v6971 = vpop.permute.xlu0 %6970
    %6972 = vrot.lane.b32.xlu0 %v3392, 121
    %v6973 = vpop.permute.xlu0 %6972
    %6974 = vrot.lane.b32.xlu0 %v3393, 121
    %v6975 = vpop.permute.xlu0 %6974
    %6976 = vrot.lane.b32.xlu0 %v3394, 121
    %v6977 = vpop.permute.xlu0 %6976
    %6978 = vrot.lane.b32.xlu0 %v3395, 121
    %v6979 = vpop.permute.xlu0 %6978
    %6980 = vset.pattern.permute.xlu0 7
    %6981 = vperm.xlu0 %6980, %v66
    %v6982 = vpop.permute.xlu0 %6981
    %6984 = vset.pattern.permute.xlu0 7
    %6985 = vperm.xlu0 %6984, %v67
    %v6986 = vpop.permute.xlu0 %6985
    %6988 = vset.pattern.permute.xlu0 7
    %6989 = vperm.xlu0 %6988, %v68
    %v6990 = vpop.permute.xlu0 %6989
    %6992 = vset.pattern.permute.xlu0 7
    %6993 = vperm.xlu0 %6992, %v69
    %v6994 = vpop.permute.xlu0 %6993
    %6996 = vset.pattern.permute.xlu0 7
    %6997 = vperm.xlu0 %6996, %v70
    %v6998 = vpop.permute.xlu0 %6997
    %7000 = vset.pattern.permute.xlu0 7
    %7001 = vperm.xlu0 %7000, %v71
    %v7002 = vpop.permute.xlu0 %7001
    %7004 = vset.pattern.permute.xlu0 7
    %7005 = vperm.xlu0 %7004, %v72
    %v7006 = vpop.permute.xlu0 %7005
    %7008 = vset.pattern.permute.xlu0 7
    %7009 = vperm.xlu0 %7008, %v73
    %v7010 = vpop.permute.xlu0 %7009
    %7012 = vset.pattern.permute.xlu0 7
    %7013 = vperm.xlu0 %7012, %v74
    %v7014 = vpop.permute.xlu0 %7013
    %7016 = vset.pattern.permute.xlu0 7
    %7017 = vperm.xlu0 %7016, %v75
    %v7018 = vpop.permute.xlu0 %7017
    %7020 = vset.pattern.permute.xlu0 7
    %7021 = vperm.xlu0 %7020, %v76
    %v7022 = vpop.permute.xlu0 %7021
    %7024 = vset.pattern.permute.xlu0 7
    %7025 = vperm.xlu0 %7024, %v77
    %v7026 = vpop.permute.xlu0 %7025
    %7028 = vset.pattern.permute.xlu0 7
    %7029 = vperm.xlu0 %7028, %v78
    %v7030 = vpop.permute.xlu0 %7029
    %7032 = vset.pattern.permute.xlu0 7
    %7033 = vperm.xlu0 %7032, %v79
    %v7034 = vpop.permute.xlu0 %7033
    %7036 = vset.pattern.permute.xlu0 7
    %7037 = vperm.xlu0 %7036, %v80
    %v7038 = vpop.permute.xlu0 %7037
    %7040 = vset.pattern.permute.xlu0 7
    %7041 = vperm.xlu0 %7040, %v81
    %v7042 = vpop.permute.xlu0 %7041
    %7044 = vset.pattern.permute.xlu0 7
    %7045 = vperm.xlu0 %7044, %v82
    %v7046 = vpop.permute.xlu0 %7045
    %7048 = vset.pattern.permute.xlu0 7
    %7049 = vperm.xlu0 %7048, %v83
    %v7050 = vpop.permute.xlu0 %7049
    %7052 = vset.pattern.permute.xlu0 7
    %7053 = vperm.xlu0 %7052, %v84
    %v7054 = vpop.permute.xlu0 %7053
    %7056 = vset.pattern.permute.xlu0 7
    %7057 = vperm.xlu0 %7056, %v85
    %v7058 = vpop.permute.xlu0 %7057
    %7060 = vset.pattern.permute.xlu0 7
    %7061 = vperm.xlu0 %7060, %v86
    %v7062 = vpop.permute.xlu0 %7061
    %7064 = vset.pattern.permute.xlu0 7
    %7065 = vperm.xlu0 %7064, %v87
    %v7066 = vpop.permute.xlu0 %7065
    %7068 = vset.pattern.permute.xlu0 7
    %7069 = vperm.xlu0 %7068, %v88
    %v7070 = vpop.permute.xlu0 %7069
    %7072 = vset.pattern.permute.xlu0 7
    %7073 = vperm.xlu0 %7072, %v89
    %v7074 = vpop.permute.xlu0 %7073
    %7076 = vset.pattern.permute.xlu0 7
    %7077 = vperm.xlu0 %7076, %v90
    %v7078 = vpop.permute.xlu0 %7077
    %7080 = vset.pattern.permute.xlu0 7
    %7081 = vperm.xlu0 %7080, %v91
    %v7082 = vpop.permute.xlu0 %7081
    %7084 = vset.pattern.permute.xlu0 7
    %7085 = vperm.xlu0 %7084, %v92
    %v7086 = vpop.permute.xlu0 %7085
    %7088 = vset.pattern.permute.xlu0 7
    %7089 = vperm.xlu0 %7088, %v93
    %v7090 = vpop.permute.xlu0 %7089
    %7092 = vset.pattern.permute.xlu0 7
    %7093 = vperm.xlu0 %7092, %v94
    %v7094 = vpop.permute.xlu0 %7093
    %7096 = vset.pattern.permute.xlu0 7
    %7097 = vperm.xlu0 %7096, %v95
    %v7098 = vpop.permute.xlu0 %7097
    %7100 = vset.pattern.permute.xlu0 7
    %7101 = vperm.xlu0 %7100, %v96
    %v7102 = vpop.permute.xlu0 %7101
    %7104 = vset.pattern.permute.xlu0 7
    %7105 = vperm.xlu0 %7104, %v97
    %v7106 = vpop.permute.xlu0 %7105
    %7108 = vset.pattern.permute.xlu0 7
    %7109 = vperm.xlu0 %7108, %v98
    %v7110 = vpop.permute.xlu0 %7109
    %7112 = vset.pattern.permute.xlu0 7
    %7113 = vperm.xlu0 %7112, %v99
    %v7114 = vpop.permute.xlu0 %7113
    %7116 = vset.pattern.permute.xlu0 7
    %7117 = vperm.xlu0 %7116, %v100
    %v7118 = vpop.permute.xlu0 %7117
    %7120 = vset.pattern.permute.xlu0 7
    %7121 = vperm.xlu0 %7120, %v101
    %v7122 = vpop.permute.xlu0 %7121
    %7124 = vset.pattern.permute.xlu0 7
    %7125 = vperm.xlu0 %7124, %v102
    %v7126 = vpop.permute.xlu0 %7125
    %7128 = vset.pattern.permute.xlu0 7
    %7129 = vperm.xlu0 %7128, %v103
    %v7130 = vpop.permute.xlu0 %7129
    %7132 = vset.pattern.permute.xlu0 7
    %7133 = vperm.xlu0 %7132, %v104
    %v7134 = vpop.permute.xlu0 %7133
    %7136 = vset.pattern.permute.xlu0 7
    %7137 = vperm.xlu0 %7136, %v105
    %v7138 = vpop.permute.xlu0 %7137
    %7140 = vset.pattern.permute.xlu0 7
    %7141 = vperm.xlu0 %7140, %v106
    %v7142 = vpop.permute.xlu0 %7141
    %7144 = vset.pattern.permute.xlu0 7
    %7145 = vperm.xlu0 %7144, %v107
    %v7146 = vpop.permute.xlu0 %7145
    %7148 = vset.pattern.permute.xlu0 7
    %7149 = vperm.xlu0 %7148, %v108
    %v7150 = vpop.permute.xlu0 %7149
    %7152 = vset.pattern.permute.xlu0 7
    %7153 = vperm.xlu0 %7152, %v109
    %v7154 = vpop.permute.xlu0 %7153
    %7156 = vset.pattern.permute.xlu0 7
    %7157 = vperm.xlu0 %7156, %v110
    %v7158 = vpop.permute.xlu0 %7157
    %7160 = vset.pattern.permute.xlu0 7
    %7161 = vperm.xlu0 %7160, %v111
    %v7162 = vpop.permute.xlu0 %7161
    %7164 = vset.pattern.permute.xlu0 7
    %7165 = vperm.xlu0 %7164, %v112
    %v7166 = vpop.permute.xlu0 %7165
    %7168 = vset.pattern.permute.xlu0 7
    %7169 = vperm.xlu0 %7168, %v113
    %v7170 = vpop.permute.xlu0 %7169
    %7172 = vset.pattern.permute.xlu0 7
    %7173 = vperm.xlu0 %7172, %v114
    %v7174 = vpop.permute.xlu0 %7173
    %7176 = vset.pattern.permute.xlu0 7
    %7177 = vperm.xlu0 %7176, %v115
    %v7178 = vpop.permute.xlu0 %7177
    %7180 = vset.pattern.permute.xlu0 7
    %7181 = vperm.xlu0 %7180, %v116
    %v7182 = vpop.permute.xlu0 %7181
    %7184 = vset.pattern.permute.xlu0 7
    %7185 = vperm.xlu0 %7184, %v117
    %v7186 = vpop.permute.xlu0 %7185
    %7188 = vset.pattern.permute.xlu0 7
    %7189 = vperm.xlu0 %7188, %v118
    %v7190 = vpop.permute.xlu0 %7189
    %7192 = vset.pattern.permute.xlu0 7
    %7193 = vperm.xlu0 %7192, %v119
    %v7194 = vpop.permute.xlu0 %7193
    %7196 = vset.pattern.permute.xlu0 7
    %7197 = vperm.xlu0 %7196, %v120
    %v7198 = vpop.permute.xlu0 %7197
    %7200 = vset.pattern.permute.xlu0 7
    %7201 = vperm.xlu0 %7200, %v121
    %v7202 = vpop.permute.xlu0 %7201
    %7204 = vset.pattern.permute.xlu0 7
    %7205 = vperm.xlu0 %7204, %v122
    %v7206 = vpop.permute.xlu0 %7205
    %7208 = vset.pattern.permute.xlu0 7
    %7209 = vperm.xlu0 %7208, %v123
    %v7210 = vpop.permute.xlu0 %7209
    %7212 = vset.pattern.permute.xlu0 7
    %7213 = vperm.xlu0 %7212, %v124
    %v7214 = vpop.permute.xlu0 %7213
    %7216 = vset.pattern.permute.xlu0 7
    %7217 = vperm.xlu0 %7216, %v125
    %v7218 = vpop.permute.xlu0 %7217
    %7220 = vset.pattern.permute.xlu0 7
    %7221 = vperm.xlu0 %7220, %v126
    %v7222 = vpop.permute.xlu0 %7221
    %7224 = vset.pattern.permute.xlu0 7
    %7225 = vperm.xlu0 %7224, %v127
    %v7226 = vpop.permute.xlu0 %7225
    %7228 = vset.pattern.permute.xlu0 7
    %7229 = vperm.xlu0 %7228, %v128
    %v7230 = vpop.permute.xlu0 %7229
    %7232 = vset.pattern.permute.xlu0 7
    %7233 = vperm.xlu0 %7232, %v129
    %v7234 = vpop.permute.xlu0 %7233
    %v7236 = vmul.f32 %v6853, %v6982
    %v7237 = vmul.f32 %v6855, %v6986
    %v7238 = vmul.f32 %v6857, %v6990
    %v7239 = vmul.f32 %v6859, %v6994
    %v7240 = vmul.f32 %v6861, %v6998
    %v7241 = vmul.f32 %v6863, %v7002
    %v7242 = vmul.f32 %v6865, %v7006
    %v7243 = vmul.f32 %v6867, %v7010
    %v7244 = vmul.f32 %v6869, %v7014
    %v7245 = vmul.f32 %v6871, %v7018
    %v7246 = vmul.f32 %v6873, %v7022
    %v7247 = vmul.f32 %v6875, %v7026
    %v7248 = vmul.f32 %v6877, %v7030
    %v7249 = vmul.f32 %v6879, %v7034
    %v7250 = vmul.f32 %v6881, %v7038
    %v7251 = vmul.f32 %v6883, %v7042
    %v7252 = vmul.f32 %v6885, %v7046
    %v7253 = vmul.f32 %v6887, %v7050
    %v7254 = vmul.f32 %v6889, %v7054
    %v7255 = vmul.f32 %v6891, %v7058
    %v7256 = vmul.f32 %v6893, %v7062
    %v7257 = vmul.f32 %v6895, %v7066
    %v7258 = vmul.f32 %v6897, %v7070
    %v7259 = vmul.f32 %v6899, %v7074
    %v7260 = vmul.f32 %v6901, %v7078
    %v7261 = vmul.f32 %v6903, %v7082
    %v7262 = vmul.f32 %v6905, %v7086
    %v7263 = vmul.f32 %v6907, %v7090
    %v7264 = vmul.f32 %v6909, %v7094
    %v7265 = vmul.f32 %v6911, %v7098
    %v7266 = vmul.f32 %v6913, %v7102
    %v7267 = vmul.f32 %v6915, %v7106
    %v7268 = vmul.f32 %v6917, %v7110
    %v7269 = vmul.f32 %v6919, %v7114
    %v7270 = vmul.f32 %v6921, %v7118
    %v7271 = vmul.f32 %v6923, %v7122
    %v7272 = vmul.f32 %v6925, %v7126
    %v7273 = vmul.f32 %v6927, %v7130
    %v7274 = vmul.f32 %v6929, %v7134
    %v7275 = vmul.f32 %v6931, %v7138
    %v7276 = vmul.f32 %v6933, %v7142
    %v7277 = vmul.f32 %v6935, %v7146
    %v7278 = vmul.f32 %v6937, %v7150
    %v7279 = vmul.f32 %v6939, %v7154
    %v7280 = vmul.f32 %v6941, %v7158
    %v7281 = vmul.f32 %v6943, %v7162
    %v7282 = vmul.f32 %v6945, %v7166
    %v7283 = vmul.f32 %v6947, %v7170
    %v7284 = vmul.f32 %v6949, %v7174
    %v7285 = vmul.f32 %v6951, %v7178
    %v7286 = vmul.f32 %v6953, %v7182
    %v7287 = vmul.f32 %v6955, %v7186
    %v7288 = vmul.f32 %v6957, %v7190
    %v7289 = vmul.f32 %v6959, %v7194
    %v7290 = vmul.f32 %v6961, %v7198
    %v7291 = vmul.f32 %v6963, %v7202
    %v7292 = vmul.f32 %v6965, %v7206
    %v7293 = vmul.f32 %v6967, %v7210
    %v7294 = vmul.f32 %v6969, %v7214
    %v7295 = vmul.f32 %v6971, %v7218
    %v7296 = vmul.f32 %v6973, %v7222
    %v7297 = vmul.f32 %v6975, %v7226
    %v7298 = vmul.f32 %v6977, %v7230
    %v7299 = vmul.f32 %v6979, %v7234
    %v7300 = vadd.f32 %v6276, %v7236
    %v7301 = vadd.f32 %v6277, %v7237
    %v7302 = vadd.f32 %v6278, %v7238
    %v7303 = vadd.f32 %v6279, %v7239
    %v7304 = vadd.f32 %v6280, %v7240
    %v7305 = vadd.f32 %v6281, %v7241
    %v7306 = vadd.f32 %v6282, %v7242
    %v7307 = vadd.f32 %v6283, %v7243
    %v7308 = vadd.f32 %v6284, %v7244
    %v7309 = vadd.f32 %v6285, %v7245
    %v7310 = vadd.f32 %v6286, %v7246
    %v7311 = vadd.f32 %v6287, %v7247
    %v7312 = vadd.f32 %v6288, %v7248
    %v7313 = vadd.f32 %v6289, %v7249
    %v7314 = vadd.f32 %v6290, %v7250
    %v7315 = vadd.f32 %v6291, %v7251
    %v7316 = vadd.f32 %v6292, %v7252
    %v7317 = vadd.f32 %v6293, %v7253
    %v7318 = vadd.f32 %v6294, %v7254
    %v7319 = vadd.f32 %v6295, %v7255
    %v7320 = vadd.f32 %v6296, %v7256
    %v7321 = vadd.f32 %v6297, %v7257
    %v7322 = vadd.f32 %v6298, %v7258
    %v7323 = vadd.f32 %v6299, %v7259
    %v7324 = vadd.f32 %v6300, %v7260
    %v7325 = vadd.f32 %v6301, %v7261
    %v7326 = vadd.f32 %v6302, %v7262
    %v7327 = vadd.f32 %v6303, %v7263
    %v7328 = vadd.f32 %v6304, %v7264
    %v7329 = vadd.f32 %v6305, %v7265
    %v7330 = vadd.f32 %v6306, %v7266
    %v7331 = vadd.f32 %v6307, %v7267
    %v7332 = vadd.f32 %v6308, %v7268
    %v7333 = vadd.f32 %v6309, %v7269
    %v7334 = vadd.f32 %v6310, %v7270
    %v7335 = vadd.f32 %v6311, %v7271
    %v7336 = vadd.f32 %v6312, %v7272
    %v7337 = vadd.f32 %v6313, %v7273
    %v7338 = vadd.f32 %v6314, %v7274
    %v7339 = vadd.f32 %v6315, %v7275
    %v7340 = vadd.f32 %v6316, %v7276
    %v7341 = vadd.f32 %v6317, %v7277
    %v7342 = vadd.f32 %v6318, %v7278
    %v7343 = vadd.f32 %v6319, %v7279
    %v7344 = vadd.f32 %v6320, %v7280
    %v7345 = vadd.f32 %v6321, %v7281
    %v7346 = vadd.f32 %v6322, %v7282
    %v7347 = vadd.f32 %v6323, %v7283
    %v7348 = vadd.f32 %v6324, %v7284
    %v7349 = vadd.f32 %v6325, %v7285
    %v7350 = vadd.f32 %v6326, %v7286
    %v7351 = vadd.f32 %v6327, %v7287
    %v7352 = vadd.f32 %v6328, %v7288
    %v7353 = vadd.f32 %v6329, %v7289
    %v7354 = vadd.f32 %v6330, %v7290
    %v7355 = vadd.f32 %v6331, %v7291
    %v7356 = vadd.f32 %v6332, %v7292
    %v7357 = vadd.f32 %v6333, %v7293
    %v7358 = vadd.f32 %v6334, %v7294
    %v7359 = vadd.f32 %v6335, %v7295
    %v7360 = vadd.f32 %v6336, %v7296
    %v7361 = vadd.f32 %v6337, %v7297
    %v7362 = vadd.f32 %v6338, %v7298
    %v7363 = vadd.f32 %v6339, %v7299
    %7364 = vrot.lane.b32.xlu0 %v3396, 120
    %v7365 = vpop.permute.xlu0 %7364
    %7366 = vrot.lane.b32.xlu0 %v3397, 120
    %v7367 = vpop.permute.xlu0 %7366
    %7368 = vrot.lane.b32.xlu0 %v3398, 120
    %v7369 = vpop.permute.xlu0 %7368
    %7370 = vrot.lane.b32.xlu0 %v3399, 120
    %v7371 = vpop.permute.xlu0 %7370
    %7372 = vrot.lane.b32.xlu0 %v3400, 120
    %v7373 = vpop.permute.xlu0 %7372
    %7374 = vrot.lane.b32.xlu0 %v3401, 120
    %v7375 = vpop.permute.xlu0 %7374
    %7376 = vrot.lane.b32.xlu0 %v3402, 120
    %v7377 = vpop.permute.xlu0 %7376
    %7378 = vrot.lane.b32.xlu0 %v3403, 120
    %v7379 = vpop.permute.xlu0 %7378
    %7380 = vrot.lane.b32.xlu0 %v3404, 120
    %v7381 = vpop.permute.xlu0 %7380
    %7382 = vrot.lane.b32.xlu0 %v3405, 120
    %v7383 = vpop.permute.xlu0 %7382
    %7384 = vrot.lane.b32.xlu0 %v3406, 120
    %v7385 = vpop.permute.xlu0 %7384
    %7386 = vrot.lane.b32.xlu0 %v3407, 120
    %v7387 = vpop.permute.xlu0 %7386
    %7388 = vrot.lane.b32.xlu0 %v3408, 120
    %v7389 = vpop.permute.xlu0 %7388
    %7390 = vrot.lane.b32.xlu0 %v3409, 120
    %v7391 = vpop.permute.xlu0 %7390
    %7392 = vrot.lane.b32.xlu0 %v3410, 120
    %v7393 = vpop.permute.xlu0 %7392
    %7394 = vrot.lane.b32.xlu0 %v3411, 120
    %v7395 = vpop.permute.xlu0 %7394
    %7396 = vrot.lane.b32.xlu0 %v3412, 120
    %v7397 = vpop.permute.xlu0 %7396
    %7398 = vrot.lane.b32.xlu0 %v3413, 120
    %v7399 = vpop.permute.xlu0 %7398
    %7400 = vrot.lane.b32.xlu0 %v3414, 120
    %v7401 = vpop.permute.xlu0 %7400
    %7402 = vrot.lane.b32.xlu0 %v3415, 120
    %v7403 = vpop.permute.xlu0 %7402
    %7404 = vrot.lane.b32.xlu0 %v3416, 120
    %v7405 = vpop.permute.xlu0 %7404
    %7406 = vrot.lane.b32.xlu0 %v3417, 120
    %v7407 = vpop.permute.xlu0 %7406
    %7408 = vrot.lane.b32.xlu0 %v3418, 120
    %v7409 = vpop.permute.xlu0 %7408
    %7410 = vrot.lane.b32.xlu0 %v3419, 120
    %v7411 = vpop.permute.xlu0 %7410
    %7412 = vrot.lane.b32.xlu0 %v3420, 120
    %v7413 = vpop.permute.xlu0 %7412
    %7414 = vrot.lane.b32.xlu0 %v3421, 120
    %v7415 = vpop.permute.xlu0 %7414
    %7416 = vrot.lane.b32.xlu0 %v3422, 120
    %v7417 = vpop.permute.xlu0 %7416
    %7418 = vrot.lane.b32.xlu0 %v3423, 120
    %v7419 = vpop.permute.xlu0 %7418
    %7420 = vrot.lane.b32.xlu0 %v3424, 120
    %v7421 = vpop.permute.xlu0 %7420
    %7422 = vrot.lane.b32.xlu0 %v3425, 120
    %v7423 = vpop.permute.xlu0 %7422
    %7424 = vrot.lane.b32.xlu0 %v3426, 120
    %v7425 = vpop.permute.xlu0 %7424
    %7426 = vrot.lane.b32.xlu0 %v3427, 120
    %v7427 = vpop.permute.xlu0 %7426
    %7428 = vrot.lane.b32.xlu0 %v3428, 120
    %v7429 = vpop.permute.xlu0 %7428
    %7430 = vrot.lane.b32.xlu0 %v3429, 120
    %v7431 = vpop.permute.xlu0 %7430
    %7432 = vrot.lane.b32.xlu0 %v3430, 120
    %v7433 = vpop.permute.xlu0 %7432
    %7434 = vrot.lane.b32.xlu0 %v3431, 120
    %v7435 = vpop.permute.xlu0 %7434
    %7436 = vrot.lane.b32.xlu0 %v3432, 120
    %v7437 = vpop.permute.xlu0 %7436
    %7438 = vrot.lane.b32.xlu0 %v3433, 120
    %v7439 = vpop.permute.xlu0 %7438
    %7440 = vrot.lane.b32.xlu0 %v3434, 120
    %v7441 = vpop.permute.xlu0 %7440
    %7442 = vrot.lane.b32.xlu0 %v3435, 120
    %v7443 = vpop.permute.xlu0 %7442
    %7444 = vrot.lane.b32.xlu0 %v3436, 120
    %v7445 = vpop.permute.xlu0 %7444
    %7446 = vrot.lane.b32.xlu0 %v3437, 120
    %v7447 = vpop.permute.xlu0 %7446
    %7448 = vrot.lane.b32.xlu0 %v3438, 120
    %v7449 = vpop.permute.xlu0 %7448
    %7450 = vrot.lane.b32.xlu0 %v3439, 120
    %v7451 = vpop.permute.xlu0 %7450
    %7452 = vrot.lane.b32.xlu0 %v3440, 120
    %v7453 = vpop.permute.xlu0 %7452
    %7454 = vrot.lane.b32.xlu0 %v3441, 120
    %v7455 = vpop.permute.xlu0 %7454
    %7456 = vrot.lane.b32.xlu0 %v3442, 120
    %v7457 = vpop.permute.xlu0 %7456
    %7458 = vrot.lane.b32.xlu0 %v3443, 120
    %v7459 = vpop.permute.xlu0 %7458
    %7460 = vrot.lane.b32.xlu0 %v3444, 120
    %v7461 = vpop.permute.xlu0 %7460
    %7462 = vrot.lane.b32.xlu0 %v3445, 120
    %v7463 = vpop.permute.xlu0 %7462
    %7464 = vrot.lane.b32.xlu0 %v3446, 120
    %v7465 = vpop.permute.xlu0 %7464
    %7466 = vrot.lane.b32.xlu0 %v3447, 120
    %v7467 = vpop.permute.xlu0 %7466
    %7468 = vrot.lane.b32.xlu0 %v3448, 120
    %v7469 = vpop.permute.xlu0 %7468
    %7470 = vrot.lane.b32.xlu0 %v3449, 120
    %v7471 = vpop.permute.xlu0 %7470
    %7472 = vrot.lane.b32.xlu0 %v3450, 120
    %v7473 = vpop.permute.xlu0 %7472
    %7474 = vrot.lane.b32.xlu0 %v3451, 120
    %v7475 = vpop.permute.xlu0 %7474
    %7476 = vrot.lane.b32.xlu0 %v3452, 120
    %v7477 = vpop.permute.xlu0 %7476
    %7478 = vrot.lane.b32.xlu0 %v3453, 120
    %v7479 = vpop.permute.xlu0 %7478
    %7480 = vrot.lane.b32.xlu0 %v3454, 120
    %v7481 = vpop.permute.xlu0 %7480
    %7482 = vrot.lane.b32.xlu0 %v3455, 120
    %v7483 = vpop.permute.xlu0 %7482
    %7484 = vrot.lane.b32.xlu0 %v3456, 120
    %v7485 = vpop.permute.xlu0 %7484
    %7486 = vrot.lane.b32.xlu0 %v3457, 120
    %v7487 = vpop.permute.xlu0 %7486
    %7488 = vrot.lane.b32.xlu0 %v3458, 120
    %v7489 = vpop.permute.xlu0 %7488
    %7490 = vrot.lane.b32.xlu0 %v3459, 120
    %v7491 = vpop.permute.xlu0 %7490
    %7492 = vset.pattern.permute.xlu0 8
    %7493 = vperm.xlu0 %7492, %v66
    %v7494 = vpop.permute.xlu0 %7493
    %7496 = vset.pattern.permute.xlu0 8
    %7497 = vperm.xlu0 %7496, %v67
    %v7498 = vpop.permute.xlu0 %7497
    %7500 = vset.pattern.permute.xlu0 8
    %7501 = vperm.xlu0 %7500, %v68
    %v7502 = vpop.permute.xlu0 %7501
    %7504 = vset.pattern.permute.xlu0 8
    %7505 = vperm.xlu0 %7504, %v69
    %v7506 = vpop.permute.xlu0 %7505
    %7508 = vset.pattern.permute.xlu0 8
    %7509 = vperm.xlu0 %7508, %v70
    %v7510 = vpop.permute.xlu0 %7509
    %7512 = vset.pattern.permute.xlu0 8
    %7513 = vperm.xlu0 %7512, %v71
    %v7514 = vpop.permute.xlu0 %7513
    %7516 = vset.pattern.permute.xlu0 8
    %7517 = vperm.xlu0 %7516, %v72
    %v7518 = vpop.permute.xlu0 %7517
    %7520 = vset.pattern.permute.xlu0 8
    %7521 = vperm.xlu0 %7520, %v73
    %v7522 = vpop.permute.xlu0 %7521
    %7524 = vset.pattern.permute.xlu0 8
    %7525 = vperm.xlu0 %7524, %v74
    %v7526 = vpop.permute.xlu0 %7525
    %7528 = vset.pattern.permute.xlu0 8
    %7529 = vperm.xlu0 %7528, %v75
    %v7530 = vpop.permute.xlu0 %7529
    %7532 = vset.pattern.permute.xlu0 8
    %7533 = vperm.xlu0 %7532, %v76
    %v7534 = vpop.permute.xlu0 %7533
    %7536 = vset.pattern.permute.xlu0 8
    %7537 = vperm.xlu0 %7536, %v77
    %v7538 = vpop.permute.xlu0 %7537
    %7540 = vset.pattern.permute.xlu0 8
    %7541 = vperm.xlu0 %7540, %v78
    %v7542 = vpop.permute.xlu0 %7541
    %7544 = vset.pattern.permute.xlu0 8
    %7545 = vperm.xlu0 %7544, %v79
    %v7546 = vpop.permute.xlu0 %7545
    %7548 = vset.pattern.permute.xlu0 8
    %7549 = vperm.xlu0 %7548, %v80
    %v7550 = vpop.permute.xlu0 %7549
    %7552 = vset.pattern.permute.xlu0 8
    %7553 = vperm.xlu0 %7552, %v81
    %v7554 = vpop.permute.xlu0 %7553
    %7556 = vset.pattern.permute.xlu0 8
    %7557 = vperm.xlu0 %7556, %v82
    %v7558 = vpop.permute.xlu0 %7557
    %7560 = vset.pattern.permute.xlu0 8
    %7561 = vperm.xlu0 %7560, %v83
    %v7562 = vpop.permute.xlu0 %7561
    %7564 = vset.pattern.permute.xlu0 8
    %7565 = vperm.xlu0 %7564, %v84
    %v7566 = vpop.permute.xlu0 %7565
    %7568 = vset.pattern.permute.xlu0 8
    %7569 = vperm.xlu0 %7568, %v85
    %v7570 = vpop.permute.xlu0 %7569
    %7572 = vset.pattern.permute.xlu0 8
    %7573 = vperm.xlu0 %7572, %v86
    %v7574 = vpop.permute.xlu0 %7573
    %7576 = vset.pattern.permute.xlu0 8
    %7577 = vperm.xlu0 %7576, %v87
    %v7578 = vpop.permute.xlu0 %7577
    %7580 = vset.pattern.permute.xlu0 8
    %7581 = vperm.xlu0 %7580, %v88
    %v7582 = vpop.permute.xlu0 %7581
    %7584 = vset.pattern.permute.xlu0 8
    %7585 = vperm.xlu0 %7584, %v89
    %v7586 = vpop.permute.xlu0 %7585
    %7588 = vset.pattern.permute.xlu0 8
    %7589 = vperm.xlu0 %7588, %v90
    %v7590 = vpop.permute.xlu0 %7589
    %7592 = vset.pattern.permute.xlu0 8
    %7593 = vperm.xlu0 %7592, %v91
    %v7594 = vpop.permute.xlu0 %7593
    %7596 = vset.pattern.permute.xlu0 8
    %7597 = vperm.xlu0 %7596, %v92
    %v7598 = vpop.permute.xlu0 %7597
    %7600 = vset.pattern.permute.xlu0 8
    %7601 = vperm.xlu0 %7600, %v93
    %v7602 = vpop.permute.xlu0 %7601
    %7604 = vset.pattern.permute.xlu0 8
    %7605 = vperm.xlu0 %7604, %v94
    %v7606 = vpop.permute.xlu0 %7605
    %7608 = vset.pattern.permute.xlu0 8
    %7609 = vperm.xlu0 %7608, %v95
    %v7610 = vpop.permute.xlu0 %7609
    %7612 = vset.pattern.permute.xlu0 8
    %7613 = vperm.xlu0 %7612, %v96
    %v7614 = vpop.permute.xlu0 %7613
    %7616 = vset.pattern.permute.xlu0 8
    %7617 = vperm.xlu0 %7616, %v97
    %v7618 = vpop.permute.xlu0 %7617
    %7620 = vset.pattern.permute.xlu0 8
    %7621 = vperm.xlu0 %7620, %v98
    %v7622 = vpop.permute.xlu0 %7621
    %7624 = vset.pattern.permute.xlu0 8
    %7625 = vperm.xlu0 %7624, %v99
    %v7626 = vpop.permute.xlu0 %7625
    %7628 = vset.pattern.permute.xlu0 8
    %7629 = vperm.xlu0 %7628, %v100
    %v7630 = vpop.permute.xlu0 %7629
    %7632 = vset.pattern.permute.xlu0 8
    %7633 = vperm.xlu0 %7632, %v101
    %v7634 = vpop.permute.xlu0 %7633
    %7636 = vset.pattern.permute.xlu0 8
    %7637 = vperm.xlu0 %7636, %v102
    %v7638 = vpop.permute.xlu0 %7637
    %7640 = vset.pattern.permute.xlu0 8
    %7641 = vperm.xlu0 %7640, %v103
    %v7642 = vpop.permute.xlu0 %7641
    %7644 = vset.pattern.permute.xlu0 8
    %7645 = vperm.xlu0 %7644, %v104
    %v7646 = vpop.permute.xlu0 %7645
    %7648 = vset.pattern.permute.xlu0 8
    %7649 = vperm.xlu0 %7648, %v105
    %v7650 = vpop.permute.xlu0 %7649
    %7652 = vset.pattern.permute.xlu0 8
    %7653 = vperm.xlu0 %7652, %v106
    %v7654 = vpop.permute.xlu0 %7653
    %7656 = vset.pattern.permute.xlu0 8
    %7657 = vperm.xlu0 %7656, %v107
    %v7658 = vpop.permute.xlu0 %7657
    %7660 = vset.pattern.permute.xlu0 8
    %7661 = vperm.xlu0 %7660, %v108
    %v7662 = vpop.permute.xlu0 %7661
    %7664 = vset.pattern.permute.xlu0 8
    %7665 = vperm.xlu0 %7664, %v109
    %v7666 = vpop.permute.xlu0 %7665
    %7668 = vset.pattern.permute.xlu0 8
    %7669 = vperm.xlu0 %7668, %v110
    %v7670 = vpop.permute.xlu0 %7669
    %7672 = vset.pattern.permute.xlu0 8
    %7673 = vperm.xlu0 %7672, %v111
    %v7674 = vpop.permute.xlu0 %7673
    %7676 = vset.pattern.permute.xlu0 8
    %7677 = vperm.xlu0 %7676, %v112
    %v7678 = vpop.permute.xlu0 %7677
    %7680 = vset.pattern.permute.xlu0 8
    %7681 = vperm.xlu0 %7680, %v113
    %v7682 = vpop.permute.xlu0 %7681
    %7684 = vset.pattern.permute.xlu0 8
    %7685 = vperm.xlu0 %7684, %v114
    %v7686 = vpop.permute.xlu0 %7685
    %7688 = vset.pattern.permute.xlu0 8
    %7689 = vperm.xlu0 %7688, %v115
    %v7690 = vpop.permute.xlu0 %7689
    %7692 = vset.pattern.permute.xlu0 8
    %7693 = vperm.xlu0 %7692, %v116
    %v7694 = vpop.permute.xlu0 %7693
    %7696 = vset.pattern.permute.xlu0 8
    %7697 = vperm.xlu0 %7696, %v117
    %v7698 = vpop.permute.xlu0 %7697
    %7700 = vset.pattern.permute.xlu0 8
    %7701 = vperm.xlu0 %7700, %v118
    %v7702 = vpop.permute.xlu0 %7701
    %7704 = vset.pattern.permute.xlu0 8
    %7705 = vperm.xlu0 %7704, %v119
    %v7706 = vpop.permute.xlu0 %7705
    %7708 = vset.pattern.permute.xlu0 8
    %7709 = vperm.xlu0 %7708, %v120
    %v7710 = vpop.permute.xlu0 %7709
    %7712 = vset.pattern.permute.xlu0 8
    %7713 = vperm.xlu0 %7712, %v121
    %v7714 = vpop.permute.xlu0 %7713
    %7716 = vset.pattern.permute.xlu0 8
    %7717 = vperm.xlu0 %7716, %v122
    %v7718 = vpop.permute.xlu0 %7717
    %7720 = vset.pattern.permute.xlu0 8
    %7721 = vperm.xlu0 %7720, %v123
    %v7722 = vpop.permute.xlu0 %7721
    %7724 = vset.pattern.permute.xlu0 8
    %7725 = vperm.xlu0 %7724, %v124
    %v7726 = vpop.permute.xlu0 %7725
    %7728 = vset.pattern.permute.xlu0 8
    %7729 = vperm.xlu0 %7728, %v125
    %v7730 = vpop.permute.xlu0 %7729
    %7732 = vset.pattern.permute.xlu0 8
    %7733 = vperm.xlu0 %7732, %v126
    %v7734 = vpop.permute.xlu0 %7733
    %7736 = vset.pattern.permute.xlu0 8
    %7737 = vperm.xlu0 %7736, %v127
    %v7738 = vpop.permute.xlu0 %7737
    %7740 = vset.pattern.permute.xlu0 8
    %7741 = vperm.xlu0 %7740, %v128
    %v7742 = vpop.permute.xlu0 %7741
    %7744 = vset.pattern.permute.xlu0 8
    %7745 = vperm.xlu0 %7744, %v129
    %v7746 = vpop.permute.xlu0 %7745
    %v7748 = vmul.f32 %v7365, %v7494
    %v7749 = vmul.f32 %v7367, %v7498
    %v7750 = vmul.f32 %v7369, %v7502
    %v7751 = vmul.f32 %v7371, %v7506
    %v7752 = vmul.f32 %v7373, %v7510
    %v7753 = vmul.f32 %v7375, %v7514
    %v7754 = vmul.f32 %v7377, %v7518
    %v7755 = vmul.f32 %v7379, %v7522
    %v7756 = vmul.f32 %v7381, %v7526
    %v7757 = vmul.f32 %v7383, %v7530
    %v7758 = vmul.f32 %v7385, %v7534
    %v7759 = vmul.f32 %v7387, %v7538
    %v7760 = vmul.f32 %v7389, %v7542
    %v7761 = vmul.f32 %v7391, %v7546
    %v7762 = vmul.f32 %v7393, %v7550
    %v7763 = vmul.f32 %v7395, %v7554
    %v7764 = vmul.f32 %v7397, %v7558
    %v7765 = vmul.f32 %v7399, %v7562
    %v7766 = vmul.f32 %v7401, %v7566
    %v7767 = vmul.f32 %v7403, %v7570
    %v7768 = vmul.f32 %v7405, %v7574
    %v7769 = vmul.f32 %v7407, %v7578
    %v7770 = vmul.f32 %v7409, %v7582
    %v7771 = vmul.f32 %v7411, %v7586
    %v7772 = vmul.f32 %v7413, %v7590
    %v7773 = vmul.f32 %v7415, %v7594
    %v7774 = vmul.f32 %v7417, %v7598
    %v7775 = vmul.f32 %v7419, %v7602
    %v7776 = vmul.f32 %v7421, %v7606
    %v7777 = vmul.f32 %v7423, %v7610
    %v7778 = vmul.f32 %v7425, %v7614
    %v7779 = vmul.f32 %v7427, %v7618
    %v7780 = vmul.f32 %v7429, %v7622
    %v7781 = vmul.f32 %v7431, %v7626
    %v7782 = vmul.f32 %v7433, %v7630
    %v7783 = vmul.f32 %v7435, %v7634
    %v7784 = vmul.f32 %v7437, %v7638
    %v7785 = vmul.f32 %v7439, %v7642
    %v7786 = vmul.f32 %v7441, %v7646
    %v7787 = vmul.f32 %v7443, %v7650
    %v7788 = vmul.f32 %v7445, %v7654
    %v7789 = vmul.f32 %v7447, %v7658
    %v7790 = vmul.f32 %v7449, %v7662
    %v7791 = vmul.f32 %v7451, %v7666
    %v7792 = vmul.f32 %v7453, %v7670
    %v7793 = vmul.f32 %v7455, %v7674
    %v7794 = vmul.f32 %v7457, %v7678
    %v7795 = vmul.f32 %v7459, %v7682
    %v7796 = vmul.f32 %v7461, %v7686
    %v7797 = vmul.f32 %v7463, %v7690
    %v7798 = vmul.f32 %v7465, %v7694
    %v7799 = vmul.f32 %v7467, %v7698
    %v7800 = vmul.f32 %v7469, %v7702
    %v7801 = vmul.f32 %v7471, %v7706
    %v7802 = vmul.f32 %v7473, %v7710
    %v7803 = vmul.f32 %v7475, %v7714
    %v7804 = vmul.f32 %v7477, %v7718
    %v7805 = vmul.f32 %v7479, %v7722
    %v7806 = vmul.f32 %v7481, %v7726
    %v7807 = vmul.f32 %v7483, %v7730
    %v7808 = vmul.f32 %v7485, %v7734
    %v7809 = vmul.f32 %v7487, %v7738
    %v7810 = vmul.f32 %v7489, %v7742
    %v7811 = vmul.f32 %v7491, %v7746
    %v7812 = vadd.f32 %v6788, %v7748
    %v7813 = vadd.f32 %v6789, %v7749
    %v7814 = vadd.f32 %v6790, %v7750
    %v7815 = vadd.f32 %v6791, %v7751
    %v7816 = vadd.f32 %v6792, %v7752
    %v7817 = vadd.f32 %v6793, %v7753
    %v7818 = vadd.f32 %v6794, %v7754
    %v7819 = vadd.f32 %v6795, %v7755
    %v7820 = vadd.f32 %v6796, %v7756
    %v7821 = vadd.f32 %v6797, %v7757
    %v7822 = vadd.f32 %v6798, %v7758
    %v7823 = vadd.f32 %v6799, %v7759
    %v7824 = vadd.f32 %v6800, %v7760
    %v7825 = vadd.f32 %v6801, %v7761
    %v7826 = vadd.f32 %v6802, %v7762
    %v7827 = vadd.f32 %v6803, %v7763
    %v7828 = vadd.f32 %v6804, %v7764
    %v7829 = vadd.f32 %v6805, %v7765
    %v7830 = vadd.f32 %v6806, %v7766
    %v7831 = vadd.f32 %v6807, %v7767
    %v7832 = vadd.f32 %v6808, %v7768
    %v7833 = vadd.f32 %v6809, %v7769
    %v7834 = vadd.f32 %v6810, %v7770
    %v7835 = vadd.f32 %v6811, %v7771
    %v7836 = vadd.f32 %v6812, %v7772
    %v7837 = vadd.f32 %v6813, %v7773
    %v7838 = vadd.f32 %v6814, %v7774
    %v7839 = vadd.f32 %v6815, %v7775
    %v7840 = vadd.f32 %v6816, %v7776
    %v7841 = vadd.f32 %v6817, %v7777
    %v7842 = vadd.f32 %v6818, %v7778
    %v7843 = vadd.f32 %v6819, %v7779
    %v7844 = vadd.f32 %v6820, %v7780
    %v7845 = vadd.f32 %v6821, %v7781
    %v7846 = vadd.f32 %v6822, %v7782
    %v7847 = vadd.f32 %v6823, %v7783
    %v7848 = vadd.f32 %v6824, %v7784
    %v7849 = vadd.f32 %v6825, %v7785
    %v7850 = vadd.f32 %v6826, %v7786
    %v7851 = vadd.f32 %v6827, %v7787
    %v7852 = vadd.f32 %v6828, %v7788
    %v7853 = vadd.f32 %v6829, %v7789
    %v7854 = vadd.f32 %v6830, %v7790
    %v7855 = vadd.f32 %v6831, %v7791
    %v7856 = vadd.f32 %v6832, %v7792
    %v7857 = vadd.f32 %v6833, %v7793
    %v7858 = vadd.f32 %v6834, %v7794
    %v7859 = vadd.f32 %v6835, %v7795
    %v7860 = vadd.f32 %v6836, %v7796
    %v7861 = vadd.f32 %v6837, %v7797
    %v7862 = vadd.f32 %v6838, %v7798
    %v7863 = vadd.f32 %v6839, %v7799
    %v7864 = vadd.f32 %v6840, %v7800
    %v7865 = vadd.f32 %v6841, %v7801
    %v7866 = vadd.f32 %v6842, %v7802
    %v7867 = vadd.f32 %v6843, %v7803
    %v7868 = vadd.f32 %v6844, %v7804
    %v7869 = vadd.f32 %v6845, %v7805
    %v7870 = vadd.f32 %v6846, %v7806
    %v7871 = vadd.f32 %v6847, %v7807
    %v7872 = vadd.f32 %v6848, %v7808
    %v7873 = vadd.f32 %v6849, %v7809
    %v7874 = vadd.f32 %v6850, %v7810
    %v7875 = vadd.f32 %v6851, %v7811
    %v7876 = vadd.f32 %v7812, %v7300
    %v7877 = vadd.f32 %v7813, %v7301
    %v7878 = vadd.f32 %v7814, %v7302
    %v7879 = vadd.f32 %v7815, %v7303
    %v7880 = vadd.f32 %v7816, %v7304
    %v7881 = vadd.f32 %v7817, %v7305
    %v7882 = vadd.f32 %v7818, %v7306
    %v7883 = vadd.f32 %v7819, %v7307
    %v7884 = vadd.f32 %v7820, %v7308
    %v7885 = vadd.f32 %v7821, %v7309
    %v7886 = vadd.f32 %v7822, %v7310
    %v7887 = vadd.f32 %v7823, %v7311
    %v7888 = vadd.f32 %v7824, %v7312
    %v7889 = vadd.f32 %v7825, %v7313
    %v7890 = vadd.f32 %v7826, %v7314
    %v7891 = vadd.f32 %v7827, %v7315
    %v7892 = vadd.f32 %v7828, %v7316
    %v7893 = vadd.f32 %v7829, %v7317
    %v7894 = vadd.f32 %v7830, %v7318
    %v7895 = vadd.f32 %v7831, %v7319
    %v7896 = vadd.f32 %v7832, %v7320
    %v7897 = vadd.f32 %v7833, %v7321
    %v7898 = vadd.f32 %v7834, %v7322
    %v7899 = vadd.f32 %v7835, %v7323
    %v7900 = vadd.f32 %v7836, %v7324
    %v7901 = vadd.f32 %v7837, %v7325
    %v7902 = vadd.f32 %v7838, %v7326
    %v7903 = vadd.f32 %v7839, %v7327
    %v7904 = vadd.f32 %v7840, %v7328
    %v7905 = vadd.f32 %v7841, %v7329
    %v7906 = vadd.f32 %v7842, %v7330
    %v7907 = vadd.f32 %v7843, %v7331
    %v7908 = vadd.f32 %v7844, %v7332
    %v7909 = vadd.f32 %v7845, %v7333
    %v7910 = vadd.f32 %v7846, %v7334
    %v7911 = vadd.f32 %v7847, %v7335
    %v7912 = vadd.f32 %v7848, %v7336
    %v7913 = vadd.f32 %v7849, %v7337
    %v7914 = vadd.f32 %v7850, %v7338
    %v7915 = vadd.f32 %v7851, %v7339
    %v7916 = vadd.f32 %v7852, %v7340
    %v7917 = vadd.f32 %v7853, %v7341
    %v7918 = vadd.f32 %v7854, %v7342
    %v7919 = vadd.f32 %v7855, %v7343
    %v7920 = vadd.f32 %v7856, %v7344
    %v7921 = vadd.f32 %v7857, %v7345
    %v7922 = vadd.f32 %v7858, %v7346
    %v7923 = vadd.f32 %v7859, %v7347
    %v7924 = vadd.f32 %v7860, %v7348
    %v7925 = vadd.f32 %v7861, %v7349
    %v7926 = vadd.f32 %v7862, %v7350
    %v7927 = vadd.f32 %v7863, %v7351
    %v7928 = vadd.f32 %v7864, %v7352
    %v7929 = vadd.f32 %v7865, %v7353
    %v7930 = vadd.f32 %v7866, %v7354
    %v7931 = vadd.f32 %v7867, %v7355
    %v7932 = vadd.f32 %v7868, %v7356
    %v7933 = vadd.f32 %v7869, %v7357
    %v7934 = vadd.f32 %v7870, %v7358
    %v7935 = vadd.f32 %v7871, %v7359
    %v7936 = vadd.f32 %v7872, %v7360
    %v7937 = vadd.f32 %v7873, %v7361
    %v7938 = vadd.f32 %v7874, %v7362
    %v7939 = vadd.f32 %v7875, %v7363
    %v7940 = vmul.f32 %v7876, %v59
    %v7941 = vmul.f32 %v7877, %v59
    %v7942 = vmul.f32 %v7878, %v59
    %v7943 = vmul.f32 %v7879, %v59
    %v7944 = vmul.f32 %v7880, %v59
    %v7945 = vmul.f32 %v7881, %v59
    %v7946 = vmul.f32 %v7882, %v59
    %v7947 = vmul.f32 %v7883, %v59
    %v7948 = vmul.f32 %v7884, %v59
    %v7949 = vmul.f32 %v7885, %v59
    %v7950 = vmul.f32 %v7886, %v59
    %v7951 = vmul.f32 %v7887, %v59
    %v7952 = vmul.f32 %v7888, %v59
    %v7953 = vmul.f32 %v7889, %v59
    %v7954 = vmul.f32 %v7890, %v59
    %v7955 = vmul.f32 %v7891, %v59
    %v7956 = vmul.f32 %v7892, %v59
    %v7957 = vmul.f32 %v7893, %v59
    %v7958 = vmul.f32 %v7894, %v59
    %v7959 = vmul.f32 %v7895, %v59
    %v7960 = vmul.f32 %v7896, %v59
    %v7961 = vmul.f32 %v7897, %v59
    %v7962 = vmul.f32 %v7898, %v59
    %v7963 = vmul.f32 %v7899, %v59
    %v7964 = vmul.f32 %v7900, %v59
    %v7965 = vmul.f32 %v7901, %v59
    %v7966 = vmul.f32 %v7902, %v59
    %v7967 = vmul.f32 %v7903, %v59
    %v7968 = vmul.f32 %v7904, %v59
    %v7969 = vmul.f32 %v7905, %v59
    %v7970 = vmul.f32 %v7906, %v59
    %v7971 = vmul.f32 %v7907, %v59
    %v7972 = vmul.f32 %v7908, %v59
    %v7973 = vmul.f32 %v7909, %v59
    %v7974 = vmul.f32 %v7910, %v59
    %v7975 = vmul.f32 %v7911, %v59
    %v7976 = vmul.f32 %v7912, %v59
    %v7977 = vmul.f32 %v7913, %v59
    %v7978 = vmul.f32 %v7914, %v59
    %v7979 = vmul.f32 %v7915, %v59
    %v7980 = vmul.f32 %v7916, %v59
    %v7981 = vmul.f32 %v7917, %v59
    %v7982 = vmul.f32 %v7918, %v59
    %v7983 = vmul.f32 %v7919, %v59
    %v7984 = vmul.f32 %v7920, %v59
    %v7985 = vmul.f32 %v7921, %v59
    %v7986 = vmul.f32 %v7922, %v59
    %v7987 = vmul.f32 %v7923, %v59
    %v7988 = vmul.f32 %v7924, %v59
    %v7989 = vmul.f32 %v7925, %v59
    %v7990 = vmul.f32 %v7926, %v59
    %v7991 = vmul.f32 %v7927, %v59
    %v7992 = vmul.f32 %v7928, %v59
    %v7993 = vmul.f32 %v7929, %v59
    %v7994 = vmul.f32 %v7930, %v59
    %v7995 = vmul.f32 %v7931, %v59
    %v7996 = vmul.f32 %v7932, %v59
    %v7997 = vmul.f32 %v7933, %v59
    %v7998 = vmul.f32 %v7934, %v59
    %v7999 = vmul.f32 %v7935, %v59
    %v8000 = vmul.f32 %v7936, %v59
    %v8001 = vmul.f32 %v7937, %v59
    %v8002 = vmul.f32 %v7938, %v59
    %v8003 = vmul.f32 %v7939, %v59
    %8004 = vadd.xlane.f32.xlu0 %v7940
    %v8005 = vpop.xlane.xlu0 %8004
    %8006 = vadd.xlane.f32.xlu0 %v7941
    %v8007 = vpop.xlane.xlu0 %8006
    %8008 = vadd.xlane.f32.xlu0 %v7942
    %v8009 = vpop.xlane.xlu0 %8008
    %8010 = vadd.xlane.f32.xlu0 %v7943
    %v8011 = vpop.xlane.xlu0 %8010
    %8012 = vadd.xlane.f32.xlu0 %v7944
    %v8013 = vpop.xlane.xlu0 %8012
    %8014 = vadd.xlane.f32.xlu0 %v7945
    %v8015 = vpop.xlane.xlu0 %8014
    %8016 = vadd.xlane.f32.xlu0 %v7946
    %v8017 = vpop.xlane.xlu0 %8016
    %8018 = vadd.xlane.f32.xlu0 %v7947
    %v8019 = vpop.xlane.xlu0 %8018
    %8020 = vadd.xlane.f32.xlu0 %v7948
    %v8021 = vpop.xlane.xlu0 %8020
    %8022 = vadd.xlane.f32.xlu0 %v7949
    %v8023 = vpop.xlane.xlu0 %8022
    %8024 = vadd.xlane.f32.xlu0 %v7950
    %v8025 = vpop.xlane.xlu0 %8024
    %8026 = vadd.xlane.f32.xlu0 %v7951
    %v8027 = vpop.xlane.xlu0 %8026
    %8028 = vadd.xlane.f32.xlu0 %v7952
    %v8029 = vpop.xlane.xlu0 %8028
    %8030 = vadd.xlane.f32.xlu0 %v7953
    %v8031 = vpop.xlane.xlu0 %8030
    %8032 = vadd.xlane.f32.xlu0 %v7954
    %v8033 = vpop.xlane.xlu0 %8032
    %8034 = vadd.xlane.f32.xlu0 %v7955
    %v8035 = vpop.xlane.xlu0 %8034
    %8036 = vadd.xlane.f32.xlu0 %v7956
    %v8037 = vpop.xlane.xlu0 %8036
    %8038 = vadd.xlane.f32.xlu0 %v7957
    %v8039 = vpop.xlane.xlu0 %8038
    %8040 = vadd.xlane.f32.xlu0 %v7958
    %v8041 = vpop.xlane.xlu0 %8040
    %8042 = vadd.xlane.f32.xlu0 %v7959
    %v8043 = vpop.xlane.xlu0 %8042
    %8044 = vadd.xlane.f32.xlu0 %v7960
    %v8045 = vpop.xlane.xlu0 %8044
    %8046 = vadd.xlane.f32.xlu0 %v7961
    %v8047 = vpop.xlane.xlu0 %8046
    %8048 = vadd.xlane.f32.xlu0 %v7962
    %v8049 = vpop.xlane.xlu0 %8048
    %8050 = vadd.xlane.f32.xlu0 %v7963
    %v8051 = vpop.xlane.xlu0 %8050
    %8052 = vadd.xlane.f32.xlu0 %v7964
    %v8053 = vpop.xlane.xlu0 %8052
    %8054 = vadd.xlane.f32.xlu0 %v7965
    %v8055 = vpop.xlane.xlu0 %8054
    %8056 = vadd.xlane.f32.xlu0 %v7966
    %v8057 = vpop.xlane.xlu0 %8056
    %8058 = vadd.xlane.f32.xlu0 %v7967
    %v8059 = vpop.xlane.xlu0 %8058
    %8060 = vadd.xlane.f32.xlu0 %v7968
    %v8061 = vpop.xlane.xlu0 %8060
    %8062 = vadd.xlane.f32.xlu0 %v7969
    %v8063 = vpop.xlane.xlu0 %8062
    %8064 = vadd.xlane.f32.xlu0 %v7970
    %v8065 = vpop.xlane.xlu0 %8064
    %8066 = vadd.xlane.f32.xlu0 %v7971
    %v8067 = vpop.xlane.xlu0 %8066
    %8068 = vadd.xlane.f32.xlu0 %v7972
    %v8069 = vpop.xlane.xlu0 %8068
    %8070 = vadd.xlane.f32.xlu0 %v7973
    %v8071 = vpop.xlane.xlu0 %8070
    %8072 = vadd.xlane.f32.xlu0 %v7974
    %v8073 = vpop.xlane.xlu0 %8072
    %8074 = vadd.xlane.f32.xlu0 %v7975
    %v8075 = vpop.xlane.xlu0 %8074
    %8076 = vadd.xlane.f32.xlu0 %v7976
    %v8077 = vpop.xlane.xlu0 %8076
    %8078 = vadd.xlane.f32.xlu0 %v7977
    %v8079 = vpop.xlane.xlu0 %8078
    %8080 = vadd.xlane.f32.xlu0 %v7978
    %v8081 = vpop.xlane.xlu0 %8080
    %8082 = vadd.xlane.f32.xlu0 %v7979
    %v8083 = vpop.xlane.xlu0 %8082
    %8084 = vadd.xlane.f32.xlu0 %v7980
    %v8085 = vpop.xlane.xlu0 %8084
    %8086 = vadd.xlane.f32.xlu0 %v7981
    %v8087 = vpop.xlane.xlu0 %8086
    %8088 = vadd.xlane.f32.xlu0 %v7982
    %v8089 = vpop.xlane.xlu0 %8088
    %8090 = vadd.xlane.f32.xlu0 %v7983
    %v8091 = vpop.xlane.xlu0 %8090
    %8092 = vadd.xlane.f32.xlu0 %v7984
    %v8093 = vpop.xlane.xlu0 %8092
    %8094 = vadd.xlane.f32.xlu0 %v7985
    %v8095 = vpop.xlane.xlu0 %8094
    %8096 = vadd.xlane.f32.xlu0 %v7986
    %v8097 = vpop.xlane.xlu0 %8096
    %8098 = vadd.xlane.f32.xlu0 %v7987
    %v8099 = vpop.xlane.xlu0 %8098
    %8100 = vadd.xlane.f32.xlu0 %v7988
    %v8101 = vpop.xlane.xlu0 %8100
    %8102 = vadd.xlane.f32.xlu0 %v7989
    %v8103 = vpop.xlane.xlu0 %8102
    %8104 = vadd.xlane.f32.xlu0 %v7990
    %v8105 = vpop.xlane.xlu0 %8104
    %8106 = vadd.xlane.f32.xlu0 %v7991
    %v8107 = vpop.xlane.xlu0 %8106
    %8108 = vadd.xlane.f32.xlu0 %v7992
    %v8109 = vpop.xlane.xlu0 %8108
    %8110 = vadd.xlane.f32.xlu0 %v7993
    %v8111 = vpop.xlane.xlu0 %8110
    %8112 = vadd.xlane.f32.xlu0 %v7994
    %v8113 = vpop.xlane.xlu0 %8112
    %8114 = vadd.xlane.f32.xlu0 %v7995
    %v8115 = vpop.xlane.xlu0 %8114
    %8116 = vadd.xlane.f32.xlu0 %v7996
    %v8117 = vpop.xlane.xlu0 %8116
    %8118 = vadd.xlane.f32.xlu0 %v7997
    %v8119 = vpop.xlane.xlu0 %8118
    %8120 = vadd.xlane.f32.xlu0 %v7998
    %v8121 = vpop.xlane.xlu0 %8120
    %8122 = vadd.xlane.f32.xlu0 %v7999
    %v8123 = vpop.xlane.xlu0 %8122
    %8124 = vadd.xlane.f32.xlu0 %v8000
    %v8125 = vpop.xlane.xlu0 %8124
    %8126 = vadd.xlane.f32.xlu0 %v8001
    %v8127 = vpop.xlane.xlu0 %8126
    %8128 = vadd.xlane.f32.xlu0 %v8002
    %v8129 = vpop.xlane.xlu0 %8128
    %8130 = vadd.xlane.f32.xlu0 %v8003
    %v8131 = vpop.xlane.xlu0 %8130
    %v8132 = vmul.f32 %v8005, 0.020408163
    %v8133 = vmul.f32 %v8007, 0.020408163
    %v8134 = vmul.f32 %v8009, 0.020408163
    %v8135 = vmul.f32 %v8011, 0.020408163
    %v8136 = vmul.f32 %v8013, 0.020408163
    %v8137 = vmul.f32 %v8015, 0.020408163
    %v8138 = vmul.f32 %v8017, 0.020408163
    %v8139 = vmul.f32 %v8019, 0.020408163
    %v8140 = vmul.f32 %v8021, 0.020408163
    %v8141 = vmul.f32 %v8023, 0.020408163
    %v8142 = vmul.f32 %v8025, 0.020408163
    %v8143 = vmul.f32 %v8027, 0.020408163
    %v8144 = vmul.f32 %v8029, 0.020408163
    %v8145 = vmul.f32 %v8031, 0.020408163
    %v8146 = vmul.f32 %v8033, 0.020408163
    %v8147 = vmul.f32 %v8035, 0.020408163
    %v8148 = vmul.f32 %v8037, 0.020408163
    %v8149 = vmul.f32 %v8039, 0.020408163
    %v8150 = vmul.f32 %v8041, 0.020408163
    %v8151 = vmul.f32 %v8043, 0.020408163
    %v8152 = vmul.f32 %v8045, 0.020408163
    %v8153 = vmul.f32 %v8047, 0.020408163
    %v8154 = vmul.f32 %v8049, 0.020408163
    %v8155 = vmul.f32 %v8051, 0.020408163
    %v8156 = vmul.f32 %v8053, 0.020408163
    %v8157 = vmul.f32 %v8055, 0.020408163
    %v8158 = vmul.f32 %v8057, 0.020408163
    %v8159 = vmul.f32 %v8059, 0.020408163
    %v8160 = vmul.f32 %v8061, 0.020408163
    %v8161 = vmul.f32 %v8063, 0.020408163
    %v8162 = vmul.f32 %v8065, 0.020408163
    %v8163 = vmul.f32 %v8067, 0.020408163
    %v8164 = vmul.f32 %v8069, 0.020408163
    %v8165 = vmul.f32 %v8071, 0.020408163
    %v8166 = vmul.f32 %v8073, 0.020408163
    %v8167 = vmul.f32 %v8075, 0.020408163
    %v8168 = vmul.f32 %v8077, 0.020408163
    %v8169 = vmul.f32 %v8079, 0.020408163
    %v8170 = vmul.f32 %v8081, 0.020408163
    %v8171 = vmul.f32 %v8083, 0.020408163
    %v8172 = vmul.f32 %v8085, 0.020408163
    %v8173 = vmul.f32 %v8087, 0.020408163
    %v8174 = vmul.f32 %v8089, 0.020408163
    %v8175 = vmul.f32 %v8091, 0.020408163
    %v8176 = vmul.f32 %v8093, 0.020408163
    %v8177 = vmul.f32 %v8095, 0.020408163
    %v8178 = vmul.f32 %v8097, 0.020408163
    %v8179 = vmul.f32 %v8099, 0.020408163
    %v8180 = vmul.f32 %v8101, 0.020408163
    %v8181 = vmul.f32 %v8103, 0.020408163
    %v8182 = vmul.f32 %v8105, 0.020408163
    %v8183 = vmul.f32 %v8107, 0.020408163
    %v8184 = vmul.f32 %v8109, 0.020408163
    %v8185 = vmul.f32 %v8111, 0.020408163
    %v8186 = vmul.f32 %v8113, 0.020408163
    %v8187 = vmul.f32 %v8115, 0.020408163
    %v8188 = vmul.f32 %v8117, 0.020408163
    %v8189 = vmul.f32 %v8119, 0.020408163
    %v8190 = vmul.f32 %v8121, 0.020408163
    %v8191 = vmul.f32 %v8123, 0.020408163
    %v8192 = vmul.f32 %v8125, 0.020408163
    %v8193 = vmul.f32 %v8127, 0.020408163
    %v8194 = vmul.f32 %v8129, 0.020408163
    %v8195 = vmul.f32 %v8131, 0.020408163
    %v8196 = vsub.f32 %v7940, %v8132
    %v8197 = vsub.f32 %v7941, %v8133
    %v8198 = vsub.f32 %v7942, %v8134
    %v8199 = vsub.f32 %v7943, %v8135
    %v8200 = vsub.f32 %v7944, %v8136
    %v8201 = vsub.f32 %v7945, %v8137
    %v8202 = vsub.f32 %v7946, %v8138
    %v8203 = vsub.f32 %v7947, %v8139
    %v8204 = vsub.f32 %v7948, %v8140
    %v8205 = vsub.f32 %v7949, %v8141
    %v8206 = vsub.f32 %v7950, %v8142
    %v8207 = vsub.f32 %v7951, %v8143
    %v8208 = vsub.f32 %v7952, %v8144
    %v8209 = vsub.f32 %v7953, %v8145
    %v8210 = vsub.f32 %v7954, %v8146
    %v8211 = vsub.f32 %v7955, %v8147
    %v8212 = vsub.f32 %v7956, %v8148
    %v8213 = vsub.f32 %v7957, %v8149
    %v8214 = vsub.f32 %v7958, %v8150
    %v8215 = vsub.f32 %v7959, %v8151
    %v8216 = vsub.f32 %v7960, %v8152
    %v8217 = vsub.f32 %v7961, %v8153
    %v8218 = vsub.f32 %v7962, %v8154
    %v8219 = vsub.f32 %v7963, %v8155
    %v8220 = vsub.f32 %v7964, %v8156
    %v8221 = vsub.f32 %v7965, %v8157
    %v8222 = vsub.f32 %v7966, %v8158
    %v8223 = vsub.f32 %v7967, %v8159
    %v8224 = vsub.f32 %v7968, %v8160
    %v8225 = vsub.f32 %v7969, %v8161
    %v8226 = vsub.f32 %v7970, %v8162
    %v8227 = vsub.f32 %v7971, %v8163
    %v8228 = vsub.f32 %v7972, %v8164
    %v8229 = vsub.f32 %v7973, %v8165
    %v8230 = vsub.f32 %v7974, %v8166
    %v8231 = vsub.f32 %v7975, %v8167
    %v8232 = vsub.f32 %v7976, %v8168
    %v8233 = vsub.f32 %v7977, %v8169
    %v8234 = vsub.f32 %v7978, %v8170
    %v8235 = vsub.f32 %v7979, %v8171
    %v8236 = vsub.f32 %v7980, %v8172
    %v8237 = vsub.f32 %v7981, %v8173
    %v8238 = vsub.f32 %v7982, %v8174
    %v8239 = vsub.f32 %v7983, %v8175
    %v8240 = vsub.f32 %v7984, %v8176
    %v8241 = vsub.f32 %v7985, %v8177
    %v8242 = vsub.f32 %v7986, %v8178
    %v8243 = vsub.f32 %v7987, %v8179
    %v8244 = vsub.f32 %v7988, %v8180
    %v8245 = vsub.f32 %v7989, %v8181
    %v8246 = vsub.f32 %v7990, %v8182
    %v8247 = vsub.f32 %v7991, %v8183
    %v8248 = vsub.f32 %v7992, %v8184
    %v8249 = vsub.f32 %v7993, %v8185
    %v8250 = vsub.f32 %v7994, %v8186
    %v8251 = vsub.f32 %v7995, %v8187
    %v8252 = vsub.f32 %v7996, %v8188
    %v8253 = vsub.f32 %v7997, %v8189
    %v8254 = vsub.f32 %v7998, %v8190
    %v8255 = vsub.f32 %v7999, %v8191
    %v8256 = vsub.f32 %v8000, %v8192
    %v8257 = vsub.f32 %v8001, %v8193
    %v8258 = vsub.f32 %v8002, %v8194
    %v8259 = vsub.f32 %v8003, %v8195
    %v8260 = vmul.f32 %v8196, %v59
    %v8261 = vmul.f32 %v8197, %v59
    %v8262 = vmul.f32 %v8198, %v59
    %v8263 = vmul.f32 %v8199, %v59
    %v8264 = vmul.f32 %v8200, %v59
    %v8265 = vmul.f32 %v8201, %v59
    %v8266 = vmul.f32 %v8202, %v59
    %v8267 = vmul.f32 %v8203, %v59
    %v8268 = vmul.f32 %v8204, %v59
    %v8269 = vmul.f32 %v8205, %v59
    %v8270 = vmul.f32 %v8206, %v59
    %v8271 = vmul.f32 %v8207, %v59
    %v8272 = vmul.f32 %v8208, %v59
    %v8273 = vmul.f32 %v8209, %v59
    %v8274 = vmul.f32 %v8210, %v59
    %v8275 = vmul.f32 %v8211, %v59
    %v8276 = vmul.f32 %v8212, %v59
    %v8277 = vmul.f32 %v8213, %v59
    %v8278 = vmul.f32 %v8214, %v59
    %v8279 = vmul.f32 %v8215, %v59
    %v8280 = vmul.f32 %v8216, %v59
    %v8281 = vmul.f32 %v8217, %v59
    %v8282 = vmul.f32 %v8218, %v59
    %v8283 = vmul.f32 %v8219, %v59
    %v8284 = vmul.f32 %v8220, %v59
    %v8285 = vmul.f32 %v8221, %v59
    %v8286 = vmul.f32 %v8222, %v59
    %v8287 = vmul.f32 %v8223, %v59
    %v8288 = vmul.f32 %v8224, %v59
    %v8289 = vmul.f32 %v8225, %v59
    %v8290 = vmul.f32 %v8226, %v59
    %v8291 = vmul.f32 %v8227, %v59
    %v8292 = vmul.f32 %v8228, %v59
    %v8293 = vmul.f32 %v8229, %v59
    %v8294 = vmul.f32 %v8230, %v59
    %v8295 = vmul.f32 %v8231, %v59
    %v8296 = vmul.f32 %v8232, %v59
    %v8297 = vmul.f32 %v8233, %v59
    %v8298 = vmul.f32 %v8234, %v59
    %v8299 = vmul.f32 %v8235, %v59
    %v8300 = vmul.f32 %v8236, %v59
    %v8301 = vmul.f32 %v8237, %v59
    %v8302 = vmul.f32 %v8238, %v59
    %v8303 = vmul.f32 %v8239, %v59
    %v8304 = vmul.f32 %v8240, %v59
    %v8305 = vmul.f32 %v8241, %v59
    %v8306 = vmul.f32 %v8242, %v59
    %v8307 = vmul.f32 %v8243, %v59
    %v8308 = vmul.f32 %v8244, %v59
    %v8309 = vmul.f32 %v8245, %v59
    %v8310 = vmul.f32 %v8246, %v59
    %v8311 = vmul.f32 %v8247, %v59
    %v8312 = vmul.f32 %v8248, %v59
    %v8313 = vmul.f32 %v8249, %v59
    %v8314 = vmul.f32 %v8250, %v59
    %v8315 = vmul.f32 %v8251, %v59
    %v8316 = vmul.f32 %v8252, %v59
    %v8317 = vmul.f32 %v8253, %v59
    %v8318 = vmul.f32 %v8254, %v59
    %v8319 = vmul.f32 %v8255, %v59
    %v8320 = vmul.f32 %v8256, %v59
    %v8321 = vmul.f32 %v8257, %v59
    %v8322 = vmul.f32 %v8258, %v59
    %v8323 = vmul.f32 %v8259, %v59
    %v8324 = vmul.f32 %v8260, %v8260
    %v8325 = vmul.f32 %v8261, %v8261
    %v8326 = vmul.f32 %v8262, %v8262
    %v8327 = vmul.f32 %v8263, %v8263
    %v8328 = vmul.f32 %v8264, %v8264
    %v8329 = vmul.f32 %v8265, %v8265
    %v8330 = vmul.f32 %v8266, %v8266
    %v8331 = vmul.f32 %v8267, %v8267
    %v8332 = vmul.f32 %v8268, %v8268
    %v8333 = vmul.f32 %v8269, %v8269
    %v8334 = vmul.f32 %v8270, %v8270
    %v8335 = vmul.f32 %v8271, %v8271
    %v8336 = vmul.f32 %v8272, %v8272
    %v8337 = vmul.f32 %v8273, %v8273
    %v8338 = vmul.f32 %v8274, %v8274
    %v8339 = vmul.f32 %v8275, %v8275
    %v8340 = vmul.f32 %v8276, %v8276
    %v8341 = vmul.f32 %v8277, %v8277
    %v8342 = vmul.f32 %v8278, %v8278
    %v8343 = vmul.f32 %v8279, %v8279
    %v8344 = vmul.f32 %v8280, %v8280
    %v8345 = vmul.f32 %v8281, %v8281
    %v8346 = vmul.f32 %v8282, %v8282
    %v8347 = vmul.f32 %v8283, %v8283
    %v8348 = vmul.f32 %v8284, %v8284
    %v8349 = vmul.f32 %v8285, %v8285
    %v8350 = vmul.f32 %v8286, %v8286
    %v8351 = vmul.f32 %v8287, %v8287
    %v8352 = vmul.f32 %v8288, %v8288
    %v8353 = vmul.f32 %v8289, %v8289
    %v8354 = vmul.f32 %v8290, %v8290
    %v8355 = vmul.f32 %v8291, %v8291
    %v8356 = vmul.f32 %v8292, %v8292
    %v8357 = vmul.f32 %v8293, %v8293
    %v8358 = vmul.f32 %v8294, %v8294
    %v8359 = vmul.f32 %v8295, %v8295
    %v8360 = vmul.f32 %v8296, %v8296
    %v8361 = vmul.f32 %v8297, %v8297
    %v8362 = vmul.f32 %v8298, %v8298
    %v8363 = vmul.f32 %v8299, %v8299
    %v8364 = vmul.f32 %v8300, %v8300
    %v8365 = vmul.f32 %v8301, %v8301
    %v8366 = vmul.f32 %v8302, %v8302
    %v8367 = vmul.f32 %v8303, %v8303
    %v8368 = vmul.f32 %v8304, %v8304
    %v8369 = vmul.f32 %v8305, %v8305
    %v8370 = vmul.f32 %v8306, %v8306
    %v8371 = vmul.f32 %v8307, %v8307
    %v8372 = vmul.f32 %v8308, %v8308
    %v8373 = vmul.f32 %v8309, %v8309
    %v8374 = vmul.f32 %v8310, %v8310
    %v8375 = vmul.f32 %v8311, %v8311
    %v8376 = vmul.f32 %v8312, %v8312
    %v8377 = vmul.f32 %v8313, %v8313
    %v8378 = vmul.f32 %v8314, %v8314
    %v8379 = vmul.f32 %v8315, %v8315
    %v8380 = vmul.f32 %v8316, %v8316
    %v8381 = vmul.f32 %v8317, %v8317
    %v8382 = vmul.f32 %v8318, %v8318
    %v8383 = vmul.f32 %v8319, %v8319
    %v8384 = vmul.f32 %v8320, %v8320
    %v8385 = vmul.f32 %v8321, %v8321
    %v8386 = vmul.f32 %v8322, %v8322
    %v8387 = vmul.f32 %v8323, %v8323
    %8388 = vadd.xlane.f32.xlu0 %v8324
    %v8389 = vpop.xlane.xlu0 %8388
    %8390 = vadd.xlane.f32.xlu0 %v8325
    %v8391 = vpop.xlane.xlu0 %8390
    %8392 = vadd.xlane.f32.xlu0 %v8326
    %v8393 = vpop.xlane.xlu0 %8392
    %8394 = vadd.xlane.f32.xlu0 %v8327
    %v8395 = vpop.xlane.xlu0 %8394
    %8396 = vadd.xlane.f32.xlu0 %v8328
    %v8397 = vpop.xlane.xlu0 %8396
    %8398 = vadd.xlane.f32.xlu0 %v8329
    %v8399 = vpop.xlane.xlu0 %8398
    %8400 = vadd.xlane.f32.xlu0 %v8330
    %v8401 = vpop.xlane.xlu0 %8400
    %8402 = vadd.xlane.f32.xlu0 %v8331
    %v8403 = vpop.xlane.xlu0 %8402
    %8404 = vadd.xlane.f32.xlu0 %v8332
    %v8405 = vpop.xlane.xlu0 %8404
    %8406 = vadd.xlane.f32.xlu0 %v8333
    %v8407 = vpop.xlane.xlu0 %8406
    %8408 = vadd.xlane.f32.xlu0 %v8334
    %v8409 = vpop.xlane.xlu0 %8408
    %8410 = vadd.xlane.f32.xlu0 %v8335
    %v8411 = vpop.xlane.xlu0 %8410
    %8412 = vadd.xlane.f32.xlu0 %v8336
    %v8413 = vpop.xlane.xlu0 %8412
    %8414 = vadd.xlane.f32.xlu0 %v8337
    %v8415 = vpop.xlane.xlu0 %8414
    %8416 = vadd.xlane.f32.xlu0 %v8338
    %v8417 = vpop.xlane.xlu0 %8416
    %8418 = vadd.xlane.f32.xlu0 %v8339
    %v8419 = vpop.xlane.xlu0 %8418
    %8420 = vadd.xlane.f32.xlu0 %v8340
    %v8421 = vpop.xlane.xlu0 %8420
    %8422 = vadd.xlane.f32.xlu0 %v8341
    %v8423 = vpop.xlane.xlu0 %8422
    %8424 = vadd.xlane.f32.xlu0 %v8342
    %v8425 = vpop.xlane.xlu0 %8424
    %8426 = vadd.xlane.f32.xlu0 %v8343
    %v8427 = vpop.xlane.xlu0 %8426
    %8428 = vadd.xlane.f32.xlu0 %v8344
    %v8429 = vpop.xlane.xlu0 %8428
    %8430 = vadd.xlane.f32.xlu0 %v8345
    %v8431 = vpop.xlane.xlu0 %8430
    %8432 = vadd.xlane.f32.xlu0 %v8346
    %v8433 = vpop.xlane.xlu0 %8432
    %8434 = vadd.xlane.f32.xlu0 %v8347
    %v8435 = vpop.xlane.xlu0 %8434
    %8436 = vadd.xlane.f32.xlu0 %v8348
    %v8437 = vpop.xlane.xlu0 %8436
    %8438 = vadd.xlane.f32.xlu0 %v8349
    %v8439 = vpop.xlane.xlu0 %8438
    %8440 = vadd.xlane.f32.xlu0 %v8350
    %v8441 = vpop.xlane.xlu0 %8440
    %8442 = vadd.xlane.f32.xlu0 %v8351
    %v8443 = vpop.xlane.xlu0 %8442
    %8444 = vadd.xlane.f32.xlu0 %v8352
    %v8445 = vpop.xlane.xlu0 %8444
    %8446 = vadd.xlane.f32.xlu0 %v8353
    %v8447 = vpop.xlane.xlu0 %8446
    %8448 = vadd.xlane.f32.xlu0 %v8354
    %v8449 = vpop.xlane.xlu0 %8448
    %8450 = vadd.xlane.f32.xlu0 %v8355
    %v8451 = vpop.xlane.xlu0 %8450
    %8452 = vadd.xlane.f32.xlu0 %v8356
    %v8453 = vpop.xlane.xlu0 %8452
    %8454 = vadd.xlane.f32.xlu0 %v8357
    %v8455 = vpop.xlane.xlu0 %8454
    %8456 = vadd.xlane.f32.xlu0 %v8358
    %v8457 = vpop.xlane.xlu0 %8456
    %8458 = vadd.xlane.f32.xlu0 %v8359
    %v8459 = vpop.xlane.xlu0 %8458
    %8460 = vadd.xlane.f32.xlu0 %v8360
    %v8461 = vpop.xlane.xlu0 %8460
    %8462 = vadd.xlane.f32.xlu0 %v8361
    %v8463 = vpop.xlane.xlu0 %8462
    %8464 = vadd.xlane.f32.xlu0 %v8362
    %v8465 = vpop.xlane.xlu0 %8464
    %8466 = vadd.xlane.f32.xlu0 %v8363
    %v8467 = vpop.xlane.xlu0 %8466
    %8468 = vadd.xlane.f32.xlu0 %v8364
    %v8469 = vpop.xlane.xlu0 %8468
    %8470 = vadd.xlane.f32.xlu0 %v8365
    %v8471 = vpop.xlane.xlu0 %8470
    %8472 = vadd.xlane.f32.xlu0 %v8366
    %v8473 = vpop.xlane.xlu0 %8472
    %8474 = vadd.xlane.f32.xlu0 %v8367
    %v8475 = vpop.xlane.xlu0 %8474
    %8476 = vadd.xlane.f32.xlu0 %v8368
    %v8477 = vpop.xlane.xlu0 %8476
    %8478 = vadd.xlane.f32.xlu0 %v8369
    %v8479 = vpop.xlane.xlu0 %8478
    %8480 = vadd.xlane.f32.xlu0 %v8370
    %v8481 = vpop.xlane.xlu0 %8480
    %8482 = vadd.xlane.f32.xlu0 %v8371
    %v8483 = vpop.xlane.xlu0 %8482
    %8484 = vadd.xlane.f32.xlu0 %v8372
    %v8485 = vpop.xlane.xlu0 %8484
    %8486 = vadd.xlane.f32.xlu0 %v8373
    %v8487 = vpop.xlane.xlu0 %8486
    %8488 = vadd.xlane.f32.xlu0 %v8374
    %v8489 = vpop.xlane.xlu0 %8488
    %8490 = vadd.xlane.f32.xlu0 %v8375
    %v8491 = vpop.xlane.xlu0 %8490
    %8492 = vadd.xlane.f32.xlu0 %v8376
    %v8493 = vpop.xlane.xlu0 %8492
    %8494 = vadd.xlane.f32.xlu0 %v8377
    %v8495 = vpop.xlane.xlu0 %8494
    %8496 = vadd.xlane.f32.xlu0 %v8378
    %v8497 = vpop.xlane.xlu0 %8496
    %8498 = vadd.xlane.f32.xlu0 %v8379
    %v8499 = vpop.xlane.xlu0 %8498
    %8500 = vadd.xlane.f32.xlu0 %v8380
    %v8501 = vpop.xlane.xlu0 %8500
    %8502 = vadd.xlane.f32.xlu0 %v8381
    %v8503 = vpop.xlane.xlu0 %8502
    %8504 = vadd.xlane.f32.xlu0 %v8382
    %v8505 = vpop.xlane.xlu0 %8504
    %8506 = vadd.xlane.f32.xlu0 %v8383
    %v8507 = vpop.xlane.xlu0 %8506
    %8508 = vadd.xlane.f32.xlu0 %v8384
    %v8509 = vpop.xlane.xlu0 %8508
    %8510 = vadd.xlane.f32.xlu0 %v8385
    %v8511 = vpop.xlane.xlu0 %8510
    %8512 = vadd.xlane.f32.xlu0 %v8386
    %v8513 = vpop.xlane.xlu0 %8512
    %8514 = vadd.xlane.f32.xlu0 %v8387
    %v8515 = vpop.xlane.xlu0 %8514
    %v8516 = vmul.f32 %v8389, 0.020408163
    %v8517 = vmul.f32 %v8391, 0.020408163
    %v8518 = vmul.f32 %v8393, 0.020408163
    %v8519 = vmul.f32 %v8395, 0.020408163
    %v8520 = vmul.f32 %v8397, 0.020408163
    %v8521 = vmul.f32 %v8399, 0.020408163
    %v8522 = vmul.f32 %v8401, 0.020408163
    %v8523 = vmul.f32 %v8403, 0.020408163
    %v8524 = vmul.f32 %v8405, 0.020408163
    %v8525 = vmul.f32 %v8407, 0.020408163
    %v8526 = vmul.f32 %v8409, 0.020408163
    %v8527 = vmul.f32 %v8411, 0.020408163
    %v8528 = vmul.f32 %v8413, 0.020408163
    %v8529 = vmul.f32 %v8415, 0.020408163
    %v8530 = vmul.f32 %v8417, 0.020408163
    %v8531 = vmul.f32 %v8419, 0.020408163
    %v8532 = vmul.f32 %v8421, 0.020408163
    %v8533 = vmul.f32 %v8423, 0.020408163
    %v8534 = vmul.f32 %v8425, 0.020408163
    %v8535 = vmul.f32 %v8427, 0.020408163
    %v8536 = vmul.f32 %v8429, 0.020408163
    %v8537 = vmul.f32 %v8431, 0.020408163
    %v8538 = vmul.f32 %v8433, 0.020408163
    %v8539 = vmul.f32 %v8435, 0.020408163
    %v8540 = vmul.f32 %v8437, 0.020408163
    %v8541 = vmul.f32 %v8439, 0.020408163
    %v8542 = vmul.f32 %v8441, 0.020408163
    %v8543 = vmul.f32 %v8443, 0.020408163
    %v8544 = vmul.f32 %v8445, 0.020408163
    %v8545 = vmul.f32 %v8447, 0.020408163
    %v8546 = vmul.f32 %v8449, 0.020408163
    %v8547 = vmul.f32 %v8451, 0.020408163
    %v8548 = vmul.f32 %v8453, 0.020408163
    %v8549 = vmul.f32 %v8455, 0.020408163
    %v8550 = vmul.f32 %v8457, 0.020408163
    %v8551 = vmul.f32 %v8459, 0.020408163
    %v8552 = vmul.f32 %v8461, 0.020408163
    %v8553 = vmul.f32 %v8463, 0.020408163
    %v8554 = vmul.f32 %v8465, 0.020408163
    %v8555 = vmul.f32 %v8467, 0.020408163
    %v8556 = vmul.f32 %v8469, 0.020408163
    %v8557 = vmul.f32 %v8471, 0.020408163
    %v8558 = vmul.f32 %v8473, 0.020408163
    %v8559 = vmul.f32 %v8475, 0.020408163
    %v8560 = vmul.f32 %v8477, 0.020408163
    %v8561 = vmul.f32 %v8479, 0.020408163
    %v8562 = vmul.f32 %v8481, 0.020408163
    %v8563 = vmul.f32 %v8483, 0.020408163
    %v8564 = vmul.f32 %v8485, 0.020408163
    %v8565 = vmul.f32 %v8487, 0.020408163
    %v8566 = vmul.f32 %v8489, 0.020408163
    %v8567 = vmul.f32 %v8491, 0.020408163
    %v8568 = vmul.f32 %v8493, 0.020408163
    %v8569 = vmul.f32 %v8495, 0.020408163
    %v8570 = vmul.f32 %v8497, 0.020408163
    %v8571 = vmul.f32 %v8499, 0.020408163
    %v8572 = vmul.f32 %v8501, 0.020408163
    %v8573 = vmul.f32 %v8503, 0.020408163
    %v8574 = vmul.f32 %v8505, 0.020408163
    %v8575 = vmul.f32 %v8507, 0.020408163
    %v8576 = vmul.f32 %v8509, 0.020408163
    %v8577 = vmul.f32 %v8511, 0.020408163
    %v8578 = vmul.f32 %v8513, 0.020408163
    %v8579 = vmul.f32 %v8515, 0.020408163
    %v8580 = vadd.f32 %v8516, 1e-05
    %v8581 = vadd.f32 %v8517, 1e-05
    %v8582 = vadd.f32 %v8518, 1e-05
    %v8583 = vadd.f32 %v8519, 1e-05
    %v8584 = vadd.f32 %v8520, 1e-05
    %v8585 = vadd.f32 %v8521, 1e-05
    %v8586 = vadd.f32 %v8522, 1e-05
    %v8587 = vadd.f32 %v8523, 1e-05
    %v8588 = vadd.f32 %v8524, 1e-05
    %v8589 = vadd.f32 %v8525, 1e-05
    %v8590 = vadd.f32 %v8526, 1e-05
    %v8591 = vadd.f32 %v8527, 1e-05
    %v8592 = vadd.f32 %v8528, 1e-05
    %v8593 = vadd.f32 %v8529, 1e-05
    %v8594 = vadd.f32 %v8530, 1e-05
    %v8595 = vadd.f32 %v8531, 1e-05
    %v8596 = vadd.f32 %v8532, 1e-05
    %v8597 = vadd.f32 %v8533, 1e-05
    %v8598 = vadd.f32 %v8534, 1e-05
    %v8599 = vadd.f32 %v8535, 1e-05
    %v8600 = vadd.f32 %v8536, 1e-05
    %v8601 = vadd.f32 %v8537, 1e-05
    %v8602 = vadd.f32 %v8538, 1e-05
    %v8603 = vadd.f32 %v8539, 1e-05
    %v8604 = vadd.f32 %v8540, 1e-05
    %v8605 = vadd.f32 %v8541, 1e-05
    %v8606 = vadd.f32 %v8542, 1e-05
    %v8607 = vadd.f32 %v8543, 1e-05
    %v8608 = vadd.f32 %v8544, 1e-05
    %v8609 = vadd.f32 %v8545, 1e-05
    %v8610 = vadd.f32 %v8546, 1e-05
    %v8611 = vadd.f32 %v8547, 1e-05
    %v8612 = vadd.f32 %v8548, 1e-05
    %v8613 = vadd.f32 %v8549, 1e-05
    %v8614 = vadd.f32 %v8550, 1e-05
    %v8615 = vadd.f32 %v8551, 1e-05
    %v8616 = vadd.f32 %v8552, 1e-05
    %v8617 = vadd.f32 %v8553, 1e-05
    %v8618 = vadd.f32 %v8554, 1e-05
    %v8619 = vadd.f32 %v8555, 1e-05
    %v8620 = vadd.f32 %v8556, 1e-05
    %v8621 = vadd.f32 %v8557, 1e-05
    %v8622 = vadd.f32 %v8558, 1e-05
    %v8623 = vadd.f32 %v8559, 1e-05
    %v8624 = vadd.f32 %v8560, 1e-05
    %v8625 = vadd.f32 %v8561, 1e-05
    %v8626 = vadd.f32 %v8562, 1e-05
    %v8627 = vadd.f32 %v8563, 1e-05
    %v8628 = vadd.f32 %v8564, 1e-05
    %v8629 = vadd.f32 %v8565, 1e-05
    %v8630 = vadd.f32 %v8566, 1e-05
    %v8631 = vadd.f32 %v8567, 1e-05
    %v8632 = vadd.f32 %v8568, 1e-05
    %v8633 = vadd.f32 %v8569, 1e-05
    %v8634 = vadd.f32 %v8570, 1e-05
    %v8635 = vadd.f32 %v8571, 1e-05
    %v8636 = vadd.f32 %v8572, 1e-05
    %v8637 = vadd.f32 %v8573, 1e-05
    %v8638 = vadd.f32 %v8574, 1e-05
    %v8639 = vadd.f32 %v8575, 1e-05
    %v8640 = vadd.f32 %v8576, 1e-05
    %v8641 = vadd.f32 %v8577, 1e-05
    %v8642 = vadd.f32 %v8578, 1e-05
    %v8643 = vadd.f32 %v8579, 1e-05
    %v8644 = vrsqrt.pop %v8580
    %v8645 = vrsqrt.pop %v8581
    %v8646 = vrsqrt.pop %v8582
    %v8647 = vrsqrt.pop %v8583
    %v8648 = vrsqrt.pop %v8584
    %v8649 = vrsqrt.pop %v8585
    %v8650 = vrsqrt.pop %v8586
    %v8651 = vrsqrt.pop %v8587
    %v8652 = vrsqrt.pop %v8588
    %v8653 = vrsqrt.pop %v8589
    %v8654 = vrsqrt.pop %v8590
    %v8655 = vrsqrt.pop %v8591
    %v8656 = vrsqrt.pop %v8592
    %v8657 = vrsqrt.pop %v8593
    %v8658 = vrsqrt.pop %v8594
    %v8659 = vrsqrt.pop %v8595
    %v8660 = vrsqrt.pop %v8596
    %v8661 = vrsqrt.pop %v8597
    %v8662 = vrsqrt.pop %v8598
    %v8663 = vrsqrt.pop %v8599
    %v8664 = vrsqrt.pop %v8600
    %v8665 = vrsqrt.pop %v8601
    %v8666 = vrsqrt.pop %v8602
    %v8667 = vrsqrt.pop %v8603
    %v8668 = vrsqrt.pop %v8604
    %v8669 = vrsqrt.pop %v8605
    %v8670 = vrsqrt.pop %v8606
    %v8671 = vrsqrt.pop %v8607
    %v8672 = vrsqrt.pop %v8608
    %v8673 = vrsqrt.pop %v8609
    %v8674 = vrsqrt.pop %v8610
    %v8675 = vrsqrt.pop %v8611
    %v8676 = vrsqrt.pop %v8612
    %v8677 = vrsqrt.pop %v8613
    %v8678 = vrsqrt.pop %v8614
    %v8679 = vrsqrt.pop %v8615
    %v8680 = vrsqrt.pop %v8616
    %v8681 = vrsqrt.pop %v8617
    %v8682 = vrsqrt.pop %v8618
    %v8683 = vrsqrt.pop %v8619
    %v8684 = vrsqrt.pop %v8620
    %v8685 = vrsqrt.pop %v8621
    %v8686 = vrsqrt.pop %v8622
    %v8687 = vrsqrt.pop %v8623
    %v8688 = vrsqrt.pop %v8624
    %v8689 = vrsqrt.pop %v8625
    %v8690 = vrsqrt.pop %v8626
    %v8691 = vrsqrt.pop %v8627
    %v8692 = vrsqrt.pop %v8628
    %v8693 = vrsqrt.pop %v8629
    %v8694 = vrsqrt.pop %v8630
    %v8695 = vrsqrt.pop %v8631
    %v8696 = vrsqrt.pop %v8632
    %v8697 = vrsqrt.pop %v8633
    %v8698 = vrsqrt.pop %v8634
    %v8699 = vrsqrt.pop %v8635
    %v8700 = vrsqrt.pop %v8636
    %v8701 = vrsqrt.pop %v8637
    %v8702 = vrsqrt.pop %v8638
    %v8703 = vrsqrt.pop %v8639
    %v8704 = vrsqrt.pop %v8640
    %v8705 = vrsqrt.pop %v8641
    %v8706 = vrsqrt.pop %v8642
    %v8707 = vrsqrt.pop %v8643
    %v8708 = vmul.f32 %v8644, %v66
    %v8709 = vmul.f32 %v8645, %v67
    %v8710 = vmul.f32 %v8646, %v68
    %v8711 = vmul.f32 %v8647, %v69
    %v8712 = vmul.f32 %v8648, %v70
    %v8713 = vmul.f32 %v8649, %v71
    %v8714 = vmul.f32 %v8650, %v72
    %v8715 = vmul.f32 %v8651, %v73
    %v8716 = vmul.f32 %v8652, %v74
    %v8717 = vmul.f32 %v8653, %v75
    %v8718 = vmul.f32 %v8654, %v76
    %v8719 = vmul.f32 %v8655, %v77
    %v8720 = vmul.f32 %v8656, %v78
    %v8721 = vmul.f32 %v8657, %v79
    %v8722 = vmul.f32 %v8658, %v80
    %v8723 = vmul.f32 %v8659, %v81
    %v8724 = vmul.f32 %v8660, %v82
    %v8725 = vmul.f32 %v8661, %v83
    %v8726 = vmul.f32 %v8662, %v84
    %v8727 = vmul.f32 %v8663, %v85
    %v8728 = vmul.f32 %v8664, %v86
    %v8729 = vmul.f32 %v8665, %v87
    %v8730 = vmul.f32 %v8666, %v88
    %v8731 = vmul.f32 %v8667, %v89
    %v8732 = vmul.f32 %v8668, %v90
    %v8733 = vmul.f32 %v8669, %v91
    %v8734 = vmul.f32 %v8670, %v92
    %v8735 = vmul.f32 %v8671, %v93
    %v8736 = vmul.f32 %v8672, %v94
    %v8737 = vmul.f32 %v8673, %v95
    %v8738 = vmul.f32 %v8674, %v96
    %v8739 = vmul.f32 %v8675, %v97
    %v8740 = vmul.f32 %v8676, %v98
    %v8741 = vmul.f32 %v8677, %v99
    %v8742 = vmul.f32 %v8678, %v100
    %v8743 = vmul.f32 %v8679, %v101
    %v8744 = vmul.f32 %v8680, %v102
    %v8745 = vmul.f32 %v8681, %v103
    %v8746 = vmul.f32 %v8682, %v104
    %v8747 = vmul.f32 %v8683, %v105
    %v8748 = vmul.f32 %v8684, %v106
    %v8749 = vmul.f32 %v8685, %v107
    %v8750 = vmul.f32 %v8686, %v108
    %v8751 = vmul.f32 %v8687, %v109
    %v8752 = vmul.f32 %v8688, %v110
    %v8753 = vmul.f32 %v8689, %v111
    %v8754 = vmul.f32 %v8690, %v112
    %v8755 = vmul.f32 %v8691, %v113
    %v8756 = vmul.f32 %v8692, %v114
    %v8757 = vmul.f32 %v8693, %v115
    %v8758 = vmul.f32 %v8694, %v116
    %v8759 = vmul.f32 %v8695, %v117
    %v8760 = vmul.f32 %v8696, %v118
    %v8761 = vmul.f32 %v8697, %v119
    %v8762 = vmul.f32 %v8698, %v120
    %v8763 = vmul.f32 %v8699, %v121
    %v8764 = vmul.f32 %v8700, %v122
    %v8765 = vmul.f32 %v8701, %v123
    %v8766 = vmul.f32 %v8702, %v124
    %v8767 = vmul.f32 %v8703, %v125
    %v8768 = vmul.f32 %v8704, %v126
    %v8769 = vmul.f32 %v8705, %v127
    %v8770 = vmul.f32 %v8706, %v128
    %v8771 = vmul.f32 %v8707, %v129
    %8773 = vset.pattern.permute.xlu0 11
    %8774 = vperm.xlu0 %8773, %v8708
    %v8775 = vpop.permute.xlu0 %8774
    %8778 = vset.pattern.permute.xlu0 11
    %8779 = vperm.xlu0 %8778, %v8709
    %v8780 = vpop.permute.xlu0 %8779
    %8783 = vset.pattern.permute.xlu0 11
    %8784 = vperm.xlu0 %8783, %v8710
    %v8785 = vpop.permute.xlu0 %8784
    %8788 = vset.pattern.permute.xlu0 11
    %8789 = vperm.xlu0 %8788, %v8711
    %v8790 = vpop.permute.xlu0 %8789
    %8793 = vset.pattern.permute.xlu0 11
    %8794 = vperm.xlu0 %8793, %v8712
    %v8795 = vpop.permute.xlu0 %8794
    %8798 = vset.pattern.permute.xlu0 11
    %8799 = vperm.xlu0 %8798, %v8713
    %v8800 = vpop.permute.xlu0 %8799
    %8803 = vset.pattern.permute.xlu0 11
    %8804 = vperm.xlu0 %8803, %v8714
    %v8805 = vpop.permute.xlu0 %8804
    %8808 = vset.pattern.permute.xlu0 11
    %8809 = vperm.xlu0 %8808, %v8715
    %v8810 = vpop.permute.xlu0 %8809
    %8813 = vset.pattern.permute.xlu0 11
    %8814 = vperm.xlu0 %8813, %v8716
    %v8815 = vpop.permute.xlu0 %8814
    %8818 = vset.pattern.permute.xlu0 11
    %8819 = vperm.xlu0 %8818, %v8717
    %v8820 = vpop.permute.xlu0 %8819
    %8823 = vset.pattern.permute.xlu0 11
    %8824 = vperm.xlu0 %8823, %v8718
    %v8825 = vpop.permute.xlu0 %8824
    %8828 = vset.pattern.permute.xlu0 11
    %8829 = vperm.xlu0 %8828, %v8719
    %v8830 = vpop.permute.xlu0 %8829
    %8833 = vset.pattern.permute.xlu0 11
    %8834 = vperm.xlu0 %8833, %v8720
    %v8835 = vpop.permute.xlu0 %8834
    %8838 = vset.pattern.permute.xlu0 11
    %8839 = vperm.xlu0 %8838, %v8721
    %v8840 = vpop.permute.xlu0 %8839
    %8843 = vset.pattern.permute.xlu0 11
    %8844 = vperm.xlu0 %8843, %v8722
    %v8845 = vpop.permute.xlu0 %8844
    %8848 = vset.pattern.permute.xlu0 11
    %8849 = vperm.xlu0 %8848, %v8723
    %v8850 = vpop.permute.xlu0 %8849
    %8853 = vset.pattern.permute.xlu0 11
    %8854 = vperm.xlu0 %8853, %v8724
    %v8855 = vpop.permute.xlu0 %8854
    %8858 = vset.pattern.permute.xlu0 11
    %8859 = vperm.xlu0 %8858, %v8725
    %v8860 = vpop.permute.xlu0 %8859
    %8863 = vset.pattern.permute.xlu0 11
    %8864 = vperm.xlu0 %8863, %v8726
    %v8865 = vpop.permute.xlu0 %8864
    %8868 = vset.pattern.permute.xlu0 11
    %8869 = vperm.xlu0 %8868, %v8727
    %v8870 = vpop.permute.xlu0 %8869
    %8873 = vset.pattern.permute.xlu0 11
    %8874 = vperm.xlu0 %8873, %v8728
    %v8875 = vpop.permute.xlu0 %8874
    %8878 = vset.pattern.permute.xlu0 11
    %8879 = vperm.xlu0 %8878, %v8729
    %v8880 = vpop.permute.xlu0 %8879
    %8883 = vset.pattern.permute.xlu0 11
    %8884 = vperm.xlu0 %8883, %v8730
    %v8885 = vpop.permute.xlu0 %8884
    %8888 = vset.pattern.permute.xlu0 11
    %8889 = vperm.xlu0 %8888, %v8731
    %v8890 = vpop.permute.xlu0 %8889
    %8893 = vset.pattern.permute.xlu0 11
    %8894 = vperm.xlu0 %8893, %v8732
    %v8895 = vpop.permute.xlu0 %8894
    %8898 = vset.pattern.permute.xlu0 11
    %8899 = vperm.xlu0 %8898, %v8733
    %v8900 = vpop.permute.xlu0 %8899
    %8903 = vset.pattern.permute.xlu0 11
    %8904 = vperm.xlu0 %8903, %v8734
    %v8905 = vpop.permute.xlu0 %8904
    %8908 = vset.pattern.permute.xlu0 11
    %8909 = vperm.xlu0 %8908, %v8735
    %v8910 = vpop.permute.xlu0 %8909
    %8913 = vset.pattern.permute.xlu0 11
    %8914 = vperm.xlu0 %8913, %v8736
    %v8915 = vpop.permute.xlu0 %8914
    %8918 = vset.pattern.permute.xlu0 11
    %8919 = vperm.xlu0 %8918, %v8737
    %v8920 = vpop.permute.xlu0 %8919
    %8923 = vset.pattern.permute.xlu0 11
    %8924 = vperm.xlu0 %8923, %v8738
    %v8925 = vpop.permute.xlu0 %8924
    %8928 = vset.pattern.permute.xlu0 11
    %8929 = vperm.xlu0 %8928, %v8739
    %v8930 = vpop.permute.xlu0 %8929
    %8933 = vset.pattern.permute.xlu0 11
    %8934 = vperm.xlu0 %8933, %v8740
    %v8935 = vpop.permute.xlu0 %8934
    %8938 = vset.pattern.permute.xlu0 11
    %8939 = vperm.xlu0 %8938, %v8741
    %v8940 = vpop.permute.xlu0 %8939
    %8943 = vset.pattern.permute.xlu0 11
    %8944 = vperm.xlu0 %8943, %v8742
    %v8945 = vpop.permute.xlu0 %8944
    %8948 = vset.pattern.permute.xlu0 11
    %8949 = vperm.xlu0 %8948, %v8743
    %v8950 = vpop.permute.xlu0 %8949
    %8953 = vset.pattern.permute.xlu0 11
    %8954 = vperm.xlu0 %8953, %v8744
    %v8955 = vpop.permute.xlu0 %8954
    %8958 = vset.pattern.permute.xlu0 11
    %8959 = vperm.xlu0 %8958, %v8745
    %v8960 = vpop.permute.xlu0 %8959
    %8963 = vset.pattern.permute.xlu0 11
    %8964 = vperm.xlu0 %8963, %v8746
    %v8965 = vpop.permute.xlu0 %8964
    %8968 = vset.pattern.permute.xlu0 11
    %8969 = vperm.xlu0 %8968, %v8747
    %v8970 = vpop.permute.xlu0 %8969
    %8973 = vset.pattern.permute.xlu0 11
    %8974 = vperm.xlu0 %8973, %v8748
    %v8975 = vpop.permute.xlu0 %8974
    %8978 = vset.pattern.permute.xlu0 11
    %8979 = vperm.xlu0 %8978, %v8749
    %v8980 = vpop.permute.xlu0 %8979
    %8983 = vset.pattern.permute.xlu0 11
    %8984 = vperm.xlu0 %8983, %v8750
    %v8985 = vpop.permute.xlu0 %8984
    %8988 = vset.pattern.permute.xlu0 11
    %8989 = vperm.xlu0 %8988, %v8751
    %v8990 = vpop.permute.xlu0 %8989
    %8993 = vset.pattern.permute.xlu0 11
    %8994 = vperm.xlu0 %8993, %v8752
    %v8995 = vpop.permute.xlu0 %8994
    %8998 = vset.pattern.permute.xlu0 11
    %8999 = vperm.xlu0 %8998, %v8753
    %v9000 = vpop.permute.xlu0 %8999
    %9003 = vset.pattern.permute.xlu0 11
    %9004 = vperm.xlu0 %9003, %v8754
    %v9005 = vpop.permute.xlu0 %9004
    %9008 = vset.pattern.permute.xlu0 11
    %9009 = vperm.xlu0 %9008, %v8755
    %v9010 = vpop.permute.xlu0 %9009
    %9013 = vset.pattern.permute.xlu0 11
    %9014 = vperm.xlu0 %9013, %v8756
    %v9015 = vpop.permute.xlu0 %9014
    %9018 = vset.pattern.permute.xlu0 11
    %9019 = vperm.xlu0 %9018, %v8757
    %v9020 = vpop.permute.xlu0 %9019
    %9023 = vset.pattern.permute.xlu0 11
    %9024 = vperm.xlu0 %9023, %v8758
    %v9025 = vpop.permute.xlu0 %9024
    %9028 = vset.pattern.permute.xlu0 11
    %9029 = vperm.xlu0 %9028, %v8759
    %v9030 = vpop.permute.xlu0 %9029
    %9033 = vset.pattern.permute.xlu0 11
    %9034 = vperm.xlu0 %9033, %v8760
    %v9035 = vpop.permute.xlu0 %9034
    %9038 = vset.pattern.permute.xlu0 11
    %9039 = vperm.xlu0 %9038, %v8761
    %v9040 = vpop.permute.xlu0 %9039
    %9043 = vset.pattern.permute.xlu0 11
    %9044 = vperm.xlu0 %9043, %v8762
    %v9045 = vpop.permute.xlu0 %9044
    %9048 = vset.pattern.permute.xlu0 11
    %9049 = vperm.xlu0 %9048, %v8763
    %v9050 = vpop.permute.xlu0 %9049
    %9053 = vset.pattern.permute.xlu0 11
    %9054 = vperm.xlu0 %9053, %v8764
    %v9055 = vpop.permute.xlu0 %9054
    %9058 = vset.pattern.permute.xlu0 11
    %9059 = vperm.xlu0 %9058, %v8765
    %v9060 = vpop.permute.xlu0 %9059
    %9063 = vset.pattern.permute.xlu0 11
    %9064 = vperm.xlu0 %9063, %v8766
    %v9065 = vpop.permute.xlu0 %9064
    %9068 = vset.pattern.permute.xlu0 11
    %9069 = vperm.xlu0 %9068, %v8767
    %v9070 = vpop.permute.xlu0 %9069
    %9073 = vset.pattern.permute.xlu0 11
    %9074 = vperm.xlu0 %9073, %v8768
    %v9075 = vpop.permute.xlu0 %9074
    %9078 = vset.pattern.permute.xlu0 11
    %9079 = vperm.xlu0 %9078, %v8769
    %v9080 = vpop.permute.xlu0 %9079
    %9083 = vset.pattern.permute.xlu0 11
    %9084 = vperm.xlu0 %9083, %v8770
    %v9085 = vpop.permute.xlu0 %9084
    %9088 = vset.pattern.permute.xlu0 11
    %9089 = vperm.xlu0 %9088, %v8771
    %v9090 = vpop.permute.xlu0 %9089
    %v9092 = vmul.f32 %v8260, %v8775
    %v9093 = vmul.f32 %v8261, %v8780
    %v9094 = vmul.f32 %v8262, %v8785
    %v9095 = vmul.f32 %v8263, %v8790
    %v9096 = vmul.f32 %v8264, %v8795
    %v9097 = vmul.f32 %v8265, %v8800
    %v9098 = vmul.f32 %v8266, %v8805
    %v9099 = vmul.f32 %v8267, %v8810
    %v9100 = vmul.f32 %v8268, %v8815
    %v9101 = vmul.f32 %v8269, %v8820
    %v9102 = vmul.f32 %v8270, %v8825
    %v9103 = vmul.f32 %v8271, %v8830
    %v9104 = vmul.f32 %v8272, %v8835
    %v9105 = vmul.f32 %v8273, %v8840
    %v9106 = vmul.f32 %v8274, %v8845
    %v9107 = vmul.f32 %v8275, %v8850
    %v9108 = vmul.f32 %v8276, %v8855
    %v9109 = vmul.f32 %v8277, %v8860
    %v9110 = vmul.f32 %v8278, %v8865
    %v9111 = vmul.f32 %v8279, %v8870
    %v9112 = vmul.f32 %v8280, %v8875
    %v9113 = vmul.f32 %v8281, %v8880
    %v9114 = vmul.f32 %v8282, %v8885
    %v9115 = vmul.f32 %v8283, %v8890
    %v9116 = vmul.f32 %v8284, %v8895
    %v9117 = vmul.f32 %v8285, %v8900
    %v9118 = vmul.f32 %v8286, %v8905
    %v9119 = vmul.f32 %v8287, %v8910
    %v9120 = vmul.f32 %v8288, %v8915
    %v9121 = vmul.f32 %v8289, %v8920
    %v9122 = vmul.f32 %v8290, %v8925
    %v9123 = vmul.f32 %v8291, %v8930
    %v9124 = vmul.f32 %v8292, %v8935
    %v9125 = vmul.f32 %v8293, %v8940
    %v9126 = vmul.f32 %v8294, %v8945
    %v9127 = vmul.f32 %v8295, %v8950
    %v9128 = vmul.f32 %v8296, %v8955
    %v9129 = vmul.f32 %v8297, %v8960
    %v9130 = vmul.f32 %v8298, %v8965
    %v9131 = vmul.f32 %v8299, %v8970
    %v9132 = vmul.f32 %v8300, %v8975
    %v9133 = vmul.f32 %v8301, %v8980
    %v9134 = vmul.f32 %v8302, %v8985
    %v9135 = vmul.f32 %v8303, %v8990
    %v9136 = vmul.f32 %v8304, %v8995
    %v9137 = vmul.f32 %v8305, %v9000
    %v9138 = vmul.f32 %v8306, %v9005
    %v9139 = vmul.f32 %v8307, %v9010
    %v9140 = vmul.f32 %v8308, %v9015
    %v9141 = vmul.f32 %v8309, %v9020
    %v9142 = vmul.f32 %v8310, %v9025
    %v9143 = vmul.f32 %v8311, %v9030
    %v9144 = vmul.f32 %v8312, %v9035
    %v9145 = vmul.f32 %v8313, %v9040
    %v9146 = vmul.f32 %v8314, %v9045
    %v9147 = vmul.f32 %v8315, %v9050
    %v9148 = vmul.f32 %v8316, %v9055
    %v9149 = vmul.f32 %v8317, %v9060
    %v9150 = vmul.f32 %v8318, %v9065
    %v9151 = vmul.f32 %v8319, %v9070
    %v9152 = vmul.f32 %v8320, %v9075
    %v9153 = vmul.f32 %v8321, %v9080
    %v9154 = vmul.f32 %v8322, %v9085
    %v9155 = vmul.f32 %v8323, %v9090
    %9156 = vset.pattern.permute.xlu0 12
    %9157 = vperm.xlu0 %9156, %v66
    %v9158 = vpop.permute.xlu0 %9157
    %9160 = vset.pattern.permute.xlu0 12
    %9161 = vperm.xlu0 %9160, %v67
    %v9162 = vpop.permute.xlu0 %9161
    %9164 = vset.pattern.permute.xlu0 12
    %9165 = vperm.xlu0 %9164, %v68
    %v9166 = vpop.permute.xlu0 %9165
    %9168 = vset.pattern.permute.xlu0 12
    %9169 = vperm.xlu0 %9168, %v69
    %v9170 = vpop.permute.xlu0 %9169
    %9172 = vset.pattern.permute.xlu0 12
    %9173 = vperm.xlu0 %9172, %v70
    %v9174 = vpop.permute.xlu0 %9173
    %9176 = vset.pattern.permute.xlu0 12
    %9177 = vperm.xlu0 %9176, %v71
    %v9178 = vpop.permute.xlu0 %9177
    %9180 = vset.pattern.permute.xlu0 12
    %9181 = vperm.xlu0 %9180, %v72
    %v9182 = vpop.permute.xlu0 %9181
    %9184 = vset.pattern.permute.xlu0 12
    %9185 = vperm.xlu0 %9184, %v73
    %v9186 = vpop.permute.xlu0 %9185
    %9188 = vset.pattern.permute.xlu0 12
    %9189 = vperm.xlu0 %9188, %v74
    %v9190 = vpop.permute.xlu0 %9189
    %9192 = vset.pattern.permute.xlu0 12
    %9193 = vperm.xlu0 %9192, %v75
    %v9194 = vpop.permute.xlu0 %9193
    %9196 = vset.pattern.permute.xlu0 12
    %9197 = vperm.xlu0 %9196, %v76
    %v9198 = vpop.permute.xlu0 %9197
    %9200 = vset.pattern.permute.xlu0 12
    %9201 = vperm.xlu0 %9200, %v77
    %v9202 = vpop.permute.xlu0 %9201
    %9204 = vset.pattern.permute.xlu0 12
    %9205 = vperm.xlu0 %9204, %v78
    %v9206 = vpop.permute.xlu0 %9205
    %9208 = vset.pattern.permute.xlu0 12
    %9209 = vperm.xlu0 %9208, %v79
    %v9210 = vpop.permute.xlu0 %9209
    %9212 = vset.pattern.permute.xlu0 12
    %9213 = vperm.xlu0 %9212, %v80
    %v9214 = vpop.permute.xlu0 %9213
    %9216 = vset.pattern.permute.xlu0 12
    %9217 = vperm.xlu0 %9216, %v81
    %v9218 = vpop.permute.xlu0 %9217
    %9220 = vset.pattern.permute.xlu0 12
    %9221 = vperm.xlu0 %9220, %v82
    %v9222 = vpop.permute.xlu0 %9221
    %9224 = vset.pattern.permute.xlu0 12
    %9225 = vperm.xlu0 %9224, %v83
    %v9226 = vpop.permute.xlu0 %9225
    %9228 = vset.pattern.permute.xlu0 12
    %9229 = vperm.xlu0 %9228, %v84
    %v9230 = vpop.permute.xlu0 %9229
    %9232 = vset.pattern.permute.xlu0 12
    %9233 = vperm.xlu0 %9232, %v85
    %v9234 = vpop.permute.xlu0 %9233
    %9236 = vset.pattern.permute.xlu0 12
    %9237 = vperm.xlu0 %9236, %v86
    %v9238 = vpop.permute.xlu0 %9237
    %9240 = vset.pattern.permute.xlu0 12
    %9241 = vperm.xlu0 %9240, %v87
    %v9242 = vpop.permute.xlu0 %9241
    %9244 = vset.pattern.permute.xlu0 12
    %9245 = vperm.xlu0 %9244, %v88
    %v9246 = vpop.permute.xlu0 %9245
    %9248 = vset.pattern.permute.xlu0 12
    %9249 = vperm.xlu0 %9248, %v89
    %v9250 = vpop.permute.xlu0 %9249
    %9252 = vset.pattern.permute.xlu0 12
    %9253 = vperm.xlu0 %9252, %v90
    %v9254 = vpop.permute.xlu0 %9253
    %9256 = vset.pattern.permute.xlu0 12
    %9257 = vperm.xlu0 %9256, %v91
    %v9258 = vpop.permute.xlu0 %9257
    %9260 = vset.pattern.permute.xlu0 12
    %9261 = vperm.xlu0 %9260, %v92
    %v9262 = vpop.permute.xlu0 %9261
    %9264 = vset.pattern.permute.xlu0 12
    %9265 = vperm.xlu0 %9264, %v93
    %v9266 = vpop.permute.xlu0 %9265
    %9268 = vset.pattern.permute.xlu0 12
    %9269 = vperm.xlu0 %9268, %v94
    %v9270 = vpop.permute.xlu0 %9269
    %9272 = vset.pattern.permute.xlu0 12
    %9273 = vperm.xlu0 %9272, %v95
    %v9274 = vpop.permute.xlu0 %9273
    %9276 = vset.pattern.permute.xlu0 12
    %9277 = vperm.xlu0 %9276, %v96
    %v9278 = vpop.permute.xlu0 %9277
    %9280 = vset.pattern.permute.xlu0 12
    %9281 = vperm.xlu0 %9280, %v97
    %v9282 = vpop.permute.xlu0 %9281
    %9284 = vset.pattern.permute.xlu0 12
    %9285 = vperm.xlu0 %9284, %v98
    %v9286 = vpop.permute.xlu0 %9285
    %9288 = vset.pattern.permute.xlu0 12
    %9289 = vperm.xlu0 %9288, %v99
    %v9290 = vpop.permute.xlu0 %9289
    %9292 = vset.pattern.permute.xlu0 12
    %9293 = vperm.xlu0 %9292, %v100
    %v9294 = vpop.permute.xlu0 %9293
    %9296 = vset.pattern.permute.xlu0 12
    %9297 = vperm.xlu0 %9296, %v101
    %v9298 = vpop.permute.xlu0 %9297
    %9300 = vset.pattern.permute.xlu0 12
    %9301 = vperm.xlu0 %9300, %v102
    %v9302 = vpop.permute.xlu0 %9301
    %9304 = vset.pattern.permute.xlu0 12
    %9305 = vperm.xlu0 %9304, %v103
    %v9306 = vpop.permute.xlu0 %9305
    %9308 = vset.pattern.permute.xlu0 12
    %9309 = vperm.xlu0 %9308, %v104
    %v9310 = vpop.permute.xlu0 %9309
    %9312 = vset.pattern.permute.xlu0 12
    %9313 = vperm.xlu0 %9312, %v105
    %v9314 = vpop.permute.xlu0 %9313
    %9316 = vset.pattern.permute.xlu0 12
    %9317 = vperm.xlu0 %9316, %v106
    %v9318 = vpop.permute.xlu0 %9317
    %9320 = vset.pattern.permute.xlu0 12
    %9321 = vperm.xlu0 %9320, %v107
    %v9322 = vpop.permute.xlu0 %9321
    %9324 = vset.pattern.permute.xlu0 12
    %9325 = vperm.xlu0 %9324, %v108
    %v9326 = vpop.permute.xlu0 %9325
    %9328 = vset.pattern.permute.xlu0 12
    %9329 = vperm.xlu0 %9328, %v109
    %v9330 = vpop.permute.xlu0 %9329
    %9332 = vset.pattern.permute.xlu0 12
    %9333 = vperm.xlu0 %9332, %v110
    %v9334 = vpop.permute.xlu0 %9333
    %9336 = vset.pattern.permute.xlu0 12
    %9337 = vperm.xlu0 %9336, %v111
    %v9338 = vpop.permute.xlu0 %9337
    %9340 = vset.pattern.permute.xlu0 12
    %9341 = vperm.xlu0 %9340, %v112
    %v9342 = vpop.permute.xlu0 %9341
    %9344 = vset.pattern.permute.xlu0 12
    %9345 = vperm.xlu0 %9344, %v113
    %v9346 = vpop.permute.xlu0 %9345
    %9348 = vset.pattern.permute.xlu0 12
    %9349 = vperm.xlu0 %9348, %v114
    %v9350 = vpop.permute.xlu0 %9349
    %9352 = vset.pattern.permute.xlu0 12
    %9353 = vperm.xlu0 %9352, %v115
    %v9354 = vpop.permute.xlu0 %9353
    %9356 = vset.pattern.permute.xlu0 12
    %9357 = vperm.xlu0 %9356, %v116
    %v9358 = vpop.permute.xlu0 %9357
    %9360 = vset.pattern.permute.xlu0 12
    %9361 = vperm.xlu0 %9360, %v117
    %v9362 = vpop.permute.xlu0 %9361
    %9364 = vset.pattern.permute.xlu0 12
    %9365 = vperm.xlu0 %9364, %v118
    %v9366 = vpop.permute.xlu0 %9365
    %9368 = vset.pattern.permute.xlu0 12
    %9369 = vperm.xlu0 %9368, %v119
    %v9370 = vpop.permute.xlu0 %9369
    %9372 = vset.pattern.permute.xlu0 12
    %9373 = vperm.xlu0 %9372, %v120
    %v9374 = vpop.permute.xlu0 %9373
    %9376 = vset.pattern.permute.xlu0 12
    %9377 = vperm.xlu0 %9376, %v121
    %v9378 = vpop.permute.xlu0 %9377
    %9380 = vset.pattern.permute.xlu0 12
    %9381 = vperm.xlu0 %9380, %v122
    %v9382 = vpop.permute.xlu0 %9381
    %9384 = vset.pattern.permute.xlu0 12
    %9385 = vperm.xlu0 %9384, %v123
    %v9386 = vpop.permute.xlu0 %9385
    %9388 = vset.pattern.permute.xlu0 12
    %9389 = vperm.xlu0 %9388, %v124
    %v9390 = vpop.permute.xlu0 %9389
    %9392 = vset.pattern.permute.xlu0 12
    %9393 = vperm.xlu0 %9392, %v125
    %v9394 = vpop.permute.xlu0 %9393
    %9396 = vset.pattern.permute.xlu0 12
    %9397 = vperm.xlu0 %9396, %v126
    %v9398 = vpop.permute.xlu0 %9397
    %9400 = vset.pattern.permute.xlu0 12
    %9401 = vperm.xlu0 %9400, %v127
    %v9402 = vpop.permute.xlu0 %9401
    %9404 = vset.pattern.permute.xlu0 12
    %9405 = vperm.xlu0 %9404, %v128
    %v9406 = vpop.permute.xlu0 %9405
    %9408 = vset.pattern.permute.xlu0 12
    %9409 = vperm.xlu0 %9408, %v129
    %v9410 = vpop.permute.xlu0 %9409
    %v9412 = vadd.f32 %v9092, %v9158
    %v9413 = vadd.f32 %v9093, %v9162
    %v9414 = vadd.f32 %v9094, %v9166
    %v9415 = vadd.f32 %v9095, %v9170
    %v9416 = vadd.f32 %v9096, %v9174
    %v9417 = vadd.f32 %v9097, %v9178
    %v9418 = vadd.f32 %v9098, %v9182
    %v9419 = vadd.f32 %v9099, %v9186
    %v9420 = vadd.f32 %v9100, %v9190
    %v9421 = vadd.f32 %v9101, %v9194
    %v9422 = vadd.f32 %v9102, %v9198
    %v9423 = vadd.f32 %v9103, %v9202
    %v9424 = vadd.f32 %v9104, %v9206
    %v9425 = vadd.f32 %v9105, %v9210
    %v9426 = vadd.f32 %v9106, %v9214
    %v9427 = vadd.f32 %v9107, %v9218
    %v9428 = vadd.f32 %v9108, %v9222
    %v9429 = vadd.f32 %v9109, %v9226
    %v9430 = vadd.f32 %v9110, %v9230
    %v9431 = vadd.f32 %v9111, %v9234
    %v9432 = vadd.f32 %v9112, %v9238
    %v9433 = vadd.f32 %v9113, %v9242
    %v9434 = vadd.f32 %v9114, %v9246
    %v9435 = vadd.f32 %v9115, %v9250
    %v9436 = vadd.f32 %v9116, %v9254
    %v9437 = vadd.f32 %v9117, %v9258
    %v9438 = vadd.f32 %v9118, %v9262
    %v9439 = vadd.f32 %v9119, %v9266
    %v9440 = vadd.f32 %v9120, %v9270
    %v9441 = vadd.f32 %v9121, %v9274
    %v9442 = vadd.f32 %v9122, %v9278
    %v9443 = vadd.f32 %v9123, %v9282
    %v9444 = vadd.f32 %v9124, %v9286
    %v9445 = vadd.f32 %v9125, %v9290
    %v9446 = vadd.f32 %v9126, %v9294
    %v9447 = vadd.f32 %v9127, %v9298
    %v9448 = vadd.f32 %v9128, %v9302
    %v9449 = vadd.f32 %v9129, %v9306
    %v9450 = vadd.f32 %v9130, %v9310
    %v9451 = vadd.f32 %v9131, %v9314
    %v9452 = vadd.f32 %v9132, %v9318
    %v9453 = vadd.f32 %v9133, %v9322
    %v9454 = vadd.f32 %v9134, %v9326
    %v9455 = vadd.f32 %v9135, %v9330
    %v9456 = vadd.f32 %v9136, %v9334
    %v9457 = vadd.f32 %v9137, %v9338
    %v9458 = vadd.f32 %v9138, %v9342
    %v9459 = vadd.f32 %v9139, %v9346
    %v9460 = vadd.f32 %v9140, %v9350
    %v9461 = vadd.f32 %v9141, %v9354
    %v9462 = vadd.f32 %v9142, %v9358
    %v9463 = vadd.f32 %v9143, %v9362
    %v9464 = vadd.f32 %v9144, %v9366
    %v9465 = vadd.f32 %v9145, %v9370
    %v9466 = vadd.f32 %v9146, %v9374
    %v9467 = vadd.f32 %v9147, %v9378
    %v9468 = vadd.f32 %v9148, %v9382
    %v9469 = vadd.f32 %v9149, %v9386
    %v9470 = vadd.f32 %v9150, %v9390
    %v9471 = vadd.f32 %v9151, %v9394
    %v9472 = vadd.f32 %v9152, %v9398
    %v9473 = vadd.f32 %v9153, %v9402
    %v9474 = vadd.f32 %v9154, %v9406
    %v9475 = vadd.f32 %v9155, %v9410
    %v9476 = vpack.c.bf16 %v9413, %v9412
    %v9477 = vpack.c.bf16 %v9415, %v9414
    %v9478 = vpack.c.bf16 %v9417, %v9416
    %v9479 = vpack.c.bf16 %v9419, %v9418
    %v9480 = vpack.c.bf16 %v9421, %v9420
    %v9481 = vpack.c.bf16 %v9423, %v9422
    %v9482 = vpack.c.bf16 %v9425, %v9424
    %v9483 = vpack.c.bf16 %v9427, %v9426
    %v9484 = vpack.c.bf16 %v9429, %v9428
    %v9485 = vpack.c.bf16 %v9431, %v9430
    %v9486 = vpack.c.bf16 %v9433, %v9432
    %v9487 = vpack.c.bf16 %v9435, %v9434
    %v9488 = vpack.c.bf16 %v9437, %v9436
    %v9489 = vpack.c.bf16 %v9439, %v9438
    %v9490 = vpack.c.bf16 %v9441, %v9440
    %v9491 = vpack.c.bf16 %v9443, %v9442
    %v9492 = vpack.c.bf16 %v9445, %v9444
    %v9493 = vpack.c.bf16 %v9447, %v9446
    %v9494 = vpack.c.bf16 %v9449, %v9448
    %v9495 = vpack.c.bf16 %v9451, %v9450
    %v9496 = vpack.c.bf16 %v9453, %v9452
    %v9497 = vpack.c.bf16 %v9455, %v9454
    %v9498 = vpack.c.bf16 %v9457, %v9456
    %v9499 = vpack.c.bf16 %v9459, %v9458
    %v9500 = vpack.c.bf16 %v9461, %v9460
    %v9501 = vpack.c.bf16 %v9463, %v9462
    %v9502 = vpack.c.bf16 %v9465, %v9464
    %v9503 = vpack.c.bf16 %v9467, %v9466
    %v9504 = vpack.c.bf16 %v9469, %v9468
    %v9505 = vpack.c.bf16 %v9471, %v9470
    %v9506 = vpack.c.bf16 %v9473, %v9472
    %v9507 = vpack.c.bf16 %v9475, %v9474
    %s9508 = smul.u32 4, 64
    %s9509 = smul.u32 %s9508, 4
    %s9510 = sshll.u32 %s9509, 4
    %9511 = dma.done [#allocation3], %s9510
    %v9512 = vld [vmem:[#allocation2] sm:$0xff]
    %v9513 = vld [vmem:[#allocation2 + $0x8] sm:$0xff]
    %v9514 = vld [vmem:[#allocation2 + $0x10] sm:$0xff]
    %v9515 = vld [vmem:[#allocation2 + $0x18] sm:$0xff]
    %v9516 = vld [vmem:[#allocation2 + $0x20] sm:$0xff]
    %v9517 = vld [vmem:[#allocation2 + $0x28] sm:$0xff]
    %v9518 = vld [vmem:[#allocation2 + $0x30] sm:$0xff]
    %v9519 = vld [vmem:[#allocation2 + $0x38] sm:$0xff]
    %v9520 = vld [vmem:[#allocation2 + $0x40] sm:$0xff]
    %v9521 = vld [vmem:[#allocation2 + $0x48] sm:$0xff]
    %v9522 = vld [vmem:[#allocation2 + $0x50] sm:$0xff]
    %v9523 = vld [vmem:[#allocation2 + $0x58] sm:$0xff]
    %v9524 = vld [vmem:[#allocation2 + $0x60] sm:$0xff]
    %v9525 = vld [vmem:[#allocation2 + $0x68] sm:$0xff]
    %v9526 = vld [vmem:[#allocation2 + $0x70] sm:$0xff]
    %v9527 = vld [vmem:[#allocation2 + $0x78] sm:$0xff]
    %v9528 = vld [vmem:[#allocation2 + $0x80] sm:$0xff]
    %v9529 = vld [vmem:[#allocation2 + $0x88] sm:$0xff]
    %v9530 = vld [vmem:[#allocation2 + $0x90] sm:$0xff]
    %v9531 = vld [vmem:[#allocation2 + $0x98] sm:$0xff]
    %v9532 = vld [vmem:[#allocation2 + $0xa0] sm:$0xff]
    %v9533 = vld [vmem:[#allocation2 + $0xa8] sm:$0xff]
    %v9534 = vld [vmem:[#allocation2 + $0xb0] sm:$0xff]
    %v9535 = vld [vmem:[#allocation2 + $0xb8] sm:$0xff]
    %v9536 = vld [vmem:[#allocation2 + $0xc0] sm:$0xff]
    %v9537 = vld [vmem:[#allocation2 + $0xc8] sm:$0xff]
    %v9538 = vld [vmem:[#allocation2 + $0xd0] sm:$0xff]
    %v9539 = vld [vmem:[#allocation2 + $0xd8] sm:$0xff]
    %v9540 = vld [vmem:[#allocation2 + $0xe0] sm:$0xff]
    %v9541 = vld [vmem:[#allocation2 + $0xe8] sm:$0xff]
    %v9542 = vld [vmem:[#allocation2 + $0xf0] sm:$0xff]
    %v9543 = vld [vmem:[#allocation2 + $0xf8] sm:$0xff]
    %v9544 = vld [vmem:[#allocation2 + $0x100] sm:$0xff]
    %v9545 = vld [vmem:[#allocation2 + $0x108] sm:$0xff]
    %v9546 = vld [vmem:[#allocation2 + $0x110] sm:$0xff]
    %v9547 = vld [vmem:[#allocation2 + $0x118] sm:$0xff]
    %v9548 = vld [vmem:[#allocation2 + $0x120] sm:$0xff]
    %v9549 = vld [vmem:[#allocation2 + $0x128] sm:$0xff]
    %v9550 = vld [vmem:[#allocation2 + $0x130] sm:$0xff]
    %v9551 = vld [vmem:[#allocation2 + $0x138] sm:$0xff]
    %v9552 = vld [vmem:[#allocation2 + $0x140] sm:$0xff]
    %v9553 = vld [vmem:[#allocation2 + $0x148] sm:$0xff]
    %v9554 = vld [vmem:[#allocation2 + $0x150] sm:$0xff]
    %v9555 = vld [vmem:[#allocation2 + $0x158] sm:$0xff]
    %v9556 = vld [vmem:[#allocation2 + $0x160] sm:$0xff]
    %v9557 = vld [vmem:[#allocation2 + $0x168] sm:$0xff]
    %v9558 = vld [vmem:[#allocation2 + $0x170] sm:$0xff]
    %v9559 = vld [vmem:[#allocation2 + $0x178] sm:$0xff]
    %v9560 = vld [vmem:[#allocation2 + $0x180] sm:$0xff]
    %v9561 = vld [vmem:[#allocation2 + $0x188] sm:$0xff]
    %v9562 = vld [vmem:[#allocation2 + $0x190] sm:$0xff]
    %v9563 = vld [vmem:[#allocation2 + $0x198] sm:$0xff]
    %v9564 = vld [vmem:[#allocation2 + $0x1a0] sm:$0xff]
    %v9565 = vld [vmem:[#allocation2 + $0x1a8] sm:$0xff]
    %v9566 = vld [vmem:[#allocation2 + $0x1b0] sm:$0xff]
    %v9567 = vld [vmem:[#allocation2 + $0x1b8] sm:$0xff]
    %v9568 = vld [vmem:[#allocation2 + $0x1c0] sm:$0xff]
    %v9569 = vld [vmem:[#allocation2 + $0x1c8] sm:$0xff]
    %v9570 = vld [vmem:[#allocation2 + $0x1d0] sm:$0xff]
    %v9571 = vld [vmem:[#allocation2 + $0x1d8] sm:$0xff]
    %v9572 = vld [vmem:[#allocation2 + $0x1e0] sm:$0xff]
    %v9573 = vld [vmem:[#allocation2 + $0x1e8] sm:$0xff]
    %v9574 = vld [vmem:[#allocation2 + $0x1f0] sm:$0xff]
    %v9575 = vld [vmem:[#allocation2 + $0x1f8] sm:$0xff]
    %v9576 = vld [vmem:[#allocation2 + $0x200] sm:$0xff]
    %v9577 = vld [vmem:[#allocation2 + $0x208] sm:$0xff]
    %v9578 = vld [vmem:[#allocation2 + $0x210] sm:$0xff]
    %v9579 = vld [vmem:[#allocation2 + $0x218] sm:$0xff]
    %v9580 = vld [vmem:[#allocation2 + $0x220] sm:$0xff]
    %v9581 = vld [vmem:[#allocation2 + $0x228] sm:$0xff]
    %v9582 = vld [vmem:[#allocation2 + $0x230] sm:$0xff]
    %v9583 = vld [vmem:[#allocation2 + $0x238] sm:$0xff]
    %v9584 = vld [vmem:[#allocation2 + $0x240] sm:$0xff]
    %v9585 = vld [vmem:[#allocation2 + $0x248] sm:$0xff]
    %v9586 = vld [vmem:[#allocation2 + $0x250] sm:$0xff]
    %v9587 = vld [vmem:[#allocation2 + $0x258] sm:$0xff]
    %v9588 = vld [vmem:[#allocation2 + $0x260] sm:$0xff]
    %v9589 = vld [vmem:[#allocation2 + $0x268] sm:$0xff]
    %v9590 = vld [vmem:[#allocation2 + $0x270] sm:$0xff]
    %v9591 = vld [vmem:[#allocation2 + $0x278] sm:$0xff]
    %v9592 = vld [vmem:[#allocation2 + $0x280] sm:$0xff]
    %v9593 = vld [vmem:[#allocation2 + $0x288] sm:$0xff]
    %v9594 = vld [vmem:[#allocation2 + $0x290] sm:$0xff]
    %v9595 = vld [vmem:[#allocation2 + $0x298] sm:$0xff]
    %v9596 = vld [vmem:[#allocation2 + $0x2a0] sm:$0xff]
    %v9597 = vld [vmem:[#allocation2 + $0x2a8] sm:$0xff]
    %v9598 = vld [vmem:[#allocation2 + $0x2b0] sm:$0xff]
    %v9599 = vld [vmem:[#allocation2 + $0x2b8] sm:$0xff]
    %v9600 = vld [vmem:[#allocation2 + $0x2c0] sm:$0xff]
    %v9601 = vld [vmem:[#allocation2 + $0x2c8] sm:$0xff]
    %v9602 = vld [vmem:[#allocation2 + $0x2d0] sm:$0xff]
    %v9603 = vld [vmem:[#allocation2 + $0x2d8] sm:$0xff]
    %v9604 = vld [vmem:[#allocation2 + $0x2e0] sm:$0xff]
    %v9605 = vld [vmem:[#allocation2 + $0x2e8] sm:$0xff]
    %v9606 = vld [vmem:[#allocation2 + $0x2f0] sm:$0xff]
    %v9607 = vld [vmem:[#allocation2 + $0x2f8] sm:$0xff]
    %v9608 = vld [vmem:[#allocation2 + $0x300] sm:$0xff]
    %v9609 = vld [vmem:[#allocation2 + $0x308] sm:$0xff]
    %v9610 = vld [vmem:[#allocation2 + $0x310] sm:$0xff]
    %v9611 = vld [vmem:[#allocation2 + $0x318] sm:$0xff]
    %v9612 = vld [vmem:[#allocation2 + $0x320] sm:$0xff]
    %v9613 = vld [vmem:[#allocation2 + $0x328] sm:$0xff]
    %v9614 = vld [vmem:[#allocation2 + $0x330] sm:$0xff]
    %v9615 = vld [vmem:[#allocation2 + $0x338] sm:$0xff]
    %v9616 = vld [vmem:[#allocation2 + $0x340] sm:$0xff]
    %v9617 = vld [vmem:[#allocation2 + $0x348] sm:$0xff]
    %v9618 = vld [vmem:[#allocation2 + $0x350] sm:$0xff]
    %v9619 = vld [vmem:[#allocation2 + $0x358] sm:$0xff]
    %v9620 = vld [vmem:[#allocation2 + $0x360] sm:$0xff]
    %v9621 = vld [vmem:[#allocation2 + $0x368] sm:$0xff]
    %v9622 = vld [vmem:[#allocation2 + $0x370] sm:$0xff]
    %v9623 = vld [vmem:[#allocation2 + $0x378] sm:$0xff]
    %v9624 = vld [vmem:[#allocation2 + $0x380] sm:$0xff]
    %v9625 = vld [vmem:[#allocation2 + $0x388] sm:$0xff]
    %v9626 = vld [vmem:[#allocation2 + $0x390] sm:$0xff]
    %v9627 = vld [vmem:[#allocation2 + $0x398] sm:$0xff]
    %v9628 = vld [vmem:[#allocation2 + $0x3a0] sm:$0xff]
    %v9629 = vld [vmem:[#allocation2 + $0x3a8] sm:$0xff]
    %v9630 = vld [vmem:[#allocation2 + $0x3b0] sm:$0xff]
    %v9631 = vld [vmem:[#allocation2 + $0x3b8] sm:$0xff]
    %v9632 = vld [vmem:[#allocation2 + $0x3c0] sm:$0xff]
    %v9633 = vld [vmem:[#allocation2 + $0x3c8] sm:$0xff]
    %v9634 = vld [vmem:[#allocation2 + $0x3d0] sm:$0xff]
    %v9635 = vld [vmem:[#allocation2 + $0x3d8] sm:$0xff]
    %v9636 = vld [vmem:[#allocation2 + $0x3e0] sm:$0xff]
    %v9637 = vld [vmem:[#allocation2 + $0x3e8] sm:$0xff]
    %v9638 = vld [vmem:[#allocation2 + $0x3f0] sm:$0xff]
    %v9639 = vld [vmem:[#allocation2 + $0x3f8] sm:$0xff]
    %9640 = vmatprep.subr.bf16.mxu0 0
    %9641 = vmatpush1.bf16.msra.mxu0 %v9476
    %9642 = vmatprep.subr.bf16.mxu0 0
    %9643 = vmatpush1.bf16.msra.mxu0 %v9477
    %9644 = vmatprep.subr.bf16.mxu0 0
    %9645 = vmatpush1.bf16.msra.mxu0 %v9478
    %9646 = vmatprep.subr.bf16.mxu0 0
    %9647 = vmatpush1.bf16.msra.mxu0 %v9479
    %9648 = vmatprep.subr.bf16.mxu0 0
    %9649 = vmatpush1.bf16.msra.mxu0 %v9480
    %9650 = vmatprep.subr.bf16.mxu0 0
    %9651 = vmatpush1.bf16.msra.mxu0 %v9481
    %9652 = vmatprep.subr.bf16.mxu0 0
    %9653 = vmatpush1.bf16.msra.mxu0 %v9482
    %9654 = vmatprep.subr.bf16.mxu0 0
    %9655 = vmatpush1.bf16.msra.mxu0 %v9483
    %9656 = vmatprep.subr.bf16.mxu0 0
    %9657 = vmatpush1.bf16.msra.mxu0 %v9484
    %9658 = vmatprep.subr.bf16.mxu0 0
    %9659 = vmatpush1.bf16.msra.mxu0 %v9485
    %9660 = vmatprep.subr.bf16.mxu0 0
    %9661 = vmatpush1.bf16.msra.mxu0 %v9486
    %9662 = vmatprep.subr.bf16.mxu0 0
    %9663 = vmatpush1.bf16.msra.mxu0 %v9487
    %9664 = vmatprep.subr.bf16.mxu0 0
    %9665 = vmatpush1.bf16.msra.mxu0 %v9488
    %9666 = vmatprep.subr.bf16.mxu0 0
    %9667 = vmatpush1.bf16.msra.mxu0 %v9489
    %9668 = vmatprep.subr.bf16.mxu0 0
    %9669 = vmatpush1.bf16.msra.mxu0 %v9490
    %9670 = vmatprep.subr.bf16.mxu0 0
    %9671 = vmatpush1.bf16.msra.mxu0 %v9491
    %9672 = vmatprep.mubr.bf16.mxu0 %v9513
    %9673 = vmatmul.mubr.bf16.gmra.mrb[0].mxu0 %v9512
    %v9674 = vpop.f32.mrb[0].mxu0
    %v9675 = vadd.f32 0.0, %v9674
    %v9676 = vpop.f32.mrb[0].mxu0
    %v9677 = vpop.f32.mrb[0].mxu0
    %v9678 = vadd.f32 0.0, %v9677
    %v9679 = vpop.f32.mrb[0].mxu0
    %9680 = vmatprep.mubr.bf16.mxu0 %v9517
    %9681 = vmatmul.mubr.bf16.gmra.mrb[0].mxu0 %v9516
    %v9682 = vpop.f32.mrb[0].mxu0
    %v9683 = vadd.f32 0.0, %v9682
    %v9684 = vpop.f32.mrb[0].mxu0
    %v9685 = vpop.f32.mrb[0].mxu0
    %v9686 = vadd.f32 0.0, %v9685
    %v9687 = vpop.f32.mrb[0].mxu0
    %9688 = vmatprep.mubr.bf16.mxu0 %v9521
    %9689 = vmatmul.mubr.bf16.gmra.mrb[0].mxu0 %v9520
    %v9690 = vpop.f32.mrb[0].mxu0
    %v9691 = vadd.f32 0.0, %v9690
    %v9692 = vpop.f32.mrb[0].mxu0
    %v9693 = vpop.f32.mrb[0].mxu0
    %v9694 = vadd.f32 0.0, %v9693
    %v9695 = vpop.f32.mrb[0].mxu0
    %9696 = vmatprep.mubr.bf16.mxu0 %v9525
    %9697 = vmatmul.mubr.bf16.gmra.mrb[0].mxu0 %v9524
    %v9698 = vpop.f32.mrb[0].mxu0
    %v9699 = vadd.f32 0.0, %v9698
    %v9700 = vpop.f32.mrb[0].mxu0
    %v9701 = vpop.f32.mrb[0].mxu0
    %v9702 = vadd.f32 0.0, %v9701
    %v9703 = vpop.f32.mrb[0].mxu0
    %9704 = vmatprep.mubr.bf16.mxu0 %v9529
    %9705 = vmatmul.mubr.bf16.gmra.mrb[0].mxu0 %v9528
    %v9706 = vpop.f32.mrb[0].mxu0
    %v9707 = vadd.f32 0.0, %v9706
    %v9708 = vpop.f32.mrb[0].mxu0
    %v9709 = vpop.f32.mrb[0].mxu0
    %v9710 = vadd.f32 0.0, %v9709
    %v9711 = vpop.f32.mrb[0].mxu0
    %9712 = vmatprep.mubr.bf16.mxu0 %v9533
    %9713 = vmatmul.mubr.bf16.gmra.mrb[0].mxu0 %v9532
    %v9714 = vpop.f32.mrb[0].mxu0
    %v9715 = vadd.f32 0.0, %v9714
    %v9716 = vpop.f32.mrb[0].mxu0
    %v9717 = vpop.f32.mrb[0].mxu0
    %v9718 = vadd.f32 0.0, %v9717
    %v9719 = vpop.f32.mrb[0].mxu0
    %9720 = vmatprep.mubr.bf16.mxu0 %v9537
    %9721 = vmatmul.mubr.bf16.gmra.mrb[0].mxu0 %v9536
    %v9722 = vpop.f32.mrb[0].mxu0
    %v9723 = vadd.f32 0.0, %v9722
    %v9724 = vpop.f32.mrb[0].mxu0
    %v9725 = vpop.f32.mrb[0].mxu0
    %v9726 = vadd.f32 0.0, %v9725
    %v9727 = vpop.f32.mrb[0].mxu0
    %9728 = vmatprep.mubr.bf16.mxu0 %v9541
    %9729 = vmatmul.mubr.bf16.gmra.mrb[0].mxu0 %v9540
    %v9730 = vpop.f32.mrb[0].mxu0
    %v9731 = vadd.f32 0.0, %v9730
    %v9732 = vpop.f32.mrb[0].mxu0
    %v9733 = vpop.f32.mrb[0].mxu0
    %v9734 = vadd.f32 0.0, %v9733
    %v9735 = vpop.f32.mrb[0].mxu0
    %9736 = vmatprep.mubr.bf16.mxu0 %v9545
    %9737 = vmatmul.mubr.bf16.gmra.mrb[0].mxu0 %v9544
    %v9738 = vpop.f32.mrb[0].mxu0
    %v9739 = vadd.f32 0.0, %v9738
    %v9740 = vpop.f32.mrb[0].mxu0
    %v9741 = vpop.f32.mrb[0].mxu0
    %v9742 = vadd.f32 0.0, %v9741
    %v9743 = vpop.f32.mrb[0].mxu0
    %9744 = vmatprep.mubr.bf16.mxu0 %v9549
    %9745 = vmatmul.mubr.bf16.gmra.mrb[0].mxu0 %v9548
    %v9746 = vpop.f32.mrb[0].mxu0
    %v9747 = vadd.f32 0.0, %v9746
    %v9748 = vpop.f32.mrb[0].mxu0
    %v9749 = vpop.f32.mrb[0].mxu0
    %v9750 = vadd.f32 0.0, %v9749
    %v9751 = vpop.f32.mrb[0].mxu0
    %9752 = vmatprep.mubr.bf16.mxu0 %v9553
    %9753 = vmatmul.mubr.bf16.gmra.mrb[0].mxu0 %v9552
    %v9754 = vpop.f32.mrb[0].mxu0
    %v9755 = vadd.f32 0.0, %v9754
    %v9756 = vpop.f32.mrb[0].mxu0
    %v9757 = vpop.f32.mrb[0].mxu0
    %v9758 = vadd.f32 0.0, %v9757
    %v9759 = vpop.f32.mrb[0].mxu0
    %9760 = vmatprep.mubr.bf16.mxu0 %v9557
    %9761 = vmatmul.mubr.bf16.gmra.mrb[0].mxu0 %v9556
    %v9762 = vpop.f32.mrb[0].mxu0
    %v9763 = vadd.f32 0.0, %v9762
    %v9764 = vpop.f32.mrb[0].mxu0
    %v9765 = vpop.f32.mrb[0].mxu0
    %v9766 = vadd.f32 0.0, %v9765
    %v9767 = vpop.f32.mrb[0].mxu0
    %9768 = vmatprep.mubr.bf16.mxu0 %v9561
    %9769 = vmatmul.mubr.bf16.gmra.mrb[0].mxu0 %v9560
    %v9770 = vpop.f32.mrb[0].mxu0
    %v9771 = vadd.f32 0.0, %v9770
    %v9772 = vpop.f32.mrb[0].mxu0
    %v9773 = vpop.f32.mrb[0].mxu0
    %v9774 = vadd.f32 0.0, %v9773
    %v9775 = vpop.f32.mrb[0].mxu0
    %9776 = vmatprep.mubr.bf16.mxu0 %v9565
    %9777 = vmatmul.mubr.bf16.gmra.mrb[0].mxu0 %v9564
    %v9778 = vpop.f32.mrb[0].mxu0
    %v9779 = vadd.f32 0.0, %v9778
    %v9780 = vpop.f32.mrb[0].mxu0
    %v9781 = vpop.f32.mrb[0].mxu0
    %v9782 = vadd.f32 0.0, %v9781
    %v9783 = vpop.f32.mrb[0].mxu0
    %9784 = vmatprep.mubr.bf16.mxu0 %v9569
    %9785 = vmatmul.mubr.bf16.gmra.mrb[0].mxu0 %v9568
    %v9786 = vpop.f32.mrb[0].mxu0
    %v9787 = vadd.f32 0.0, %v9786
    %v9788 = vpop.f32.mrb[0].mxu0
    %v9789 = vpop.f32.mrb[0].mxu0
    %v9790 = vadd.f32 0.0, %v9789
    %v9791 = vpop.f32.mrb[0].mxu0
    %9792 = vmatprep.mubr.bf16.mxu0 %v9573
    %9793 = vmatmul.mubr.bf16.gmra.mrb[0].mxu0 %v9572
    %v9794 = vpop.f32.mrb[0].mxu0
    %v9795 = vadd.f32 0.0, %v9794
    %v9796 = vpop.f32.mrb[0].mxu0
    %v9797 = vpop.f32.mrb[0].mxu0
    %v9798 = vadd.f32 0.0, %v9797
    %v9799 = vpop.f32.mrb[0].mxu0
    %9800 = vmatprep.mubr.bf16.mxu0 %v9577
    %9801 = vmatmul.mubr.bf16.gmra.mrb[0].mxu0 %v9576
    %v9802 = vpop.f32.mrb[0].mxu0
    %v9803 = vadd.f32 0.0, %v9802
    %v9804 = vpop.f32.mrb[0].mxu0
    %v9805 = vpop.f32.mrb[0].mxu0
    %v9806 = vadd.f32 0.0, %v9805
    %v9807 = vpop.f32.mrb[0].mxu0
    %9808 = vmatprep.mubr.bf16.mxu0 %v9581
    %9809 = vmatmul.mubr.bf16.gmra.mrb[0].mxu0 %v9580
    %v9810 = vpop.f32.mrb[0].mxu0
    %v9811 = vadd.f32 0.0, %v9810
    %v9812 = vpop.f32.mrb[0].mxu0
    %v9813 = vpop.f32.mrb[0].mxu0
    %v9814 = vadd.f32 0.0, %v9813
    %v9815 = vpop.f32.mrb[0].mxu0
    %9816 = vmatprep.mubr.bf16.mxu0 %v9585
    %9817 = vmatmul.mubr.bf16.gmra.mrb[0].mxu0 %v9584
    %v9818 = vpop.f32.mrb[0].mxu0
    %v9819 = vadd.f32 0.0, %v9818
    %v9820 = vpop.f32.mrb[0].mxu0
    %v9821 = vpop.f32.mrb[0].mxu0
    %v9822 = vadd.f32 0.0, %v9821
    %v9823 = vpop.f32.mrb[0].mxu0
    %9824 = vmatprep.mubr.bf16.mxu0 %v9589
    %9825 = vmatmul.mubr.bf16.gmra.mrb[0].mxu0 %v9588
    %v9826 = vpop.f32.mrb[0].mxu0
    %v9827 = vadd.f32 0.0, %v9826
    %v9828 = vpop.f32.mrb[0].mxu0
    %v9829 = vpop.f32.mrb[0].mxu0
    %v9830 = vadd.f32 0.0, %v9829
    %v9831 = vpop.f32.mrb[0].mxu0
    %9832 = vmatprep.mubr.bf16.mxu0 %v9593
    %9833 = vmatmul.mubr.bf16.gmra.mrb[0].mxu0 %v9592
    %v9834 = vpop.f32.mrb[0].mxu0
    %v9835 = vadd.f32 0.0, %v9834
    %v9836 = vpop.f32.mrb[0].mxu0
    %v9837 = vpop.f32.mrb[0].mxu0
    %v9838 = vadd.f32 0.0, %v9837
    %v9839 = vpop.f32.mrb[0].mxu0
    %9840 = vmatprep.mubr.bf16.mxu0 %v9597
    %9841 = vmatmul.mubr.bf16.gmra.mrb[0].mxu0 %v9596
    %v9842 = vpop.f32.mrb[0].mxu0
    %v9843 = vadd.f32 0.0, %v9842
    %v9844 = vpop.f32.mrb[0].mxu0
    %v9845 = vpop.f32.mrb[0].mxu0
    %v9846 = vadd.f32 0.0, %v9845
    %v9847 = vpop.f32.mrb[0].mxu0
    %9848 = vmatprep.mubr.bf16.mxu0 %v9601
    %9849 = vmatmul.mubr.bf16.gmra.mrb[0].mxu0 %v9600
    %v9850 = vpop.f32.mrb[0].mxu0
    %v9851 = vadd.f32 0.0, %v9850
    %v9852 = vpop.f32.mrb[0].mxu0
    %v9853 = vpop.f32.mrb[0].mxu0
    %v9854 = vadd.f32 0.0, %v9853
    %v9855 = vpop.f32.mrb[0].mxu0
    %9856 = vmatprep.mubr.bf16.mxu0 %v9605
    %9857 = vmatmul.mubr.bf16.gmra.mrb[0].mxu0 %v9604
    %v9858 = vpop.f32.mrb[0].mxu0
    %v9859 = vadd.f32 0.0, %v9858
    %v9860 = vpop.f32.mrb[0].mxu0
    %v9861 = vpop.f32.mrb[0].mxu0
    %v9862 = vadd.f32 0.0, %v9861
    %v9863 = vpop.f32.mrb[0].mxu0
    %9864 = vmatprep.mubr.bf16.mxu0 %v9609
    %9865 = vmatmul.mubr.bf16.gmra.mrb[0].mxu0 %v9608
    %v9866 = vpop.f32.mrb[0].mxu0
    %v9867 = vadd.f32 0.0, %v9866
    %v9868 = vpop.f32.mrb[0].mxu0
    %v9869 = vpop.f32.mrb[0].mxu0
    %v9870 = vadd.f32 0.0, %v9869
    %v9871 = vpop.f32.mrb[0].mxu0
    %9872 = vmatprep.mubr.bf16.mxu0 %v9613
    %9873 = vmatmul.mubr.bf16.gmra.mrb[0].mxu0 %v9612
    %v9874 = vpop.f32.mrb[0].mxu0
    %v9875 = vadd.f32 0.0, %v9874
    %v9876 = vpop.f32.mrb[0].mxu0
    %v9877 = vpop.f32.mrb[0].mxu0
    %v9878 = vadd.f32 0.0, %v9877
    %v9879 = vpop.f32.mrb[0].mxu0
    %9880 = vmatprep.mubr.bf16.mxu0 %v9617
    %9881 = vmatmul.mubr.bf16.gmra.mrb[0].mxu0 %v9616
    %v9882 = vpop.f32.mrb[0].mxu0
    %v9883 = vadd.f32 0.0, %v9882
    %v9884 = vpop.f32.mrb[0].mxu0
    %v9885 = vpop.f32.mrb[0].mxu0
    %v9886 = vadd.f32 0.0, %v9885
    %v9887 = vpop.f32.mrb[0].mxu0
    %9888 = vmatprep.mubr.bf16.mxu0 %v9621
    %9889 = vmatmul.mubr.bf16.gmra.mrb[0].mxu0 %v9620
    %v9890 = vpop.f32.mrb[0].mxu0
    %v9891 = vadd.f32 0.0, %v9890
    %v9892 = vpop.f32.mrb[0].mxu0
    %v9893 = vpop.f32.mrb[0].mxu0
    %v9894 = vadd.f32 0.0, %v9893
    %v9895 = vpop.f32.mrb[0].mxu0
    %9896 = vmatprep.mubr.bf16.mxu0 %v9625
    %9897 = vmatmul.mubr.bf16.gmra.mrb[0].mxu0 %v9624
    %v9898 = vpop.f32.mrb[0].mxu0
    %v9899 = vadd.f32 0.0, %v9898
    %v9900 = vpop.f32.mrb[0].mxu0
    %v9901 = vpop.f32.mrb[0].mxu0
    %v9902 = vadd.f32 0.0, %v9901
    %v9903 = vpop.f32.mrb[0].mxu0
    %9904 = vmatprep.mubr.bf16.mxu0 %v9629
    %9905 = vmatmul.mubr.bf16.gmra.mrb[0].mxu0 %v9628
    %v9906 = vpop.f32.mrb[0].mxu0
    %v9907 = vadd.f32 0.0, %v9906
    %v9908 = vpop.f32.mrb[0].mxu0
    %v9909 = vpop.f32.mrb[0].mxu0
    %v9910 = vadd.f32 0.0, %v9909
    %v9911 = vpop.f32.mrb[0].mxu0
    %9912 = vmatprep.mubr.bf16.mxu0 %v9633
    %9913 = vmatmul.mubr.bf16.gmra.mrb[0].mxu0 %v9632
    %v9914 = vpop.f32.mrb[0].mxu0
    %v9915 = vadd.f32 0.0, %v9914
    %v9916 = vpop.f32.mrb[0].mxu0
    %v9917 = vpop.f32.mrb[0].mxu0
    %v9918 = vadd.f32 0.0, %v9917
    %v9919 = vpop.f32.mrb[0].mxu0
    %9920 = vmatprep.mubr.bf16.mxu0 %v9637
    %9921 = vmatmul.mubr.bf16.gmra.mrb[0].mxu0 %v9636
    %v9922 = vpop.f32.mrb[0].mxu0
    %v9923 = vadd.f32 0.0, %v9922
    %v9924 = vpop.f32.mrb[0].mxu0
    %v9925 = vpop.f32.mrb[0].mxu0
    %v9926 = vadd.f32 0.0, %v9925
    %v9927 = vpop.f32.mrb[0].mxu0
    %9928 = vdwg.mxu0
    %9929 = vmatprep.subr.bf16.mxu0 0
    %9930 = vmatpush1.bf16.msra.mxu0 %v9492
    %9931 = vmatprep.subr.bf16.mxu0 0
    %9932 = vmatpush1.bf16.msra.mxu0 %v9493
    %9933 = vmatprep.subr.bf16.mxu0 0
    %9934 = vmatpush1.bf16.msra.mxu0 %v9494
    %9935 = vmatprep.subr.bf16.mxu0 0
    %9936 = vmatpush1.bf16.msra.mxu0 %v9495
    %9937 = vmatprep.subr.bf16.mxu0 0
    %9938 = vmatpush1.bf16.msra.mxu0 %v9496
    %9939 = vmatprep.subr.bf16.mxu0 0
    %9940 = vmatpush1.bf16.msra.mxu0 %v9497
    %9941 = vmatprep.subr.bf16.mxu0 0
    %9942 = vmatpush1.bf16.msra.mxu0 %v9498
    %9943 = vmatprep.subr.bf16.mxu0 0
    %9944 = vmatpush1.bf16.msra.mxu0 %v9499
    %9945 = vmatprep.subr.bf16.mxu0 0
    %9946 = vmatpush1.bf16.msra.mxu0 %v9500
    %9947 = vmatprep.subr.bf16.mxu0 0
    %9948 = vmatpush1.bf16.msra.mxu0 %v9501
    %9949 = vmatprep.subr.bf16.mxu0 0
    %9950 = vmatpush1.bf16.msra.mxu0 %v9502
    %9951 = vmatprep.subr.bf16.mxu0 0
    %9952 = vmatpush1.bf16.msra.mxu0 %v9503
    %9953 = vmatprep.subr.bf16.mxu0 0
    %9954 = vmatpush1.bf16.msra.mxu0 %v9504
    %9955 = vmatprep.subr.bf16.mxu0 0
    %9956 = vmatpush1.bf16.msra.mxu0 %v9505
    %9957 = vmatprep.subr.bf16.mxu0 0
    %9958 = vmatpush1.bf16.msra.mxu0 %v9506
    %9959 = vmatprep.subr.bf16.mxu0 0
    %9960 = vmatpush1.bf16.msra.mxu0 %v9507
    %9961 = vmatprep.mubr.bf16.mxu0 %v9515
    %9962 = vmatmul.mubr.bf16.gmra.mrb[0].mxu0 %v9514
    %v9963 = vpop.f32.mrb[0].mxu0
    %v9964 = vadd.f32 %v9675, %v9963
    %v9965 = vpop.f32.mrb[0].mxu0
    %v9966 = vpop.f32.mrb[0].mxu0
    %v9967 = vadd.f32 %v9678, %v9966
    %v9968 = vpop.f32.mrb[0].mxu0
    %9969 = vmatprep.mubr.bf16.mxu0 %v9519
    %9970 = vmatmul.mubr.bf16.gmra.mrb[0].mxu0 %v9518
    %v9971 = vpop.f32.mrb[0].mxu0
    %v9972 = vadd.f32 %v9683, %v9971
    %v9973 = vpop.f32.mrb[0].mxu0
    %v9974 = vpop.f32.mrb[0].mxu0
    %v9975 = vadd.f32 %v9686, %v9974
    %v9976 = vpop.f32.mrb[0].mxu0
    %9977 = vmatprep.mubr.bf16.mxu0 %v9523
    %9978 = vmatmul.mubr.bf16.gmra.mrb[0].mxu0 %v9522
    %v9979 = vpop.f32.mrb[0].mxu0
    %v9980 = vadd.f32 %v9691, %v9979
    %v9981 = vpop.f32.mrb[0].mxu0
    %v9982 = vpop.f32.mrb[0].mxu0
    %v9983 = vadd.f32 %v9694, %v9982
    %v9984 = vpop.f32.mrb[0].mxu0
    %9985 = vmatprep.mubr.bf16.mxu0 %v9527
    %9986 = vmatmul.mubr.bf16.gmra.mrb[0].mxu0 %v9526
    %v9987 = vpop.f32.mrb[0].mxu0
    %v9988 = vadd.f32 %v9699, %v9987
    %v9989 = vpop.f32.mrb[0].mxu0
    %v9990 = vpop.f32.mrb[0].mxu0
    %v9991 = vadd.f32 %v9702, %v9990
    %v9992 = vpop.f32.mrb[0].mxu0
    %9993 = vmatprep.mubr.bf16.mxu0 %v9531
    %9994 = vmatmul.mubr.bf16.gmra.mrb[0].mxu0 %v9530
    %v9995 = vpop.f32.mrb[0].mxu0
    %v9996 = vadd.f32 %v9707, %v9995
    %v9997 = vpop.f32.mrb[0].mxu0
    %v9998 = vpop.f32.mrb[0].mxu0
    %v9999 = vadd.f32 %v9710, %v9998
    %v10000 = vpop.f32.mrb[0].mxu0
    %10001 = vmatprep.mubr.bf16.mxu0 %v9535
    %10002 = vmatmul.mubr.bf16.gmra.mrb[0].mxu0 %v9534
    %v10003 = vpop.f32.mrb[0].mxu0
    %v10004 = vadd.f32 %v9715, %v10003
    %v10005 = vpop.f32.mrb[0].mxu0
    %v10006 = vpop.f32.mrb[0].mxu0
    %v10007 = vadd.f32 %v9718, %v10006
    %v10008 = vpop.f32.mrb[0].mxu0
    %10009 = vmatprep.mubr.bf16.mxu0 %v9539
    %10010 = vmatmul.mubr.bf16.gmra.mrb[0].mxu0 %v9538
    %v10011 = vpop.f32.mrb[0].mxu0
    %v10012 = vadd.f32 %v9723, %v10011
    %v10013 = vpop.f32.mrb[0].mxu0
    %v10014 = vpop.f32.mrb[0].mxu0
    %v10015 = vadd.f32 %v9726, %v10014
    %v10016 = vpop.f32.mrb[0].mxu0
    %10017 = vmatprep.mubr.bf16.mxu0 %v9543
    %10018 = vmatmul.mubr.bf16.gmra.mrb[0].mxu0 %v9542
    %v10019 = vpop.f32.mrb[0].mxu0
    %v10020 = vadd.f32 %v9731, %v10019
    %v10021 = vpop.f32.mrb[0].mxu0
    %v10022 = vpop.f32.mrb[0].mxu0
    %v10023 = vadd.f32 %v9734, %v10022
    %v10024 = vpop.f32.mrb[0].mxu0
    %10025 = vmatprep.mubr.bf16.mxu0 %v9547
    %10026 = vmatmul.mubr.bf16.gmra.mrb[0].mxu0 %v9546
    %v10027 = vpop.f32.mrb[0].mxu0
    %v10028 = vadd.f32 %v9739, %v10027
    %v10029 = vpop.f32.mrb[0].mxu0
    %v10030 = vpop.f32.mrb[0].mxu0
    %v10031 = vadd.f32 %v9742, %v10030
    %v10032 = vpop.f32.mrb[0].mxu0
    %10033 = vmatprep.mubr.bf16.mxu0 %v9551
    %10034 = vmatmul.mubr.bf16.gmra.mrb[0].mxu0 %v9550
    %v10035 = vpop.f32.mrb[0].mxu0
    %v10036 = vadd.f32 %v9747, %v10035
    %v10037 = vpop.f32.mrb[0].mxu0
    %v10038 = vpop.f32.mrb[0].mxu0
    %v10039 = vadd.f32 %v9750, %v10038
    %v10040 = vpop.f32.mrb[0].mxu0
    %10041 = vmatprep.mubr.bf16.mxu0 %v9555
    %10042 = vmatmul.mubr.bf16.gmra.mrb[0].mxu0 %v9554
    %v10043 = vpop.f32.mrb[0].mxu0
    %v10044 = vadd.f32 %v9755, %v10043
    %v10045 = vpop.f32.mrb[0].mxu0
    %v10046 = vpop.f32.mrb[0].mxu0
    %v10047 = vadd.f32 %v9758, %v10046
    %v10048 = vpop.f32.mrb[0].mxu0
    %10049 = vmatprep.mubr.bf16.mxu0 %v9559
    %10050 = vmatmul.mubr.bf16.gmra.mrb[0].mxu0 %v9558
    %v10051 = vpop.f32.mrb[0].mxu0
    %v10052 = vadd.f32 %v9763, %v10051
    %v10053 = vpop.f32.mrb[0].mxu0
    %v10054 = vpop.f32.mrb[0].mxu0
    %v10055 = vadd.f32 %v9766, %v10054
    %v10056 = vpop.f32.mrb[0].mxu0
    %10057 = vmatprep.mubr.bf16.mxu0 %v9563
    %10058 = vmatmul.mubr.bf16.gmra.mrb[0].mxu0 %v9562
    %v10059 = vpop.f32.mrb[0].mxu0
    %v10060 = vadd.f32 %v9771, %v10059
    %v10061 = vpop.f32.mrb[0].mxu0
    %v10062 = vpop.f32.mrb[0].mxu0
    %v10063 = vadd.f32 %v9774, %v10062
    %v10064 = vpop.f32.mrb[0].mxu0
    %10065 = vmatprep.mubr.bf16.mxu0 %v9567
    %10066 = vmatmul.mubr.bf16.gmra.mrb[0].mxu0 %v9566
    %v10067 = vpop.f32.mrb[0].mxu0
    %v10068 = vadd.f32 %v9779, %v10067
    %v10069 = vpop.f32.mrb[0].mxu0
    %v10070 = vpop.f32.mrb[0].mxu0
    %v10071 = vadd.f32 %v9782, %v10070
    %v10072 = vpop.f32.mrb[0].mxu0
    %10073 = vmatprep.mubr.bf16.mxu0 %v9571
    %10074 = vmatmul.mubr.bf16.gmra.mrb[0].mxu0 %v9570
    %v10075 = vpop.f32.mrb[0].mxu0
    %v10076 = vadd.f32 %v9787, %v10075
    %v10077 = vpop.f32.mrb[0].mxu0
    %v10078 = vpop.f32.mrb[0].mxu0
    %v10079 = vadd.f32 %v9790, %v10078
    %v10080 = vpop.f32.mrb[0].mxu0
    %10081 = vmatprep.mubr.bf16.mxu0 %v9575
    %10082 = vmatmul.mubr.bf16.gmra.mrb[0].mxu0 %v9574
    %v10083 = vpop.f32.mrb[0].mxu0
    %v10084 = vadd.f32 %v9795, %v10083
    %v10085 = vpop.f32.mrb[0].mxu0
    %v10086 = vpop.f32.mrb[0].mxu0
    %v10087 = vadd.f32 %v9798, %v10086
    %v10088 = vpop.f32.mrb[0].mxu0
    %10089 = vmatprep.mubr.bf16.mxu0 %v9579
    %10090 = vmatmul.mubr.bf16.gmra.mrb[0].mxu0 %v9578
    %v10091 = vpop.f32.mrb[0].mxu0
    %v10092 = vadd.f32 %v9803, %v10091
    %v10093 = vpop.f32.mrb[0].mxu0
    %v10094 = vpop.f32.mrb[0].mxu0
    %v10095 = vadd.f32 %v9806, %v10094
    %v10096 = vpop.f32.mrb[0].mxu0
    %10097 = vmatprep.mubr.bf16.mxu0 %v9583
    %10098 = vmatmul.mubr.bf16.gmra.mrb[0].mxu0 %v9582
    %v10099 = vpop.f32.mrb[0].mxu0
    %v10100 = vadd.f32 %v9811, %v10099
    %v10101 = vpop.f32.mrb[0].mxu0
    %v10102 = vpop.f32.mrb[0].mxu0
    %v10103 = vadd.f32 %v9814, %v10102
    %v10104 = vpop.f32.mrb[0].mxu0
    %10105 = vmatprep.mubr.bf16.mxu0 %v9587
    %10106 = vmatmul.mubr.bf16.gmra.mrb[0].mxu0 %v9586
    %v10107 = vpop.f32.mrb[0].mxu0
    %v10108 = vadd.f32 %v9819, %v10107
    %v10109 = vpop.f32.mrb[0].mxu0
    %v10110 = vpop.f32.mrb[0].mxu0
    %v10111 = vadd.f32 %v9822, %v10110
    %v10112 = vpop.f32.mrb[0].mxu0
    %10113 = vmatprep.mubr.bf16.mxu0 %v9591
    %10114 = vmatmul.mubr.bf16.gmra.mrb[0].mxu0 %v9590
    %v10115 = vpop.f32.mrb[0].mxu0
    %v10116 = vadd.f32 %v9827, %v10115
    %v10117 = vpop.f32.mrb[0].mxu0
    %v10118 = vpop.f32.mrb[0].mxu0
    %v10119 = vadd.f32 %v9830, %v10118
    %v10120 = vpop.f32.mrb[0].mxu0
    %10121 = vmatprep.mubr.bf16.mxu0 %v9595
    %10122 = vmatmul.mubr.bf16.gmra.mrb[0].mxu0 %v9594
    %v10123 = vpop.f32.mrb[0].mxu0
    %v10124 = vadd.f32 %v9835, %v10123
    %v10125 = vpop.f32.mrb[0].mxu0
    %v10126 = vpop.f32.mrb[0].mxu0
    %v10127 = vadd.f32 %v9838, %v10126
    %v10128 = vpop.f32.mrb[0].mxu0
    %10129 = vmatprep.mubr.bf16.mxu0 %v9599
    %10130 = vmatmul.mubr.bf16.gmra.mrb[0].mxu0 %v9598
    %v10131 = vpop.f32.mrb[0].mxu0
    %v10132 = vadd.f32 %v9843, %v10131
    %v10133 = vpop.f32.mrb[0].mxu0
    %v10134 = vpop.f32.mrb[0].mxu0
    %v10135 = vadd.f32 %v9846, %v10134
    %v10136 = vpop.f32.mrb[0].mxu0
    %10137 = vmatprep.mubr.bf16.mxu0 %v9603
    %10138 = vmatmul.mubr.bf16.gmra.mrb[0].mxu0 %v9602
    %v10139 = vpop.f32.mrb[0].mxu0
    %v10140 = vadd.f32 %v9851, %v10139
    %v10141 = vpop.f32.mrb[0].mxu0
    %v10142 = vpop.f32.mrb[0].mxu0
    %v10143 = vadd.f32 %v9854, %v10142
    %v10144 = vpop.f32.mrb[0].mxu0
    %10145 = vmatprep.mubr.bf16.mxu0 %v9607
    %10146 = vmatmul.mubr.bf16.gmra.mrb[0].mxu0 %v9606
    %v10147 = vpop.f32.mrb[0].mxu0
    %v10148 = vadd.f32 %v9859, %v10147
    %v10149 = vpop.f32.mrb[0].mxu0
    %v10150 = vpop.f32.mrb[0].mxu0
    %v10151 = vadd.f32 %v9862, %v10150
    %v10152 = vpop.f32.mrb[0].mxu0
    %10153 = vmatprep.mubr.bf16.mxu0 %v9611
    %10154 = vmatmul.mubr.bf16.gmra.mrb[0].mxu0 %v9610
    %v10155 = vpop.f32.mrb[0].mxu0
    %v10156 = vadd.f32 %v9867, %v10155
    %v10157 = vpop.f32.mrb[0].mxu0
    %v10158 = vpop.f32.mrb[0].mxu0
    %v10159 = vadd.f32 %v9870, %v10158
    %v10160 = vpop.f32.mrb[0].mxu0
    %10161 = vmatprep.mubr.bf16.mxu0 %v9615
    %10162 = vmatmul.mubr.bf16.gmra.mrb[0].mxu0 %v9614
    %v10163 = vpop.f32.mrb[0].mxu0
    %v10164 = vadd.f32 %v9875, %v10163
    %v10165 = vpop.f32.mrb[0].mxu0
    %v10166 = vpop.f32.mrb[0].mxu0
    %v10167 = vadd.f32 %v9878, %v10166
    %v10168 = vpop.f32.mrb[0].mxu0
    %10169 = vmatprep.mubr.bf16.mxu0 %v9619
    %10170 = vmatmul.mubr.bf16.gmra.mrb[0].mxu0 %v9618
    %v10171 = vpop.f32.mrb[0].mxu0
    %v10172 = vadd.f32 %v9883, %v10171
    %v10173 = vpop.f32.mrb[0].mxu0
    %v10174 = vpop.f32.mrb[0].mxu0
    %v10175 = vadd.f32 %v9886, %v10174
    %v10176 = vpop.f32.mrb[0].mxu0
    %10177 = vmatprep.mubr.bf16.mxu0 %v9623
    %10178 = vmatmul.mubr.bf16.gmra.mrb[0].mxu0 %v9622
    %v10179 = vpop.f32.mrb[0].mxu0
    %v10180 = vadd.f32 %v9891, %v10179
    %v10181 = vpop.f32.mrb[0].mxu0
    %v10182 = vpop.f32.mrb[0].mxu0
    %v10183 = vadd.f32 %v9894, %v10182
    %v10184 = vpop.f32.mrb[0].mxu0
    %10185 = vmatprep.mubr.bf16.mxu0 %v9627
    %10186 = vmatmul.mubr.bf16.gmra.mrb[0].mxu0 %v9626
    %v10187 = vpop.f32.mrb[0].mxu0
    %v10188 = vadd.f32 %v9899, %v10187
    %v10189 = vpop.f32.mrb[0].mxu0
    %v10190 = vpop.f32.mrb[0].mxu0
    %v10191 = vadd.f32 %v9902, %v10190
    %v10192 = vpop.f32.mrb[0].mxu0
    %10193 = vmatprep.mubr.bf16.mxu0 %v9631
    %10194 = vmatmul.mubr.bf16.gmra.mrb[0].mxu0 %v9630
    %v10195 = vpop.f32.mrb[0].mxu0
    %v10196 = vadd.f32 %v9907, %v10195
    %v10197 = vpop.f32.mrb[0].mxu0
    %v10198 = vpop.f32.mrb[0].mxu0
    %v10199 = vadd.f32 %v9910, %v10198
    %v10200 = vpop.f32.mrb[0].mxu0
    %10201 = vmatprep.mubr.bf16.mxu0 %v9635
    %10202 = vmatmul.mubr.bf16.gmra.mrb[0].mxu0 %v9634
    %v10203 = vpop.f32.mrb[0].mxu0
    %v10204 = vadd.f32 %v9915, %v10203
    %v10205 = vpop.f32.mrb[0].mxu0
    %v10206 = vpop.f32.mrb[0].mxu0
    %v10207 = vadd.f32 %v9918, %v10206
    %v10208 = vpop.f32.mrb[0].mxu0
    %10209 = vmatprep.mubr.bf16.mxu0 %v9639
    %10210 = vmatmul.mubr.bf16.gmra.mrb[0].mxu0 %v9638
    %v10211 = vpop.f32.mrb[0].mxu0
    %v10212 = vadd.f32 %v9923, %v10211
    %v10213 = vpop.f32.mrb[0].mxu0
    %v10214 = vpop.f32.mrb[0].mxu0
    %v10215 = vadd.f32 %v9926, %v10214
    %v10216 = vpop.f32.mrb[0].mxu0
    %10217 = vdwg.mxu0
    %v10218 = vpack.c.bf16 %v9967, %v9964
    %v10219 = vpack.c.bf16 %v9975, %v9972
    %v10220 = vpack.c.bf16 %v9983, %v9980
    %v10221 = vpack.c.bf16 %v9991, %v9988
    %v10222 = vpack.c.bf16 %v9999, %v9996
    %v10223 = vpack.c.bf16 %v10007, %v10004
    %v10224 = vpack.c.bf16 %v10015, %v10012
    %v10225 = vpack.c.bf16 %v10023, %v10020
    %v10226 = vpack.c.bf16 %v10031, %v10028
    %v10227 = vpack.c.bf16 %v10039, %v10036
    %v10228 = vpack.c.bf16 %v10047, %v10044
    %v10229 = vpack.c.bf16 %v10055, %v10052
    %v10230 = vpack.c.bf16 %v10063, %v10060
    %v10231 = vpack.c.bf16 %v10071, %v10068
    %v10232 = vpack.c.bf16 %v10079, %v10076
    %v10233 = vpack.c.bf16 %v10087, %v10084
    %v10234 = vpack.c.bf16 %v10095, %v10092
    %v10235 = vpack.c.bf16 %v10103, %v10100
    %v10236 = vpack.c.bf16 %v10111, %v10108
    %v10237 = vpack.c.bf16 %v10119, %v10116
    %v10238 = vpack.c.bf16 %v10127, %v10124
    %v10239 = vpack.c.bf16 %v10135, %v10132
    %v10240 = vpack.c.bf16 %v10143, %v10140
    %v10241 = vpack.c.bf16 %v10151, %v10148
    %v10242 = vpack.c.bf16 %v10159, %v10156
    %v10243 = vpack.c.bf16 %v10167, %v10164
    %v10244 = vpack.c.bf16 %v10175, %v10172
    %v10245 = vpack.c.bf16 %v10183, %v10180
    %v10246 = vpack.c.bf16 %v10191, %v10188
    %v10247 = vpack.c.bf16 %v10199, %v10196
    %v10248 = vpack.c.bf16 %v10207, %v10204
    %v10249 = vpack.c.bf16 %v10215, %v10212
    %v10282 = vunpack.c.l.b16 %v10218
    %v10283 = vunpack.c.h.b16 %v10218
    %v10284 = vunpack.c.l.b16 %v10219
    %v10285 = vunpack.c.h.b16 %v10219
    %v10286 = vunpack.c.l.b16 %v10220
    %v10287 = vunpack.c.h.b16 %v10220
    %v10288 = vunpack.c.l.b16 %v10221
    %v10289 = vunpack.c.h.b16 %v10221
    %v10290 = vunpack.c.l.b16 %v10222
    %v10291 = vunpack.c.h.b16 %v10222
    %v10292 = vunpack.c.l.b16 %v10223
    %v10293 = vunpack.c.h.b16 %v10223
    %v10294 = vunpack.c.l.b16 %v10224
    %v10295 = vunpack.c.h.b16 %v10224
    %v10296 = vunpack.c.l.b16 %v10225
    %v10297 = vunpack.c.h.b16 %v10225
    %v10298 = vunpack.c.l.b16 %v10226
    %v10299 = vunpack.c.h.b16 %v10226
    %v10300 = vunpack.c.l.b16 %v10227
    %v10301 = vunpack.c.h.b16 %v10227
    %v10302 = vunpack.c.l.b16 %v10228
    %v10303 = vunpack.c.h.b16 %v10228
    %v10304 = vunpack.c.l.b16 %v10229
    %v10305 = vunpack.c.h.b16 %v10229
    %v10306 = vunpack.c.l.b16 %v10230
    %v10307 = vunpack.c.h.b16 %v10230
    %v10308 = vunpack.c.l.b16 %v10231
    %v10309 = vunpack.c.h.b16 %v10231
    %v10310 = vunpack.c.l.b16 %v10232
    %v10311 = vunpack.c.h.b16 %v10232
    %v10312 = vunpack.c.l.b16 %v10233
    %v10313 = vunpack.c.h.b16 %v10233
    %v10314 = vunpack.c.l.b16 %v10234
    %v10315 = vunpack.c.h.b16 %v10234
    %v10316 = vunpack.c.l.b16 %v10235
    %v10317 = vunpack.c.h.b16 %v10235
    %v10318 = vunpack.c.l.b16 %v10236
    %v10319 = vunpack.c.h.b16 %v10236
    %v10320 = vunpack.c.l.b16 %v10237
    %v10321 = vunpack.c.h.b16 %v10237
    %v10322 = vunpack.c.l.b16 %v10238
    %v10323 = vunpack.c.h.b16 %v10238
    %v10324 = vunpack.c.l.b16 %v10239
    %v10325 = vunpack.c.h.b16 %v10239
    %v10326 = vunpack.c.l.b16 %v10240
    %v10327 = vunpack.c.h.b16 %v10240
    %v10328 = vunpack.c.l.b16 %v10241
    %v10329 = vunpack.c.h.b16 %v10241
    %v10330 = vunpack.c.l.b16 %v10242
    %v10331 = vunpack.c.h.b16 %v10242
    %v10332 = vunpack.c.l.b16 %v10243
    %v10333 = vunpack.c.h.b16 %v10243
    %v10334 = vunpack.c.l.b16 %v10244
    %v10335 = vunpack.c.h.b16 %v10244
    %v10336 = vunpack.c.l.b16 %v10245
    %v10337 = vunpack.c.h.b16 %v10245
    %v10338 = vunpack.c.l.b16 %v10246
    %v10339 = vunpack.c.h.b16 %v10246
    %v10340 = vunpack.c.l.b16 %v10247
    %v10341 = vunpack.c.h.b16 %v10247
    %v10342 = vunpack.c.l.b16 %v10248
    %v10343 = vunpack.c.h.b16 %v10248
    %v10344 = vunpack.c.l.b16 %v10249
    %v10345 = vunpack.c.h.b16 %v10249
    %v10346 = vpack.c.b16 %v10282, %v10282
    %v10347 = vpack.c.b16 %v10283, %v10283
    %v10348 = vpack.c.b16 %v10284, %v10284
    %v10349 = vpack.c.b16 %v10285, %v10285
    %v10350 = vpack.c.b16 %v10286, %v10286
    %v10351 = vpack.c.b16 %v10287, %v10287
    %v10352 = vpack.c.b16 %v10288, %v10288
    %v10353 = vpack.c.b16 %v10289, %v10289
    %v10354 = vpack.c.b16 %v10290, %v10290
    %v10355 = vpack.c.b16 %v10291, %v10291
    %v10356 = vpack.c.b16 %v10292, %v10292
    %v10357 = vpack.c.b16 %v10293, %v10293
    %v10358 = vpack.c.b16 %v10294, %v10294
    %v10359 = vpack.c.b16 %v10295, %v10295
    %v10360 = vpack.c.b16 %v10296, %v10296
    %v10361 = vpack.c.b16 %v10297, %v10297
    %v10362 = vpack.c.b16 %v10298, %v10298
    %v10363 = vpack.c.b16 %v10299, %v10299
    %v10364 = vpack.c.b16 %v10300, %v10300
    %v10365 = vpack.c.b16 %v10301, %v10301
    %v10366 = vpack.c.b16 %v10302, %v10302
    %v10367 = vpack.c.b16 %v10303, %v10303
    %v10368 = vpack.c.b16 %v10304, %v10304
    %v10369 = vpack.c.b16 %v10305, %v10305
    %v10370 = vpack.c.b16 %v10306, %v10306
    %v10371 = vpack.c.b16 %v10307, %v10307
    %v10372 = vpack.c.b16 %v10308, %v10308
    %v10373 = vpack.c.b16 %v10309, %v10309
    %v10374 = vpack.c.b16 %v10310, %v10310
    %v10375 = vpack.c.b16 %v10311, %v10311
    %v10376 = vpack.c.b16 %v10312, %v10312
    %v10377 = vpack.c.b16 %v10313, %v10313
    %v10378 = vpack.c.b16 %v10314, %v10314
    %v10379 = vpack.c.b16 %v10315, %v10315
    %v10380 = vpack.c.b16 %v10316, %v10316
    %v10381 = vpack.c.b16 %v10317, %v10317
    %v10382 = vpack.c.b16 %v10318, %v10318
    %v10383 = vpack.c.b16 %v10319, %v10319
    %v10384 = vpack.c.b16 %v10320, %v10320
    %v10385 = vpack.c.b16 %v10321, %v10321
    %v10386 = vpack.c.b16 %v10322, %v10322
    %v10387 = vpack.c.b16 %v10323, %v10323
    %v10388 = vpack.c.b16 %v10324, %v10324
    %v10389 = vpack.c.b16 %v10325, %v10325
    %v10390 = vpack.c.b16 %v10326, %v10326
    %v10391 = vpack.c.b16 %v10327, %v10327
    %v10392 = vpack.c.b16 %v10328, %v10328
    %v10393 = vpack.c.b16 %v10329, %v10329
    %v10394 = vpack.c.b16 %v10330, %v10330
    %v10395 = vpack.c.b16 %v10331, %v10331
    %v10396 = vpack.c.b16 %v10332, %v10332
    %v10397 = vpack.c.b16 %v10333, %v10333
    %v10398 = vpack.c.b16 %v10334, %v10334
    %v10399 = vpack.c.b16 %v10335, %v10335
    %v10400 = vpack.c.b16 %v10336, %v10336
    %v10401 = vpack.c.b16 %v10337, %v10337
    %v10402 = vpack.c.b16 %v10338, %v10338
    %v10403 = vpack.c.b16 %v10339, %v10339
    %v10404 = vpack.c.b16 %v10340, %v10340
    %v10405 = vpack.c.b16 %v10341, %v10341
    %v10406 = vpack.c.b16 %v10342, %v10342
    %v10407 = vpack.c.b16 %v10343, %v10343
    %v10408 = vpack.c.b16 %v10344, %v10344
    %v10409 = vpack.c.b16 %v10345, %v10345
    %10474 = vst [vmem:[%s4] sm:$0xf] %v10346
    %10475 = vst [vmem:[%s4 + $0x4] sm:$0xf] %v10347
    %10476 = vst [vmem:[%s4 + $0x8] sm:$0xf] %v10348
    %10477 = vst [vmem:[%s4 + $0xc] sm:$0xf] %v10349
    %10478 = vst [vmem:[%s4 + $0x10] sm:$0xf] %v10350
    %10479 = vst [vmem:[%s4 + $0x14] sm:$0xf] %v10351
    %10480 = vst [vmem:[%s4 + $0x18] sm:$0xf] %v10352
    %10481 = vst [vmem:[%s4 + $0x1c] sm:$0xf] %v10353
    %10482 = vst [vmem:[%s4 + $0x20] sm:$0xf] %v10354
    %10483 = vst [vmem:[%s4 + $0x24] sm:$0xf] %v10355
    %10484 = vst [vmem:[%s4 + $0x28] sm:$0xf] %v10356
    %10485 = vst [vmem:[%s4 + $0x2c] sm:$0xf] %v10357
    %10486 = vst [vmem:[%s4 + $0x30] sm:$0xf] %v10358
    %10487 = vst [vmem:[%s4 + $0x34] sm:$0xf] %v10359
    %10488 = vst [vmem:[%s4 + $0x38] sm:$0xf] %v10360
    %10489 = vst [vmem:[%s4 + $0x3c] sm:$0xf] %v10361
    %10490 = vst [vmem:[%s4 + $0x40] sm:$0xf] %v10362
    %10491 = vst [vmem:[%s4 + $0x44] sm:$0xf] %v10363
    %10492 = vst [vmem:[%s4 + $0x48] sm:$0xf] %v10364
    %10493 = vst [vmem:[%s4 + $0x4c] sm:$0xf] %v10365
    %10494 = vst [vmem:[%s4 + $0x50] sm:$0xf] %v10366
    %10495 = vst [vmem:[%s4 + $0x54] sm:$0xf] %v10367
    %10496 = vst [vmem:[%s4 + $0x58] sm:$0xf] %v10368
    %10497 = vst [vmem:[%s4 + $0x5c] sm:$0xf] %v10369
    %10498 = vst [vmem:[%s4 + $0x60] sm:$0xf] %v10370
    %10499 = vst [vmem:[%s4 + $0x64] sm:$0xf] %v10371
    %10500 = vst [vmem:[%s4 + $0x68] sm:$0xf] %v10372
    %10501 = vst [vmem:[%s4 + $0x6c] sm:$0xf] %v10373
    %10502 = vst [vmem:[%s4 + $0x70] sm:$0xf] %v10374
    %10503 = vst [vmem:[%s4 + $0x74] sm:$0xf] %v10375
    %10504 = vst [vmem:[%s4 + $0x78] sm:$0xf] %v10376
    %10505 = vst [vmem:[%s4 + $0x7c] sm:$0xf] %v10377
    %10506 = vst [vmem:[%s4 + $0x80] sm:$0xf] %v10378
    %10507 = vst [vmem:[%s4 + $0x84] sm:$0xf] %v10379
    %10508 = vst [vmem:[%s4 + $0x88] sm:$0xf] %v10380
    %10509 = vst [vmem:[%s4 + $0x8c] sm:$0xf] %v10381
    %10510 = vst [vmem:[%s4 + $0x90] sm:$0xf] %v10382
    %10511 = vst [vmem:[%s4 + $0x94] sm:$0xf] %v10383
    %10512 = vst [vmem:[%s4 + $0x98] sm:$0xf] %v10384
    %10513 = vst [vmem:[%s4 + $0x9c] sm:$0xf] %v10385
    %10514 = vst [vmem:[%s4 + $0xa0] sm:$0xf] %v10386
    %10515 = vst [vmem:[%s4 + $0xa4] sm:$0xf] %v10387
    %10516 = vst [vmem:[%s4 + $0xa8] sm:$0xf] %v10388
    %10517 = vst [vmem:[%s4 + $0xac] sm:$0xf] %v10389
    %10518 = vst [vmem:[%s4 + $0xb0] sm:$0xf] %v10390
    %10519 = vst [vmem:[%s4 + $0xb4] sm:$0xf] %v10391
    %10520 = vst [vmem:[%s4 + $0xb8] sm:$0xf] %v10392
    %10521 = vst [vmem:[%s4 + $0xbc] sm:$0xf] %v10393
    %10522 = vst [vmem:[%s4 + $0xc0] sm:$0xf] %v10394
    %10523 = vst [vmem:[%s4 + $0xc4] sm:$0xf] %v10395
    %10524 = vst [vmem:[%s4 + $0xc8] sm:$0xf] %v10396
    %10525 = vst [vmem:[%s4 + $0xcc] sm:$0xf] %v10397
    %10526 = vst [vmem:[%s4 + $0xd0] sm:$0xf] %v10398
    %10527 = vst [vmem:[%s4 + $0xd4] sm:$0xf] %v10399
    %10528 = vst [vmem:[%s4 + $0xd8] sm:$0xf] %v10400
    %10529 = vst [vmem:[%s4 + $0xdc] sm:$0xf] %v10401
    %10530 = vst [vmem:[%s4 + $0xe0] sm:$0xf] %v10402
    %10531 = vst [vmem:[%s4 + $0xe4] sm:$0xf] %v10403
    %10532 = vst [vmem:[%s4 + $0xe8] sm:$0xf] %v10404
    %10533 = vst [vmem:[%s4 + $0xec] sm:$0xf] %v10405
    %10534 = vst [vmem:[%s4 + $0xf0] sm:$0xf] %v10406
    %10535 = vst [vmem:[%s4 + $0xf4] sm:$0xf] %v10407
    %10536 = vst [vmem:[%s4 + $0xf8] sm:$0xf] %v10408
    %10537 = vst [vmem:[%s4 + $0xfc] sm:$0xf] %v10409
    // Predicated region
    $region14: #{forward.1} parent=1 // pred_check
      _
    $region15: #{forward.1} parent=1 // pred_check_branch
      %10539 = sbr.rel (0) target = $region17
    $region16: #{forward.1} parent=1 // pred_region
      _
    $region17: #{forward.1} parent=1 // pred_fallthru
      _
    // Predicated region
    $region18: #{forward.1} parent=1 // pred_check
      _
    $region19: #{forward.1} parent=1 // pred_check_branch
      %10541 = sbr.rel (0) target = $region21
    $region20: #{forward.1} parent=1 // pred_region
      _
    $region21: #{forward.1} parent=1 // pred_fallthru
      _
  %10542 = vsyncmov [#allocation3]
  %s10543 = vpop.sfrf %10542
  %p10544 = scmp.eq.s32.totalorder %s10543, 0
  %p10545 = pneg %p10544
  %10547 = shalt.err (%p10545)

</llo_original>
